<compile_context>
chip_gen: v6e
topology: v6e:2x2x1
jax: 0.10.0
libtpu: 0.0.40
codegen_flags: <defaults>
</compile_context>

<pallas_src>
import jax
import jax.numpy as jnp
from jax import lax
from jax.experimental import pallas as pl
from jax.experimental.pallas import tpu as pltpu


# ----------------------------------------------------------------------------
# Pallas kernels
# ----------------------------------------------------------------------------
def _conv1_pool_relu_kernel(p_ref, w_ref, b_ref, o_ref):
    """conv1 (one matmul per pool phase) -> 2x2 max-pool -> +bias -> ReLU.

    p_ref : (4, TILE_B*144, 25) f32   stacked im2col patches, rows (b, ph, pw)
    w_ref : (25, 10)            f32   flattened conv1 weights, cols (ki, kj)
    b_ref : (1, 10)             f32
    o_ref : (TILE_B*144, 10)    f32   pooled + ReLU'ed feature map
    """
    w = w_ref[...]
    y = None
    for ph in range(4):
        yp = jnp.dot(p_ref[ph], w, preferred_element_type=jnp.float32)
        y = yp if y is None else jnp.maximum(y, yp)
    # bias is constant across the 2x2 pool window, so add after the max.
    o_ref[...] = jnp.maximum(y + b_ref[...], 0.0)


def _conv2_pool_mlp_kernel(p2_ref, w2_ref, b2_ref, w1f_ref, b1f_ref,
                           w2f_ref, b2f_ref, o_ref):
    """Fused stage 2: conv2 -> maxpool -> +bias -> ReLU -> NCHW flatten
    contraction (fc1) -> ReLU -> fc2 -> tanh.  Everything stays in vregs.

    p2_ref : (4, 16*TILE_B, 250) f32   rows ordered (s, b) within the tile
    w2_ref : (250, 20)  f32           conv2 weights, cols (ci, ki, kj)
    b2_ref : (1, 20)    f32
    w1f_ref: (16, 20, 50) f32          fc1 weights permuted to (s, c, j)
    b1f_ref: (1, 50)    f32
    w2f_ref: (50, num_output) f32
    b2f_ref: (1, num_output)  f32
    o_ref  : (TILE_B, num_output) f32
    """
    tb = o_ref.shape[0]                 # batch tile (multiple of 8)
    ns = w1f_ref.shape[0]               # 16 pooled spatial positions
    w2 = w2_ref[...]

    # conv2: one matmul per pool phase over all (s, b) rows of the tile.
    y = None
    for ph in range(4):
        yp = jnp.dot(p2_ref[ph], w2, preferred_element_type=jnp.float32)
        y = yp if y is None else jnp.maximum(y, yp)
    y = jnp.maximum(y + b2_ref[...], 0.0)          # (16*tb, 20), rows (s, b)

    # fc1 == flatten-contraction over (s, c): 16 aligned (tb,20)x(20,50) dots
    # accumulated in vregs (no VMEM scratch, no masked narrow stores).
    h = jnp.zeros((tb, w1f_ref.shape[-1]), jnp.float32) + b1f_ref[...]
    for s in range(ns):
        h = h + jnp.dot(y[s * tb:(s + 1) * tb, :], w1f_ref[s],
                        preferred_element_type=jnp.float32)
    h = jnp.maximum(h, 0.0)

    z = jnp.dot(h, w2f_ref[...], preferred_element_type=jnp.float32) + b2f_ref[...]
    o_ref[...] = jnp.tanh(z)


# ----------------------------------------------------------------------------
# pallas_call wrappers
# ----------------------------------------------------------------------------
_VMEM_LIMIT = 32 * 1024 * 1024   # ample headroom; safe on v5e/v6e/v7x


def _nbytes(*arrays):
    return int(sum(a.size * a.dtype.itemsize for a in arrays))


def conv1_pool_relu_call(p1, w, b, *, tile_b, rows_per_ex):
    _, rows, k = p1.shape
    c = w.shape[1]
    b_pad = rows // rows_per_ex
    blk_rows = tile_b * rows_per_ex
    grid = (b_pad // tile_b,)
    cost = pl.CostEstimate(flops=2 * 4 * rows * k * c, transcendentals=0,
                           bytes_accessed=_nbytes(p1, w, b) + rows * c * 4)
    return pl.pallas_call(
        _conv1_pool_relu_kernel,
        out_shape=jax.ShapeDtypeStruct((rows, c), jnp.float32),
        grid=grid,
        in_specs=[
            pl.BlockSpec((4, blk_rows, k), lambda i: (0, i, 0)),
            pl.BlockSpec((k, c), lambda i: (0, 0)),
            pl.BlockSpec((1, c), lambda i: (0, 0)),
        ],
        out_specs=pl.BlockSpec((blk_rows, c), lambda i: (i, 0)),
        compiler_params=pltpu.CompilerParams(
            dimension_semantics=("parallel",),
            vmem_limit_bytes=_VMEM_LIMIT),
        cost_estimate=cost,
    )(p1, w, b)


def conv2_pool_mlp_call(p2, w2, b2, w1f, b1f, w2f, b2f, *, tile_b):
    _, rows, k2 = p2.shape
    ns = w1f.shape[0]                    # 16
    c2 = w2.shape[1]                     # 20
    nf1 = w1f.shape[-1]                  # 50
    n_out = w2f.shape[1]
    b_pad = rows // ns
    grid = (b_pad // tile_b,)
    flops = (2 * 4 * rows * k2 * c2
             + 2 * b_pad * ns * c2 * nf1
             + 2 * b_pad * nf1 * n_out)
    cost = pl.CostEstimate(
        flops=flops, transcendentals=b_pad * n_out,
        bytes_accessed=_nbytes(p2, w2, b2, w1f, b1f, w2f, b2f) + b_pad * n_out * 4)
    return pl.pallas_call(
        _conv2_pool_mlp_kernel,
        out_shape=jax.ShapeDtypeStruct((b_pad, n_out), jnp.float32),
        grid=grid,
        in_specs=[
            pl.BlockSpec((4, ns * tile_b, k2), lambda i: (0, i, 0)),
            pl.BlockSpec((k2, c2), lambda i: (0, 0)),
            pl.BlockSpec((1, c2), lambda i: (0, 0)),
            pl.BlockSpec((ns, c2, nf1), lambda i: (0, 0, 0)),
            pl.BlockSpec((1, nf1), lambda i: (0, 0)),
            pl.BlockSpec((nf1, n_out), lambda i: (0, 0)),
            pl.BlockSpec((1, n_out), lambda i: (0, 0)),
        ],
        out_specs=pl.BlockSpec((tile_b, n_out), lambda i: (i, 0)),
        compiler_params=pltpu.CompilerParams(
            dimension_semantics=("parallel",),
            vmem_limit_bytes=_VMEM_LIMIT),
        cost_estimate=cost,
    )(p2, w2, b2, w1f, b1f, w2f, b2f)


# ----------------------------------------------------------------------------
# Host glue: im2col via one conv_general_dilated_patches per stage.
# ----------------------------------------------------------------------------
def _round_up(x, m):
    return ((x + m - 1) // m) * m


def _patches(nhwc, k=5):
    # feature order of the output channels: (c, ki, kj), c slowest.
    return lax.conv_general_dilated_patches(
        nhwc, (k, k), (1, 1), "VALID",
        dimension_numbers=("NHWC", "HWIO", "NHWC"),
        precision=lax.Precision.HIGHEST)


# ----------------------------------------------------------------------------
# BoundedGridLocNet forward
# ----------------------------------------------------------------------------
def bounded_grid_loc_net_forward(x_nchw, params):
    B = x_nchw.shape[0]
    tile_b = min(32, _round_up(B, 8))
    b_pad = _round_up(B, tile_b)
    n_tiles = b_pad // tile_b

    x = jnp.pad(x_nchw, ((0, b_pad - B), (0, 0), (0, 0), (0, 0)))
    img = jnp.transpose(x, (0, 2, 3, 1))                       # (B_pad,28,28,1)

    # ---- stage 1: conv1(1->10, k5) -> maxpool2 -> relu ----
    pat1 = _patches(img)                                       # (B_pad,24,24,25)
    p1 = jnp.stack(
        [pat1[:, di::2, dj::2, :].reshape(b_pad * 144, 25)
         for di in (0, 1) for dj in (0, 1)], axis=0)           # (4,B_pad*144,25)
    w1m = params["w_conv1"].reshape(10, 25).T                  # (25,10)
    b1m = params["b_conv1"].reshape(1, 10)
    feat1 = conv1_pool_relu_call(p1, w1m, b1m, tile_b=tile_b,
                                 rows_per_ex=144)              # (B_pad*144, 10)

    # ---- stage 2 + head: conv2 -> pool -> relu -> flatten -> fc1 -> relu
    #      -> fc2 -> tanh, fused in one gridded kernel ----
    f1 = feat1.reshape(b_pad, 12, 12, 10)
    pat2 = _patches(f1)                                        # (B_pad,8,8,250)
    phases2 = []
    for di in (0, 1):
        for dj in (0, 1):
            q = pat2[:, di::2, dj::2, :]                       # (B_pad,4,4,250)
            q = q.reshape(n_tiles, tile_b, 16, 250)
            q = jnp.transpose(q, (0, 2, 1, 3))                 # tile-major,(s,b)
            phases2.append(q.reshape(b_pad * 16, 250))
    p2 = jnp.stack(phases2, axis=0)                            # (4,B_pad*16,250)

    w2m = params["w_conv2"].reshape(20, 250).T                 # cols (c,ki,kj)
    b2m = params["b_conv2"].reshape(1, 20)
    # fc1 weights permuted from torch flatten order (c*16 + s) to (s, c, j).
    w1f = params["w_fc1"].reshape(50, 20, 16).transpose(2, 1, 0)   # (16,20,50)
    b1f = params["b_fc1"].reshape(1, 50)
    w2f = params["w_fc2"].T                                    # (50, num_output)
    b2f = params["b_fc2"].reshape(1, -1)

    out = conv2_pool_mlp_call(p2, w2m, b2m, w1f, b1f, w2f, b2f,
                              tile_b=tile_b)                   # (B_pad, n_out)
    return out[:B].reshape(B, -1, 2)


# ----------------------------------------------------------------------------
# Pure-JAX f32 reference (for numerical validation)
# ----------------------------------------------------------------------------
def reference_forward(x, params):
    hp = lax.Precision.HIGHEST
    y = lax.conv_general_dilated(x, params["w_conv1"], (1, 1), "VALID",
                                 dimension_numbers=("NCHW", "OIHW", "NCHW"),
                                 precision=hp)
    y = y + params["b_conv1"][None, :, None, None]
    y = lax.reduce_window(y, -jnp.inf, lax.max, (1, 1, 2, 2), (1, 1, 2, 2), "VALID")
    y = jnp.maximum(y, 0.0)
    y = lax.conv_general_dilated(y, params["w_conv2"], (1, 1), "VALID",
                                 dimension_numbers=("NCHW", "OIHW", "NCHW"),
                                 precision=hp)
    y = y + params["b_conv2"][None, :, None, None]
    y = lax.reduce_window(y, -jnp.inf, lax.max, (1, 1, 2, 2), (1, 1, 2, 2), "VALID")
    y = jnp.maximum(y, 0.0)
    y = y.reshape(y.shape[0], -1)                              # NCHW flatten -> 320
    y = jnp.maximum(jnp.dot(y, params["w_fc1"].T, precision=hp) + params["b_fc1"], 0.0)
    y = jnp.dot(y, params["w_fc2"].T, precision=hp) + params["b_fc2"]
    return jnp.tanh(y).reshape(x.shape[0], -1, 2)


# ----------------------------------------------------------------------------
# Deterministic parameter construction (mirrors the PyTorch module init)
# ----------------------------------------------------------------------------
def make_params(grid_height=4, grid_width=4):
    num_output = grid_height * grid_width * 2
    key = jax.random.PRNGKey(42)
    k1, k2, k3, k4, k5, k6 = jax.random.split(key, 6)
    params = {
        "w_conv1": jax.random.normal(k1, (10, 1, 5, 5), jnp.float32) * 0.1,
        "b_conv1": jax.random.normal(k2, (10,), jnp.float32) * 0.1,
        "w_conv2": jax.random.normal(k3, (20, 10, 5, 5), jnp.float32) * 0.05,
        "b_conv2": jax.random.normal(k4, (20,), jnp.float32) * 0.1,
        "w_fc1": jax.random.normal(k5, (50, 320), jnp.float32) * 0.05,
        "b_fc1": jax.random.normal(k6, (50,), jnp.float32) * 0.1,
    }
    # target control points: regular grid in (-0.9, 0.9), shape (gh*gw, 2)
    ys = jnp.linspace(-0.9, 0.9, grid_height)
    xs = jnp.linspace(-0.9, 0.9, grid_width)
    gy, gx = jnp.meshgrid(ys, xs, indexing="ij")
    tcp = jnp.stack([gy.reshape(-1), gx.reshape(-1)], axis=1)
    # fc2: weight zeroed, bias = arctanh(target_control_points).view(-1)
    params["w_fc2"] = jnp.zeros((num_output, 50), jnp.float32)
    params["b_fc2"] = jnp.arctanh(tcp).reshape(-1).astype(jnp.float32)
    return params


if __name__ == "__main__":
    # MNIST-style input: the CNN architecture fixes spatial size 28x28, 1 channel.
    B = 2
    x = jax.random.normal(jax.random.PRNGKey(0), (B, 1, 28, 28), jnp.float32)
    params = make_params(grid_height=4, grid_width=4)

    fwd = jax.jit(bounded_grid_loc_net_forward)
    points = fwd(x, params)
    jax.block_until_ready(points)

    assert points.shape == (B, 16, 2), points.shape
    assert bool(jnp.all(jnp.isfinite(points)))
    # With fc2 weights zeroed (as in the PyTorch module), the output must be
    # tanh(arctanh(target_control_points)) == target_control_points exactly.
    expected = jnp.tanh(params["b_fc2"]).reshape(-1, 2)
    assert bool(jnp.max(jnp.abs(points - expected[None])) < 1e-3)

    # Full numeric validation of conv1/conv2/flatten-permutation/fc1 against a
    # pure-JAX f32 reference, using random nonzero fc2 weights.
    params_rand = dict(params)
    params_rand["w_fc2"] = (
        jax.random.normal(jax.random.PRNGKey(7), params["w_fc2"].shape, jnp.float32) * 0.05)
    pts2 = fwd(x, params_rand)
    ref2 = reference_forward(x, params_rand)
    jax.block_until_ready((pts2, ref2))
    err = float(jnp.max(jnp.abs(pts2 - ref2)))
    assert err < 2e-2, f"max abs error vs reference: {err}"
    print("KERNEL_OK")
</pallas_src>

<mosaic_0001>
module attributes {stable_mosaic.version = 11 : i64} {
  func.func @_conv1_pool_relu_kernel(%arg0: i32, %arg1: memref<4x1152x25xf32, #tpu.memory_space<vmem>>, %arg2: memref<25x10xf32, #tpu.memory_space<vmem>>, %arg3: memref<1x10xf32, #tpu.memory_space<vmem>>, %arg4: memref<1152x10xf32, #tpu.memory_space<vmem>>) attributes {dimension_semantics = [#tpu.dimension_semantics<parallel>], iteration_bounds = array<i64: 1>, scalar_prefetch = 0 : i64, scratch_operands = 0 : i64, tpu.core_type = #tpu.core_type<tc>, window_params = [{transform_indices = @transform_0, window_bounds = array<i64: 4, 1152, 25>}, {pipeline_mode = #tpu.pipeline_mode<synchronous>, transform_indices = @transform_1, window_bounds = array<i64: 25, 10>}, {pipeline_mode = #tpu.pipeline_mode<synchronous>, transform_indices = @transform_2, window_bounds = array<i64: 1, 10>}, {transform_indices = @transform_3, window_bounds = array<i64: 1152, 10>}]} {
    %c0 = arith.constant 0 : index
    %c0_0 = arith.constant 0 : index
    %0 = vector.load %arg2[%c0, %c0_0] : memref<25x10xf32, #tpu.memory_space<vmem>>, vector<25x10xf32>
    %c0_1 = arith.constant 0 : index
    %c0_2 = arith.constant 0 : index
    %c0_3 = arith.constant 0 : index
    %1 = vector.load %arg1[%c0_1, %c0_2, %c0_3] : memref<4x1152x25xf32, #tpu.memory_space<vmem>>, vector<1x1152x25xf32>
    %2 = vector.shape_cast %1 : vector<1x1152x25xf32> to vector<1152x25xf32>
    %cst = arith.constant dense<0.000000e+00> : vector<1152x10xf32>
    %3 = tpu.matmul %2, %0, %cst {dimension_numbers = #tpu.dot_dimension_numbers<[1], [0], [0], [1], [0, 0, 1, 1], [], []>} : vector<1152x25xf32>, vector<25x10xf32>, vector<1152x10xf32> -> vector<1152x10xf32>
    %c1 = arith.constant 1 : index
    %c0_4 = arith.constant 0 : index
    %c0_5 = arith.constant 0 : index
    %4 = vector.load %arg1[%c1, %c0_4, %c0_5] : memref<4x1152x25xf32, #tpu.memory_space<vmem>>, vector<1x1152x25xf32>
    %5 = vector.shape_cast %4 : vector<1x1152x25xf32> to vector<1152x25xf32>
    %cst_6 = arith.constant dense<0.000000e+00> : vector<1152x10xf32>
    %6 = tpu.matmul %5, %0, %cst_6 {dimension_numbers = #tpu.dot_dimension_numbers<[1], [0], [0], [1], [0, 0, 1, 1], [], []>} : vector<1152x25xf32>, vector<25x10xf32>, vector<1152x10xf32> -> vector<1152x10xf32>
    %7 = arith.maximumf %3, %6 : vector<1152x10xf32>
    %c2 = arith.constant 2 : index
    %c0_7 = arith.constant 0 : index
    %c0_8 = arith.constant 0 : index
    %8 = vector.load %arg1[%c2, %c0_7, %c0_8] : memref<4x1152x25xf32, #tpu.memory_space<vmem>>, vector<1x1152x25xf32>
    %9 = vector.shape_cast %8 : vector<1x1152x25xf32> to vector<1152x25xf32>
    %cst_9 = arith.constant dense<0.000000e+00> : vector<1152x10xf32>
    %10 = tpu.matmul %9, %0, %cst_9 {dimension_numbers = #tpu.dot_dimension_numbers<[1], [0], [0], [1], [0, 0, 1, 1], [], []>} : vector<1152x25xf32>, vector<25x10xf32>, vector<1152x10xf32> -> vector<1152x10xf32>
    %11 = arith.maximumf %7, %10 : vector<1152x10xf32>
    %c3 = arith.constant 3 : index
    %c0_10 = arith.constant 0 : index
    %c0_11 = arith.constant 0 : index
    %12 = vector.load %arg1[%c3, %c0_10, %c0_11] : memref<4x1152x25xf32, #tpu.memory_space<vmem>>, vector<1x1152x25xf32>
    %13 = vector.shape_cast %12 : vector<1x1152x25xf32> to vector<1152x25xf32>
    %cst_12 = arith.constant dense<0.000000e+00> : vector<1152x10xf32>
    %14 = tpu.matmul %13, %0, %cst_12 {dimension_numbers = #tpu.dot_dimension_numbers<[1], [0], [0], [1], [0, 0, 1, 1], [], []>} : vector<1152x25xf32>, vector<25x10xf32>, vector<1152x10xf32> -> vector<1152x10xf32>
    %15 = arith.maximumf %11, %14 : vector<1152x10xf32>
    %c0_13 = arith.constant 0 : index
    %c0_14 = arith.constant 0 : index
    %16 = vector.load %arg3[%c0_13, %c0_14] : memref<1x10xf32, #tpu.memory_space<vmem>>, vector<1x10xf32>
    %17 = vector.broadcast %16 : vector<1x10xf32> to vector<1152x10xf32>
    %18 = arith.addf %15, %17 : vector<1152x10xf32>
    %cst_15 = arith.constant 0.000000e+00 : f32
    %19 = vector.broadcast %cst_15 : f32 to vector<1152x10xf32>
    %20 = arith.maximumf %18, %19 : vector<1152x10xf32>
    %c0_16 = arith.constant 0 : index
    %c0_17 = arith.constant 0 : index
    %21 = vector.load %arg4[%c0_16, %c0_17] : memref<1152x10xf32, #tpu.memory_space<vmem>>, vector<1152x10xf32>
    tpu.vector_store %arg4[%c0_16, %c0_17], %20 {strides = array<i32>} : memref<1152x10xf32, #tpu.memory_space<vmem>>, vector<1152x10xf32>,
    return
  }
  func.func @transform_0(%arg0: i32) -> (i32, i32, i32) {
    %c0_i32 = arith.constant 0 : i32
    %c0_i32_0 = arith.constant 0 : i32
    %c0_i32_1 = arith.constant 0 : i32
    return %c0_i32, %arg0, %c0_i32_0 : i32, i32, i32
  }
  func.func @transform_1(%arg0: i32) -> (i32, i32) {
    %c0_i32 = arith.constant 0 : i32
    %c0_i32_0 = arith.constant 0 : i32
    %c0_i32_1 = arith.constant 0 : i32
    return %c0_i32, %c0_i32_0 : i32, i32
  }
  func.func @transform_2(%arg0: i32) -> (i32, i32) {
    %c0_i32 = arith.constant 0 : i32
    %c0_i32_0 = arith.constant 0 : i32
    %c0_i32_1 = arith.constant 0 : i32
    return %c0_i32, %c0_i32_0 : i32, i32
  }
  func.func @transform_3(%arg0: i32) -> (i32, i32) {
    %c0_i32 = arith.constant 0 : i32
    %c0_i32_0 = arith.constant 0 : i32
    return %arg0, %c0_i32 : i32, i32
  }
}

module attributes {stable_mosaic.version = 11 : i64} {
  func.func @_conv2_pool_mlp_kernel(%arg0: i32, %arg1: memref<4x128x250xf32, #tpu.memory_space<vmem>>, %arg2: memref<250x20xf32, #tpu.memory_space<vmem>>, %arg3: memref<1x20xf32, #tpu.memory_space<vmem>>, %arg4: memref<16x20x50xf32, #tpu.memory_space<vmem>>, %arg5: memref<1x50xf32, #tpu.memory_space<vmem>>, %arg6: memref<50x32xf32, #tpu.memory_space<vmem>>, %arg7: memref<1x32xf32, #tpu.memory_space<vmem>>, %arg8: memref<8x32xf32, #tpu.memory_space<vmem>>) attributes {dimension_semantics = [#tpu.dimension_semantics<parallel>], iteration_bounds = array<i64: 1>, scalar_prefetch = 0 : i64, scratch_operands = 0 : i64, tpu.core_type = #tpu.core_type<tc>, window_params = [{transform_indices = @transform_0, window_bounds = array<i64: 4, 128, 250>}, {pipeline_mode = #tpu.pipeline_mode<synchronous>, transform_indices = @transform_1, window_bounds = array<i64: 250, 20>}, {pipeline_mode = #tpu.pipeline_mode<synchronous>, transform_indices = @transform_2, window_bounds = array<i64: 1, 20>}, {pipeline_mode = #tpu.pipeline_mode<synchronous>, transform_indices = @transform_3, window_bounds = array<i64: 16, 20, 50>}, {pipeline_mode = #tpu.pipeline_mode<synchronous>, transform_indices = @transform_4, window_bounds = array<i64: 1, 50>}, {pipeline_mode = #tpu.pipeline_mode<synchronous>, transform_indices = @transform_5, window_bounds = array<i64: 50, 32>}, {pipeline_mode = #tpu.pipeline_mode<synchronous>, transform_indices = @transform_6, window_bounds = array<i64: 1, 32>}, {transform_indices = @transform_7, window_bounds = array<i64: 8, 32>}]} {
    %c0 = arith.constant 0 : index
    %c0_0 = arith.constant 0 : index
    %0 = vector.load %arg2[%c0, %c0_0] : memref<250x20xf32, #tpu.memory_space<vmem>>, vector<250x20xf32>
    %c0_1 = arith.constant 0 : index
    %c0_2 = arith.constant 0 : index
    %c0_3 = arith.constant 0 : index
    %1 = vector.load %arg1[%c0_1, %c0_2, %c0_3] : memref<4x128x250xf32, #tpu.memory_space<vmem>>, vector<1x128x250xf32>
    %2 = vector.shape_cast %1 : vector<1x128x250xf32> to vector<128x250xf32>
    %cst = arith.constant dense<0.000000e+00> : vector<128x20xf32>
    %3 = tpu.matmul %2, %0, %cst {dimension_numbers = #tpu.dot_dimension_numbers<[1], [0], [0], [1], [0, 0, 1, 1], [], []>} : vector<128x250xf32>, vector<250x20xf32>, vector<128x20xf32> -> vector<128x20xf32>
    %c1 = arith.constant 1 : index
    %c0_4 = arith.constant 0 : index
    %c0_5 = arith.constant 0 : index
    %4 = vector.load %arg1[%c1, %c0_4, %c0_5] : memref<4x128x250xf32, #tpu.memory_space<vmem>>, vector<1x128x250xf32>
    %5 = vector.shape_cast %4 : vector<1x128x250xf32> to vector<128x250xf32>
    %cst_6 = arith.constant dense<0.000000e+00> : vector<128x20xf32>
    %6 = tpu.matmul %5, %0, %cst_6 {dimension_numbers = #tpu.dot_dimension_numbers<[1], [0], [0], [1], [0, 0, 1, 1], [], []>} : vector<128x250xf32>, vector<250x20xf32>, vector<128x20xf32> -> vector<128x20xf32>
    %7 = arith.maximumf %3, %6 : vector<128x20xf32>
    %c2 = arith.constant 2 : index
    %c0_7 = arith.constant 0 : index
    %c0_8 = arith.constant 0 : index
    %8 = vector.load %arg1[%c2, %c0_7, %c0_8] : memref<4x128x250xf32, #tpu.memory_space<vmem>>, vector<1x128x250xf32>
    %9 = vector.shape_cast %8 : vector<1x128x250xf32> to vector<128x250xf32>
    %cst_9 = arith.constant dense<0.000000e+00> : vector<128x20xf32>
    %10 = tpu.matmul %9, %0, %cst_9 {dimension_numbers = #tpu.dot_dimension_numbers<[1], [0], [0], [1], [0, 0, 1, 1], [], []>} : vector<128x250xf32>, vector<250x20xf32>, vector<128x20xf32> -> vector<128x20xf32>
    %11 = arith.maximumf %7, %10 : vector<128x20xf32>
    %c3 = arith.constant 3 : index
    %c0_10 = arith.constant 0 : index
    %c0_11 = arith.constant 0 : index
    %12 = vector.load %arg1[%c3, %c0_10, %c0_11] : memref<4x128x250xf32, #tpu.memory_space<vmem>>, vector<1x128x250xf32>
    %13 = vector.shape_cast %12 : vector<1x128x250xf32> to vector<128x250xf32>
    %cst_12 = arith.constant dense<0.000000e+00> : vector<128x20xf32>
    %14 = tpu.matmul %13, %0, %cst_12 {dimension_numbers = #tpu.dot_dimension_numbers<[1], [0], [0], [1], [0, 0, 1, 1], [], []>} : vector<128x250xf32>, vector<250x20xf32>, vector<128x20xf32> -> vector<128x20xf32>
    %15 = arith.maximumf %11, %14 : vector<128x20xf32>
    %c0_13 = arith.constant 0 : index
    %c0_14 = arith.constant 0 : index
    %16 = vector.load %arg3[%c0_13, %c0_14] : memref<1x20xf32, #tpu.memory_space<vmem>>, vector<1x20xf32>
    %17 = vector.broadcast %16 : vector<1x20xf32> to vector<128x20xf32>
    %18 = arith.addf %15, %17 : vector<128x20xf32>
    %cst_15 = arith.constant 0.000000e+00 : f32
    %19 = vector.broadcast %cst_15 : f32 to vector<128x20xf32>
    %20 = arith.maximumf %18, %19 : vector<128x20xf32>
    %cst_16 = arith.constant 0.000000e+00 : f32
    %21 = vector.broadcast %cst_16 : f32 to vector<8x50xf32>
    %c0_17 = arith.constant 0 : index
    %c0_18 = arith.constant 0 : index
    %22 = vector.load %arg5[%c0_17, %c0_18] : memref<1x50xf32, #tpu.memory_space<vmem>>, vector<1x50xf32>
    %23 = vector.broadcast %22 : vector<1x50xf32> to vector<8x50xf32>
    %24 = arith.addf %21, %23 : vector<8x50xf32>
    %25 = vector.extract_strided_slice %20 {offsets = [0, 0], sizes = [8, 20], strides = [1, 1]} : vector<128x20xf32> to vector<8x20xf32>
    %c0_19 = arith.constant 0 : index
    %c0_20 = arith.constant 0 : index
    %c0_21 = arith.constant 0 : index
    %26 = vector.load %arg4[%c0_19, %c0_20, %c0_21] : memref<16x20x50xf32, #tpu.memory_space<vmem>>, vector<1x20x50xf32>
    %27 = vector.shape_cast %26 : vector<1x20x50xf32> to vector<20x50xf32>
    %cst_22 = arith.constant dense<0.000000e+00> : vector<8x50xf32>
    %28 = tpu.matmul %25, %27, %cst_22 {dimension_numbers = #tpu.dot_dimension_numbers<[1], [0], [0], [1], [0, 0, 1, 1], [], []>} : vector<8x20xf32>, vector<20x50xf32>, vector<8x50xf32> -> vector<8x50xf32>
    %29 = arith.addf %24, %28 : vector<8x50xf32>
    %30 = vector.extract_strided_slice %20 {offsets = [8, 0], sizes = [8, 20], strides = [1, 1]} : vector<128x20xf32> to vector<8x20xf32>
    %c1_23 = arith.constant 1 : index
    %c0_24 = arith.constant 0 : index
    %c0_25 = arith.constant 0 : index
    %31 = vector.load %arg4[%c1_23, %c0_24, %c0_25] : memref<16x20x50xf32, #tpu.memory_space<vmem>>, vector<1x20x50xf32>
    %32 = vector.shape_cast %31 : vector<1x20x50xf32> to vector<20x50xf32>
    %cst_26 = arith.constant dense<0.000000e+00> : vector<8x50xf32>
    %33 = tpu.matmul %30, %32, %cst_26 {dimension_numbers = #tpu.dot_dimension_numbers<[1], [0], [0], [1], [0, 0, 1, 1], [], []>} : vector<8x20xf32>, vector<20x50xf32>, vector<8x50xf32> -> vector<8x50xf32>
    %34 = arith.addf %29, %33 : vector<8x50xf32>
    %35 = vector.extract_strided_slice %20 {offsets = [16, 0], sizes = [8, 20], strides = [1, 1]} : vector<128x20xf32> to vector<8x20xf32>
    %c2_27 = arith.constant 2 : index
    %c0_28 = arith.constant 0 : index
    %c0_29 = arith.constant 0 : index
    %36 = vector.load %arg4[%c2_27, %c0_28, %c0_29] : memref<16x20x50xf32, #tpu.memory_space<vmem>>, vector<1x20x50xf32>
    %37 = vector.shape_cast %36 : vector<1x20x50xf32> to vector<20x50xf32>
    %cst_30 = arith.constant dense<0.000000e+00> : vector<8x50xf32>
    %38 = tpu.matmul %35, %37, %cst_30 {dimension_numbers = #tpu.dot_dimension_numbers<[1], [0], [0], [1], [0, 0, 1, 1], [], []>} : vector<8x20xf32>, vector<20x50xf32>, vector<8x50xf32> -> vector<8x50xf32>
    %39 = arith.addf %34, %38 : vector<8x50xf32>
    %40 = vector.extract_strided_slice %20 {offsets = [24, 0], sizes = [8, 20], strides = [1, 1]} : vector<128x20xf32> to vector<8x20xf32>
    %c3_31 = arith.constant 3 : index
    %c0_32 = arith.constant 0 : index
    %c0_33 = arith.constant 0 : index
    %41 = vector.load %arg4[%c3_31, %c0_32, %c0_33] : memref<16x20x50xf32, #tpu.memory_space<vmem>>, vector<1x20x50xf32>
    %42 = vector.shape_cast %41 : vector<1x20x50xf32> to vector<20x50xf32>
    %cst_34 = arith.constant dense<0.000000e+00> : vector<8x50xf32>
    %43 = tpu.matmul %40, %42, %cst_34 {dimension_numbers = #tpu.dot_dimension_numbers<[1], [0], [0], [1], [0, 0, 1, 1], [], []>} : vector<8x20xf32>, vector<20x50xf32>, vector<8x50xf32> -> vector<8x50xf32>
    %44 = arith.addf %39, %43 : vector<8x50xf32>
    %45 = vector.extract_strided_slice %20 {offsets = [32, 0], sizes = [8, 20], strides = [1, 1]} : vector<128x20xf32> to vector<8x20xf32>
    %c4 = arith.constant 4 : index
    %c0_35 = arith.constant 0 : index
    %c0_36 = arith.constant 0 : index
    %46 = vector.load %arg4[%c4, %c0_35, %c0_36] : memref<16x20x50xf32, #tpu.memory_space<vmem>>, vector<1x20x50xf32>
    %47 = vector.shape_cast %46 : vector<1x20x50xf32> to vector<20x50xf32>
    %cst_37 = arith.constant dense<0.000000e+00> : vector<8x50xf32>
    %48 = tpu.matmul %45, %47, %cst_37 {dimension_numbers = #tpu.dot_dimension_numbers<[1], [0], [0], [1], [0, 0, 1, 1], [], []>} : vector<8x20xf32>, vector<20x50xf32>, vector<8x50xf32> -> vector<8x50xf32>
    %49 = arith.addf %44, %48 : vector<8x50xf32>
    %50 = vector.extract_strided_slice %20 {offsets = [40, 0], sizes = [8, 20], strides = [1, 1]} : vector<128x20xf32> to vector<8x20xf32>
    %c5 = arith.constant 5 : index
    %c0_38 = arith.constant 0 : index
    %c0_39 = arith.constant 0 : index
    %51 = vector.load %arg4[%c5, %c0_38, %c0_39] : memref<16x20x50xf32, #tpu.memory_space<vmem>>, vector<1x20x50xf32>
    %52 = vector.shape_cast %51 : vector<1x20x50xf32> to vector<20x50xf32>
    %cst_40 = arith.constant dense<0.000000e+00> : vector<8x50xf32>
    %53 = tpu.matmul %50, %52, %cst_40 {dimension_numbers = #tpu.dot_dimension_numbers<[1], [0], [0], [1], [0, 0, 1, 1], [], []>} : vector<8x20xf32>, vector<20x50xf32>, vector<8x50xf32> -> vector<8x50xf32>
    %54 = arith.addf %49, %53 : vector<8x50xf32>
    %55 = vector.extract_strided_slice %20 {offsets = [48, 0], sizes = [8, 20], strides = [1, 1]} : vector<128x20xf32> to vector<8x20xf32>
    %c6 = arith.constant 6 : index
    %c0_41 = arith.constant 0 : index
    %c0_42 = arith.constant 0 : index
    %56 = vector.load %arg4[%c6, %c0_41, %c0_42] : memref<16x20x50xf32, #tpu.memory_space<vmem>>, vector<1x20x50xf32>
    %57 = vector.shape_cast %56 : vector<1x20x50xf32> to vector<20x50xf32>
    %cst_43 = arith.constant dense<0.000000e+00> : vector<8x50xf32>
    %58 = tpu.matmul %55, %57, %cst_43 {dimension_numbers = #tpu.dot_dimension_numbers<[1], [0], [0], [1], [0, 0, 1, 1], [], []>} : vector<8x20xf32>, vector<20x50xf32>, vector<8x50xf32> -> vector<8x50xf32>
    %59 = arith.addf %54, %58 : vector<8x50xf32>
    %60 = vector.extract_strided_slice %20 {offsets = [56, 0], sizes = [8, 20], strides = [1, 1]} : vector<128x20xf32> to vector<8x20xf32>
    %c7 = arith.constant 7 : index
    %c0_44 = arith.constant 0 : index
    %c0_45 = arith.constant 0 : index
    %61 = vector.load %arg4[%c7, %c0_44, %c0_45] : memref<16x20x50xf32, #tpu.memory_space<vmem>>, vector<1x20x50xf32>
    %62 = vector.shape_cast %61 : vector<1x20x50xf32> to vector<20x50xf32>
    %cst_46 = arith.constant dense<0.000000e+00> : vector<8x50xf32>
    %63 = tpu.matmul %60, %62, %cst_46 {dimension_numbers = #tpu.dot_dimension_numbers<[1], [0], [0], [1], [0, 0, 1, 1], [], []>} : vector<8x20xf32>, vector<20x50xf32>, vector<8x50xf32> -> vector<8x50xf32>
    %64 = arith.addf %59, %63 : vector<8x50xf32>
    %65 = vector.extract_strided_slice %20 {offsets = [64, 0], sizes = [8, 20], strides = [1, 1]} : vector<128x20xf32> to vector<8x20xf32>
    %c8 = arith.constant 8 : index
    %c0_47 = arith.constant 0 : index
    %c0_48 = arith.constant 0 : index
    %66 = vector.load %arg4[%c8, %c0_47, %c0_48] : memref<16x20x50xf32, #tpu.memory_space<vmem>>, vector<1x20x50xf32>
    %67 = vector.shape_cast %66 : vector<1x20x50xf32> to vector<20x50xf32>
    %cst_49 = arith.constant dense<0.000000e+00> : vector<8x50xf32>
    %68 = tpu.matmul %65, %67, %cst_49 {dimension_numbers = #tpu.dot_dimension_numbers<[1], [0], [0], [1], [0, 0, 1, 1], [], []>} : vector<8x20xf32>, vector<20x50xf32>, vector<8x50xf32> -> vector<8x50xf32>
    %69 = arith.addf %64, %68 : vector<8x50xf32>
    %70 = vector.extract_strided_slice %20 {offsets = [72, 0], sizes = [8, 20], strides = [1, 1]} : vector<128x20xf32> to vector<8x20xf32>
    %c9 = arith.constant 9 : index
    %c0_50 = arith.constant 0 : index
    %c0_51 = arith.constant 0 : index
    %71 = vector.load %arg4[%c9, %c0_50, %c0_51] : memref<16x20x50xf32, #tpu.memory_space<vmem>>, vector<1x20x50xf32>
    %72 = vector.shape_cast %71 : vector<1x20x50xf32> to vector<20x50xf32>
    %cst_52 = arith.constant dense<0.000000e+00> : vector<8x50xf32>
    %73 = tpu.matmul %70, %72, %cst_52 {dimension_numbers = #tpu.dot_dimension_numbers<[1], [0], [0], [1], [0, 0, 1, 1], [], []>} : vector<8x20xf32>, vector<20x50xf32>, vector<8x50xf32> -> vector<8x50xf32>
    %74 = arith.addf %69, %73 : vector<8x50xf32>
    %75 = vector.extract_strided_slice %20 {offsets = [80, 0], sizes = [8, 20], strides = [1, 1]} : vector<128x20xf32> to vector<8x20xf32>
    %c10 = arith.constant 10 : index
    %c0_53 = arith.constant 0 : index
    %c0_54 = arith.constant 0 : index
    %76 = vector.load %arg4[%c10, %c0_53, %c0_54] : memref<16x20x50xf32, #tpu.memory_space<vmem>>, vector<1x20x50xf32>
    %77 = vector.shape_cast %76 : vector<1x20x50xf32> to vector<20x50xf32>
    %cst_55 = arith.constant dense<0.000000e+00> : vector<8x50xf32>
    %78 = tpu.matmul %75, %77, %cst_55 {dimension_numbers = #tpu.dot_dimension_numbers<[1], [0], [0], [1], [0, 0, 1, 1], [], []>} : vector<8x20xf32>, vector<20x50xf32>, vector<8x50xf32> -> vector<8x50xf32>
    %79 = arith.addf %74, %78 : vector<8x50xf32>
    %80 = vector.extract_strided_slice %20 {offsets = [88, 0], sizes = [8, 20], strides = [1, 1]} : vector<128x20xf32> to vector<8x20xf32>
    %c11 = arith.constant 11 : index
    %c0_56 = arith.constant 0 : index
    %c0_57 = arith.constant 0 : index
    %81 = vector.load %arg4[%c11, %c0_56, %c0_57] : memref<16x20x50xf32, #tpu.memory_space<vmem>>, vector<1x20x50xf32>
    %82 = vector.shape_cast %81 : vector<1x20x50xf32> to vector<20x50xf32>
    %cst_58 = arith.constant dense<0.000000e+00> : vector<8x50xf32>
    %83 = tpu.matmul %80, %82, %cst_58 {dimension_numbers = #tpu.dot_dimension_numbers<[1], [0], [0], [1], [0, 0, 1, 1], [], []>} : vector<8x20xf32>, vector<20x50xf32>, vector<8x50xf32> -> vector<8x50xf32>
    %84 = arith.addf %79, %83 : vector<8x50xf32>
    %85 = vector.extract_strided_slice %20 {offsets = [96, 0], sizes = [8, 20], strides = [1, 1]} : vector<128x20xf32> to vector<8x20xf32>
    %c12 = arith.constant 12 : index
    %c0_59 = arith.constant 0 : index
    %c0_60 = arith.constant 0 : index
    %86 = vector.load %arg4[%c12, %c0_59, %c0_60] : memref<16x20x50xf32, #tpu.memory_space<vmem>>, vector<1x20x50xf32>
    %87 = vector.shape_cast %86 : vector<1x20x50xf32> to vector<20x50xf32>
    %cst_61 = arith.constant dense<0.000000e+00> : vector<8x50xf32>
    %88 = tpu.matmul %85, %87, %cst_61 {dimension_numbers = #tpu.dot_dimension_numbers<[1], [0], [0], [1], [0, 0, 1, 1], [], []>} : vector<8x20xf32>, vector<20x50xf32>, vector<8x50xf32> -> vector<8x50xf32>
    %89 = arith.addf %84, %88 : vector<8x50xf32>
    %90 = vector.extract_strided_slice %20 {offsets = [104, 0], sizes = [8, 20], strides = [1, 1]} : vector<128x20xf32> to vector<8x20xf32>
    %c13 = arith.constant 13 : index
    %c0_62 = arith.constant 0 : index
    %c0_63 = arith.constant 0 : index
    %91 = vector.load %arg4[%c13, %c0_62, %c0_63] : memref<16x20x50xf32, #tpu.memory_space<vmem>>, vector<1x20x50xf32>
    %92 = vector.shape_cast %91 : vector<1x20x50xf32> to vector<20x50xf32>
    %cst_64 = arith.constant dense<0.000000e+00> : vector<8x50xf32>
    %93 = tpu.matmul %90, %92, %cst_64 {dimension_numbers = #tpu.dot_dimension_numbers<[1], [0], [0], [1], [0, 0, 1, 1], [], []>} : vector<8x20xf32>, vector<20x50xf32>, vector<8x50xf32> -> vector<8x50xf32>
    %94 = arith.addf %89, %93 : vector<8x50xf32>
    %95 = vector.extract_strided_slice %20 {offsets = [112, 0], sizes = [8, 20], strides = [1, 1]} : vector<128x20xf32> to vector<8x20xf32>
    %c14 = arith.constant 14 : index
    %c0_65 = arith.constant 0 : index
    %c0_66 = arith.constant 0 : index
    %96 = vector.load %arg4[%c14, %c0_65, %c0_66] : memref<16x20x50xf32, #tpu.memory_space<vmem>>, vector<1x20x50xf32>
    %97 = vector.shape_cast %96 : vector<1x20x50xf32> to vector<20x50xf32>
    %cst_67 = arith.constant dense<0.000000e+00> : vector<8x50xf32>
    %98 = tpu.matmul %95, %97, %cst_67 {dimension_numbers = #tpu.dot_dimension_numbers<[1], [0], [0], [1], [0, 0, 1, 1], [], []>} : vector<8x20xf32>, vector<20x50xf32>, vector<8x50xf32> -> vector<8x50xf32>
    %99 = arith.addf %94, %98 : vector<8x50xf32>
    %100 = vector.extract_strided_slice %20 {offsets = [120, 0], sizes = [8, 20], strides = [1, 1]} : vector<128x20xf32> to vector<8x20xf32>
    %c15 = arith.constant 15 : index
    %c0_68 = arith.constant 0 : index
    %c0_69 = arith.constant 0 : index
    %101 = vector.load %arg4[%c15, %c0_68, %c0_69] : memref<16x20x50xf32, #tpu.memory_space<vmem>>, vector<1x20x50xf32>
    %102 = vector.shape_cast %101 : vector<1x20x50xf32> to vector<20x50xf32>
    %cst_70 = arith.constant dense<0.000000e+00> : vector<8x50xf32>
    %103 = tpu.matmul %100, %102, %cst_70 {dimension_numbers = #tpu.dot_dimension_numbers<[1], [0], [0], [1], [0, 0, 1, 1], [], []>} : vector<8x20xf32>, vector<20x50xf32>, vector<8x50xf32> -> vector<8x50xf32>
    %104 = arith.addf %99, %103 : vector<8x50xf32>
    %cst_71 = arith.constant 0.000000e+00 : f32
    %105 = vector.broadcast %cst_71 : f32 to vector<8x50xf32>
    %106 = arith.maximumf %104, %105 : vector<8x50xf32>
    %c0_72 = arith.constant 0 : index
    %c0_73 = arith.constant 0 : index
    %107 = vector.load %arg6[%c0_72, %c0_73] : memref<50x32xf32, #tpu.memory_space<vmem>>, vector<50x32xf32>
    %cst_74 = arith.constant dense<0.000000e+00> : vector<8x32xf32>
    %108 = tpu.matmul %106, %107, %cst_74 {dimension_numbers = #tpu.dot_dimension_numbers<[1], [0], [0], [1], [0, 0, 1, 1], [], []>} : vector<8x50xf32>, vector<50x32xf32>, vector<8x32xf32> -> vector<8x32xf32>
    %c0_75 = arith.constant 0 : index
    %c0_76 = arith.constant 0 : index
    %109 = vector.load %arg7[%c0_75, %c0_76] : memref<1x32xf32, #tpu.memory_space<vmem>>, vector<1x32xf32>
    %110 = vector.broadcast %109 : vector<1x32xf32> to vector<8x32xf32>
    %111 = arith.addf %108, %110 : vector<8x32xf32>
    %112 = math.tanh %111 : vector<8x32xf32>
    %c0_77 = arith.constant 0 : index
    %c0_78 = arith.constant 0 : index
    %113 = vector.load %arg8[%c0_77, %c0_78] : memref<8x32xf32, #tpu.memory_space<vmem>>, vector<8x32xf32>
    tpu.vector_store %arg8[%c0_77, %c0_78], %112 {strides = array<i32>} : memref<8x32xf32, #tpu.memory_space<vmem>>, vector<8x32xf32>,
    return
  }
  func.func @transform_0(%arg0: i32) -> (i32, i32, i32) {
    %c0_i32 = arith.constant 0 : i32
    %c0_i32_0 = arith.constant 0 : i32
    %c0_i32_1 = arith.constant 0 : i32
    return %c0_i32, %arg0, %c0_i32_0 : i32, i32, i32
  }
  func.func @transform_1(%arg0: i32) -> (i32, i32) {
    %c0_i32 = arith.constant 0 : i32
    %c0_i32_0 = arith.constant 0 : i32
    %c0_i32_1 = arith.constant 0 : i32
    return %c0_i32, %c0_i32_0 : i32, i32
  }
  func.func @transform_2(%arg0: i32) -> (i32, i32) {
    %c0_i32 = arith.constant 0 : i32
    %c0_i32_0 = arith.constant 0 : i32
    %c0_i32_1 = arith.constant 0 : i32
    return %c0_i32, %c0_i32_0 : i32, i32
  }
  func.func @transform_3(%arg0: i32) -> (i32, i32, i32) {
    %c0_i32 = arith.constant 0 : i32
    %c0_i32_0 = arith.constant 0 : i32
    %c0_i32_1 = arith.constant 0 : i32
    %c0_i32_2 = arith.constant 0 : i32
    return %c0_i32, %c0_i32_0, %c0_i32_1 : i32, i32, i32
  }
  func.func @transform_4(%arg0: i32) -> (i32, i32) {
    %c0_i32 = arith.constant 0 : i32
    %c0_i32_0 = arith.constant 0 : i32
    %c0_i32_1 = arith.constant 0 : i32
    return %c0_i32, %c0_i32_0 : i32, i32
  }
  func.func @transform_5(%arg0: i32) -> (i32, i32) {
    %c0_i32 = arith.constant 0 : i32
    %c0_i32_0 = arith.constant 0 : i32
    %c0_i32_1 = arith.constant 0 : i32
    return %c0_i32, %c0_i32_0 : i32, i32
  }
  func.func @transform_6(%arg0: i32) -> (i32, i32) {
    %c0_i32 = arith.constant 0 : i32
    %c0_i32_0 = arith.constant 0 : i32
    %c0_i32_1 = arith.constant 0 : i32
    return %c0_i32, %c0_i32_0 : i32, i32
  }
  func.func @transform_7(%arg0: i32) -> (i32, i32) {
    %c0_i32 = arith.constant 0 : i32
    %c0_i32_0 = arith.constant 0 : i32
    return %arg0, %c0_i32 : i32, i32
  }
}

</mosaic_0001>

<llo_original>
// kernel: bounded_grid_loc_net_forward.2
$region0: #{bounded_grid_loc_net_forward.2}
  #allocation0 [shape = 'u32[]', space=smem, size = 0x4, offset = 0x4, fixed_abs, tag = 'smem constant byte address 0x4 - core index']
  #allocation1 [shape = 'u32[144,128]{1,0:T(1,128)}', space=vmem, size = 0x12000, scoped, tag = 'internal scratch']
  %s0 = inlined_call_operand.vmem [shape: f32[4,1152,25], index: 0, kind: input, shape index: {}]
  %s1 = inlined_call_operand.vmem [shape: f32[25,10], index: 1, kind: input, shape index: {}]
  %s2 = inlined_call_operand.vmem [shape: f32[1,10], index: 2, kind: input, shape index: {}]
  %s3 = inlined_call_operand.vmem [shape: f32[1152,10], index: 3, kind: output, shape index: {}]
  %s4 = sld [smem:[#allocation0]]
  $region22: #{bounded_grid_loc_net_forward.2} parent=0
    _
  %s6 = ssub.s32 1, %s4
  %s7 = scalar_select 0, %s6, %s4
  // Predicated region
  $region2: #{bounded_grid_loc_net_forward.2} parent=0 // pred_check
    _
  $region3: #{bounded_grid_loc_net_forward.2} parent=0 // pred_check_branch
    %9 = sbr.rel (0) target = $region5
  $region4: #{bounded_grid_loc_net_forward.2} parent=0 // pred_region
    _
  $region5: #{bounded_grid_loc_net_forward.2} parent=0 // pred_fallthru
    _
  // Predicated region
  $region6: #{bounded_grid_loc_net_forward.2} parent=0 // pred_check
    _
  $region7: #{bounded_grid_loc_net_forward.2} parent=0 // pred_check_branch
    %11 = sbr.rel (0) target = $region9
  $region8: #{bounded_grid_loc_net_forward.2} parent=0 // pred_region
    _
  $region9: #{bounded_grid_loc_net_forward.2} parent=0 // pred_fallthru
    _
  // Predicated region
  $region10: #{bounded_grid_loc_net_forward.2} parent=0 // pred_check
    _
  $region11: #{bounded_grid_loc_net_forward.2} parent=0 // pred_check_branch
    %13 = sbr.rel (0) target = $region13
  $region12: #{bounded_grid_loc_net_forward.2} parent=0 // pred_region
    _
  $region13: #{bounded_grid_loc_net_forward.2} parent=0 // pred_fallthru
    _
  %v14 = vld [vmem:[%s1] sm:$0xff]
  %v15 = vld [vmem:[%s1 + $0x8] sm:$0xff]
  %v16 = vld [vmem:[%s1 + $0x10] sm:$0xff]
  %v17 = vld [vmem:[%s1 + $0x18] sm:$0x1]
  %v18 = vld [vmem:[%s0] sm:$0xff]
  %v19 = vld [vmem:[%s0 + $0x8] sm:$0xff]
  %v20 = vld [vmem:[%s0 + $0x10] sm:$0xff]
  %v21 = vld [vmem:[%s0 + $0x18] sm:$0xff]
  %v22 = vld [vmem:[%s0 + $0x20] sm:$0xff]
  %v23 = vld [vmem:[%s0 + $0x28] sm:$0xff]
  %v24 = vld [vmem:[%s0 + $0x30] sm:$0xff]
  %v25 = vld [vmem:[%s0 + $0x38] sm:$0xff]
  %v26 = vld [vmem:[%s0 + $0x40] sm:$0xff]
  %v27 = vld [vmem:[%s0 + $0x48] sm:$0xff]
  %v28 = vld [vmem:[%s0 + $0x50] sm:$0xff]
  %v29 = vld [vmem:[%s0 + $0x58] sm:$0xff]
  %v30 = vld [vmem:[%s0 + $0x60] sm:$0xff]
  %v31 = vld [vmem:[%s0 + $0x68] sm:$0xff]
  %v32 = vld [vmem:[%s0 + $0x70] sm:$0xff]
  %v33 = vld [vmem:[%s0 + $0x78] sm:$0xff]
  %v34 = vld [vmem:[%s0 + $0x80] sm:$0xff]
  %v35 = vld [vmem:[%s0 + $0x88] sm:$0xff]
  %v36 = vld [vmem:[%s0 + $0x90] sm:$0xff]
  %v37 = vld [vmem:[%s0 + $0x98] sm:$0xff]
  %v38 = vld [vmem:[%s0 + $0xa0] sm:$0xff]
  %v39 = vld [vmem:[%s0 + $0xa8] sm:$0xff]
  %v40 = vld [vmem:[%s0 + $0xb0] sm:$0xff]
  %v41 = vld [vmem:[%s0 + $0xb8] sm:$0xff]
  %v42 = vld [vmem:[%s0 + $0xc0] sm:$0xff]
  %v43 = vld [vmem:[%s0 + $0xc8] sm:$0xff]
  %v44 = vld [vmem:[%s0 + $0xd0] sm:$0xff]
  %v45 = vld [vmem:[%s0 + $0xd8] sm:$0xff]
  %v46 = vld [vmem:[%s0 + $0xe0] sm:$0xff]
  %v47 = vld [vmem:[%s0 + $0xe8] sm:$0xff]
  %v48 = vld [vmem:[%s0 + $0xf0] sm:$0xff]
  %v49 = vld [vmem:[%s0 + $0xf8] sm:$0xff]
  %v50 = vld [vmem:[%s0 + $0x100] sm:$0xff]
  %v51 = vld [vmem:[%s0 + $0x108] sm:$0xff]
  %v52 = vld [vmem:[%s0 + $0x110] sm:$0xff]
  %v53 = vld [vmem:[%s0 + $0x118] sm:$0xff]
  %v54 = vld [vmem:[%s0 + $0x120] sm:$0xff]
  %v55 = vld [vmem:[%s0 + $0x128] sm:$0xff]
  %v56 = vld [vmem:[%s0 + $0x130] sm:$0xff]
  %v57 = vld [vmem:[%s0 + $0x138] sm:$0xff]
  %v58 = vld [vmem:[%s0 + $0x140] sm:$0xff]
  %v59 = vld [vmem:[%s0 + $0x148] sm:$0xff]
  %v60 = vld [vmem:[%s0 + $0x150] sm:$0xff]
  %v61 = vld [vmem:[%s0 + $0x158] sm:$0xff]
  %v62 = vld [vmem:[%s0 + $0x160] sm:$0xff]
  %v63 = vld [vmem:[%s0 + $0x168] sm:$0xff]
  %v64 = vld [vmem:[%s0 + $0x170] sm:$0xff]
  %v65 = vld [vmem:[%s0 + $0x178] sm:$0xff]
  %v66 = vld [vmem:[%s0 + $0x180] sm:$0xff]
  %v67 = vld [vmem:[%s0 + $0x188] sm:$0xff]
  %v68 = vld [vmem:[%s0 + $0x190] sm:$0xff]
  %v69 = vld [vmem:[%s0 + $0x198] sm:$0xff]
  %v70 = vld [vmem:[%s0 + $0x1a0] sm:$0xff]
  %v71 = vld [vmem:[%s0 + $0x1a8] sm:$0xff]
  %v72 = vld [vmem:[%s0 + $0x1b0] sm:$0xff]
  %v73 = vld [vmem:[%s0 + $0x1b8] sm:$0xff]
  %v74 = vld [vmem:[%s0 + $0x1c0] sm:$0xff]
  %v75 = vld [vmem:[%s0 + $0x1c8] sm:$0xff]
  %v76 = vld [vmem:[%s0 + $0x1d0] sm:$0xff]
  %v77 = vld [vmem:[%s0 + $0x1d8] sm:$0xff]
  %v78 = vld [vmem:[%s0 + $0x1e0] sm:$0xff]
  %v79 = vld [vmem:[%s0 + $0x1e8] sm:$0xff]
  %v80 = vld [vmem:[%s0 + $0x1f0] sm:$0xff]
  %v81 = vld [vmem:[%s0 + $0x1f8] sm:$0xff]
  %v82 = vld [vmem:[%s0 + $0x200] sm:$0xff]
  %v83 = vld [vmem:[%s0 + $0x208] sm:$0xff]
  %v84 = vld [vmem:[%s0 + $0x210] sm:$0xff]
  %v85 = vld [vmem:[%s0 + $0x218] sm:$0xff]
  %v86 = vld [vmem:[%s0 + $0x220] sm:$0xff]
  %v87 = vld [vmem:[%s0 + $0x228] sm:$0xff]
  %v88 = vld [vmem:[%s0 + $0x230] sm:$0xff]
  %v89 = vld [vmem:[%s0 + $0x238] sm:$0xff]
  %v90 = vld [vmem:[%s0 + $0x240] sm:$0xff]
  %v91 = vld [vmem:[%s0 + $0x248] sm:$0xff]
  %v92 = vld [vmem:[%s0 + $0x250] sm:$0xff]
  %v93 = vld [vmem:[%s0 + $0x258] sm:$0xff]
  %v94 = vld [vmem:[%s0 + $0x260] sm:$0xff]
  %v95 = vld [vmem:[%s0 + $0x268] sm:$0xff]
  %v96 = vld [vmem:[%s0 + $0x270] sm:$0xff]
  %v97 = vld [vmem:[%s0 + $0x278] sm:$0xff]
  %v98 = vld [vmem:[%s0 + $0x280] sm:$0xff]
  %v99 = vld [vmem:[%s0 + $0x288] sm:$0xff]
  %v100 = vld [vmem:[%s0 + $0x290] sm:$0xff]
  %v101 = vld [vmem:[%s0 + $0x298] sm:$0xff]
  %v102 = vld [vmem:[%s0 + $0x2a0] sm:$0xff]
  %v103 = vld [vmem:[%s0 + $0x2a8] sm:$0xff]
  %v104 = vld [vmem:[%s0 + $0x2b0] sm:$0xff]
  %v105 = vld [vmem:[%s0 + $0x2b8] sm:$0xff]
  %v106 = vld [vmem:[%s0 + $0x2c0] sm:$0xff]
  %v107 = vld [vmem:[%s0 + $0x2c8] sm:$0xff]
  %v108 = vld [vmem:[%s0 + $0x2d0] sm:$0xff]
  %v109 = vld [vmem:[%s0 + $0x2d8] sm:$0xff]
  %v110 = vld [vmem:[%s0 + $0x2e0] sm:$0xff]
  %v111 = vld [vmem:[%s0 + $0x2e8] sm:$0xff]
  %v112 = vld [vmem:[%s0 + $0x2f0] sm:$0xff]
  %v113 = vld [vmem:[%s0 + $0x2f8] sm:$0xff]
  %v114 = vld [vmem:[%s0 + $0x300] sm:$0xff]
  %v115 = vld [vmem:[%s0 + $0x308] sm:$0xff]
  %v116 = vld [vmem:[%s0 + $0x310] sm:$0xff]
  %v117 = vld [vmem:[%s0 + $0x318] sm:$0xff]
  %v118 = vld [vmem:[%s0 + $0x320] sm:$0xff]
  %v119 = vld [vmem:[%s0 + $0x328] sm:$0xff]
  %v120 = vld [vmem:[%s0 + $0x330] sm:$0xff]
  %v121 = vld [vmem:[%s0 + $0x338] sm:$0xff]
  %v122 = vld [vmem:[%s0 + $0x340] sm:$0xff]
  %v123 = vld [vmem:[%s0 + $0x348] sm:$0xff]
  %v124 = vld [vmem:[%s0 + $0x350] sm:$0xff]
  %v125 = vld [vmem:[%s0 + $0x358] sm:$0xff]
  %v126 = vld [vmem:[%s0 + $0x360] sm:$0xff]
  %v127 = vld [vmem:[%s0 + $0x368] sm:$0xff]
  %v128 = vld [vmem:[%s0 + $0x370] sm:$0xff]
  %v129 = vld [vmem:[%s0 + $0x378] sm:$0xff]
  %v130 = vld [vmem:[%s0 + $0x380] sm:$0xff]
  %v131 = vld [vmem:[%s0 + $0x388] sm:$0xff]
  %v132 = vld [vmem:[%s0 + $0x390] sm:$0xff]
  %v133 = vld [vmem:[%s0 + $0x398] sm:$0xff]
  %v134 = vld [vmem:[%s0 + $0x3a0] sm:$0xff]
  %v135 = vld [vmem:[%s0 + $0x3a8] sm:$0xff]
  %v136 = vld [vmem:[%s0 + $0x3b0] sm:$0xff]
  %v137 = vld [vmem:[%s0 + $0x3b8] sm:$0xff]
  %v138 = vld [vmem:[%s0 + $0x3c0] sm:$0xff]
  %v139 = vld [vmem:[%s0 + $0x3c8] sm:$0xff]
  %v140 = vld [vmem:[%s0 + $0x3d0] sm:$0xff]
  %v141 = vld [vmem:[%s0 + $0x3d8] sm:$0xff]
  %v142 = vld [vmem:[%s0 + $0x3e0] sm:$0xff]
  %v143 = vld [vmem:[%s0 + $0x3e8] sm:$0xff]
  %v144 = vld [vmem:[%s0 + $0x3f0] sm:$0xff]
  %v145 = vld [vmem:[%s0 + $0x3f8] sm:$0xff]
  %v146 = vld [vmem:[%s0 + $0x400] sm:$0xff]
  %v147 = vld [vmem:[%s0 + $0x408] sm:$0xff]
  %v148 = vld [vmem:[%s0 + $0x410] sm:$0xff]
  %v149 = vld [vmem:[%s0 + $0x418] sm:$0xff]
  %v150 = vld [vmem:[%s0 + $0x420] sm:$0xff]
  %v151 = vld [vmem:[%s0 + $0x428] sm:$0xff]
  %v152 = vld [vmem:[%s0 + $0x430] sm:$0xff]
  %v153 = vld [vmem:[%s0 + $0x438] sm:$0xff]
  %v154 = vld [vmem:[%s0 + $0x440] sm:$0xff]
  %v155 = vld [vmem:[%s0 + $0x448] sm:$0xff]
  %v156 = vld [vmem:[%s0 + $0x450] sm:$0xff]
  %v157 = vld [vmem:[%s0 + $0x458] sm:$0xff]
  %v158 = vld [vmem:[%s0 + $0x460] sm:$0xff]
  %v159 = vld [vmem:[%s0 + $0x468] sm:$0xff]
  %v160 = vld [vmem:[%s0 + $0x470] sm:$0xff]
  %v161 = vld [vmem:[%s0 + $0x478] sm:$0xff]
  %vm162 = vcmask 203776
  %v164 = vsel %vm162, %v18, 0
  %v167 = vsel %vm162, %v19, 0
  %v170 = vsel %vm162, %v20, 0
  %v173 = vsel %vm162, %v21, 0
  %v176 = vsel %vm162, %v22, 0
  %v179 = vsel %vm162, %v23, 0
  %v182 = vsel %vm162, %v24, 0
  %v185 = vsel %vm162, %v25, 0
  %v188 = vsel %vm162, %v26, 0
  %v191 = vsel %vm162, %v27, 0
  %v194 = vsel %vm162, %v28, 0
  %v197 = vsel %vm162, %v29, 0
  %v200 = vsel %vm162, %v30, 0
  %v203 = vsel %vm162, %v31, 0
  %v206 = vsel %vm162, %v32, 0
  %v209 = vsel %vm162, %v33, 0
  %v212 = vsel %vm162, %v34, 0
  %v215 = vsel %vm162, %v35, 0
  %v218 = vsel %vm162, %v36, 0
  %v221 = vsel %vm162, %v37, 0
  %v224 = vsel %vm162, %v38, 0
  %v227 = vsel %vm162, %v39, 0
  %v230 = vsel %vm162, %v40, 0
  %v233 = vsel %vm162, %v41, 0
  %v236 = vsel %vm162, %v42, 0
  %v239 = vsel %vm162, %v43, 0
  %v242 = vsel %vm162, %v44, 0
  %v245 = vsel %vm162, %v45, 0
  %v248 = vsel %vm162, %v46, 0
  %v251 = vsel %vm162, %v47, 0
  %v254 = vsel %vm162, %v48, 0
  %v257 = vsel %vm162, %v49, 0
  %v260 = vsel %vm162, %v50, 0
  %v263 = vsel %vm162, %v51, 0
  %v266 = vsel %vm162, %v52, 0
  %v269 = vsel %vm162, %v53, 0
  %v272 = vsel %vm162, %v54, 0
  %v275 = vsel %vm162, %v55, 0
  %v278 = vsel %vm162, %v56, 0
  %v281 = vsel %vm162, %v57, 0
  %v284 = vsel %vm162, %v58, 0
  %v287 = vsel %vm162, %v59, 0
  %v290 = vsel %vm162, %v60, 0
  %v293 = vsel %vm162, %v61, 0
  %v296 = vsel %vm162, %v62, 0
  %v299 = vsel %vm162, %v63, 0
  %v302 = vsel %vm162, %v64, 0
  %v305 = vsel %vm162, %v65, 0
  %v308 = vsel %vm162, %v66, 0
  %v311 = vsel %vm162, %v67, 0
  %v314 = vsel %vm162, %v68, 0
  %v317 = vsel %vm162, %v69, 0
  %v320 = vsel %vm162, %v70, 0
  %v323 = vsel %vm162, %v71, 0
  %v326 = vsel %vm162, %v72, 0
  %v329 = vsel %vm162, %v73, 0
  %v332 = vsel %vm162, %v74, 0
  %v335 = vsel %vm162, %v75, 0
  %v338 = vsel %vm162, %v76, 0
  %v341 = vsel %vm162, %v77, 0
  %v344 = vsel %vm162, %v78, 0
  %v347 = vsel %vm162, %v79, 0
  %v350 = vsel %vm162, %v80, 0
  %v353 = vsel %vm162, %v81, 0
  %v356 = vsel %vm162, %v82, 0
  %v359 = vsel %vm162, %v83, 0
  %v362 = vsel %vm162, %v84, 0
  %v365 = vsel %vm162, %v85, 0
  %v368 = vsel %vm162, %v86, 0
  %v371 = vsel %vm162, %v87, 0
  %v374 = vsel %vm162, %v88, 0
  %v377 = vsel %vm162, %v89, 0
  %v380 = vsel %vm162, %v90, 0
  %v383 = vsel %vm162, %v91, 0
  %v386 = vsel %vm162, %v92, 0
  %v389 = vsel %vm162, %v93, 0
  %v392 = vsel %vm162, %v94, 0
  %v395 = vsel %vm162, %v95, 0
  %v398 = vsel %vm162, %v96, 0
  %v401 = vsel %vm162, %v97, 0
  %v404 = vsel %vm162, %v98, 0
  %v407 = vsel %vm162, %v99, 0
  %v410 = vsel %vm162, %v100, 0
  %v413 = vsel %vm162, %v101, 0
  %v416 = vsel %vm162, %v102, 0
  %v419 = vsel %vm162, %v103, 0
  %v422 = vsel %vm162, %v104, 0
  %v425 = vsel %vm162, %v105, 0
  %v428 = vsel %vm162, %v106, 0
  %v431 = vsel %vm162, %v107, 0
  %v434 = vsel %vm162, %v108, 0
  %v437 = vsel %vm162, %v109, 0
  %v440 = vsel %vm162, %v110, 0
  %v443 = vsel %vm162, %v111, 0
  %v446 = vsel %vm162, %v112, 0
  %v449 = vsel %vm162, %v113, 0
  %v452 = vsel %vm162, %v114, 0
  %v455 = vsel %vm162, %v115, 0
  %v458 = vsel %vm162, %v116, 0
  %v461 = vsel %vm162, %v117, 0
  %v464 = vsel %vm162, %v118, 0
  %v467 = vsel %vm162, %v119, 0
  %v470 = vsel %vm162, %v120, 0
  %v473 = vsel %vm162, %v121, 0
  %v476 = vsel %vm162, %v122, 0
  %v479 = vsel %vm162, %v123, 0
  %v482 = vsel %vm162, %v124, 0
  %v485 = vsel %vm162, %v125, 0
  %v488 = vsel %vm162, %v126, 0
  %v491 = vsel %vm162, %v127, 0
  %v494 = vsel %vm162, %v128, 0
  %v497 = vsel %vm162, %v129, 0
  %v500 = vsel %vm162, %v130, 0
  %v503 = vsel %vm162, %v131, 0
  %v506 = vsel %vm162, %v132, 0
  %v509 = vsel %vm162, %v133, 0
  %v512 = vsel %vm162, %v134, 0
  %v515 = vsel %vm162, %v135, 0
  %v518 = vsel %vm162, %v136, 0
  %v521 = vsel %vm162, %v137, 0
  %v524 = vsel %vm162, %v138, 0
  %v527 = vsel %vm162, %v139, 0
  %v530 = vsel %vm162, %v140, 0
  %v533 = vsel %vm162, %v141, 0
  %v536 = vsel %vm162, %v142, 0
  %v539 = vsel %vm162, %v143, 0
  %v542 = vsel %vm162, %v144, 0
  %v545 = vsel %vm162, %v145, 0
  %v548 = vsel %vm162, %v146, 0
  %v551 = vsel %vm162, %v147, 0
  %v554 = vsel %vm162, %v148, 0
  %v557 = vsel %vm162, %v149, 0
  %v560 = vsel %vm162, %v150, 0
  %v563 = vsel %vm162, %v151, 0
  %v566 = vsel %vm162, %v152, 0
  %v569 = vsel %vm162, %v153, 0
  %v572 = vsel %vm162, %v154, 0
  %v575 = vsel %vm162, %v155, 0
  %v578 = vsel %vm162, %v156, 0
  %v581 = vsel %vm162, %v157, 0
  %v584 = vsel %vm162, %v158, 0
  %v587 = vsel %vm162, %v159, 0
  %v590 = vsel %vm162, %v160, 0
  %v593 = vsel %vm162, %v161, 0
  %vm595 = vcmask 1040384
  %v597 = vsel %vm595, %v17, 0
  %599 = vmatprep.subr.mxu0 0.0
  %600 = vmatpush1.msra.mxu0 0.0
  %601 = vmatprep.subr.mxu0 0.0
  %602 = vmatpush1.msra.mxu0 0.0
  %603 = vmatprep.subr.mxu0 0.0
  %604 = vmatpush1.msra.mxu0 0.0
  %605 = vmatprep.subr.mxu0 0.0
  %606 = vmatpush1.msra.mxu0 0.0
  %607 = vmatprep.subr.mxu0 0.0
  %608 = vmatpush1.msra.mxu0 0.0
  %609 = vmatprep.subr.mxu0 0.0
  %610 = vmatpush1.msra.mxu0 0.0
  %611 = vmatprep.subr.mxu0 0.0
  %612 = vmatpush1.msra.mxu0 0.0
  %613 = vmatprep.subr.mxu0 0.0
  %614 = vmatpush1.msra.mxu0 0.0
  %615 = vmatprep.subr.mxu0 0.0
  %616 = vmatpush1.msra.mxu0 0.0
  %617 = vmatprep.subr.mxu0 0.0
  %618 = vmatpush1.msra.mxu0 0.0
  %619 = vmatprep.subr.mxu0 0.0
  %620 = vmatpush1.msra.mxu0 0.0
  %621 = vmatprep.subr.mxu0 0.0
  %622 = vmatpush1.msra.mxu0 0.0
  %623 = vmatprep.subr.mxu0 0.0
  %624 = vmatpush1.msra.mxu0 %v597
  %625 = vmatprep.subr.mxu0 0.0
  %626 = vmatpush1.msra.mxu0 %v16
  %627 = vmatprep.subr.mxu0 0.0
  %628 = vmatpush1.msra.mxu0 %v15
  %629 = vmatprep.subr.mxu0 0.0
  %630 = vmatpush1.msra.mxu0 %v14
  %631 = vmatprep.subr.mxu0 0.0
  %632 = vmatpush2.msra.mxu0 0.0
  %633 = vmatprep.subr.mxu0 0.0
  %634 = vmatpush2.msra.mxu0 0.0
  %635 = vmatprep.subr.mxu0 0.0
  %636 = vmatpush2.msra.mxu0 0.0
  %637 = vmatprep.subr.mxu0 0.0
  %638 = vmatpush2.msra.mxu0 0.0
  %639 = vmatprep.subr.mxu0 0.0
  %640 = vmatpush2.msra.mxu0 0.0
  %641 = vmatprep.subr.mxu0 0.0
  %642 = vmatpush2.msra.mxu0 0.0
  %643 = vmatprep.subr.mxu0 0.0
  %644 = vmatpush2.msra.mxu0 0.0
  %645 = vmatprep.subr.mxu0 0.0
  %646 = vmatpush2.msra.mxu0 0.0
  %647 = vmatprep.subr.mxu0 0.0
  %648 = vmatpush2.msra.mxu0 0.0
  %649 = vmatprep.subr.mxu0 0.0
  %650 = vmatpush2.msra.mxu0 0.0
  %651 = vmatprep.subr.mxu0 0.0
  %652 = vmatpush2.msra.mxu0 0.0
  %653 = vmatprep.subr.mxu0 0.0
  %654 = vmatpush2.msra.mxu0 0.0
  %655 = vmatprep.subr.mxu0 0.0
  %656 = vmatpush2.msra.mxu0 0.0
  %657 = vmatprep.subr.mxu0 0.0
  %658 = vmatpush2.msra.mxu0 0.0
  %659 = vmatprep.subr.mxu0 0.0
  %660 = vmatpush2.msra.mxu0 0.0
  %661 = vmatprep.subr.mxu0 0.0
  %662 = vmatpush2.msra.mxu0 0.0
  %663 = vmatprep.mubr.f32.mxu0 0.0
  %664 = vmatmul.mubr.f32.gmra.mxu0 %v164
  %v665 = vpop.f32.mrf.mxu0
  %v666 = vadd.f32 0.0, %v665
  %v667 = vpop.f32.mrf.mxu0
  %668 = vmatprep.mubr.f32.mxu0 0.0
  %669 = vmatmul.mubr.f32.gmra.mxu0 %v167
  %v670 = vpop.f32.mrf.mxu0
  %v671 = vadd.f32 0.0, %v670
  %v672 = vpop.f32.mrf.mxu0
  %673 = vmatprep.mubr.f32.mxu0 0.0
  %674 = vmatmul.mubr.f32.gmra.mxu0 %v170
  %v675 = vpop.f32.mrf.mxu0
  %v676 = vadd.f32 0.0, %v675
  %v677 = vpop.f32.mrf.mxu0
  %678 = vmatprep.mubr.f32.mxu0 0.0
  %679 = vmatmul.mubr.f32.gmra.mxu0 %v173
  %v680 = vpop.f32.mrf.mxu0
  %v681 = vadd.f32 0.0, %v680
  %v682 = vpop.f32.mrf.mxu0
  %683 = vmatprep.mubr.f32.mxu0 0.0
  %684 = vmatmul.mubr.f32.gmra.mxu0 %v176
  %v685 = vpop.f32.mrf.mxu0
  %v686 = vadd.f32 0.0, %v685
  %v687 = vpop.f32.mrf.mxu0
  %688 = vmatprep.mubr.f32.mxu0 0.0
  %689 = vmatmul.mubr.f32.gmra.mxu0 %v179
  %v690 = vpop.f32.mrf.mxu0
  %v691 = vadd.f32 0.0, %v690
  %v692 = vpop.f32.mrf.mxu0
  %693 = vmatprep.mubr.f32.mxu0 0.0
  %694 = vmatmul.mubr.f32.gmra.mxu0 %v182
  %v695 = vpop.f32.mrf.mxu0
  %v696 = vadd.f32 0.0, %v695
  %v697 = vpop.f32.mrf.mxu0
  %698 = vmatprep.mubr.f32.mxu0 0.0
  %699 = vmatmul.mubr.f32.gmra.mxu0 %v185
  %v700 = vpop.f32.mrf.mxu0
  %v701 = vadd.f32 0.0, %v700
  %v702 = vpop.f32.mrf.mxu0
  %703 = vmatprep.mubr.f32.mxu0 0.0
  %704 = vmatmul.mubr.f32.gmra.mxu0 %v188
  %v705 = vpop.f32.mrf.mxu0
  %v706 = vadd.f32 0.0, %v705
  %v707 = vpop.f32.mrf.mxu0
  %708 = vmatprep.mubr.f32.mxu0 0.0
  %709 = vmatmul.mubr.f32.gmra.mxu0 %v191
  %v710 = vpop.f32.mrf.mxu0
  %v711 = vadd.f32 0.0, %v710
  %v712 = vpop.f32.mrf.mxu0
  %713 = vmatprep.mubr.f32.mxu0 0.0
  %714 = vmatmul.mubr.f32.gmra.mxu0 %v194
  %v715 = vpop.f32.mrf.mxu0
  %v716 = vadd.f32 0.0, %v715
  %v717 = vpop.f32.mrf.mxu0
  %718 = vmatprep.mubr.f32.mxu0 0.0
  %719 = vmatmul.mubr.f32.gmra.mxu0 %v197
  %v720 = vpop.f32.mrf.mxu0
  %v721 = vadd.f32 0.0, %v720
  %v722 = vpop.f32.mrf.mxu0
  %723 = vmatprep.mubr.f32.mxu0 0.0
  %724 = vmatmul.mubr.f32.gmra.mxu0 %v200
  %v725 = vpop.f32.mrf.mxu0
  %v726 = vadd.f32 0.0, %v725
  %v727 = vpop.f32.mrf.mxu0
  %728 = vmatprep.mubr.f32.mxu0 0.0
  %729 = vmatmul.mubr.f32.gmra.mxu0 %v203
  %v730 = vpop.f32.mrf.mxu0
  %v731 = vadd.f32 0.0, %v730
  %v732 = vpop.f32.mrf.mxu0
  %733 = vmatprep.mubr.f32.mxu0 0.0
  %734 = vmatmul.mubr.f32.gmra.mxu0 %v206
  %v735 = vpop.f32.mrf.mxu0
  %v736 = vadd.f32 0.0, %v735
  %v737 = vpop.f32.mrf.mxu0
  %738 = vmatprep.mubr.f32.mxu0 0.0
  %739 = vmatmul.mubr.f32.gmra.mxu0 %v209
  %v740 = vpop.f32.mrf.mxu0
  %v741 = vadd.f32 0.0, %v740
  %v742 = vpop.f32.mrf.mxu0
  %743 = vmatprep.mubr.f32.mxu0 0.0
  %744 = vmatmul.mubr.f32.gmra.mxu0 %v212
  %v745 = vpop.f32.mrf.mxu0
  %v746 = vadd.f32 0.0, %v745
  %v747 = vpop.f32.mrf.mxu0
  %748 = vmatprep.mubr.f32.mxu0 0.0
  %749 = vmatmul.mubr.f32.gmra.mxu0 %v215
  %v750 = vpop.f32.mrf.mxu0
  %v751 = vadd.f32 0.0, %v750
  %v752 = vpop.f32.mrf.mxu0
  %753 = vmatprep.mubr.f32.mxu0 0.0
  %754 = vmatmul.mubr.f32.gmra.mxu0 %v218
  %v755 = vpop.f32.mrf.mxu0
  %v756 = vadd.f32 0.0, %v755
  %v757 = vpop.f32.mrf.mxu0
  %758 = vmatprep.mubr.f32.mxu0 0.0
  %759 = vmatmul.mubr.f32.gmra.mxu0 %v221
  %v760 = vpop.f32.mrf.mxu0
  %v761 = vadd.f32 0.0, %v760
  %v762 = vpop.f32.mrf.mxu0
  %763 = vmatprep.mubr.f32.mxu0 0.0
  %764 = vmatmul.mubr.f32.gmra.mxu0 %v224
  %v765 = vpop.f32.mrf.mxu0
  %v766 = vadd.f32 0.0, %v765
  %v767 = vpop.f32.mrf.mxu0
  %768 = vmatprep.mubr.f32.mxu0 0.0
  %769 = vmatmul.mubr.f32.gmra.mxu0 %v227
  %v770 = vpop.f32.mrf.mxu0
  %v771 = vadd.f32 0.0, %v770
  %v772 = vpop.f32.mrf.mxu0
  %773 = vmatprep.mubr.f32.mxu0 0.0
  %774 = vmatmul.mubr.f32.gmra.mxu0 %v230
  %v775 = vpop.f32.mrf.mxu0
  %v776 = vadd.f32 0.0, %v775
  %v777 = vpop.f32.mrf.mxu0
  %778 = vmatprep.mubr.f32.mxu0 0.0
  %779 = vmatmul.mubr.f32.gmra.mxu0 %v233
  %v780 = vpop.f32.mrf.mxu0
  %v781 = vadd.f32 0.0, %v780
  %v782 = vpop.f32.mrf.mxu0
  %783 = vmatprep.mubr.f32.mxu0 0.0
  %784 = vmatmul.mubr.f32.gmra.mxu0 %v236
  %v785 = vpop.f32.mrf.mxu0
  %v786 = vadd.f32 0.0, %v785
  %v787 = vpop.f32.mrf.mxu0
  %788 = vmatprep.mubr.f32.mxu0 0.0
  %789 = vmatmul.mubr.f32.gmra.mxu0 %v239
  %v790 = vpop.f32.mrf.mxu0
  %v791 = vadd.f32 0.0, %v790
  %v792 = vpop.f32.mrf.mxu0
  %793 = vmatprep.mubr.f32.mxu0 0.0
  %794 = vmatmul.mubr.f32.gmra.mxu0 %v242
  %v795 = vpop.f32.mrf.mxu0
  %v796 = vadd.f32 0.0, %v795
  %v797 = vpop.f32.mrf.mxu0
  %798 = vmatprep.mubr.f32.mxu0 0.0
  %799 = vmatmul.mubr.f32.gmra.mxu0 %v245
  %v800 = vpop.f32.mrf.mxu0
  %v801 = vadd.f32 0.0, %v800
  %v802 = vpop.f32.mrf.mxu0
  %803 = vmatprep.mubr.f32.mxu0 0.0
  %804 = vmatmul.mubr.f32.gmra.mxu0 %v248
  %v805 = vpop.f32.mrf.mxu0
  %v806 = vadd.f32 0.0, %v805
  %v807 = vpop.f32.mrf.mxu0
  %808 = vmatprep.mubr.f32.mxu0 0.0
  %809 = vmatmul.mubr.f32.gmra.mxu0 %v251
  %v810 = vpop.f32.mrf.mxu0
  %v811 = vadd.f32 0.0, %v810
  %v812 = vpop.f32.mrf.mxu0
  %813 = vmatprep.mubr.f32.mxu0 0.0
  %814 = vmatmul.mubr.f32.gmra.mxu0 %v254
  %v815 = vpop.f32.mrf.mxu0
  %v816 = vadd.f32 0.0, %v815
  %v817 = vpop.f32.mrf.mxu0
  %818 = vmatprep.mubr.f32.mxu0 0.0
  %819 = vmatmul.mubr.f32.gmra.mxu0 %v257
  %v820 = vpop.f32.mrf.mxu0
  %v821 = vadd.f32 0.0, %v820
  %v822 = vpop.f32.mrf.mxu0
  %823 = vmatprep.mubr.f32.mxu0 0.0
  %824 = vmatmul.mubr.f32.gmra.mxu0 %v260
  %v825 = vpop.f32.mrf.mxu0
  %v826 = vadd.f32 0.0, %v825
  %v827 = vpop.f32.mrf.mxu0
  %828 = vmatprep.mubr.f32.mxu0 0.0
  %829 = vmatmul.mubr.f32.gmra.mxu0 %v263
  %v830 = vpop.f32.mrf.mxu0
  %v831 = vadd.f32 0.0, %v830
  %v832 = vpop.f32.mrf.mxu0
  %833 = vmatprep.mubr.f32.mxu0 0.0
  %834 = vmatmul.mubr.f32.gmra.mxu0 %v266
  %v835 = vpop.f32.mrf.mxu0
  %v836 = vadd.f32 0.0, %v835
  %v837 = vpop.f32.mrf.mxu0
  %838 = vmatprep.mubr.f32.mxu0 0.0
  %839 = vmatmul.mubr.f32.gmra.mxu0 %v269
  %v840 = vpop.f32.mrf.mxu0
  %v841 = vadd.f32 0.0, %v840
  %v842 = vpop.f32.mrf.mxu0
  %843 = vmatprep.mubr.f32.mxu0 0.0
  %844 = vmatmul.mubr.f32.gmra.mxu0 %v272
  %v845 = vpop.f32.mrf.mxu0
  %v846 = vadd.f32 0.0, %v845
  %v847 = vpop.f32.mrf.mxu0
  %848 = vmatprep.mubr.f32.mxu0 0.0
  %849 = vmatmul.mubr.f32.gmra.mxu0 %v275
  %v850 = vpop.f32.mrf.mxu0
  %v851 = vadd.f32 0.0, %v850
  %v852 = vpop.f32.mrf.mxu0
  %853 = vmatprep.mubr.f32.mxu0 0.0
  %854 = vmatmul.mubr.f32.gmra.mxu0 %v278
  %v855 = vpop.f32.mrf.mxu0
  %v856 = vadd.f32 0.0, %v855
  %v857 = vpop.f32.mrf.mxu0
  %858 = vmatprep.mubr.f32.mxu0 0.0
  %859 = vmatmul.mubr.f32.gmra.mxu0 %v281
  %v860 = vpop.f32.mrf.mxu0
  %v861 = vadd.f32 0.0, %v860
  %v862 = vpop.f32.mrf.mxu0
  %863 = vmatprep.mubr.f32.mxu0 0.0
  %864 = vmatmul.mubr.f32.gmra.mxu0 %v284
  %v865 = vpop.f32.mrf.mxu0
  %v866 = vadd.f32 0.0, %v865
  %v867 = vpop.f32.mrf.mxu0
  %868 = vmatprep.mubr.f32.mxu0 0.0
  %869 = vmatmul.mubr.f32.gmra.mxu0 %v287
  %v870 = vpop.f32.mrf.mxu0
  %v871 = vadd.f32 0.0, %v870
  %v872 = vpop.f32.mrf.mxu0
  %873 = vmatprep.mubr.f32.mxu0 0.0
  %874 = vmatmul.mubr.f32.gmra.mxu0 %v290
  %v875 = vpop.f32.mrf.mxu0
  %v876 = vadd.f32 0.0, %v875
  %v877 = vpop.f32.mrf.mxu0
  %878 = vmatprep.mubr.f32.mxu0 0.0
  %879 = vmatmul.mubr.f32.gmra.mxu0 %v293
  %v880 = vpop.f32.mrf.mxu0
  %v881 = vadd.f32 0.0, %v880
  %v882 = vpop.f32.mrf.mxu0
  %883 = vmatprep.mubr.f32.mxu0 0.0
  %884 = vmatmul.mubr.f32.gmra.mxu0 %v296
  %v885 = vpop.f32.mrf.mxu0
  %v886 = vadd.f32 0.0, %v885
  %v887 = vpop.f32.mrf.mxu0
  %888 = vmatprep.mubr.f32.mxu0 0.0
  %889 = vmatmul.mubr.f32.gmra.mxu0 %v299
  %v890 = vpop.f32.mrf.mxu0
  %v891 = vadd.f32 0.0, %v890
  %v892 = vpop.f32.mrf.mxu0
  %893 = vmatprep.mubr.f32.mxu0 0.0
  %894 = vmatmul.mubr.f32.gmra.mxu0 %v302
  %v895 = vpop.f32.mrf.mxu0
  %v896 = vadd.f32 0.0, %v895
  %v897 = vpop.f32.mrf.mxu0
  %898 = vmatprep.mubr.f32.mxu0 0.0
  %899 = vmatmul.mubr.f32.gmra.mxu0 %v305
  %v900 = vpop.f32.mrf.mxu0
  %v901 = vadd.f32 0.0, %v900
  %v902 = vpop.f32.mrf.mxu0
  %903 = vmatprep.mubr.f32.mxu0 0.0
  %904 = vmatmul.mubr.f32.gmra.mxu0 %v308
  %v905 = vpop.f32.mrf.mxu0
  %v906 = vadd.f32 0.0, %v905
  %v907 = vpop.f32.mrf.mxu0
  %908 = vmatprep.mubr.f32.mxu0 0.0
  %909 = vmatmul.mubr.f32.gmra.mxu0 %v311
  %v910 = vpop.f32.mrf.mxu0
  %v911 = vadd.f32 0.0, %v910
  %v912 = vpop.f32.mrf.mxu0
  %913 = vmatprep.mubr.f32.mxu0 0.0
  %914 = vmatmul.mubr.f32.gmra.mxu0 %v314
  %v915 = vpop.f32.mrf.mxu0
  %v916 = vadd.f32 0.0, %v915
  %v917 = vpop.f32.mrf.mxu0
  %918 = vmatprep.mubr.f32.mxu0 0.0
  %919 = vmatmul.mubr.f32.gmra.mxu0 %v317
  %v920 = vpop.f32.mrf.mxu0
  %v921 = vadd.f32 0.0, %v920
  %v922 = vpop.f32.mrf.mxu0
  %923 = vmatprep.mubr.f32.mxu0 0.0
  %924 = vmatmul.mubr.f32.gmra.mxu0 %v320
  %v925 = vpop.f32.mrf.mxu0
  %v926 = vadd.f32 0.0, %v925
  %v927 = vpop.f32.mrf.mxu0
  %928 = vmatprep.mubr.f32.mxu0 0.0
  %929 = vmatmul.mubr.f32.gmra.mxu0 %v323
  %v930 = vpop.f32.mrf.mxu0
  %v931 = vadd.f32 0.0, %v930
  %v932 = vpop.f32.mrf.mxu0
  %933 = vmatprep.mubr.f32.mxu0 0.0
  %934 = vmatmul.mubr.f32.gmra.mxu0 %v326
  %v935 = vpop.f32.mrf.mxu0
  %v936 = vadd.f32 0.0, %v935
  %v937 = vpop.f32.mrf.mxu0
  %938 = vmatprep.mubr.f32.mxu0 0.0
  %939 = vmatmul.mubr.f32.gmra.mxu0 %v329
  %v940 = vpop.f32.mrf.mxu0
  %v941 = vadd.f32 0.0, %v940
  %v942 = vpop.f32.mrf.mxu0
  %943 = vmatprep.mubr.f32.mxu0 0.0
  %944 = vmatmul.mubr.f32.gmra.mxu0 %v332
  %v945 = vpop.f32.mrf.mxu0
  %v946 = vadd.f32 0.0, %v945
  %v947 = vpop.f32.mrf.mxu0
  %948 = vmatprep.mubr.f32.mxu0 0.0
  %949 = vmatmul.mubr.f32.gmra.mxu0 %v335
  %v950 = vpop.f32.mrf.mxu0
  %v951 = vadd.f32 0.0, %v950
  %v952 = vpop.f32.mrf.mxu0
  %953 = vmatprep.mubr.f32.mxu0 0.0
  %954 = vmatmul.mubr.f32.gmra.mxu0 %v338
  %v955 = vpop.f32.mrf.mxu0
  %v956 = vadd.f32 0.0, %v955
  %v957 = vpop.f32.mrf.mxu0
  %958 = vmatprep.mubr.f32.mxu0 0.0
  %959 = vmatmul.mubr.f32.gmra.mxu0 %v341
  %v960 = vpop.f32.mrf.mxu0
  %v961 = vadd.f32 0.0, %v960
  %v962 = vpop.f32.mrf.mxu0
  %963 = vmatprep.mubr.f32.mxu0 0.0
  %964 = vmatmul.mubr.f32.gmra.mxu0 %v344
  %v965 = vpop.f32.mrf.mxu0
  %v966 = vadd.f32 0.0, %v965
  %v967 = vpop.f32.mrf.mxu0
  %968 = vmatprep.mubr.f32.mxu0 0.0
  %969 = vmatmul.mubr.f32.gmra.mxu0 %v347
  %v970 = vpop.f32.mrf.mxu0
  %v971 = vadd.f32 0.0, %v970
  %v972 = vpop.f32.mrf.mxu0
  %973 = vmatprep.mubr.f32.mxu0 0.0
  %974 = vmatmul.mubr.f32.gmra.mxu0 %v350
  %v975 = vpop.f32.mrf.mxu0
  %v976 = vadd.f32 0.0, %v975
  %v977 = vpop.f32.mrf.mxu0
  %978 = vmatprep.mubr.f32.mxu0 0.0
  %979 = vmatmul.mubr.f32.gmra.mxu0 %v353
  %v980 = vpop.f32.mrf.mxu0
  %v981 = vadd.f32 0.0, %v980
  %v982 = vpop.f32.mrf.mxu0
  %983 = vmatprep.mubr.f32.mxu0 0.0
  %984 = vmatmul.mubr.f32.gmra.mxu0 %v356
  %v985 = vpop.f32.mrf.mxu0
  %v986 = vadd.f32 0.0, %v985
  %v987 = vpop.f32.mrf.mxu0
  %988 = vmatprep.mubr.f32.mxu0 0.0
  %989 = vmatmul.mubr.f32.gmra.mxu0 %v359
  %v990 = vpop.f32.mrf.mxu0
  %v991 = vadd.f32 0.0, %v990
  %v992 = vpop.f32.mrf.mxu0
  %993 = vmatprep.mubr.f32.mxu0 0.0
  %994 = vmatmul.mubr.f32.gmra.mxu0 %v362
  %v995 = vpop.f32.mrf.mxu0
  %v996 = vadd.f32 0.0, %v995
  %v997 = vpop.f32.mrf.mxu0
  %998 = vmatprep.mubr.f32.mxu0 0.0
  %999 = vmatmul.mubr.f32.gmra.mxu0 %v365
  %v1000 = vpop.f32.mrf.mxu0
  %v1001 = vadd.f32 0.0, %v1000
  %v1002 = vpop.f32.mrf.mxu0
  %1003 = vmatprep.mubr.f32.mxu0 0.0
  %1004 = vmatmul.mubr.f32.gmra.mxu0 %v368
  %v1005 = vpop.f32.mrf.mxu0
  %v1006 = vadd.f32 0.0, %v1005
  %v1007 = vpop.f32.mrf.mxu0
  %1008 = vmatprep.mubr.f32.mxu0 0.0
  %1009 = vmatmul.mubr.f32.gmra.mxu0 %v371
  %v1010 = vpop.f32.mrf.mxu0
  %v1011 = vadd.f32 0.0, %v1010
  %v1012 = vpop.f32.mrf.mxu0
  %1013 = vmatprep.mubr.f32.mxu0 0.0
  %1014 = vmatmul.mubr.f32.gmra.mxu0 %v374
  %v1015 = vpop.f32.mrf.mxu0
  %v1016 = vadd.f32 0.0, %v1015
  %v1017 = vpop.f32.mrf.mxu0
  %1018 = vmatprep.mubr.f32.mxu0 0.0
  %1019 = vmatmul.mubr.f32.gmra.mxu0 %v377
  %v1020 = vpop.f32.mrf.mxu0
  %v1021 = vadd.f32 0.0, %v1020
  %v1022 = vpop.f32.mrf.mxu0
  %1023 = vmatprep.mubr.f32.mxu0 0.0
  %1024 = vmatmul.mubr.f32.gmra.mxu0 %v380
  %v1025 = vpop.f32.mrf.mxu0
  %v1026 = vadd.f32 0.0, %v1025
  %v1027 = vpop.f32.mrf.mxu0
  %1028 = vmatprep.mubr.f32.mxu0 0.0
  %1029 = vmatmul.mubr.f32.gmra.mxu0 %v383
  %v1030 = vpop.f32.mrf.mxu0
  %v1031 = vadd.f32 0.0, %v1030
  %v1032 = vpop.f32.mrf.mxu0
  %1033 = vmatprep.mubr.f32.mxu0 0.0
  %1034 = vmatmul.mubr.f32.gmra.mxu0 %v386
  %v1035 = vpop.f32.mrf.mxu0
  %v1036 = vadd.f32 0.0, %v1035
  %v1037 = vpop.f32.mrf.mxu0
  %1038 = vmatprep.mubr.f32.mxu0 0.0
  %1039 = vmatmul.mubr.f32.gmra.mxu0 %v389
  %v1040 = vpop.f32.mrf.mxu0
  %v1041 = vadd.f32 0.0, %v1040
  %v1042 = vpop.f32.mrf.mxu0
  %1043 = vmatprep.mubr.f32.mxu0 0.0
  %1044 = vmatmul.mubr.f32.gmra.mxu0 %v392
  %v1045 = vpop.f32.mrf.mxu0
  %v1046 = vadd.f32 0.0, %v1045
  %v1047 = vpop.f32.mrf.mxu0
  %1048 = vmatprep.mubr.f32.mxu0 0.0
  %1049 = vmatmul.mubr.f32.gmra.mxu0 %v395
  %v1050 = vpop.f32.mrf.mxu0
  %v1051 = vadd.f32 0.0, %v1050
  %v1052 = vpop.f32.mrf.mxu0
  %1053 = vmatprep.mubr.f32.mxu0 0.0
  %1054 = vmatmul.mubr.f32.gmra.mxu0 %v398
  %v1055 = vpop.f32.mrf.mxu0
  %v1056 = vadd.f32 0.0, %v1055
  %v1057 = vpop.f32.mrf.mxu0
  %1058 = vmatprep.mubr.f32.mxu0 0.0
  %1059 = vmatmul.mubr.f32.gmra.mxu0 %v401
  %v1060 = vpop.f32.mrf.mxu0
  %v1061 = vadd.f32 0.0, %v1060
  %v1062 = vpop.f32.mrf.mxu0
  %1063 = vmatprep.mubr.f32.mxu0 0.0
  %1064 = vmatmul.mubr.f32.gmra.mxu0 %v404
  %v1065 = vpop.f32.mrf.mxu0
  %v1066 = vadd.f32 0.0, %v1065
  %v1067 = vpop.f32.mrf.mxu0
  %1068 = vmatprep.mubr.f32.mxu0 0.0
  %1069 = vmatmul.mubr.f32.gmra.mxu0 %v407
  %v1070 = vpop.f32.mrf.mxu0
  %v1071 = vadd.f32 0.0, %v1070
  %v1072 = vpop.f32.mrf.mxu0
  %1073 = vmatprep.mubr.f32.mxu0 0.0
  %1074 = vmatmul.mubr.f32.gmra.mxu0 %v410
  %v1075 = vpop.f32.mrf.mxu0
  %v1076 = vadd.f32 0.0, %v1075
  %v1077 = vpop.f32.mrf.mxu0
  %1078 = vmatprep.mubr.f32.mxu0 0.0
  %1079 = vmatmul.mubr.f32.gmra.mxu0 %v413
  %v1080 = vpop.f32.mrf.mxu0
  %v1081 = vadd.f32 0.0, %v1080
  %v1082 = vpop.f32.mrf.mxu0
  %1083 = vmatprep.mubr.f32.mxu0 0.0
  %1084 = vmatmul.mubr.f32.gmra.mxu0 %v416
  %v1085 = vpop.f32.mrf.mxu0
  %v1086 = vadd.f32 0.0, %v1085
  %v1087 = vpop.f32.mrf.mxu0
  %1088 = vmatprep.mubr.f32.mxu0 0.0
  %1089 = vmatmul.mubr.f32.gmra.mxu0 %v419
  %v1090 = vpop.f32.mrf.mxu0
  %v1091 = vadd.f32 0.0, %v1090
  %v1092 = vpop.f32.mrf.mxu0
  %1093 = vmatprep.mubr.f32.mxu0 0.0
  %1094 = vmatmul.mubr.f32.gmra.mxu0 %v422
  %v1095 = vpop.f32.mrf.mxu0
  %v1096 = vadd.f32 0.0, %v1095
  %v1097 = vpop.f32.mrf.mxu0
  %1098 = vmatprep.mubr.f32.mxu0 0.0
  %1099 = vmatmul.mubr.f32.gmra.mxu0 %v425
  %v1100 = vpop.f32.mrf.mxu0
  %v1101 = vadd.f32 0.0, %v1100
  %v1102 = vpop.f32.mrf.mxu0
  %1103 = vmatprep.mubr.f32.mxu0 0.0
  %1104 = vmatmul.mubr.f32.gmra.mxu0 %v428
  %v1105 = vpop.f32.mrf.mxu0
  %v1106 = vadd.f32 0.0, %v1105
  %v1107 = vpop.f32.mrf.mxu0
  %1108 = vmatprep.mubr.f32.mxu0 0.0
  %1109 = vmatmul.mubr.f32.gmra.mxu0 %v431
  %v1110 = vpop.f32.mrf.mxu0
  %v1111 = vadd.f32 0.0, %v1110
  %v1112 = vpop.f32.mrf.mxu0
  %1113 = vmatprep.mubr.f32.mxu0 0.0
  %1114 = vmatmul.mubr.f32.gmra.mxu0 %v434
  %v1115 = vpop.f32.mrf.mxu0
  %v1116 = vadd.f32 0.0, %v1115
  %v1117 = vpop.f32.mrf.mxu0
  %1118 = vmatprep.mubr.f32.mxu0 0.0
  %1119 = vmatmul.mubr.f32.gmra.mxu0 %v437
  %v1120 = vpop.f32.mrf.mxu0
  %v1121 = vadd.f32 0.0, %v1120
  %v1122 = vpop.f32.mrf.mxu0
  %1123 = vmatprep.mubr.f32.mxu0 0.0
  %1124 = vmatmul.mubr.f32.gmra.mxu0 %v440
  %v1125 = vpop.f32.mrf.mxu0
  %v1126 = vadd.f32 0.0, %v1125
  %v1127 = vpop.f32.mrf.mxu0
  %1128 = vmatprep.mubr.f32.mxu0 0.0
  %1129 = vmatmul.mubr.f32.gmra.mxu0 %v443
  %v1130 = vpop.f32.mrf.mxu0
  %v1131 = vadd.f32 0.0, %v1130
  %v1132 = vpop.f32.mrf.mxu0
  %1133 = vmatprep.mubr.f32.mxu0 0.0
  %1134 = vmatmul.mubr.f32.gmra.mxu0 %v446
  %v1135 = vpop.f32.mrf.mxu0
  %v1136 = vadd.f32 0.0, %v1135
  %v1137 = vpop.f32.mrf.mxu0
  %1138 = vmatprep.mubr.f32.mxu0 0.0
  %1139 = vmatmul.mubr.f32.gmra.mxu0 %v449
  %v1140 = vpop.f32.mrf.mxu0
  %v1141 = vadd.f32 0.0, %v1140
  %v1142 = vpop.f32.mrf.mxu0
  %1143 = vmatprep.mubr.f32.mxu0 0.0
  %1144 = vmatmul.mubr.f32.gmra.mxu0 %v452
  %v1145 = vpop.f32.mrf.mxu0
  %v1146 = vadd.f32 0.0, %v1145
  %v1147 = vpop.f32.mrf.mxu0
  %1148 = vmatprep.mubr.f32.mxu0 0.0
  %1149 = vmatmul.mubr.f32.gmra.mxu0 %v455
  %v1150 = vpop.f32.mrf.mxu0
  %v1151 = vadd.f32 0.0, %v1150
  %v1152 = vpop.f32.mrf.mxu0
  %1153 = vmatprep.mubr.f32.mxu0 0.0
  %1154 = vmatmul.mubr.f32.gmra.mxu0 %v458
  %v1155 = vpop.f32.mrf.mxu0
  %v1156 = vadd.f32 0.0, %v1155
  %v1157 = vpop.f32.mrf.mxu0
  %1158 = vmatprep.mubr.f32.mxu0 0.0
  %1159 = vmatmul.mubr.f32.gmra.mxu0 %v461
  %v1160 = vpop.f32.mrf.mxu0
  %v1161 = vadd.f32 0.0, %v1160
  %v1162 = vpop.f32.mrf.mxu0
  %1163 = vmatprep.mubr.f32.mxu0 0.0
  %1164 = vmatmul.mubr.f32.gmra.mxu0 %v464
  %v1165 = vpop.f32.mrf.mxu0
  %v1166 = vadd.f32 0.0, %v1165
  %v1167 = vpop.f32.mrf.mxu0
  %1168 = vmatprep.mubr.f32.mxu0 0.0
  %1169 = vmatmul.mubr.f32.gmra.mxu0 %v467
  %v1170 = vpop.f32.mrf.mxu0
  %v1171 = vadd.f32 0.0, %v1170
  %v1172 = vpop.f32.mrf.mxu0
  %1173 = vmatprep.mubr.f32.mxu0 0.0
  %1174 = vmatmul.mubr.f32.gmra.mxu0 %v470
  %v1175 = vpop.f32.mrf.mxu0
  %v1176 = vadd.f32 0.0, %v1175
  %v1177 = vpop.f32.mrf.mxu0
  %1178 = vmatprep.mubr.f32.mxu0 0.0
  %1179 = vmatmul.mubr.f32.gmra.mxu0 %v473
  %v1180 = vpop.f32.mrf.mxu0
  %v1181 = vadd.f32 0.0, %v1180
  %v1182 = vpop.f32.mrf.mxu0
  %1183 = vmatprep.mubr.f32.mxu0 0.0
  %1184 = vmatmul.mubr.f32.gmra.mxu0 %v476
  %v1185 = vpop.f32.mrf.mxu0
  %v1186 = vadd.f32 0.0, %v1185
  %v1187 = vpop.f32.mrf.mxu0
  %1188 = vmatprep.mubr.f32.mxu0 0.0
  %1189 = vmatmul.mubr.f32.gmra.mxu0 %v479
  %v1190 = vpop.f32.mrf.mxu0
  %v1191 = vadd.f32 0.0, %v1190
  %v1192 = vpop.f32.mrf.mxu0
  %1193 = vmatprep.mubr.f32.mxu0 0.0
  %1194 = vmatmul.mubr.f32.gmra.mxu0 %v482
  %v1195 = vpop.f32.mrf.mxu0
  %v1196 = vadd.f32 0.0, %v1195
  %v1197 = vpop.f32.mrf.mxu0
  %1198 = vmatprep.mubr.f32.mxu0 0.0
  %1199 = vmatmul.mubr.f32.gmra.mxu0 %v485
  %v1200 = vpop.f32.mrf.mxu0
  %v1201 = vadd.f32 0.0, %v1200
  %v1202 = vpop.f32.mrf.mxu0
  %1203 = vmatprep.mubr.f32.mxu0 0.0
  %1204 = vmatmul.mubr.f32.gmra.mxu0 %v488
  %v1205 = vpop.f32.mrf.mxu0
  %v1206 = vadd.f32 0.0, %v1205
  %v1207 = vpop.f32.mrf.mxu0
  %1208 = vmatprep.mubr.f32.mxu0 0.0
  %1209 = vmatmul.mubr.f32.gmra.mxu0 %v491
  %v1210 = vpop.f32.mrf.mxu0
  %v1211 = vadd.f32 0.0, %v1210
  %v1212 = vpop.f32.mrf.mxu0
  %1213 = vmatprep.mubr.f32.mxu0 0.0
  %1214 = vmatmul.mubr.f32.gmra.mxu0 %v494
  %v1215 = vpop.f32.mrf.mxu0
  %v1216 = vadd.f32 0.0, %v1215
  %v1217 = vpop.f32.mrf.mxu0
  %1218 = vmatprep.mubr.f32.mxu0 0.0
  %1219 = vmatmul.mubr.f32.gmra.mxu0 %v497
  %v1220 = vpop.f32.mrf.mxu0
  %v1221 = vadd.f32 0.0, %v1220
  %v1222 = vpop.f32.mrf.mxu0
  %1223 = vmatprep.mubr.f32.mxu0 0.0
  %1224 = vmatmul.mubr.f32.gmra.mxu0 %v500
  %v1225 = vpop.f32.mrf.mxu0
  %v1226 = vadd.f32 0.0, %v1225
  %v1227 = vpop.f32.mrf.mxu0
  %1228 = vmatprep.mubr.f32.mxu0 0.0
  %1229 = vmatmul.mubr.f32.gmra.mxu0 %v503
  %v1230 = vpop.f32.mrf.mxu0
  %v1231 = vadd.f32 0.0, %v1230
  %v1232 = vpop.f32.mrf.mxu0
  %1233 = vmatprep.mubr.f32.mxu0 0.0
  %1234 = vmatmul.mubr.f32.gmra.mxu0 %v506
  %v1235 = vpop.f32.mrf.mxu0
  %v1236 = vadd.f32 0.0, %v1235
  %v1237 = vpop.f32.mrf.mxu0
  %1238 = vmatprep.mubr.f32.mxu0 0.0
  %1239 = vmatmul.mubr.f32.gmra.mxu0 %v509
  %v1240 = vpop.f32.mrf.mxu0
  %v1241 = vadd.f32 0.0, %v1240
  %v1242 = vpop.f32.mrf.mxu0
  %1243 = vmatprep.mubr.f32.mxu0 0.0
  %1244 = vmatmul.mubr.f32.gmra.mxu0 %v512
  %v1245 = vpop.f32.mrf.mxu0
  %v1246 = vadd.f32 0.0, %v1245
  %v1247 = vpop.f32.mrf.mxu0
  %1248 = vmatprep.mubr.f32.mxu0 0.0
  %1249 = vmatmul.mubr.f32.gmra.mxu0 %v515
  %v1250 = vpop.f32.mrf.mxu0
  %v1251 = vadd.f32 0.0, %v1250
  %v1252 = vpop.f32.mrf.mxu0
  %1253 = vmatprep.mubr.f32.mxu0 0.0
  %1254 = vmatmul.mubr.f32.gmra.mxu0 %v518
  %v1255 = vpop.f32.mrf.mxu0
  %v1256 = vadd.f32 0.0, %v1255
  %v1257 = vpop.f32.mrf.mxu0
  %1258 = vmatprep.mubr.f32.mxu0 0.0
  %1259 = vmatmul.mubr.f32.gmra.mxu0 %v521
  %v1260 = vpop.f32.mrf.mxu0
  %v1261 = vadd.f32 0.0, %v1260
  %v1262 = vpop.f32.mrf.mxu0
  %1263 = vmatprep.mubr.f32.mxu0 0.0
  %1264 = vmatmul.mubr.f32.gmra.mxu0 %v524
  %v1265 = vpop.f32.mrf.mxu0
  %v1266 = vadd.f32 0.0, %v1265
  %v1267 = vpop.f32.mrf.mxu0
  %1268 = vmatprep.mubr.f32.mxu0 0.0
  %1269 = vmatmul.mubr.f32.gmra.mxu0 %v527
  %v1270 = vpop.f32.mrf.mxu0
  %v1271 = vadd.f32 0.0, %v1270
  %v1272 = vpop.f32.mrf.mxu0
  %1273 = vmatprep.mubr.f32.mxu0 0.0
  %1274 = vmatmul.mubr.f32.gmra.mxu0 %v530
  %v1275 = vpop.f32.mrf.mxu0
  %v1276 = vadd.f32 0.0, %v1275
  %v1277 = vpop.f32.mrf.mxu0
  %1278 = vmatprep.mubr.f32.mxu0 0.0
  %1279 = vmatmul.mubr.f32.gmra.mxu0 %v533
  %v1280 = vpop.f32.mrf.mxu0
  %v1281 = vadd.f32 0.0, %v1280
  %v1282 = vpop.f32.mrf.mxu0
  %1283 = vmatprep.mubr.f32.mxu0 0.0
  %1284 = vmatmul.mubr.f32.gmra.mxu0 %v536
  %v1285 = vpop.f32.mrf.mxu0
  %v1286 = vadd.f32 0.0, %v1285
  %v1287 = vpop.f32.mrf.mxu0
  %1288 = vmatprep.mubr.f32.mxu0 0.0
  %1289 = vmatmul.mubr.f32.gmra.mxu0 %v539
  %v1290 = vpop.f32.mrf.mxu0
  %v1291 = vadd.f32 0.0, %v1290
  %v1292 = vpop.f32.mrf.mxu0
  %1293 = vmatprep.mubr.f32.mxu0 0.0
  %1294 = vmatmul.mubr.f32.gmra.mxu0 %v542
  %v1295 = vpop.f32.mrf.mxu0
  %v1296 = vadd.f32 0.0, %v1295
  %v1297 = vpop.f32.mrf.mxu0
  %1298 = vmatprep.mubr.f32.mxu0 0.0
  %1299 = vmatmul.mubr.f32.gmra.mxu0 %v545
  %v1300 = vpop.f32.mrf.mxu0
  %v1301 = vadd.f32 0.0, %v1300
  %v1302 = vpop.f32.mrf.mxu0
  %1303 = vmatprep.mubr.f32.mxu0 0.0
  %1304 = vmatmul.mubr.f32.gmra.mxu0 %v548
  %v1305 = vpop.f32.mrf.mxu0
  %v1306 = vadd.f32 0.0, %v1305
  %v1307 = vpop.f32.mrf.mxu0
  %1308 = vmatprep.mubr.f32.mxu0 0.0
  %1309 = vmatmul.mubr.f32.gmra.mxu0 %v551
  %v1310 = vpop.f32.mrf.mxu0
  %v1311 = vadd.f32 0.0, %v1310
  %v1312 = vpop.f32.mrf.mxu0
  %1313 = vmatprep.mubr.f32.mxu0 0.0
  %1314 = vmatmul.mubr.f32.gmra.mxu0 %v554
  %v1315 = vpop.f32.mrf.mxu0
  %v1316 = vadd.f32 0.0, %v1315
  %v1317 = vpop.f32.mrf.mxu0
  %1318 = vmatprep.mubr.f32.mxu0 0.0
  %1319 = vmatmul.mubr.f32.gmra.mxu0 %v557
  %v1320 = vpop.f32.mrf.mxu0
  %v1321 = vadd.f32 0.0, %v1320
  %v1322 = vpop.f32.mrf.mxu0
  %1323 = vmatprep.mubr.f32.mxu0 0.0
  %1324 = vmatmul.mubr.f32.gmra.mxu0 %v560
  %v1325 = vpop.f32.mrf.mxu0
  %v1326 = vadd.f32 0.0, %v1325
  %v1327 = vpop.f32.mrf.mxu0
  %1328 = vmatprep.mubr.f32.mxu0 0.0
  %1329 = vmatmul.mubr.f32.gmra.mxu0 %v563
  %v1330 = vpop.f32.mrf.mxu0
  %v1331 = vadd.f32 0.0, %v1330
  %v1332 = vpop.f32.mrf.mxu0
  %1333 = vmatprep.mubr.f32.mxu0 0.0
  %1334 = vmatmul.mubr.f32.gmra.mxu0 %v566
  %v1335 = vpop.f32.mrf.mxu0
  %v1336 = vadd.f32 0.0, %v1335
  %v1337 = vpop.f32.mrf.mxu0
  %1338 = vmatprep.mubr.f32.mxu0 0.0
  %1339 = vmatmul.mubr.f32.gmra.mxu0 %v569
  %v1340 = vpop.f32.mrf.mxu0
  %v1341 = vadd.f32 0.0, %v1340
  %v1342 = vpop.f32.mrf.mxu0
  %1343 = vmatprep.mubr.f32.mxu0 0.0
  %1344 = vmatmul.mubr.f32.gmra.mxu0 %v572
  %v1345 = vpop.f32.mrf.mxu0
  %v1346 = vadd.f32 0.0, %v1345
  %v1347 = vpop.f32.mrf.mxu0
  %1348 = vmatprep.mubr.f32.mxu0 0.0
  %1349 = vmatmul.mubr.f32.gmra.mxu0 %v575
  %v1350 = vpop.f32.mrf.mxu0
  %v1351 = vadd.f32 0.0, %v1350
  %v1352 = vpop.f32.mrf.mxu0
  %1353 = vmatprep.mubr.f32.mxu0 0.0
  %1354 = vmatmul.mubr.f32.gmra.mxu0 %v578
  %v1355 = vpop.f32.mrf.mxu0
  %v1356 = vadd.f32 0.0, %v1355
  %v1357 = vpop.f32.mrf.mxu0
  %1358 = vmatprep.mubr.f32.mxu0 0.0
  %1359 = vmatmul.mubr.f32.gmra.mxu0 %v581
  %v1360 = vpop.f32.mrf.mxu0
  %v1361 = vadd.f32 0.0, %v1360
  %v1362 = vpop.f32.mrf.mxu0
  %1363 = vmatprep.mubr.f32.mxu0 0.0
  %1364 = vmatmul.mubr.f32.gmra.mxu0 %v584
  %v1365 = vpop.f32.mrf.mxu0
  %v1366 = vadd.f32 0.0, %v1365
  %v1367 = vpop.f32.mrf.mxu0
  %1368 = vmatprep.mubr.f32.mxu0 0.0
  %1369 = vmatmul.mubr.f32.gmra.mxu0 %v587
  %v1370 = vpop.f32.mrf.mxu0
  %v1371 = vadd.f32 0.0, %v1370
  %v1372 = vpop.f32.mrf.mxu0
  %1373 = vmatprep.mubr.f32.mxu0 0.0
  %1374 = vmatmul.mubr.f32.gmra.mxu0 %v590
  %v1375 = vpop.f32.mrf.mxu0
  %v1376 = vadd.f32 0.0, %v1375
  %v1377 = vpop.f32.mrf.mxu0
  %1378 = vmatprep.mubr.f32.mxu0 0.0
  %1379 = vmatmul.mubr.f32.gmra.mxu0 %v593
  %v1380 = vpop.f32.mrf.mxu0
  %v1381 = vadd.f32 0.0, %v1380
  %v1382 = vpop.f32.mrf.mxu0
  %1383 = vdwg.mxu0
  %s1384 = scalar_lea.vmem %s0, 1152
  %v1385 = vld [vmem:[%s1384] sm:$0xff]
  %v1386 = vld [vmem:[%s1384 + $0x8] sm:$0xff]
  %v1387 = vld [vmem:[%s1384 + $0x10] sm:$0xff]
  %v1388 = vld [vmem:[%s1384 + $0x18] sm:$0xff]
  %v1389 = vld [vmem:[%s1384 + $0x20] sm:$0xff]
  %v1390 = vld [vmem:[%s1384 + $0x28] sm:$0xff]
  %v1391 = vld [vmem:[%s1384 + $0x30] sm:$0xff]
  %v1392 = vld [vmem:[%s1384 + $0x38] sm:$0xff]
  %v1393 = vld [vmem:[%s1384 + $0x40] sm:$0xff]
  %v1394 = vld [vmem:[%s1384 + $0x48] sm:$0xff]
  %v1395 = vld [vmem:[%s1384 + $0x50] sm:$0xff]
  %v1396 = vld [vmem:[%s1384 + $0x58] sm:$0xff]
  %v1397 = vld [vmem:[%s1384 + $0x60] sm:$0xff]
  %v1398 = vld [vmem:[%s1384 + $0x68] sm:$0xff]
  %v1399 = vld [vmem:[%s1384 + $0x70] sm:$0xff]
  %v1400 = vld [vmem:[%s1384 + $0x78] sm:$0xff]
  %v1401 = vld [vmem:[%s1384 + $0x80] sm:$0xff]
  %v1402 = vld [vmem:[%s1384 + $0x88] sm:$0xff]
  %v1403 = vld [vmem:[%s1384 + $0x90] sm:$0xff]
  %v1404 = vld [vmem:[%s1384 + $0x98] sm:$0xff]
  %v1405 = vld [vmem:[%s1384 + $0xa0] sm:$0xff]
  %v1406 = vld [vmem:[%s1384 + $0xa8] sm:$0xff]
  %v1407 = vld [vmem:[%s1384 + $0xb0] sm:$0xff]
  %v1408 = vld [vmem:[%s1384 + $0xb8] sm:$0xff]
  %v1409 = vld [vmem:[%s1384 + $0xc0] sm:$0xff]
  %v1410 = vld [vmem:[%s1384 + $0xc8] sm:$0xff]
  %v1411 = vld [vmem:[%s1384 + $0xd0] sm:$0xff]
  %v1412 = vld [vmem:[%s1384 + $0xd8] sm:$0xff]
  %v1413 = vld [vmem:[%s1384 + $0xe0] sm:$0xff]
  %v1414 = vld [vmem:[%s1384 + $0xe8] sm:$0xff]
  %v1415 = vld [vmem:[%s1384 + $0xf0] sm:$0xff]
  %v1416 = vld [vmem:[%s1384 + $0xf8] sm:$0xff]
  %v1417 = vld [vmem:[%s1384 + $0x100] sm:$0xff]
  %v1418 = vld [vmem:[%s1384 + $0x108] sm:$0xff]
  %v1419 = vld [vmem:[%s1384 + $0x110] sm:$0xff]
  %v1420 = vld [vmem:[%s1384 + $0x118] sm:$0xff]
  %v1421 = vld [vmem:[%s1384 + $0x120] sm:$0xff]
  %v1422 = vld [vmem:[%s1384 + $0x128] sm:$0xff]
  %v1423 = vld [vmem:[%s1384 + $0x130] sm:$0xff]
  %v1424 = vld [vmem:[%s1384 + $0x138] sm:$0xff]
  %v1425 = vld [vmem:[%s1384 + $0x140] sm:$0xff]
  %v1426 = vld [vmem:[%s1384 + $0x148] sm:$0xff]
  %v1427 = vld [vmem:[%s1384 + $0x150] sm:$0xff]
  %v1428 = vld [vmem:[%s1384 + $0x158] sm:$0xff]
  %v1429 = vld [vmem:[%s1384 + $0x160] sm:$0xff]
  %v1430 = vld [vmem:[%s1384 + $0x168] sm:$0xff]
  %v1431 = vld [vmem:[%s1384 + $0x170] sm:$0xff]
  %v1432 = vld [vmem:[%s1384 + $0x178] sm:$0xff]
  %v1433 = vld [vmem:[%s1384 + $0x180] sm:$0xff]
  %v1434 = vld [vmem:[%s1384 + $0x188] sm:$0xff]
  %v1435 = vld [vmem:[%s1384 + $0x190] sm:$0xff]
  %v1436 = vld [vmem:[%s1384 + $0x198] sm:$0xff]
  %v1437 = vld [vmem:[%s1384 + $0x1a0] sm:$0xff]
  %v1438 = vld [vmem:[%s1384 + $0x1a8] sm:$0xff]
  %v1439 = vld [vmem:[%s1384 + $0x1b0] sm:$0xff]
  %v1440 = vld [vmem:[%s1384 + $0x1b8] sm:$0xff]
  %v1441 = vld [vmem:[%s1384 + $0x1c0] sm:$0xff]
  %v1442 = vld [vmem:[%s1384 + $0x1c8] sm:$0xff]
  %v1443 = vld [vmem:[%s1384 + $0x1d0] sm:$0xff]
  %v1444 = vld [vmem:[%s1384 + $0x1d8] sm:$0xff]
  %v1445 = vld [vmem:[%s1384 + $0x1e0] sm:$0xff]
  %v1446 = vld [vmem:[%s1384 + $0x1e8] sm:$0xff]
  %v1447 = vld [vmem:[%s1384 + $0x1f0] sm:$0xff]
  %v1448 = vld [vmem:[%s1384 + $0x1f8] sm:$0xff]
  %v1449 = vld [vmem:[%s1384 + $0x200] sm:$0xff]
  %v1450 = vld [vmem:[%s1384 + $0x208] sm:$0xff]
  %v1451 = vld [vmem:[%s1384 + $0x210] sm:$0xff]
  %v1452 = vld [vmem:[%s1384 + $0x218] sm:$0xff]
  %v1453 = vld [vmem:[%s1384 + $0x220] sm:$0xff]
  %v1454 = vld [vmem:[%s1384 + $0x228] sm:$0xff]
  %v1455 = vld [vmem:[%s1384 + $0x230] sm:$0xff]
  %v1456 = vld [vmem:[%s1384 + $0x238] sm:$0xff]
  %v1457 = vld [vmem:[%s1384 + $0x240] sm:$0xff]
  %v1458 = vld [vmem:[%s1384 + $0x248] sm:$0xff]
  %v1459 = vld [vmem:[%s1384 + $0x250] sm:$0xff]
  %v1460 = vld [vmem:[%s1384 + $0x258] sm:$0xff]
  %v1461 = vld [vmem:[%s1384 + $0x260] sm:$0xff]
  %v1462 = vld [vmem:[%s1384 + $0x268] sm:$0xff]
  %v1463 = vld [vmem:[%s1384 + $0x270] sm:$0xff]
  %v1464 = vld [vmem:[%s1384 + $0x278] sm:$0xff]
  %v1465 = vld [vmem:[%s1384 + $0x280] sm:$0xff]
  %v1466 = vld [vmem:[%s1384 + $0x288] sm:$0xff]
  %v1467 = vld [vmem:[%s1384 + $0x290] sm:$0xff]
  %v1468 = vld [vmem:[%s1384 + $0x298] sm:$0xff]
  %v1469 = vld [vmem:[%s1384 + $0x2a0] sm:$0xff]
  %v1470 = vld [vmem:[%s1384 + $0x2a8] sm:$0xff]
  %v1471 = vld [vmem:[%s1384 + $0x2b0] sm:$0xff]
  %v1472 = vld [vmem:[%s1384 + $0x2b8] sm:$0xff]
  %v1473 = vld [vmem:[%s1384 + $0x2c0] sm:$0xff]
  %v1474 = vld [vmem:[%s1384 + $0x2c8] sm:$0xff]
  %v1475 = vld [vmem:[%s1384 + $0x2d0] sm:$0xff]
  %v1476 = vld [vmem:[%s1384 + $0x2d8] sm:$0xff]
  %v1477 = vld [vmem:[%s1384 + $0x2e0] sm:$0xff]
  %v1478 = vld [vmem:[%s1384 + $0x2e8] sm:$0xff]
  %v1479 = vld [vmem:[%s1384 + $0x2f0] sm:$0xff]
  %v1480 = vld [vmem:[%s1384 + $0x2f8] sm:$0xff]
  %v1481 = vld [vmem:[%s1384 + $0x300] sm:$0xff]
  %v1482 = vld [vmem:[%s1384 + $0x308] sm:$0xff]
  %v1483 = vld [vmem:[%s1384 + $0x310] sm:$0xff]
  %v1484 = vld [vmem:[%s1384 + $0x318] sm:$0xff]
  %v1485 = vld [vmem:[%s1384 + $0x320] sm:$0xff]
  %v1486 = vld [vmem:[%s1384 + $0x328] sm:$0xff]
  %v1487 = vld [vmem:[%s1384 + $0x330] sm:$0xff]
  %v1488 = vld [vmem:[%s1384 + $0x338] sm:$0xff]
  %v1489 = vld [vmem:[%s1384 + $0x340] sm:$0xff]
  %v1490 = vld [vmem:[%s1384 + $0x348] sm:$0xff]
  %v1491 = vld [vmem:[%s1384 + $0x350] sm:$0xff]
  %v1492 = vld [vmem:[%s1384 + $0x358] sm:$0xff]
  %v1493 = vld [vmem:[%s1384 + $0x360] sm:$0xff]
  %v1494 = vld [vmem:[%s1384 + $0x368] sm:$0xff]
  %v1495 = vld [vmem:[%s1384 + $0x370] sm:$0xff]
  %v1496 = vld [vmem:[%s1384 + $0x378] sm:$0xff]
  %v1497 = vld [vmem:[%s1384 + $0x380] sm:$0xff]
  %v1498 = vld [vmem:[%s1384 + $0x388] sm:$0xff]
  %v1499 = vld [vmem:[%s1384 + $0x390] sm:$0xff]
  %v1500 = vld [vmem:[%s1384 + $0x398] sm:$0xff]
  %v1501 = vld [vmem:[%s1384 + $0x3a0] sm:$0xff]
  %v1502 = vld [vmem:[%s1384 + $0x3a8] sm:$0xff]
  %v1503 = vld [vmem:[%s1384 + $0x3b0] sm:$0xff]
  %v1504 = vld [vmem:[%s1384 + $0x3b8] sm:$0xff]
  %v1505 = vld [vmem:[%s1384 + $0x3c0] sm:$0xff]
  %v1506 = vld [vmem:[%s1384 + $0x3c8] sm:$0xff]
  %v1507 = vld [vmem:[%s1384 + $0x3d0] sm:$0xff]
  %v1508 = vld [vmem:[%s1384 + $0x3d8] sm:$0xff]
  %v1509 = vld [vmem:[%s1384 + $0x3e0] sm:$0xff]
  %v1510 = vld [vmem:[%s1384 + $0x3e8] sm:$0xff]
  %v1511 = vld [vmem:[%s1384 + $0x3f0] sm:$0xff]
  %v1512 = vld [vmem:[%s1384 + $0x3f8] sm:$0xff]
  %v1513 = vld [vmem:[%s1384 + $0x400] sm:$0xff]
  %v1514 = vld [vmem:[%s1384 + $0x408] sm:$0xff]
  %v1515 = vld [vmem:[%s1384 + $0x410] sm:$0xff]
  %v1516 = vld [vmem:[%s1384 + $0x418] sm:$0xff]
  %v1517 = vld [vmem:[%s1384 + $0x420] sm:$0xff]
  %v1518 = vld [vmem:[%s1384 + $0x428] sm:$0xff]
  %v1519 = vld [vmem:[%s1384 + $0x430] sm:$0xff]
  %v1520 = vld [vmem:[%s1384 + $0x438] sm:$0xff]
  %v1521 = vld [vmem:[%s1384 + $0x440] sm:$0xff]
  %v1522 = vld [vmem:[%s1384 + $0x448] sm:$0xff]
  %v1523 = vld [vmem:[%s1384 + $0x450] sm:$0xff]
  %v1524 = vld [vmem:[%s1384 + $0x458] sm:$0xff]
  %v1525 = vld [vmem:[%s1384 + $0x460] sm:$0xff]
  %v1526 = vld [vmem:[%s1384 + $0x468] sm:$0xff]
  %v1527 = vld [vmem:[%s1384 + $0x470] sm:$0xff]
  %v1528 = vld [vmem:[%s1384 + $0x478] sm:$0xff]
  %v1530 = vsel %vm162, %v1385, 0
  %v1533 = vsel %vm162, %v1386, 0
  %v1536 = vsel %vm162, %v1387, 0
  %v1539 = vsel %vm162, %v1388, 0
  %v1542 = vsel %vm162, %v1389, 0
  %v1545 = vsel %vm162, %v1390, 0
  %v1548 = vsel %vm162, %v1391, 0
  %v1551 = vsel %vm162, %v1392, 0
  %v1554 = vsel %vm162, %v1393, 0
  %v1557 = vsel %vm162, %v1394, 0
  %v1560 = vsel %vm162, %v1395, 0
  %v1563 = vsel %vm162, %v1396, 0
  %v1566 = vsel %vm162, %v1397, 0
  %v1569 = vsel %vm162, %v1398, 0
  %v1572 = vsel %vm162, %v1399, 0
  %v1575 = vsel %vm162, %v1400, 0
  %v1578 = vsel %vm162, %v1401, 0
  %v1581 = vsel %vm162, %v1402, 0
  %v1584 = vsel %vm162, %v1403, 0
  %v1587 = vsel %vm162, %v1404, 0
  %v1590 = vsel %vm162, %v1405, 0
  %v1593 = vsel %vm162, %v1406, 0
  %v1596 = vsel %vm162, %v1407, 0
  %v1599 = vsel %vm162, %v1408, 0
  %v1602 = vsel %vm162, %v1409, 0
  %v1605 = vsel %vm162, %v1410, 0
  %v1608 = vsel %vm162, %v1411, 0
  %v1611 = vsel %vm162, %v1412, 0
  %v1614 = vsel %vm162, %v1413, 0
  %v1617 = vsel %vm162, %v1414, 0
  %v1620 = vsel %vm162, %v1415, 0
  %v1623 = vsel %vm162, %v1416, 0
  %v1626 = vsel %vm162, %v1417, 0
  %v1629 = vsel %vm162, %v1418, 0
  %v1632 = vsel %vm162, %v1419, 0
  %v1635 = vsel %vm162, %v1420, 0
  %v1638 = vsel %vm162, %v1421, 0
  %v1641 = vsel %vm162, %v1422, 0
  %v1644 = vsel %vm162, %v1423, 0
  %v1647 = vsel %vm162, %v1424, 0
  %v1650 = vsel %vm162, %v1425, 0
  %v1653 = vsel %vm162, %v1426, 0
  %v1656 = vsel %vm162, %v1427, 0
  %v1659 = vsel %vm162, %v1428, 0
  %v1662 = vsel %vm162, %v1429, 0
  %v1665 = vsel %vm162, %v1430, 0
  %v1668 = vsel %vm162, %v1431, 0
  %v1671 = vsel %vm162, %v1432, 0
  %v1674 = vsel %vm162, %v1433, 0
  %v1677 = vsel %vm162, %v1434, 0
  %v1680 = vsel %vm162, %v1435, 0
  %v1683 = vsel %vm162, %v1436, 0
  %v1686 = vsel %vm162, %v1437, 0
  %v1689 = vsel %vm162, %v1438, 0
  %v1692 = vsel %vm162, %v1439, 0
  %v1695 = vsel %vm162, %v1440, 0
  %v1698 = vsel %vm162, %v1441, 0
  %v1701 = vsel %vm162, %v1442, 0
  %v1704 = vsel %vm162, %v1443, 0
  %v1707 = vsel %vm162, %v1444, 0
  %v1710 = vsel %vm162, %v1445, 0
  %v1713 = vsel %vm162, %v1446, 0
  %v1716 = vsel %vm162, %v1447, 0
  %v1719 = vsel %vm162, %v1448, 0
  %v1722 = vsel %vm162, %v1449, 0
  %v1725 = vsel %vm162, %v1450, 0
  %v1728 = vsel %vm162, %v1451, 0
  %v1731 = vsel %vm162, %v1452, 0
  %v1734 = vsel %vm162, %v1453, 0
  %v1737 = vsel %vm162, %v1454, 0
  %v1740 = vsel %vm162, %v1455, 0
  %v1743 = vsel %vm162, %v1456, 0
  %v1746 = vsel %vm162, %v1457, 0
  %v1749 = vsel %vm162, %v1458, 0
  %v1752 = vsel %vm162, %v1459, 0
  %v1755 = vsel %vm162, %v1460, 0
  %v1758 = vsel %vm162, %v1461, 0
  %v1761 = vsel %vm162, %v1462, 0
  %v1764 = vsel %vm162, %v1463, 0
  %v1767 = vsel %vm162, %v1464, 0
  %v1770 = vsel %vm162, %v1465, 0
  %v1773 = vsel %vm162, %v1466, 0
  %v1776 = vsel %vm162, %v1467, 0
  %v1779 = vsel %vm162, %v1468, 0
  %v1782 = vsel %vm162, %v1469, 0
  %v1785 = vsel %vm162, %v1470, 0
  %v1788 = vsel %vm162, %v1471, 0
  %v1791 = vsel %vm162, %v1472, 0
  %v1794 = vsel %vm162, %v1473, 0
  %v1797 = vsel %vm162, %v1474, 0
  %v1800 = vsel %vm162, %v1475, 0
  %v1803 = vsel %vm162, %v1476, 0
  %v1806 = vsel %vm162, %v1477, 0
  %v1809 = vsel %vm162, %v1478, 0
  %v1812 = vsel %vm162, %v1479, 0
  %v1815 = vsel %vm162, %v1480, 0
  %v1818 = vsel %vm162, %v1481, 0
  %v1821 = vsel %vm162, %v1482, 0
  %v1824 = vsel %vm162, %v1483, 0
  %v1827 = vsel %vm162, %v1484, 0
  %v1830 = vsel %vm162, %v1485, 0
  %v1833 = vsel %vm162, %v1486, 0
  %v1836 = vsel %vm162, %v1487, 0
  %v1839 = vsel %vm162, %v1488, 0
  %v1842 = vsel %vm162, %v1489, 0
  %v1845 = vsel %vm162, %v1490, 0
  %v1848 = vsel %vm162, %v1491, 0
  %v1851 = vsel %vm162, %v1492, 0
  %v1854 = vsel %vm162, %v1493, 0
  %v1857 = vsel %vm162, %v1494, 0
  %v1860 = vsel %vm162, %v1495, 0
  %v1863 = vsel %vm162, %v1496, 0
  %v1866 = vsel %vm162, %v1497, 0
  %v1869 = vsel %vm162, %v1498, 0
  %v1872 = vsel %vm162, %v1499, 0
  %v1875 = vsel %vm162, %v1500, 0
  %v1878 = vsel %vm162, %v1501, 0
  %v1881 = vsel %vm162, %v1502, 0
  %v1884 = vsel %vm162, %v1503, 0
  %v1887 = vsel %vm162, %v1504, 0
  %v1890 = vsel %vm162, %v1505, 0
  %v1893 = vsel %vm162, %v1506, 0
  %v1896 = vsel %vm162, %v1507, 0
  %v1899 = vsel %vm162, %v1508, 0
  %v1902 = vsel %vm162, %v1509, 0
  %v1905 = vsel %vm162, %v1510, 0
  %v1908 = vsel %vm162, %v1511, 0
  %v1911 = vsel %vm162, %v1512, 0
  %v1914 = vsel %vm162, %v1513, 0
  %v1917 = vsel %vm162, %v1514, 0
  %v1920 = vsel %vm162, %v1515, 0
  %v1923 = vsel %vm162, %v1516, 0
  %v1926 = vsel %vm162, %v1517, 0
  %v1929 = vsel %vm162, %v1518, 0
  %v1932 = vsel %vm162, %v1519, 0
  %v1935 = vsel %vm162, %v1520, 0
  %v1938 = vsel %vm162, %v1521, 0
  %v1941 = vsel %vm162, %v1522, 0
  %v1944 = vsel %vm162, %v1523, 0
  %v1947 = vsel %vm162, %v1524, 0
  %v1950 = vsel %vm162, %v1525, 0
  %v1953 = vsel %vm162, %v1526, 0
  %v1956 = vsel %vm162, %v1527, 0
  %v1959 = vsel %vm162, %v1528, 0
  %1961 = vmatprep.subr.mxu0 0.0
  %1962 = vmatpush1.msra.mxu0 0.0
  %1963 = vmatprep.subr.mxu0 0.0
  %1964 = vmatpush1.msra.mxu0 0.0
  %1965 = vmatprep.subr.mxu0 0.0
  %1966 = vmatpush1.msra.mxu0 0.0
  %1967 = vmatprep.subr.mxu0 0.0
  %1968 = vmatpush1.msra.mxu0 0.0
  %1969 = vmatprep.subr.mxu0 0.0
  %1970 = vmatpush1.msra.mxu0 0.0
  %1971 = vmatprep.subr.mxu0 0.0
  %1972 = vmatpush1.msra.mxu0 0.0
  %1973 = vmatprep.subr.mxu0 0.0
  %1974 = vmatpush1.msra.mxu0 0.0
  %1975 = vmatprep.subr.mxu0 0.0
  %1976 = vmatpush1.msra.mxu0 0.0
  %1977 = vmatprep.subr.mxu0 0.0
  %1978 = vmatpush1.msra.mxu0 0.0
  %1979 = vmatprep.subr.mxu0 0.0
  %1980 = vmatpush1.msra.mxu0 0.0
  %1981 = vmatprep.subr.mxu0 0.0
  %1982 = vmatpush1.msra.mxu0 0.0
  %1983 = vmatprep.subr.mxu0 0.0
  %1984 = vmatpush1.msra.mxu0 0.0
  %1985 = vmatprep.subr.mxu0 0.0
  %1986 = vmatpush1.msra.mxu0 %v597
  %1987 = vmatprep.subr.mxu0 0.0
  %1988 = vmatpush1.msra.mxu0 %v16
  %1989 = vmatprep.subr.mxu0 0.0
  %1990 = vmatpush1.msra.mxu0 %v15
  %1991 = vmatprep.subr.mxu0 0.0
  %1992 = vmatpush1.msra.mxu0 %v14
  %1993 = vmatprep.subr.mxu0 0.0
  %1994 = vmatpush2.msra.mxu0 0.0
  %1995 = vmatprep.subr.mxu0 0.0
  %1996 = vmatpush2.msra.mxu0 0.0
  %1997 = vmatprep.subr.mxu0 0.0
  %1998 = vmatpush2.msra.mxu0 0.0
  %1999 = vmatprep.subr.mxu0 0.0
  %2000 = vmatpush2.msra.mxu0 0.0
  %2001 = vmatprep.subr.mxu0 0.0
  %2002 = vmatpush2.msra.mxu0 0.0
  %2003 = vmatprep.subr.mxu0 0.0
  %2004 = vmatpush2.msra.mxu0 0.0
  %2005 = vmatprep.subr.mxu0 0.0
  %2006 = vmatpush2.msra.mxu0 0.0
  %2007 = vmatprep.subr.mxu0 0.0
  %2008 = vmatpush2.msra.mxu0 0.0
  %2009 = vmatprep.subr.mxu0 0.0
  %2010 = vmatpush2.msra.mxu0 0.0
  %2011 = vmatprep.subr.mxu0 0.0
  %2012 = vmatpush2.msra.mxu0 0.0
  %2013 = vmatprep.subr.mxu0 0.0
  %2014 = vmatpush2.msra.mxu0 0.0
  %2015 = vmatprep.subr.mxu0 0.0
  %2016 = vmatpush2.msra.mxu0 0.0
  %2017 = vmatprep.subr.mxu0 0.0
  %2018 = vmatpush2.msra.mxu0 0.0
  %2019 = vmatprep.subr.mxu0 0.0
  %2020 = vmatpush2.msra.mxu0 0.0
  %2021 = vmatprep.subr.mxu0 0.0
  %2022 = vmatpush2.msra.mxu0 0.0
  %2023 = vmatprep.subr.mxu0 0.0
  %2024 = vmatpush2.msra.mxu0 0.0
  %2025 = vmatprep.mubr.f32.mxu0 0.0
  %2026 = vmatmul.mubr.f32.gmra.mxu0 %v1530
  %v2027 = vpop.f32.mrf.mxu0
  %v2028 = vadd.f32 0.0, %v2027
  %v2029 = vpop.f32.mrf.mxu0
  %2030 = vmatprep.mubr.f32.mxu0 0.0
  %2031 = vmatmul.mubr.f32.gmra.mxu0 %v1533
  %v2032 = vpop.f32.mrf.mxu0
  %v2033 = vadd.f32 0.0, %v2032
  %v2034 = vpop.f32.mrf.mxu0
  %2035 = vmatprep.mubr.f32.mxu0 0.0
  %2036 = vmatmul.mubr.f32.gmra.mxu0 %v1536
  %v2037 = vpop.f32.mrf.mxu0
  %v2038 = vadd.f32 0.0, %v2037
  %v2039 = vpop.f32.mrf.mxu0
  %2040 = vmatprep.mubr.f32.mxu0 0.0
  %2041 = vmatmul.mubr.f32.gmra.mxu0 %v1539
  %v2042 = vpop.f32.mrf.mxu0
  %v2043 = vadd.f32 0.0, %v2042
  %v2044 = vpop.f32.mrf.mxu0
  %2045 = vmatprep.mubr.f32.mxu0 0.0
  %2046 = vmatmul.mubr.f32.gmra.mxu0 %v1542
  %v2047 = vpop.f32.mrf.mxu0
  %v2048 = vadd.f32 0.0, %v2047
  %v2049 = vpop.f32.mrf.mxu0
  %2050 = vmatprep.mubr.f32.mxu0 0.0
  %2051 = vmatmul.mubr.f32.gmra.mxu0 %v1545
  %v2052 = vpop.f32.mrf.mxu0
  %v2053 = vadd.f32 0.0, %v2052
  %v2054 = vpop.f32.mrf.mxu0
  %2055 = vmatprep.mubr.f32.mxu0 0.0
  %2056 = vmatmul.mubr.f32.gmra.mxu0 %v1548
  %v2057 = vpop.f32.mrf.mxu0
  %v2058 = vadd.f32 0.0, %v2057
  %v2059 = vpop.f32.mrf.mxu0
  %2060 = vmatprep.mubr.f32.mxu0 0.0
  %2061 = vmatmul.mubr.f32.gmra.mxu0 %v1551
  %v2062 = vpop.f32.mrf.mxu0
  %v2063 = vadd.f32 0.0, %v2062
  %v2064 = vpop.f32.mrf.mxu0
  %2065 = vmatprep.mubr.f32.mxu0 0.0
  %2066 = vmatmul.mubr.f32.gmra.mxu0 %v1554
  %v2067 = vpop.f32.mrf.mxu0
  %v2068 = vadd.f32 0.0, %v2067
  %v2069 = vpop.f32.mrf.mxu0
  %2070 = vmatprep.mubr.f32.mxu0 0.0
  %2071 = vmatmul.mubr.f32.gmra.mxu0 %v1557
  %v2072 = vpop.f32.mrf.mxu0
  %v2073 = vadd.f32 0.0, %v2072
  %v2074 = vpop.f32.mrf.mxu0
  %2075 = vmatprep.mubr.f32.mxu0 0.0
  %2076 = vmatmul.mubr.f32.gmra.mxu0 %v1560
  %v2077 = vpop.f32.mrf.mxu0
  %v2078 = vadd.f32 0.0, %v2077
  %v2079 = vpop.f32.mrf.mxu0
  %2080 = vmatprep.mubr.f32.mxu0 0.0
  %2081 = vmatmul.mubr.f32.gmra.mxu0 %v1563
  %v2082 = vpop.f32.mrf.mxu0
  %v2083 = vadd.f32 0.0, %v2082
  %v2084 = vpop.f32.mrf.mxu0
  %2085 = vmatprep.mubr.f32.mxu0 0.0
  %2086 = vmatmul.mubr.f32.gmra.mxu0 %v1566
  %v2087 = vpop.f32.mrf.mxu0
  %v2088 = vadd.f32 0.0, %v2087
  %v2089 = vpop.f32.mrf.mxu0
  %2090 = vmatprep.mubr.f32.mxu0 0.0
  %2091 = vmatmul.mubr.f32.gmra.mxu0 %v1569
  %v2092 = vpop.f32.mrf.mxu0
  %v2093 = vadd.f32 0.0, %v2092
  %v2094 = vpop.f32.mrf.mxu0
  %2095 = vmatprep.mubr.f32.mxu0 0.0
  %2096 = vmatmul.mubr.f32.gmra.mxu0 %v1572
  %v2097 = vpop.f32.mrf.mxu0
  %v2098 = vadd.f32 0.0, %v2097
  %v2099 = vpop.f32.mrf.mxu0
  %2100 = vmatprep.mubr.f32.mxu0 0.0
  %2101 = vmatmul.mubr.f32.gmra.mxu0 %v1575
  %v2102 = vpop.f32.mrf.mxu0
  %v2103 = vadd.f32 0.0, %v2102
  %v2104 = vpop.f32.mrf.mxu0
  %2105 = vmatprep.mubr.f32.mxu0 0.0
  %2106 = vmatmul.mubr.f32.gmra.mxu0 %v1578
  %v2107 = vpop.f32.mrf.mxu0
  %v2108 = vadd.f32 0.0, %v2107
  %v2109 = vpop.f32.mrf.mxu0
  %2110 = vmatprep.mubr.f32.mxu0 0.0
  %2111 = vmatmul.mubr.f32.gmra.mxu0 %v1581
  %v2112 = vpop.f32.mrf.mxu0
  %v2113 = vadd.f32 0.0, %v2112
  %v2114 = vpop.f32.mrf.mxu0
  %2115 = vmatprep.mubr.f32.mxu0 0.0
  %2116 = vmatmul.mubr.f32.gmra.mxu0 %v1584
  %v2117 = vpop.f32.mrf.mxu0
  %v2118 = vadd.f32 0.0, %v2117
  %v2119 = vpop.f32.mrf.mxu0
  %2120 = vmatprep.mubr.f32.mxu0 0.0
  %2121 = vmatmul.mubr.f32.gmra.mxu0 %v1587
  %v2122 = vpop.f32.mrf.mxu0
  %v2123 = vadd.f32 0.0, %v2122
  %v2124 = vpop.f32.mrf.mxu0
  %2125 = vmatprep.mubr.f32.mxu0 0.0
  %2126 = vmatmul.mubr.f32.gmra.mxu0 %v1590
  %v2127 = vpop.f32.mrf.mxu0
  %v2128 = vadd.f32 0.0, %v2127
  %v2129 = vpop.f32.mrf.mxu0
  %2130 = vmatprep.mubr.f32.mxu0 0.0
  %2131 = vmatmul.mubr.f32.gmra.mxu0 %v1593
  %v2132 = vpop.f32.mrf.mxu0
  %v2133 = vadd.f32 0.0, %v2132
  %v2134 = vpop.f32.mrf.mxu0
  %2135 = vmatprep.mubr.f32.mxu0 0.0
  %2136 = vmatmul.mubr.f32.gmra.mxu0 %v1596
  %v2137 = vpop.f32.mrf.mxu0
  %v2138 = vadd.f32 0.0, %v2137
  %v2139 = vpop.f32.mrf.mxu0
  %2140 = vmatprep.mubr.f32.mxu0 0.0
  %2141 = vmatmul.mubr.f32.gmra.mxu0 %v1599
  %v2142 = vpop.f32.mrf.mxu0
  %v2143 = vadd.f32 0.0, %v2142
  %v2144 = vpop.f32.mrf.mxu0
  %2145 = vmatprep.mubr.f32.mxu0 0.0
  %2146 = vmatmul.mubr.f32.gmra.mxu0 %v1602
  %v2147 = vpop.f32.mrf.mxu0
  %v2148 = vadd.f32 0.0, %v2147
  %v2149 = vpop.f32.mrf.mxu0
  %2150 = vmatprep.mubr.f32.mxu0 0.0
  %2151 = vmatmul.mubr.f32.gmra.mxu0 %v1605
  %v2152 = vpop.f32.mrf.mxu0
  %v2153 = vadd.f32 0.0, %v2152
  %v2154 = vpop.f32.mrf.mxu0
  %2155 = vmatprep.mubr.f32.mxu0 0.0
  %2156 = vmatmul.mubr.f32.gmra.mxu0 %v1608
  %v2157 = vpop.f32.mrf.mxu0
  %v2158 = vadd.f32 0.0, %v2157
  %v2159 = vpop.f32.mrf.mxu0
  %2160 = vmatprep.mubr.f32.mxu0 0.0
  %2161 = vmatmul.mubr.f32.gmra.mxu0 %v1611
  %v2162 = vpop.f32.mrf.mxu0
  %v2163 = vadd.f32 0.0, %v2162
  %v2164 = vpop.f32.mrf.mxu0
  %2165 = vmatprep.mubr.f32.mxu0 0.0
  %2166 = vmatmul.mubr.f32.gmra.mxu0 %v1614
  %v2167 = vpop.f32.mrf.mxu0
  %v2168 = vadd.f32 0.0, %v2167
  %v2169 = vpop.f32.mrf.mxu0
  %2170 = vmatprep.mubr.f32.mxu0 0.0
  %2171 = vmatmul.mubr.f32.gmra.mxu0 %v1617
  %v2172 = vpop.f32.mrf.mxu0
  %v2173 = vadd.f32 0.0, %v2172
  %v2174 = vpop.f32.mrf.mxu0
  %2175 = vmatprep.mubr.f32.mxu0 0.0
  %2176 = vmatmul.mubr.f32.gmra.mxu0 %v1620
  %v2177 = vpop.f32.mrf.mxu0
  %v2178 = vadd.f32 0.0, %v2177
  %v2179 = vpop.f32.mrf.mxu0
  %2180 = vmatprep.mubr.f32.mxu0 0.0
  %2181 = vmatmul.mubr.f32.gmra.mxu0 %v1623
  %v2182 = vpop.f32.mrf.mxu0
  %v2183 = vadd.f32 0.0, %v2182
  %v2184 = vpop.f32.mrf.mxu0
  %2185 = vmatprep.mubr.f32.mxu0 0.0
  %2186 = vmatmul.mubr.f32.gmra.mxu0 %v1626
  %v2187 = vpop.f32.mrf.mxu0
  %v2188 = vadd.f32 0.0, %v2187
  %v2189 = vpop.f32.mrf.mxu0
  %2190 = vmatprep.mubr.f32.mxu0 0.0
  %2191 = vmatmul.mubr.f32.gmra.mxu0 %v1629
  %v2192 = vpop.f32.mrf.mxu0
  %v2193 = vadd.f32 0.0, %v2192
  %v2194 = vpop.f32.mrf.mxu0
  %2195 = vmatprep.mubr.f32.mxu0 0.0
  %2196 = vmatmul.mubr.f32.gmra.mxu0 %v1632
  %v2197 = vpop.f32.mrf.mxu0
  %v2198 = vadd.f32 0.0, %v2197
  %v2199 = vpop.f32.mrf.mxu0
  %2200 = vmatprep.mubr.f32.mxu0 0.0
  %2201 = vmatmul.mubr.f32.gmra.mxu0 %v1635
  %v2202 = vpop.f32.mrf.mxu0
  %v2203 = vadd.f32 0.0, %v2202
  %v2204 = vpop.f32.mrf.mxu0
  %2205 = vmatprep.mubr.f32.mxu0 0.0
  %2206 = vmatmul.mubr.f32.gmra.mxu0 %v1638
  %v2207 = vpop.f32.mrf.mxu0
  %v2208 = vadd.f32 0.0, %v2207
  %v2209 = vpop.f32.mrf.mxu0
  %2210 = vmatprep.mubr.f32.mxu0 0.0
  %2211 = vmatmul.mubr.f32.gmra.mxu0 %v1641
  %v2212 = vpop.f32.mrf.mxu0
  %v2213 = vadd.f32 0.0, %v2212
  %v2214 = vpop.f32.mrf.mxu0
  %2215 = vmatprep.mubr.f32.mxu0 0.0
  %2216 = vmatmul.mubr.f32.gmra.mxu0 %v1644
  %v2217 = vpop.f32.mrf.mxu0
  %v2218 = vadd.f32 0.0, %v2217
  %v2219 = vpop.f32.mrf.mxu0
  %2220 = vmatprep.mubr.f32.mxu0 0.0
  %2221 = vmatmul.mubr.f32.gmra.mxu0 %v1647
  %v2222 = vpop.f32.mrf.mxu0
  %v2223 = vadd.f32 0.0, %v2222
  %v2224 = vpop.f32.mrf.mxu0
  %2225 = vmatprep.mubr.f32.mxu0 0.0
  %2226 = vmatmul.mubr.f32.gmra.mxu0 %v1650
  %v2227 = vpop.f32.mrf.mxu0
  %v2228 = vadd.f32 0.0, %v2227
  %v2229 = vpop.f32.mrf.mxu0
  %2230 = vmatprep.mubr.f32.mxu0 0.0
  %2231 = vmatmul.mubr.f32.gmra.mxu0 %v1653
  %v2232 = vpop.f32.mrf.mxu0
  %v2233 = vadd.f32 0.0, %v2232
  %v2234 = vpop.f32.mrf.mxu0
  %2235 = vmatprep.mubr.f32.mxu0 0.0
  %2236 = vmatmul.mubr.f32.gmra.mxu0 %v1656
  %v2237 = vpop.f32.mrf.mxu0
  %v2238 = vadd.f32 0.0, %v2237
  %v2239 = vpop.f32.mrf.mxu0
  %2240 = vmatprep.mubr.f32.mxu0 0.0
  %2241 = vmatmul.mubr.f32.gmra.mxu0 %v1659
  %v2242 = vpop.f32.mrf.mxu0
  %v2243 = vadd.f32 0.0, %v2242
  %v2244 = vpop.f32.mrf.mxu0
  %2245 = vmatprep.mubr.f32.mxu0 0.0
  %2246 = vmatmul.mubr.f32.gmra.mxu0 %v1662
  %v2247 = vpop.f32.mrf.mxu0
  %v2248 = vadd.f32 0.0, %v2247
  %v2249 = vpop.f32.mrf.mxu0
  %2250 = vmatprep.mubr.f32.mxu0 0.0
  %2251 = vmatmul.mubr.f32.gmra.mxu0 %v1665
  %v2252 = vpop.f32.mrf.mxu0
  %v2253 = vadd.f32 0.0, %v2252
  %v2254 = vpop.f32.mrf.mxu0
  %2255 = vmatprep.mubr.f32.mxu0 0.0
  %2256 = vmatmul.mubr.f32.gmra.mxu0 %v1668
  %v2257 = vpop.f32.mrf.mxu0
  %v2258 = vadd.f32 0.0, %v2257
  %v2259 = vpop.f32.mrf.mxu0
  %2260 = vmatprep.mubr.f32.mxu0 0.0
  %2261 = vmatmul.mubr.f32.gmra.mxu0 %v1671
  %v2262 = vpop.f32.mrf.mxu0
  %v2263 = vadd.f32 0.0, %v2262
  %v2264 = vpop.f32.mrf.mxu0
  %2265 = vmatprep.mubr.f32.mxu0 0.0
  %2266 = vmatmul.mubr.f32.gmra.mxu0 %v1674
  %v2267 = vpop.f32.mrf.mxu0
  %v2268 = vadd.f32 0.0, %v2267
  %v2269 = vpop.f32.mrf.mxu0
  %2270 = vmatprep.mubr.f32.mxu0 0.0
  %2271 = vmatmul.mubr.f32.gmra.mxu0 %v1677
  %v2272 = vpop.f32.mrf.mxu0
  %v2273 = vadd.f32 0.0, %v2272
  %v2274 = vpop.f32.mrf.mxu0
  %2275 = vmatprep.mubr.f32.mxu0 0.0
  %2276 = vmatmul.mubr.f32.gmra.mxu0 %v1680
  %v2277 = vpop.f32.mrf.mxu0
  %v2278 = vadd.f32 0.0, %v2277
  %v2279 = vpop.f32.mrf.mxu0
  %2280 = vmatprep.mubr.f32.mxu0 0.0
  %2281 = vmatmul.mubr.f32.gmra.mxu0 %v1683
  %v2282 = vpop.f32.mrf.mxu0
  %v2283 = vadd.f32 0.0, %v2282
  %v2284 = vpop.f32.mrf.mxu0
  %2285 = vmatprep.mubr.f32.mxu0 0.0
  %2286 = vmatmul.mubr.f32.gmra.mxu0 %v1686
  %v2287 = vpop.f32.mrf.mxu0
  %v2288 = vadd.f32 0.0, %v2287
  %v2289 = vpop.f32.mrf.mxu0
  %2290 = vmatprep.mubr.f32.mxu0 0.0
  %2291 = vmatmul.mubr.f32.gmra.mxu0 %v1689
  %v2292 = vpop.f32.mrf.mxu0
  %v2293 = vadd.f32 0.0, %v2292
  %v2294 = vpop.f32.mrf.mxu0
  %2295 = vmatprep.mubr.f32.mxu0 0.0
  %2296 = vmatmul.mubr.f32.gmra.mxu0 %v1692
  %v2297 = vpop.f32.mrf.mxu0
  %v2298 = vadd.f32 0.0, %v2297
  %v2299 = vpop.f32.mrf.mxu0
  %2300 = vmatprep.mubr.f32.mxu0 0.0
  %2301 = vmatmul.mubr.f32.gmra.mxu0 %v1695
  %v2302 = vpop.f32.mrf.mxu0
  %v2303 = vadd.f32 0.0, %v2302
  %v2304 = vpop.f32.mrf.mxu0
  %2305 = vmatprep.mubr.f32.mxu0 0.0
  %2306 = vmatmul.mubr.f32.gmra.mxu0 %v1698
  %v2307 = vpop.f32.mrf.mxu0
  %v2308 = vadd.f32 0.0, %v2307
  %v2309 = vpop.f32.mrf.mxu0
  %2310 = vmatprep.mubr.f32.mxu0 0.0
  %2311 = vmatmul.mubr.f32.gmra.mxu0 %v1701
  %v2312 = vpop.f32.mrf.mxu0
  %v2313 = vadd.f32 0.0, %v2312
  %v2314 = vpop.f32.mrf.mxu0
  %2315 = vmatprep.mubr.f32.mxu0 0.0
  %2316 = vmatmul.mubr.f32.gmra.mxu0 %v1704
  %v2317 = vpop.f32.mrf.mxu0
  %v2318 = vadd.f32 0.0, %v2317
  %v2319 = vpop.f32.mrf.mxu0
  %2320 = vmatprep.mubr.f32.mxu0 0.0
  %2321 = vmatmul.mubr.f32.gmra.mxu0 %v1707
  %v2322 = vpop.f32.mrf.mxu0
  %v2323 = vadd.f32 0.0, %v2322
  %v2324 = vpop.f32.mrf.mxu0
  %2325 = vmatprep.mubr.f32.mxu0 0.0
  %2326 = vmatmul.mubr.f32.gmra.mxu0 %v1710
  %v2327 = vpop.f32.mrf.mxu0
  %v2328 = vadd.f32 0.0, %v2327
  %v2329 = vpop.f32.mrf.mxu0
  %2330 = vmatprep.mubr.f32.mxu0 0.0
  %2331 = vmatmul.mubr.f32.gmra.mxu0 %v1713
  %v2332 = vpop.f32.mrf.mxu0
  %v2333 = vadd.f32 0.0, %v2332
  %v2334 = vpop.f32.mrf.mxu0
  %2335 = vmatprep.mubr.f32.mxu0 0.0
  %2336 = vmatmul.mubr.f32.gmra.mxu0 %v1716
  %v2337 = vpop.f32.mrf.mxu0
  %v2338 = vadd.f32 0.0, %v2337
  %v2339 = vpop.f32.mrf.mxu0
  %2340 = vmatprep.mubr.f32.mxu0 0.0
  %2341 = vmatmul.mubr.f32.gmra.mxu0 %v1719
  %v2342 = vpop.f32.mrf.mxu0
  %v2343 = vadd.f32 0.0, %v2342
  %v2344 = vpop.f32.mrf.mxu0
  %2345 = vmatprep.mubr.f32.mxu0 0.0
  %2346 = vmatmul.mubr.f32.gmra.mxu0 %v1722
  %v2347 = vpop.f32.mrf.mxu0
  %v2348 = vadd.f32 0.0, %v2347
  %v2349 = vpop.f32.mrf.mxu0
  %2350 = vmatprep.mubr.f32.mxu0 0.0
  %2351 = vmatmul.mubr.f32.gmra.mxu0 %v1725
  %v2352 = vpop.f32.mrf.mxu0
  %v2353 = vadd.f32 0.0, %v2352
  %v2354 = vpop.f32.mrf.mxu0
  %2355 = vmatprep.mubr.f32.mxu0 0.0
  %2356 = vmatmul.mubr.f32.gmra.mxu0 %v1728
  %v2357 = vpop.f32.mrf.mxu0
  %v2358 = vadd.f32 0.0, %v2357
  %v2359 = vpop.f32.mrf.mxu0
  %2360 = vmatprep.mubr.f32.mxu0 0.0
  %2361 = vmatmul.mubr.f32.gmra.mxu0 %v1731
  %v2362 = vpop.f32.mrf.mxu0
  %v2363 = vadd.f32 0.0, %v2362
  %v2364 = vpop.f32.mrf.mxu0
  %2365 = vmatprep.mubr.f32.mxu0 0.0
  %2366 = vmatmul.mubr.f32.gmra.mxu0 %v1734
  %v2367 = vpop.f32.mrf.mxu0
  %v2368 = vadd.f32 0.0, %v2367
  %v2369 = vpop.f32.mrf.mxu0
  %2370 = vmatprep.mubr.f32.mxu0 0.0
  %2371 = vmatmul.mubr.f32.gmra.mxu0 %v1737
  %v2372 = vpop.f32.mrf.mxu0
  %v2373 = vadd.f32 0.0, %v2372
  %v2374 = vpop.f32.mrf.mxu0
  %2375 = vmatprep.mubr.f32.mxu0 0.0
  %2376 = vmatmul.mubr.f32.gmra.mxu0 %v1740
  %v2377 = vpop.f32.mrf.mxu0
  %v2378 = vadd.f32 0.0, %v2377
  %v2379 = vpop.f32.mrf.mxu0
  %2380 = vmatprep.mubr.f32.mxu0 0.0
  %2381 = vmatmul.mubr.f32.gmra.mxu0 %v1743
  %v2382 = vpop.f32.mrf.mxu0
  %v2383 = vadd.f32 0.0, %v2382
  %v2384 = vpop.f32.mrf.mxu0
  %2385 = vmatprep.mubr.f32.mxu0 0.0
  %2386 = vmatmul.mubr.f32.gmra.mxu0 %v1746
  %v2387 = vpop.f32.mrf.mxu0
  %v2388 = vadd.f32 0.0, %v2387
  %v2389 = vpop.f32.mrf.mxu0
  %2390 = vmatprep.mubr.f32.mxu0 0.0
  %2391 = vmatmul.mubr.f32.gmra.mxu0 %v1749
  %v2392 = vpop.f32.mrf.mxu0
  %v2393 = vadd.f32 0.0, %v2392
  %v2394 = vpop.f32.mrf.mxu0
  %2395 = vmatprep.mubr.f32.mxu0 0.0
  %2396 = vmatmul.mubr.f32.gmra.mxu0 %v1752
  %v2397 = vpop.f32.mrf.mxu0
  %v2398 = vadd.f32 0.0, %v2397
  %v2399 = vpop.f32.mrf.mxu0
  %2400 = vmatprep.mubr.f32.mxu0 0.0
  %2401 = vmatmul.mubr.f32.gmra.mxu0 %v1755
  %v2402 = vpop.f32.mrf.mxu0
  %v2403 = vadd.f32 0.0, %v2402
  %v2404 = vpop.f32.mrf.mxu0
  %2405 = vmatprep.mubr.f32.mxu0 0.0
  %2406 = vmatmul.mubr.f32.gmra.mxu0 %v1758
  %v2407 = vpop.f32.mrf.mxu0
  %v2408 = vadd.f32 0.0, %v2407
  %v2409 = vpop.f32.mrf.mxu0
  %2410 = vmatprep.mubr.f32.mxu0 0.0
  %2411 = vmatmul.mubr.f32.gmra.mxu0 %v1761
  %v2412 = vpop.f32.mrf.mxu0
  %v2413 = vadd.f32 0.0, %v2412
  %v2414 = vpop.f32.mrf.mxu0
  %2415 = vmatprep.mubr.f32.mxu0 0.0
  %2416 = vmatmul.mubr.f32.gmra.mxu0 %v1764
  %v2417 = vpop.f32.mrf.mxu0
  %v2418 = vadd.f32 0.0, %v2417
  %v2419 = vpop.f32.mrf.mxu0
  %2420 = vmatprep.mubr.f32.mxu0 0.0
  %2421 = vmatmul.mubr.f32.gmra.mxu0 %v1767
  %v2422 = vpop.f32.mrf.mxu0
  %v2423 = vadd.f32 0.0, %v2422
  %v2424 = vpop.f32.mrf.mxu0
  %2425 = vmatprep.mubr.f32.mxu0 0.0
  %2426 = vmatmul.mubr.f32.gmra.mxu0 %v1770
  %v2427 = vpop.f32.mrf.mxu0
  %v2428 = vadd.f32 0.0, %v2427
  %v2429 = vpop.f32.mrf.mxu0
  %2430 = vmatprep.mubr.f32.mxu0 0.0
  %2431 = vmatmul.mubr.f32.gmra.mxu0 %v1773
  %v2432 = vpop.f32.mrf.mxu0
  %v2433 = vadd.f32 0.0, %v2432
  %v2434 = vpop.f32.mrf.mxu0
  %2435 = vmatprep.mubr.f32.mxu0 0.0
  %2436 = vmatmul.mubr.f32.gmra.mxu0 %v1776
  %v2437 = vpop.f32.mrf.mxu0
  %v2438 = vadd.f32 0.0, %v2437
  %v2439 = vpop.f32.mrf.mxu0
  %2440 = vmatprep.mubr.f32.mxu0 0.0
  %2441 = vmatmul.mubr.f32.gmra.mxu0 %v1779
  %v2442 = vpop.f32.mrf.mxu0
  %v2443 = vadd.f32 0.0, %v2442
  %v2444 = vpop.f32.mrf.mxu0
  %2445 = vmatprep.mubr.f32.mxu0 0.0
  %2446 = vmatmul.mubr.f32.gmra.mxu0 %v1782
  %v2447 = vpop.f32.mrf.mxu0
  %v2448 = vadd.f32 0.0, %v2447
  %v2449 = vpop.f32.mrf.mxu0
  %2450 = vmatprep.mubr.f32.mxu0 0.0
  %2451 = vmatmul.mubr.f32.gmra.mxu0 %v1785
  %v2452 = vpop.f32.mrf.mxu0
  %v2453 = vadd.f32 0.0, %v2452
  %v2454 = vpop.f32.mrf.mxu0
  %2455 = vmatprep.mubr.f32.mxu0 0.0
  %2456 = vmatmul.mubr.f32.gmra.mxu0 %v1788
  %v2457 = vpop.f32.mrf.mxu0
  %v2458 = vadd.f32 0.0, %v2457
  %v2459 = vpop.f32.mrf.mxu0
  %2460 = vmatprep.mubr.f32.mxu0 0.0
  %2461 = vmatmul.mubr.f32.gmra.mxu0 %v1791
  %v2462 = vpop.f32.mrf.mxu0
  %v2463 = vadd.f32 0.0, %v2462
  %v2464 = vpop.f32.mrf.mxu0
  %2465 = vmatprep.mubr.f32.mxu0 0.0
  %2466 = vmatmul.mubr.f32.gmra.mxu0 %v1794
  %v2467 = vpop.f32.mrf.mxu0
  %v2468 = vadd.f32 0.0, %v2467
  %v2469 = vpop.f32.mrf.mxu0
  %2470 = vmatprep.mubr.f32.mxu0 0.0
  %2471 = vmatmul.mubr.f32.gmra.mxu0 %v1797
  %v2472 = vpop.f32.mrf.mxu0
  %v2473 = vadd.f32 0.0, %v2472
  %v2474 = vpop.f32.mrf.mxu0
  %2475 = vmatprep.mubr.f32.mxu0 0.0
  %2476 = vmatmul.mubr.f32.gmra.mxu0 %v1800
  %v2477 = vpop.f32.mrf.mxu0
  %v2478 = vadd.f32 0.0, %v2477
  %v2479 = vpop.f32.mrf.mxu0
  %2480 = vmatprep.mubr.f32.mxu0 0.0
  %2481 = vmatmul.mubr.f32.gmra.mxu0 %v1803
  %v2482 = vpop.f32.mrf.mxu0
  %v2483 = vadd.f32 0.0, %v2482
  %v2484 = vpop.f32.mrf.mxu0
  %2485 = vmatprep.mubr.f32.mxu0 0.0
  %2486 = vmatmul.mubr.f32.gmra.mxu0 %v1806
  %v2487 = vpop.f32.mrf.mxu0
  %v2488 = vadd.f32 0.0, %v2487
  %v2489 = vpop.f32.mrf.mxu0
  %2490 = vmatprep.mubr.f32.mxu0 0.0
  %2491 = vmatmul.mubr.f32.gmra.mxu0 %v1809
  %v2492 = vpop.f32.mrf.mxu0
  %v2493 = vadd.f32 0.0, %v2492
  %v2494 = vpop.f32.mrf.mxu0
  %2495 = vmatprep.mubr.f32.mxu0 0.0
  %2496 = vmatmul.mubr.f32.gmra.mxu0 %v1812
  %v2497 = vpop.f32.mrf.mxu0
  %v2498 = vadd.f32 0.0, %v2497
  %v2499 = vpop.f32.mrf.mxu0
  %2500 = vmatprep.mubr.f32.mxu0 0.0
  %2501 = vmatmul.mubr.f32.gmra.mxu0 %v1815
  %v2502 = vpop.f32.mrf.mxu0
  %v2503 = vadd.f32 0.0, %v2502
  %v2504 = vpop.f32.mrf.mxu0
  %2505 = vmatprep.mubr.f32.mxu0 0.0
  %2506 = vmatmul.mubr.f32.gmra.mxu0 %v1818
  %v2507 = vpop.f32.mrf.mxu0
  %v2508 = vadd.f32 0.0, %v2507
  %v2509 = vpop.f32.mrf.mxu0
  %2510 = vmatprep.mubr.f32.mxu0 0.0
  %2511 = vmatmul.mubr.f32.gmra.mxu0 %v1821
  %v2512 = vpop.f32.mrf.mxu0
  %v2513 = vadd.f32 0.0, %v2512
  %v2514 = vpop.f32.mrf.mxu0
  %2515 = vmatprep.mubr.f32.mxu0 0.0
  %2516 = vmatmul.mubr.f32.gmra.mxu0 %v1824
  %v2517 = vpop.f32.mrf.mxu0
  %v2518 = vadd.f32 0.0, %v2517
  %v2519 = vpop.f32.mrf.mxu0
  %2520 = vmatprep.mubr.f32.mxu0 0.0
  %2521 = vmatmul.mubr.f32.gmra.mxu0 %v1827
  %v2522 = vpop.f32.mrf.mxu0
  %v2523 = vadd.f32 0.0, %v2522
  %v2524 = vpop.f32.mrf.mxu0
  %2525 = vmatprep.mubr.f32.mxu0 0.0
  %2526 = vmatmul.mubr.f32.gmra.mxu0 %v1830
  %v2527 = vpop.f32.mrf.mxu0
  %v2528 = vadd.f32 0.0, %v2527
  %v2529 = vpop.f32.mrf.mxu0
  %2530 = vmatprep.mubr.f32.mxu0 0.0
  %2531 = vmatmul.mubr.f32.gmra.mxu0 %v1833
  %v2532 = vpop.f32.mrf.mxu0
  %v2533 = vadd.f32 0.0, %v2532
  %v2534 = vpop.f32.mrf.mxu0
  %2535 = vmatprep.mubr.f32.mxu0 0.0
  %2536 = vmatmul.mubr.f32.gmra.mxu0 %v1836
  %v2537 = vpop.f32.mrf.mxu0
  %v2538 = vadd.f32 0.0, %v2537
  %v2539 = vpop.f32.mrf.mxu0
  %2540 = vmatprep.mubr.f32.mxu0 0.0
  %2541 = vmatmul.mubr.f32.gmra.mxu0 %v1839
  %v2542 = vpop.f32.mrf.mxu0
  %v2543 = vadd.f32 0.0, %v2542
  %v2544 = vpop.f32.mrf.mxu0
  %2545 = vmatprep.mubr.f32.mxu0 0.0
  %2546 = vmatmul.mubr.f32.gmra.mxu0 %v1842
  %v2547 = vpop.f32.mrf.mxu0
  %v2548 = vadd.f32 0.0, %v2547
  %v2549 = vpop.f32.mrf.mxu0
  %2550 = vmatprep.mubr.f32.mxu0 0.0
  %2551 = vmatmul.mubr.f32.gmra.mxu0 %v1845
  %v2552 = vpop.f32.mrf.mxu0
  %v2553 = vadd.f32 0.0, %v2552
  %v2554 = vpop.f32.mrf.mxu0
  %2555 = vmatprep.mubr.f32.mxu0 0.0
  %2556 = vmatmul.mubr.f32.gmra.mxu0 %v1848
  %v2557 = vpop.f32.mrf.mxu0
  %v2558 = vadd.f32 0.0, %v2557
  %v2559 = vpop.f32.mrf.mxu0
  %2560 = vmatprep.mubr.f32.mxu0 0.0
  %2561 = vmatmul.mubr.f32.gmra.mxu0 %v1851
  %v2562 = vpop.f32.mrf.mxu0
  %v2563 = vadd.f32 0.0, %v2562
  %v2564 = vpop.f32.mrf.mxu0
  %2565 = vmatprep.mubr.f32.mxu0 0.0
  %2566 = vmatmul.mubr.f32.gmra.mxu0 %v1854
  %v2567 = vpop.f32.mrf.mxu0
  %v2568 = vadd.f32 0.0, %v2567
  %v2569 = vpop.f32.mrf.mxu0
  %2570 = vmatprep.mubr.f32.mxu0 0.0
  %2571 = vmatmul.mubr.f32.gmra.mxu0 %v1857
  %v2572 = vpop.f32.mrf.mxu0
  %v2573 = vadd.f32 0.0, %v2572
  %v2574 = vpop.f32.mrf.mxu0
  %2575 = vmatprep.mubr.f32.mxu0 0.0
  %2576 = vmatmul.mubr.f32.gmra.mxu0 %v1860
  %v2577 = vpop.f32.mrf.mxu0
  %v2578 = vadd.f32 0.0, %v2577
  %v2579 = vpop.f32.mrf.mxu0
  %2580 = vmatprep.mubr.f32.mxu0 0.0
  %2581 = vmatmul.mubr.f32.gmra.mxu0 %v1863
  %v2582 = vpop.f32.mrf.mxu0
  %v2583 = vadd.f32 0.0, %v2582
  %v2584 = vpop.f32.mrf.mxu0
  %2585 = vmatprep.mubr.f32.mxu0 0.0
  %2586 = vmatmul.mubr.f32.gmra.mxu0 %v1866
  %v2587 = vpop.f32.mrf.mxu0
  %v2588 = vadd.f32 0.0, %v2587
  %v2589 = vpop.f32.mrf.mxu0
  %2590 = vmatprep.mubr.f32.mxu0 0.0
  %2591 = vmatmul.mubr.f32.gmra.mxu0 %v1869
  %v2592 = vpop.f32.mrf.mxu0
  %v2593 = vadd.f32 0.0, %v2592
  %v2594 = vpop.f32.mrf.mxu0
  %2595 = vmatprep.mubr.f32.mxu0 0.0
  %2596 = vmatmul.mubr.f32.gmra.mxu0 %v1872
  %v2597 = vpop.f32.mrf.mxu0
  %v2598 = vadd.f32 0.0, %v2597
  %v2599 = vpop.f32.mrf.mxu0
  %2600 = vmatprep.mubr.f32.mxu0 0.0
  %2601 = vmatmul.mubr.f32.gmra.mxu0 %v1875
  %v2602 = vpop.f32.mrf.mxu0
  %v2603 = vadd.f32 0.0, %v2602
  %v2604 = vpop.f32.mrf.mxu0
  %2605 = vmatprep.mubr.f32.mxu0 0.0
  %2606 = vmatmul.mubr.f32.gmra.mxu0 %v1878
  %v2607 = vpop.f32.mrf.mxu0
  %v2608 = vadd.f32 0.0, %v2607
  %v2609 = vpop.f32.mrf.mxu0
  %2610 = vmatprep.mubr.f32.mxu0 0.0
  %2611 = vmatmul.mubr.f32.gmra.mxu0 %v1881
  %v2612 = vpop.f32.mrf.mxu0
  %v2613 = vadd.f32 0.0, %v2612
  %v2614 = vpop.f32.mrf.mxu0
  %2615 = vmatprep.mubr.f32.mxu0 0.0
  %2616 = vmatmul.mubr.f32.gmra.mxu0 %v1884
  %v2617 = vpop.f32.mrf.mxu0
  %v2618 = vadd.f32 0.0, %v2617
  %v2619 = vpop.f32.mrf.mxu0
  %2620 = vmatprep.mubr.f32.mxu0 0.0
  %2621 = vmatmul.mubr.f32.gmra.mxu0 %v1887
  %v2622 = vpop.f32.mrf.mxu0
  %v2623 = vadd.f32 0.0, %v2622
  %v2624 = vpop.f32.mrf.mxu0
  %2625 = vmatprep.mubr.f32.mxu0 0.0
  %2626 = vmatmul.mubr.f32.gmra.mxu0 %v1890
  %v2627 = vpop.f32.mrf.mxu0
  %v2628 = vadd.f32 0.0, %v2627
  %v2629 = vpop.f32.mrf.mxu0
  %2630 = vmatprep.mubr.f32.mxu0 0.0
  %2631 = vmatmul.mubr.f32.gmra.mxu0 %v1893
  %v2632 = vpop.f32.mrf.mxu0
  %v2633 = vadd.f32 0.0, %v2632
  %v2634 = vpop.f32.mrf.mxu0
  %2635 = vmatprep.mubr.f32.mxu0 0.0
  %2636 = vmatmul.mubr.f32.gmra.mxu0 %v1896
  %v2637 = vpop.f32.mrf.mxu0
  %v2638 = vadd.f32 0.0, %v2637
  %v2639 = vpop.f32.mrf.mxu0
  %2640 = vmatprep.mubr.f32.mxu0 0.0
  %2641 = vmatmul.mubr.f32.gmra.mxu0 %v1899
  %v2642 = vpop.f32.mrf.mxu0
  %v2643 = vadd.f32 0.0, %v2642
  %v2644 = vpop.f32.mrf.mxu0
  %2645 = vmatprep.mubr.f32.mxu0 0.0
  %2646 = vmatmul.mubr.f32.gmra.mxu0 %v1902
  %v2647 = vpop.f32.mrf.mxu0
  %v2648 = vadd.f32 0.0, %v2647
  %v2649 = vpop.f32.mrf.mxu0
  %2650 = vmatprep.mubr.f32.mxu0 0.0
  %2651 = vmatmul.mubr.f32.gmra.mxu0 %v1905
  %v2652 = vpop.f32.mrf.mxu0
  %v2653 = vadd.f32 0.0, %v2652
  %v2654 = vpop.f32.mrf.mxu0
  %2655 = vmatprep.mubr.f32.mxu0 0.0
  %2656 = vmatmul.mubr.f32.gmra.mxu0 %v1908
  %v2657 = vpop.f32.mrf.mxu0
  %v2658 = vadd.f32 0.0, %v2657
  %v2659 = vpop.f32.mrf.mxu0
  %2660 = vmatprep.mubr.f32.mxu0 0.0
  %2661 = vmatmul.mubr.f32.gmra.mxu0 %v1911
  %v2662 = vpop.f32.mrf.mxu0
  %v2663 = vadd.f32 0.0, %v2662
  %v2664 = vpop.f32.mrf.mxu0
  %2665 = vmatprep.mubr.f32.mxu0 0.0
  %2666 = vmatmul.mubr.f32.gmra.mxu0 %v1914
  %v2667 = vpop.f32.mrf.mxu0
  %v2668 = vadd.f32 0.0, %v2667
  %v2669 = vpop.f32.mrf.mxu0
  %2670 = vmatprep.mubr.f32.mxu0 0.0
  %2671 = vmatmul.mubr.f32.gmra.mxu0 %v1917
  %v2672 = vpop.f32.mrf.mxu0
  %v2673 = vadd.f32 0.0, %v2672
  %v2674 = vpop.f32.mrf.mxu0
  %2675 = vmatprep.mubr.f32.mxu0 0.0
  %2676 = vmatmul.mubr.f32.gmra.mxu0 %v1920
  %v2677 = vpop.f32.mrf.mxu0
  %v2678 = vadd.f32 0.0, %v2677
  %v2679 = vpop.f32.mrf.mxu0
  %2680 = vmatprep.mubr.f32.mxu0 0.0
  %2681 = vmatmul.mubr.f32.gmra.mxu0 %v1923
  %v2682 = vpop.f32.mrf.mxu0
  %v2683 = vadd.f32 0.0, %v2682
  %v2684 = vpop.f32.mrf.mxu0
  %2685 = vmatprep.mubr.f32.mxu0 0.0
  %2686 = vmatmul.mubr.f32.gmra.mxu0 %v1926
  %v2687 = vpop.f32.mrf.mxu0
  %v2688 = vadd.f32 0.0, %v2687
  %v2689 = vpop.f32.mrf.mxu0
  %2690 = vmatprep.mubr.f32.mxu0 0.0
  %2691 = vmatmul.mubr.f32.gmra.mxu0 %v1929
  %v2692 = vpop.f32.mrf.mxu0
  %v2693 = vadd.f32 0.0, %v2692
  %v2694 = vpop.f32.mrf.mxu0
  %2695 = vmatprep.mubr.f32.mxu0 0.0
  %2696 = vmatmul.mubr.f32.gmra.mxu0 %v1932
  %v2697 = vpop.f32.mrf.mxu0
  %v2698 = vadd.f32 0.0, %v2697
  %v2699 = vpop.f32.mrf.mxu0
  %2700 = vmatprep.mubr.f32.mxu0 0.0
  %2701 = vmatmul.mubr.f32.gmra.mxu0 %v1935
  %v2702 = vpop.f32.mrf.mxu0
  %v2703 = vadd.f32 0.0, %v2702
  %v2704 = vpop.f32.mrf.mxu0
  %2705 = vmatprep.mubr.f32.mxu0 0.0
  %2706 = vmatmul.mubr.f32.gmra.mxu0 %v1938
  %v2707 = vpop.f32.mrf.mxu0
  %v2708 = vadd.f32 0.0, %v2707
  %v2709 = vpop.f32.mrf.mxu0
  %2710 = vmatprep.mubr.f32.mxu0 0.0
  %2711 = vmatmul.mubr.f32.gmra.mxu0 %v1941
  %v2712 = vpop.f32.mrf.mxu0
  %v2713 = vadd.f32 0.0, %v2712
  %v2714 = vpop.f32.mrf.mxu0
  %2715 = vmatprep.mubr.f32.mxu0 0.0
  %2716 = vmatmul.mubr.f32.gmra.mxu0 %v1944
  %v2717 = vpop.f32.mrf.mxu0
  %v2718 = vadd.f32 0.0, %v2717
  %v2719 = vpop.f32.mrf.mxu0
  %2720 = vmatprep.mubr.f32.mxu0 0.0
  %2721 = vmatmul.mubr.f32.gmra.mxu0 %v1947
  %v2722 = vpop.f32.mrf.mxu0
  %v2723 = vadd.f32 0.0, %v2722
  %v2724 = vpop.f32.mrf.mxu0
  %2725 = vmatprep.mubr.f32.mxu0 0.0
  %2726 = vmatmul.mubr.f32.gmra.mxu0 %v1950
  %v2727 = vpop.f32.mrf.mxu0
  %v2728 = vadd.f32 0.0, %v2727
  %v2729 = vpop.f32.mrf.mxu0
  %2730 = vmatprep.mubr.f32.mxu0 0.0
  %2731 = vmatmul.mubr.f32.gmra.mxu0 %v1953
  %v2732 = vpop.f32.mrf.mxu0
  %v2733 = vadd.f32 0.0, %v2732
  %v2734 = vpop.f32.mrf.mxu0
  %2735 = vmatprep.mubr.f32.mxu0 0.0
  %2736 = vmatmul.mubr.f32.gmra.mxu0 %v1956
  %v2737 = vpop.f32.mrf.mxu0
  %v2738 = vadd.f32 0.0, %v2737
  %v2739 = vpop.f32.mrf.mxu0
  %2740 = vmatprep.mubr.f32.mxu0 0.0
  %2741 = vmatmul.mubr.f32.gmra.mxu0 %v1959
  %v2742 = vpop.f32.mrf.mxu0
  %v2743 = vadd.f32 0.0, %v2742
  %v2744 = vpop.f32.mrf.mxu0
  %2745 = vdwg.mxu0
  %v2746 = vmax.f32 %v666, %v2028
  %v2747 = vmax.f32 %v671, %v2033
  %v2748 = vmax.f32 %v676, %v2038
  %v2749 = vmax.f32 %v681, %v2043
  %v2750 = vmax.f32 %v686, %v2048
  %v2751 = vmax.f32 %v691, %v2053
  %v2752 = vmax.f32 %v696, %v2058
  %v2753 = vmax.f32 %v701, %v2063
  %v2754 = vmax.f32 %v706, %v2068
  %v2755 = vmax.f32 %v711, %v2073
  %v2756 = vmax.f32 %v716, %v2078
  %v2757 = vmax.f32 %v721, %v2083
  %v2758 = vmax.f32 %v726, %v2088
  %v2759 = vmax.f32 %v731, %v2093
  %v2760 = vmax.f32 %v736, %v2098
  %v2761 = vmax.f32 %v741, %v2103
  %v2762 = vmax.f32 %v746, %v2108
  %v2763 = vmax.f32 %v751, %v2113
  %v2764 = vmax.f32 %v756, %v2118
  %v2765 = vmax.f32 %v761, %v2123
  %v2766 = vmax.f32 %v766, %v2128
  %v2767 = vmax.f32 %v771, %v2133
  %v2768 = vmax.f32 %v776, %v2138
  %v2769 = vmax.f32 %v781, %v2143
  %v2770 = vmax.f32 %v786, %v2148
  %v2771 = vmax.f32 %v791, %v2153
  %v2772 = vmax.f32 %v796, %v2158
  %v2773 = vmax.f32 %v801, %v2163
  %v2774 = vmax.f32 %v806, %v2168
  %v2775 = vmax.f32 %v811, %v2173
  %v2776 = vmax.f32 %v816, %v2178
  %v2777 = vmax.f32 %v821, %v2183
  %v2778 = vmax.f32 %v826, %v2188
  %v2779 = vmax.f32 %v831, %v2193
  %v2780 = vmax.f32 %v836, %v2198
  %v2781 = vmax.f32 %v841, %v2203
  %v2782 = vmax.f32 %v846, %v2208
  %v2783 = vmax.f32 %v851, %v2213
  %v2784 = vmax.f32 %v856, %v2218
  %v2785 = vmax.f32 %v861, %v2223
  %v2786 = vmax.f32 %v866, %v2228
  %v2787 = vmax.f32 %v871, %v2233
  %v2788 = vmax.f32 %v876, %v2238
  %v2789 = vmax.f32 %v881, %v2243
  %v2790 = vmax.f32 %v886, %v2248
  %v2791 = vmax.f32 %v891, %v2253
  %v2792 = vmax.f32 %v896, %v2258
  %v2793 = vmax.f32 %v901, %v2263
  %v2794 = vmax.f32 %v906, %v2268
  %v2795 = vmax.f32 %v911, %v2273
  %v2796 = vmax.f32 %v916, %v2278
  %v2797 = vmax.f32 %v921, %v2283
  %v2798 = vmax.f32 %v926, %v2288
  %v2799 = vmax.f32 %v931, %v2293
  %v2800 = vmax.f32 %v936, %v2298
  %v2801 = vmax.f32 %v941, %v2303
  %v2802 = vmax.f32 %v946, %v2308
  %v2803 = vmax.f32 %v951, %v2313
  %v2804 = vmax.f32 %v956, %v2318
  %v2805 = vmax.f32 %v961, %v2323
  %v2806 = vmax.f32 %v966, %v2328
  %v2807 = vmax.f32 %v971, %v2333
  %v2808 = vmax.f32 %v976, %v2338
  %v2809 = vmax.f32 %v981, %v2343
  %v2810 = vmax.f32 %v986, %v2348
  %v2811 = vmax.f32 %v991, %v2353
  %v2812 = vmax.f32 %v996, %v2358
  %v2813 = vmax.f32 %v1001, %v2363
  %v2814 = vmax.f32 %v1006, %v2368
  %v2815 = vmax.f32 %v1011, %v2373
  %v2816 = vmax.f32 %v1016, %v2378
  %v2817 = vmax.f32 %v1021, %v2383
  %v2818 = vmax.f32 %v1026, %v2388
  %v2819 = vmax.f32 %v1031, %v2393
  %v2820 = vmax.f32 %v1036, %v2398
  %v2821 = vmax.f32 %v1041, %v2403
  %v2822 = vmax.f32 %v1046, %v2408
  %v2823 = vmax.f32 %v1051, %v2413
  %v2824 = vmax.f32 %v1056, %v2418
  %v2825 = vmax.f32 %v1061, %v2423
  %v2826 = vmax.f32 %v1066, %v2428
  %v2827 = vmax.f32 %v1071, %v2433
  %v2828 = vmax.f32 %v1076, %v2438
  %v2829 = vmax.f32 %v1081, %v2443
  %v2830 = vmax.f32 %v1086, %v2448
  %v2831 = vmax.f32 %v1091, %v2453
  %v2832 = vmax.f32 %v1096, %v2458
  %v2833 = vmax.f32 %v1101, %v2463
  %v2834 = vmax.f32 %v1106, %v2468
  %v2835 = vmax.f32 %v1111, %v2473
  %v2836 = vmax.f32 %v1116, %v2478
  %v2837 = vmax.f32 %v1121, %v2483
  %v2838 = vmax.f32 %v1126, %v2488
  %v2839 = vmax.f32 %v1131, %v2493
  %v2840 = vmax.f32 %v1136, %v2498
  %v2841 = vmax.f32 %v1141, %v2503
  %v2842 = vmax.f32 %v1146, %v2508
  %v2843 = vmax.f32 %v1151, %v2513
  %v2844 = vmax.f32 %v1156, %v2518
  %v2845 = vmax.f32 %v1161, %v2523
  %v2846 = vmax.f32 %v1166, %v2528
  %v2847 = vmax.f32 %v1171, %v2533
  %v2848 = vmax.f32 %v1176, %v2538
  %v2849 = vmax.f32 %v1181, %v2543
  %v2850 = vmax.f32 %v1186, %v2548
  %v2851 = vmax.f32 %v1191, %v2553
  %v2852 = vmax.f32 %v1196, %v2558
  %v2853 = vmax.f32 %v1201, %v2563
  %v2854 = vmax.f32 %v1206, %v2568
  %v2855 = vmax.f32 %v1211, %v2573
  %v2856 = vmax.f32 %v1216, %v2578
  %v2857 = vmax.f32 %v1221, %v2583
  %v2858 = vmax.f32 %v1226, %v2588
  %v2859 = vmax.f32 %v1231, %v2593
  %v2860 = vmax.f32 %v1236, %v2598
  %v2861 = vmax.f32 %v1241, %v2603
  %v2862 = vmax.f32 %v1246, %v2608
  %v2863 = vmax.f32 %v1251, %v2613
  %v2864 = vmax.f32 %v1256, %v2618
  %v2865 = vmax.f32 %v1261, %v2623
  %v2866 = vmax.f32 %v1266, %v2628
  %v2867 = vmax.f32 %v1271, %v2633
  %v2868 = vmax.f32 %v1276, %v2638
  %v2869 = vmax.f32 %v1281, %v2643
  %v2870 = vmax.f32 %v1286, %v2648
  %v2871 = vmax.f32 %v1291, %v2653
  %v2872 = vmax.f32 %v1296, %v2658
  %v2873 = vmax.f32 %v1301, %v2663
  %v2874 = vmax.f32 %v1306, %v2668
  %v2875 = vmax.f32 %v1311, %v2673
  %v2876 = vmax.f32 %v1316, %v2678
  %v2877 = vmax.f32 %v1321, %v2683
  %v2878 = vmax.f32 %v1326, %v2688
  %v2879 = vmax.f32 %v1331, %v2693
  %v2880 = vmax.f32 %v1336, %v2698
  %v2881 = vmax.f32 %v1341, %v2703
  %v2882 = vmax.f32 %v1346, %v2708
  %v2883 = vmax.f32 %v1351, %v2713
  %v2884 = vmax.f32 %v1356, %v2718
  %v2885 = vmax.f32 %v1361, %v2723
  %v2886 = vmax.f32 %v1366, %v2728
  %v2887 = vmax.f32 %v1371, %v2733
  %v2888 = vmax.f32 %v1376, %v2738
  %v2889 = vmax.f32 %v1381, %v2743
  %s2890 = scalar_lea.vmem %s0, 2304
  %v2891 = vld [vmem:[%s2890] sm:$0xff]
  %v2892 = vld [vmem:[%s2890 + $0x8] sm:$0xff]
  %v2893 = vld [vmem:[%s2890 + $0x10] sm:$0xff]
  %v2894 = vld [vmem:[%s2890 + $0x18] sm:$0xff]
  %v2895 = vld [vmem:[%s2890 + $0x20] sm:$0xff]
  %v2896 = vld [vmem:[%s2890 + $0x28] sm:$0xff]
  %v2897 = vld [vmem:[%s2890 + $0x30] sm:$0xff]
  %v2898 = vld [vmem:[%s2890 + $0x38] sm:$0xff]
  %v2899 = vld [vmem:[%s2890 + $0x40] sm:$0xff]
  %v2900 = vld [vmem:[%s2890 + $0x48] sm:$0xff]
  %v2901 = vld [vmem:[%s2890 + $0x50] sm:$0xff]
  %v2902 = vld [vmem:[%s2890 + $0x58] sm:$0xff]
  %v2903 = vld [vmem:[%s2890 + $0x60] sm:$0xff]
  %v2904 = vld [vmem:[%s2890 + $0x68] sm:$0xff]
  %v2905 = vld [vmem:[%s2890 + $0x70] sm:$0xff]
  %v2906 = vld [vmem:[%s2890 + $0x78] sm:$0xff]
  %v2907 = vld [vmem:[%s2890 + $0x80] sm:$0xff]
  %v2908 = vld [vmem:[%s2890 + $0x88] sm:$0xff]
  %v2909 = vld [vmem:[%s2890 + $0x90] sm:$0xff]
  %v2910 = vld [vmem:[%s2890 + $0x98] sm:$0xff]
  %v2911 = vld [vmem:[%s2890 + $0xa0] sm:$0xff]
  %v2912 = vld [vmem:[%s2890 + $0xa8] sm:$0xff]
  %v2913 = vld [vmem:[%s2890 + $0xb0] sm:$0xff]
  %v2914 = vld [vmem:[%s2890 + $0xb8] sm:$0xff]
  %v2915 = vld [vmem:[%s2890 + $0xc0] sm:$0xff]
  %v2916 = vld [vmem:[%s2890 + $0xc8] sm:$0xff]
  %v2917 = vld [vmem:[%s2890 + $0xd0] sm:$0xff]
  %v2918 = vld [vmem:[%s2890 + $0xd8] sm:$0xff]
  %v2919 = vld [vmem:[%s2890 + $0xe0] sm:$0xff]
  %v2920 = vld [vmem:[%s2890 + $0xe8] sm:$0xff]
  %v2921 = vld [vmem:[%s2890 + $0xf0] sm:$0xff]
  %v2922 = vld [vmem:[%s2890 + $0xf8] sm:$0xff]
  %v2923 = vld [vmem:[%s2890 + $0x100] sm:$0xff]
  %v2924 = vld [vmem:[%s2890 + $0x108] sm:$0xff]
  %v2925 = vld [vmem:[%s2890 + $0x110] sm:$0xff]
  %v2926 = vld [vmem:[%s2890 + $0x118] sm:$0xff]
  %v2927 = vld [vmem:[%s2890 + $0x120] sm:$0xff]
  %v2928 = vld [vmem:[%s2890 + $0x128] sm:$0xff]
  %v2929 = vld [vmem:[%s2890 + $0x130] sm:$0xff]
  %v2930 = vld [vmem:[%s2890 + $0x138] sm:$0xff]
  %v2931 = vld [vmem:[%s2890 + $0x140] sm:$0xff]
  %v2932 = vld [vmem:[%s2890 + $0x148] sm:$0xff]
  %v2933 = vld [vmem:[%s2890 + $0x150] sm:$0xff]
  %v2934 = vld [vmem:[%s2890 + $0x158] sm:$0xff]
  %v2935 = vld [vmem:[%s2890 + $0x160] sm:$0xff]
  %v2936 = vld [vmem:[%s2890 + $0x168] sm:$0xff]
  %v2937 = vld [vmem:[%s2890 + $0x170] sm:$0xff]
  %v2938 = vld [vmem:[%s2890 + $0x178] sm:$0xff]
  %v2939 = vld [vmem:[%s2890 + $0x180] sm:$0xff]
  %v2940 = vld [vmem:[%s2890 + $0x188] sm:$0xff]
  %v2941 = vld [vmem:[%s2890 + $0x190] sm:$0xff]
  %v2942 = vld [vmem:[%s2890 + $0x198] sm:$0xff]
  %v2943 = vld [vmem:[%s2890 + $0x1a0] sm:$0xff]
  %v2944 = vld [vmem:[%s2890 + $0x1a8] sm:$0xff]
  %v2945 = vld [vmem:[%s2890 + $0x1b0] sm:$0xff]
  %v2946 = vld [vmem:[%s2890 + $0x1b8] sm:$0xff]
  %v2947 = vld [vmem:[%s2890 + $0x1c0] sm:$0xff]
  %v2948 = vld [vmem:[%s2890 + $0x1c8] sm:$0xff]
  %v2949 = vld [vmem:[%s2890 + $0x1d0] sm:$0xff]
  %v2950 = vld [vmem:[%s2890 + $0x1d8] sm:$0xff]
  %v2951 = vld [vmem:[%s2890 + $0x1e0] sm:$0xff]
  %v2952 = vld [vmem:[%s2890 + $0x1e8] sm:$0xff]
  %v2953 = vld [vmem:[%s2890 + $0x1f0] sm:$0xff]
  %v2954 = vld [vmem:[%s2890 + $0x1f8] sm:$0xff]
  %v2955 = vld [vmem:[%s2890 + $0x200] sm:$0xff]
  %v2956 = vld [vmem:[%s2890 + $0x208] sm:$0xff]
  %v2957 = vld [vmem:[%s2890 + $0x210] sm:$0xff]
  %v2958 = vld [vmem:[%s2890 + $0x218] sm:$0xff]
  %v2959 = vld [vmem:[%s2890 + $0x220] sm:$0xff]
  %v2960 = vld [vmem:[%s2890 + $0x228] sm:$0xff]
  %v2961 = vld [vmem:[%s2890 + $0x230] sm:$0xff]
  %v2962 = vld [vmem:[%s2890 + $0x238] sm:$0xff]
  %v2963 = vld [vmem:[%s2890 + $0x240] sm:$0xff]
  %v2964 = vld [vmem:[%s2890 + $0x248] sm:$0xff]
  %v2965 = vld [vmem:[%s2890 + $0x250] sm:$0xff]
  %v2966 = vld [vmem:[%s2890 + $0x258] sm:$0xff]
  %v2967 = vld [vmem:[%s2890 + $0x260] sm:$0xff]
  %v2968 = vld [vmem:[%s2890 + $0x268] sm:$0xff]
  %v2969 = vld [vmem:[%s2890 + $0x270] sm:$0xff]
  %v2970 = vld [vmem:[%s2890 + $0x278] sm:$0xff]
  %v2971 = vld [vmem:[%s2890 + $0x280] sm:$0xff]
  %v2972 = vld [vmem:[%s2890 + $0x288] sm:$0xff]
  %v2973 = vld [vmem:[%s2890 + $0x290] sm:$0xff]
  %v2974 = vld [vmem:[%s2890 + $0x298] sm:$0xff]
  %v2975 = vld [vmem:[%s2890 + $0x2a0] sm:$0xff]
  %v2976 = vld [vmem:[%s2890 + $0x2a8] sm:$0xff]
  %v2977 = vld [vmem:[%s2890 + $0x2b0] sm:$0xff]
  %v2978 = vld [vmem:[%s2890 + $0x2b8] sm:$0xff]
  %v2979 = vld [vmem:[%s2890 + $0x2c0] sm:$0xff]
  %v2980 = vld [vmem:[%s2890 + $0x2c8] sm:$0xff]
  %v2981 = vld [vmem:[%s2890 + $0x2d0] sm:$0xff]
  %v2982 = vld [vmem:[%s2890 + $0x2d8] sm:$0xff]
  %v2983 = vld [vmem:[%s2890 + $0x2e0] sm:$0xff]
  %v2984 = vld [vmem:[%s2890 + $0x2e8] sm:$0xff]
  %v2985 = vld [vmem:[%s2890 + $0x2f0] sm:$0xff]
  %v2986 = vld [vmem:[%s2890 + $0x2f8] sm:$0xff]
  %v2987 = vld [vmem:[%s2890 + $0x300] sm:$0xff]
  %v2988 = vld [vmem:[%s2890 + $0x308] sm:$0xff]
  %v2989 = vld [vmem:[%s2890 + $0x310] sm:$0xff]
  %v2990 = vld [vmem:[%s2890 + $0x318] sm:$0xff]
  %v2991 = vld [vmem:[%s2890 + $0x320] sm:$0xff]
  %v2992 = vld [vmem:[%s2890 + $0x328] sm:$0xff]
  %v2993 = vld [vmem:[%s2890 + $0x330] sm:$0xff]
  %v2994 = vld [vmem:[%s2890 + $0x338] sm:$0xff]
  %v2995 = vld [vmem:[%s2890 + $0x340] sm:$0xff]
  %v2996 = vld [vmem:[%s2890 + $0x348] sm:$0xff]
  %v2997 = vld [vmem:[%s2890 + $0x350] sm:$0xff]
  %v2998 = vld [vmem:[%s2890 + $0x358] sm:$0xff]
  %v2999 = vld [vmem:[%s2890 + $0x360] sm:$0xff]
  %v3000 = vld [vmem:[%s2890 + $0x368] sm:$0xff]
  %v3001 = vld [vmem:[%s2890 + $0x370] sm:$0xff]
  %v3002 = vld [vmem:[%s2890 + $0x378] sm:$0xff]
  %v3003 = vld [vmem:[%s2890 + $0x380] sm:$0xff]
  %v3004 = vld [vmem:[%s2890 + $0x388] sm:$0xff]
  %v3005 = vld [vmem:[%s2890 + $0x390] sm:$0xff]
  %v3006 = vld [vmem:[%s2890 + $0x398] sm:$0xff]
  %v3007 = vld [vmem:[%s2890 + $0x3a0] sm:$0xff]
  %v3008 = vld [vmem:[%s2890 + $0x3a8] sm:$0xff]
  %v3009 = vld [vmem:[%s2890 + $0x3b0] sm:$0xff]
  %v3010 = vld [vmem:[%s2890 + $0x3b8] sm:$0xff]
  %v3011 = vld [vmem:[%s2890 + $0x3c0] sm:$0xff]
  %v3012 = vld [vmem:[%s2890 + $0x3c8] sm:$0xff]
  %v3013 = vld [vmem:[%s2890 + $0x3d0] sm:$0xff]
  %v3014 = vld [vmem:[%s2890 + $0x3d8] sm:$0xff]
  %v3015 = vld [vmem:[%s2890 + $0x3e0] sm:$0xff]
  %v3016 = vld [vmem:[%s2890 + $0x3e8] sm:$0xff]
  %v3017 = vld [vmem:[%s2890 + $0x3f0] sm:$0xff]
  %v3018 = vld [vmem:[%s2890 + $0x3f8] sm:$0xff]
  %v3019 = vld [vmem:[%s2890 + $0x400] sm:$0xff]
  %v3020 = vld [vmem:[%s2890 + $0x408] sm:$0xff]
  %v3021 = vld [vmem:[%s2890 + $0x410] sm:$0xff]
  %v3022 = vld [vmem:[%s2890 + $0x418] sm:$0xff]
  %v3023 = vld [vmem:[%s2890 + $0x420] sm:$0xff]
  %v3024 = vld [vmem:[%s2890 + $0x428] sm:$0xff]
  %v3025 = vld [vmem:[%s2890 + $0x430] sm:$0xff]
  %v3026 = vld [vmem:[%s2890 + $0x438] sm:$0xff]
  %v3027 = vld [vmem:[%s2890 + $0x440] sm:$0xff]
  %v3028 = vld [vmem:[%s2890 + $0x448] sm:$0xff]
  %v3029 = vld [vmem:[%s2890 + $0x450] sm:$0xff]
  %v3030 = vld [vmem:[%s2890 + $0x458] sm:$0xff]
  %v3031 = vld [vmem:[%s2890 + $0x460] sm:$0xff]
  %v3032 = vld [vmem:[%s2890 + $0x468] sm:$0xff]
  %v3033 = vld [vmem:[%s2890 + $0x470] sm:$0xff]
  %v3034 = vld [vmem:[%s2890 + $0x478] sm:$0xff]
  %v3036 = vsel %vm162, %v2891, 0
  %v3039 = vsel %vm162, %v2892, 0
  %v3042 = vsel %vm162, %v2893, 0
  %v3045 = vsel %vm162, %v2894, 0
  %v3048 = vsel %vm162, %v2895, 0
  %v3051 = vsel %vm162, %v2896, 0
  %v3054 = vsel %vm162, %v2897, 0
  %v3057 = vsel %vm162, %v2898, 0
  %v3060 = vsel %vm162, %v2899, 0
  %v3063 = vsel %vm162, %v2900, 0
  %v3066 = vsel %vm162, %v2901, 0
  %v3069 = vsel %vm162, %v2902, 0
  %v3072 = vsel %vm162, %v2903, 0
  %v3075 = vsel %vm162, %v2904, 0
  %v3078 = vsel %vm162, %v2905, 0
  %v3081 = vsel %vm162, %v2906, 0
  %v3084 = vsel %vm162, %v2907, 0
  %v3087 = vsel %vm162, %v2908, 0
  %v3090 = vsel %vm162, %v2909, 0
  %v3093 = vsel %vm162, %v2910, 0
  %v3096 = vsel %vm162, %v2911, 0
  %v3099 = vsel %vm162, %v2912, 0
  %v3102 = vsel %vm162, %v2913, 0
  %v3105 = vsel %vm162, %v2914, 0
  %v3108 = vsel %vm162, %v2915, 0
  %v3111 = vsel %vm162, %v2916, 0
  %v3114 = vsel %vm162, %v2917, 0
  %v3117 = vsel %vm162, %v2918, 0
  %v3120 = vsel %vm162, %v2919, 0
  %v3123 = vsel %vm162, %v2920, 0
  %v3126 = vsel %vm162, %v2921, 0
  %v3129 = vsel %vm162, %v2922, 0
  %v3132 = vsel %vm162, %v2923, 0
  %v3135 = vsel %vm162, %v2924, 0
  %v3138 = vsel %vm162, %v2925, 0
  %v3141 = vsel %vm162, %v2926, 0
  %v3144 = vsel %vm162, %v2927, 0
  %v3147 = vsel %vm162, %v2928, 0
  %v3150 = vsel %vm162, %v2929, 0
  %v3153 = vsel %vm162, %v2930, 0
  %v3156 = vsel %vm162, %v2931, 0
  %v3159 = vsel %vm162, %v2932, 0
  %v3162 = vsel %vm162, %v2933, 0
  %v3165 = vsel %vm162, %v2934, 0
  %v3168 = vsel %vm162, %v2935, 0
  %v3171 = vsel %vm162, %v2936, 0
  %v3174 = vsel %vm162, %v2937, 0
  %v3177 = vsel %vm162, %v2938, 0
  %v3180 = vsel %vm162, %v2939, 0
  %v3183 = vsel %vm162, %v2940, 0
  %v3186 = vsel %vm162, %v2941, 0
  %v3189 = vsel %vm162, %v2942, 0
  %v3192 = vsel %vm162, %v2943, 0
  %v3195 = vsel %vm162, %v2944, 0
  %v3198 = vsel %vm162, %v2945, 0
  %v3201 = vsel %vm162, %v2946, 0
  %v3204 = vsel %vm162, %v2947, 0
  %v3207 = vsel %vm162, %v2948, 0
  %v3210 = vsel %vm162, %v2949, 0
  %v3213 = vsel %vm162, %v2950, 0
  %v3216 = vsel %vm162, %v2951, 0
  %v3219 = vsel %vm162, %v2952, 0
  %v3222 = vsel %vm162, %v2953, 0
  %v3225 = vsel %vm162, %v2954, 0
  %v3228 = vsel %vm162, %v2955, 0
  %v3231 = vsel %vm162, %v2956, 0
  %v3234 = vsel %vm162, %v2957, 0
  %v3237 = vsel %vm162, %v2958, 0
  %v3240 = vsel %vm162, %v2959, 0
  %v3243 = vsel %vm162, %v2960, 0
  %v3246 = vsel %vm162, %v2961, 0
  %v3249 = vsel %vm162, %v2962, 0
  %v3252 = vsel %vm162, %v2963, 0
  %v3255 = vsel %vm162, %v2964, 0
  %v3258 = vsel %vm162, %v2965, 0
  %v3261 = vsel %vm162, %v2966, 0
  %v3264 = vsel %vm162, %v2967, 0
  %v3267 = vsel %vm162, %v2968, 0
  %v3270 = vsel %vm162, %v2969, 0
  %v3273 = vsel %vm162, %v2970, 0
  %v3276 = vsel %vm162, %v2971, 0
  %v3279 = vsel %vm162, %v2972, 0
  %v3282 = vsel %vm162, %v2973, 0
  %v3285 = vsel %vm162, %v2974, 0
  %v3288 = vsel %vm162, %v2975, 0
  %v3291 = vsel %vm162, %v2976, 0
  %v3294 = vsel %vm162, %v2977, 0
  %v3297 = vsel %vm162, %v2978, 0
  %v3300 = vsel %vm162, %v2979, 0
  %v3303 = vsel %vm162, %v2980, 0
  %v3306 = vsel %vm162, %v2981, 0
  %v3309 = vsel %vm162, %v2982, 0
  %v3312 = vsel %vm162, %v2983, 0
  %v3315 = vsel %vm162, %v2984, 0
  %v3318 = vsel %vm162, %v2985, 0
  %v3321 = vsel %vm162, %v2986, 0
  %v3324 = vsel %vm162, %v2987, 0
  %v3327 = vsel %vm162, %v2988, 0
  %v3330 = vsel %vm162, %v2989, 0
  %v3333 = vsel %vm162, %v2990, 0
  %v3336 = vsel %vm162, %v2991, 0
  %v3339 = vsel %vm162, %v2992, 0
  %v3342 = vsel %vm162, %v2993, 0
  %v3345 = vsel %vm162, %v2994, 0
  %v3348 = vsel %vm162, %v2995, 0
  %v3351 = vsel %vm162, %v2996, 0
  %v3354 = vsel %vm162, %v2997, 0
  %v3357 = vsel %vm162, %v2998, 0
  %v3360 = vsel %vm162, %v2999, 0
  %v3363 = vsel %vm162, %v3000, 0
  %v3366 = vsel %vm162, %v3001, 0
  %v3369 = vsel %vm162, %v3002, 0
  %v3372 = vsel %vm162, %v3003, 0
  %v3375 = vsel %vm162, %v3004, 0
  %v3378 = vsel %vm162, %v3005, 0
  %v3381 = vsel %vm162, %v3006, 0
  %v3384 = vsel %vm162, %v3007, 0
  %v3387 = vsel %vm162, %v3008, 0
  %v3390 = vsel %vm162, %v3009, 0
  %v3393 = vsel %vm162, %v3010, 0
  %v3396 = vsel %vm162, %v3011, 0
  %v3399 = vsel %vm162, %v3012, 0
  %v3402 = vsel %vm162, %v3013, 0
  %v3405 = vsel %vm162, %v3014, 0
  %v3408 = vsel %vm162, %v3015, 0
  %v3411 = vsel %vm162, %v3016, 0
  %v3414 = vsel %vm162, %v3017, 0
  %v3417 = vsel %vm162, %v3018, 0
  %v3420 = vsel %vm162, %v3019, 0
  %v3423 = vsel %vm162, %v3020, 0
  %v3426 = vsel %vm162, %v3021, 0
  %v3429 = vsel %vm162, %v3022, 0
  %v3432 = vsel %vm162, %v3023, 0
  %v3435 = vsel %vm162, %v3024, 0
  %v3438 = vsel %vm162, %v3025, 0
  %v3441 = vsel %vm162, %v3026, 0
  %v3444 = vsel %vm162, %v3027, 0
  %v3447 = vsel %vm162, %v3028, 0
  %v3450 = vsel %vm162, %v3029, 0
  %v3453 = vsel %vm162, %v3030, 0
  %v3456 = vsel %vm162, %v3031, 0
  %v3459 = vsel %vm162, %v3032, 0
  %v3462 = vsel %vm162, %v3033, 0
  %v3465 = vsel %vm162, %v3034, 0
  %3467 = vmatprep.subr.mxu0 0.0
  %3468 = vmatpush1.msra.mxu0 0.0
  %3469 = vmatprep.subr.mxu0 0.0
  %3470 = vmatpush1.msra.mxu0 0.0
  %3471 = vmatprep.subr.mxu0 0.0
  %3472 = vmatpush1.msra.mxu0 0.0
  %3473 = vmatprep.subr.mxu0 0.0
  %3474 = vmatpush1.msra.mxu0 0.0
  %3475 = vmatprep.subr.mxu0 0.0
  %3476 = vmatpush1.msra.mxu0 0.0
  %3477 = vmatprep.subr.mxu0 0.0
  %3478 = vmatpush1.msra.mxu0 0.0
  %3479 = vmatprep.subr.mxu0 0.0
  %3480 = vmatpush1.msra.mxu0 0.0
  %3481 = vmatprep.subr.mxu0 0.0
  %3482 = vmatpush1.msra.mxu0 0.0
  %3483 = vmatprep.subr.mxu0 0.0
  %3484 = vmatpush1.msra.mxu0 0.0
  %3485 = vmatprep.subr.mxu0 0.0
  %3486 = vmatpush1.msra.mxu0 0.0
  %3487 = vmatprep.subr.mxu0 0.0
  %3488 = vmatpush1.msra.mxu0 0.0
  %3489 = vmatprep.subr.mxu0 0.0
  %3490 = vmatpush1.msra.mxu0 0.0
  %3491 = vmatprep.subr.mxu0 0.0
  %3492 = vmatpush1.msra.mxu0 %v597
  %3493 = vmatprep.subr.mxu0 0.0
  %3494 = vmatpush1.msra.mxu0 %v16
  %3495 = vmatprep.subr.mxu0 0.0
  %3496 = vmatpush1.msra.mxu0 %v15
  %3497 = vmatprep.subr.mxu0 0.0
  %3498 = vmatpush1.msra.mxu0 %v14
  %3499 = vmatprep.subr.mxu0 0.0
  %3500 = vmatpush2.msra.mxu0 0.0
  %3501 = vmatprep.subr.mxu0 0.0
  %3502 = vmatpush2.msra.mxu0 0.0
  %3503 = vmatprep.subr.mxu0 0.0
  %3504 = vmatpush2.msra.mxu0 0.0
  %3505 = vmatprep.subr.mxu0 0.0
  %3506 = vmatpush2.msra.mxu0 0.0
  %3507 = vmatprep.subr.mxu0 0.0
  %3508 = vmatpush2.msra.mxu0 0.0
  %3509 = vmatprep.subr.mxu0 0.0
  %3510 = vmatpush2.msra.mxu0 0.0
  %3511 = vmatprep.subr.mxu0 0.0
  %3512 = vmatpush2.msra.mxu0 0.0
  %3513 = vmatprep.subr.mxu0 0.0
  %3514 = vmatpush2.msra.mxu0 0.0
  %3515 = vmatprep.subr.mxu0 0.0
  %3516 = vmatpush2.msra.mxu0 0.0
  %3517 = vmatprep.subr.mxu0 0.0
  %3518 = vmatpush2.msra.mxu0 0.0
  %3519 = vmatprep.subr.mxu0 0.0
  %3520 = vmatpush2.msra.mxu0 0.0
  %3521 = vmatprep.subr.mxu0 0.0
  %3522 = vmatpush2.msra.mxu0 0.0
  %3523 = vmatprep.subr.mxu0 0.0
  %3524 = vmatpush2.msra.mxu0 0.0
  %3525 = vmatprep.subr.mxu0 0.0
  %3526 = vmatpush2.msra.mxu0 0.0
  %3527 = vmatprep.subr.mxu0 0.0
  %3528 = vmatpush2.msra.mxu0 0.0
  %3529 = vmatprep.subr.mxu0 0.0
  %3530 = vmatpush2.msra.mxu0 0.0
  %3531 = vmatprep.mubr.f32.mxu0 0.0
  %3532 = vmatmul.mubr.f32.gmra.mxu0 %v3036
  %v3533 = vpop.f32.mrf.mxu0
  %v3534 = vadd.f32 0.0, %v3533
  %v3535 = vpop.f32.mrf.mxu0
  %3536 = vmatprep.mubr.f32.mxu0 0.0
  %3537 = vmatmul.mubr.f32.gmra.mxu0 %v3039
  %v3538 = vpop.f32.mrf.mxu0
  %v3539 = vadd.f32 0.0, %v3538
  %v3540 = vpop.f32.mrf.mxu0
  %3541 = vmatprep.mubr.f32.mxu0 0.0
  %3542 = vmatmul.mubr.f32.gmra.mxu0 %v3042
  %v3543 = vpop.f32.mrf.mxu0
  %v3544 = vadd.f32 0.0, %v3543
  %v3545 = vpop.f32.mrf.mxu0
  %3546 = vmatprep.mubr.f32.mxu0 0.0
  %3547 = vmatmul.mubr.f32.gmra.mxu0 %v3045
  %v3548 = vpop.f32.mrf.mxu0
  %v3549 = vadd.f32 0.0, %v3548
  %v3550 = vpop.f32.mrf.mxu0
  %3551 = vmatprep.mubr.f32.mxu0 0.0
  %3552 = vmatmul.mubr.f32.gmra.mxu0 %v3048
  %v3553 = vpop.f32.mrf.mxu0
  %v3554 = vadd.f32 0.0, %v3553
  %v3555 = vpop.f32.mrf.mxu0
  %3556 = vmatprep.mubr.f32.mxu0 0.0
  %3557 = vmatmul.mubr.f32.gmra.mxu0 %v3051
  %v3558 = vpop.f32.mrf.mxu0
  %v3559 = vadd.f32 0.0, %v3558
  %v3560 = vpop.f32.mrf.mxu0
  %3561 = vmatprep.mubr.f32.mxu0 0.0
  %3562 = vmatmul.mubr.f32.gmra.mxu0 %v3054
  %v3563 = vpop.f32.mrf.mxu0
  %v3564 = vadd.f32 0.0, %v3563
  %v3565 = vpop.f32.mrf.mxu0
  %3566 = vmatprep.mubr.f32.mxu0 0.0
  %3567 = vmatmul.mubr.f32.gmra.mxu0 %v3057
  %v3568 = vpop.f32.mrf.mxu0
  %v3569 = vadd.f32 0.0, %v3568
  %v3570 = vpop.f32.mrf.mxu0
  %3571 = vmatprep.mubr.f32.mxu0 0.0
  %3572 = vmatmul.mubr.f32.gmra.mxu0 %v3060
  %v3573 = vpop.f32.mrf.mxu0
  %v3574 = vadd.f32 0.0, %v3573
  %v3575 = vpop.f32.mrf.mxu0
  %3576 = vmatprep.mubr.f32.mxu0 0.0
  %3577 = vmatmul.mubr.f32.gmra.mxu0 %v3063
  %v3578 = vpop.f32.mrf.mxu0
  %v3579 = vadd.f32 0.0, %v3578
  %v3580 = vpop.f32.mrf.mxu0
  %3581 = vmatprep.mubr.f32.mxu0 0.0
  %3582 = vmatmul.mubr.f32.gmra.mxu0 %v3066
  %v3583 = vpop.f32.mrf.mxu0
  %v3584 = vadd.f32 0.0, %v3583
  %v3585 = vpop.f32.mrf.mxu0
  %3586 = vmatprep.mubr.f32.mxu0 0.0
  %3587 = vmatmul.mubr.f32.gmra.mxu0 %v3069
  %v3588 = vpop.f32.mrf.mxu0
  %v3589 = vadd.f32 0.0, %v3588
  %v3590 = vpop.f32.mrf.mxu0
  %3591 = vmatprep.mubr.f32.mxu0 0.0
  %3592 = vmatmul.mubr.f32.gmra.mxu0 %v3072
  %v3593 = vpop.f32.mrf.mxu0
  %v3594 = vadd.f32 0.0, %v3593
  %v3595 = vpop.f32.mrf.mxu0
  %3596 = vmatprep.mubr.f32.mxu0 0.0
  %3597 = vmatmul.mubr.f32.gmra.mxu0 %v3075
  %v3598 = vpop.f32.mrf.mxu0
  %v3599 = vadd.f32 0.0, %v3598
  %v3600 = vpop.f32.mrf.mxu0
  %3601 = vmatprep.mubr.f32.mxu0 0.0
  %3602 = vmatmul.mubr.f32.gmra.mxu0 %v3078
  %v3603 = vpop.f32.mrf.mxu0
  %v3604 = vadd.f32 0.0, %v3603
  %v3605 = vpop.f32.mrf.mxu0
  %3606 = vmatprep.mubr.f32.mxu0 0.0
  %3607 = vmatmul.mubr.f32.gmra.mxu0 %v3081
  %v3608 = vpop.f32.mrf.mxu0
  %v3609 = vadd.f32 0.0, %v3608
  %v3610 = vpop.f32.mrf.mxu0
  %3611 = vmatprep.mubr.f32.mxu0 0.0
  %3612 = vmatmul.mubr.f32.gmra.mxu0 %v3084
  %v3613 = vpop.f32.mrf.mxu0
  %v3614 = vadd.f32 0.0, %v3613
  %v3615 = vpop.f32.mrf.mxu0
  %3616 = vmatprep.mubr.f32.mxu0 0.0
  %3617 = vmatmul.mubr.f32.gmra.mxu0 %v3087
  %v3618 = vpop.f32.mrf.mxu0
  %v3619 = vadd.f32 0.0, %v3618
  %v3620 = vpop.f32.mrf.mxu0
  %3621 = vmatprep.mubr.f32.mxu0 0.0
  %3622 = vmatmul.mubr.f32.gmra.mxu0 %v3090
  %v3623 = vpop.f32.mrf.mxu0
  %v3624 = vadd.f32 0.0, %v3623
  %v3625 = vpop.f32.mrf.mxu0
  %3626 = vmatprep.mubr.f32.mxu0 0.0
  %3627 = vmatmul.mubr.f32.gmra.mxu0 %v3093
  %v3628 = vpop.f32.mrf.mxu0
  %v3629 = vadd.f32 0.0, %v3628
  %v3630 = vpop.f32.mrf.mxu0
  %3631 = vmatprep.mubr.f32.mxu0 0.0
  %3632 = vmatmul.mubr.f32.gmra.mxu0 %v3096
  %v3633 = vpop.f32.mrf.mxu0
  %v3634 = vadd.f32 0.0, %v3633
  %v3635 = vpop.f32.mrf.mxu0
  %3636 = vmatprep.mubr.f32.mxu0 0.0
  %3637 = vmatmul.mubr.f32.gmra.mxu0 %v3099
  %v3638 = vpop.f32.mrf.mxu0
  %v3639 = vadd.f32 0.0, %v3638
  %v3640 = vpop.f32.mrf.mxu0
  %3641 = vmatprep.mubr.f32.mxu0 0.0
  %3642 = vmatmul.mubr.f32.gmra.mxu0 %v3102
  %v3643 = vpop.f32.mrf.mxu0
  %v3644 = vadd.f32 0.0, %v3643
  %v3645 = vpop.f32.mrf.mxu0
  %3646 = vmatprep.mubr.f32.mxu0 0.0
  %3647 = vmatmul.mubr.f32.gmra.mxu0 %v3105
  %v3648 = vpop.f32.mrf.mxu0
  %v3649 = vadd.f32 0.0, %v3648
  %v3650 = vpop.f32.mrf.mxu0
  %3651 = vmatprep.mubr.f32.mxu0 0.0
  %3652 = vmatmul.mubr.f32.gmra.mxu0 %v3108
  %v3653 = vpop.f32.mrf.mxu0
  %v3654 = vadd.f32 0.0, %v3653
  %v3655 = vpop.f32.mrf.mxu0
  %3656 = vmatprep.mubr.f32.mxu0 0.0
  %3657 = vmatmul.mubr.f32.gmra.mxu0 %v3111
  %v3658 = vpop.f32.mrf.mxu0
  %v3659 = vadd.f32 0.0, %v3658
  %v3660 = vpop.f32.mrf.mxu0
  %3661 = vmatprep.mubr.f32.mxu0 0.0
  %3662 = vmatmul.mubr.f32.gmra.mxu0 %v3114
  %v3663 = vpop.f32.mrf.mxu0
  %v3664 = vadd.f32 0.0, %v3663
  %v3665 = vpop.f32.mrf.mxu0
  %3666 = vmatprep.mubr.f32.mxu0 0.0
  %3667 = vmatmul.mubr.f32.gmra.mxu0 %v3117
  %v3668 = vpop.f32.mrf.mxu0
  %v3669 = vadd.f32 0.0, %v3668
  %v3670 = vpop.f32.mrf.mxu0
  %3671 = vmatprep.mubr.f32.mxu0 0.0
  %3672 = vmatmul.mubr.f32.gmra.mxu0 %v3120
  %v3673 = vpop.f32.mrf.mxu0
  %v3674 = vadd.f32 0.0, %v3673
  %v3675 = vpop.f32.mrf.mxu0
  %3676 = vmatprep.mubr.f32.mxu0 0.0
  %3677 = vmatmul.mubr.f32.gmra.mxu0 %v3123
  %v3678 = vpop.f32.mrf.mxu0
  %v3679 = vadd.f32 0.0, %v3678
  %v3680 = vpop.f32.mrf.mxu0
  %3681 = vmatprep.mubr.f32.mxu0 0.0
  %3682 = vmatmul.mubr.f32.gmra.mxu0 %v3126
  %v3683 = vpop.f32.mrf.mxu0
  %v3684 = vadd.f32 0.0, %v3683
  %v3685 = vpop.f32.mrf.mxu0
  %3686 = vmatprep.mubr.f32.mxu0 0.0
  %3687 = vmatmul.mubr.f32.gmra.mxu0 %v3129
  %v3688 = vpop.f32.mrf.mxu0
  %v3689 = vadd.f32 0.0, %v3688
  %v3690 = vpop.f32.mrf.mxu0
  %3691 = vmatprep.mubr.f32.mxu0 0.0
  %3692 = vmatmul.mubr.f32.gmra.mxu0 %v3132
  %v3693 = vpop.f32.mrf.mxu0
  %v3694 = vadd.f32 0.0, %v3693
  %v3695 = vpop.f32.mrf.mxu0
  %3696 = vmatprep.mubr.f32.mxu0 0.0
  %3697 = vmatmul.mubr.f32.gmra.mxu0 %v3135
  %v3698 = vpop.f32.mrf.mxu0
  %v3699 = vadd.f32 0.0, %v3698
  %v3700 = vpop.f32.mrf.mxu0
  %3701 = vmatprep.mubr.f32.mxu0 0.0
  %3702 = vmatmul.mubr.f32.gmra.mxu0 %v3138
  %v3703 = vpop.f32.mrf.mxu0
  %v3704 = vadd.f32 0.0, %v3703
  %v3705 = vpop.f32.mrf.mxu0
  %3706 = vmatprep.mubr.f32.mxu0 0.0
  %3707 = vmatmul.mubr.f32.gmra.mxu0 %v3141
  %v3708 = vpop.f32.mrf.mxu0
  %v3709 = vadd.f32 0.0, %v3708
  %v3710 = vpop.f32.mrf.mxu0
  %3711 = vmatprep.mubr.f32.mxu0 0.0
  %3712 = vmatmul.mubr.f32.gmra.mxu0 %v3144
  %v3713 = vpop.f32.mrf.mxu0
  %v3714 = vadd.f32 0.0, %v3713
  %v3715 = vpop.f32.mrf.mxu0
  %3716 = vmatprep.mubr.f32.mxu0 0.0
  %3717 = vmatmul.mubr.f32.gmra.mxu0 %v3147
  %v3718 = vpop.f32.mrf.mxu0
  %v3719 = vadd.f32 0.0, %v3718
  %v3720 = vpop.f32.mrf.mxu0
  %3721 = vmatprep.mubr.f32.mxu0 0.0
  %3722 = vmatmul.mubr.f32.gmra.mxu0 %v3150
  %v3723 = vpop.f32.mrf.mxu0
  %v3724 = vadd.f32 0.0, %v3723
  %v3725 = vpop.f32.mrf.mxu0
  %3726 = vmatprep.mubr.f32.mxu0 0.0
  %3727 = vmatmul.mubr.f32.gmra.mxu0 %v3153
  %v3728 = vpop.f32.mrf.mxu0
  %v3729 = vadd.f32 0.0, %v3728
  %v3730 = vpop.f32.mrf.mxu0
  %3731 = vmatprep.mubr.f32.mxu0 0.0
  %3732 = vmatmul.mubr.f32.gmra.mxu0 %v3156
  %v3733 = vpop.f32.mrf.mxu0
  %v3734 = vadd.f32 0.0, %v3733
  %v3735 = vpop.f32.mrf.mxu0
  %3736 = vmatprep.mubr.f32.mxu0 0.0
  %3737 = vmatmul.mubr.f32.gmra.mxu0 %v3159
  %v3738 = vpop.f32.mrf.mxu0
  %v3739 = vadd.f32 0.0, %v3738
  %v3740 = vpop.f32.mrf.mxu0
  %3741 = vmatprep.mubr.f32.mxu0 0.0
  %3742 = vmatmul.mubr.f32.gmra.mxu0 %v3162
  %v3743 = vpop.f32.mrf.mxu0
  %v3744 = vadd.f32 0.0, %v3743
  %v3745 = vpop.f32.mrf.mxu0
  %3746 = vmatprep.mubr.f32.mxu0 0.0
  %3747 = vmatmul.mubr.f32.gmra.mxu0 %v3165
  %v3748 = vpop.f32.mrf.mxu0
  %v3749 = vadd.f32 0.0, %v3748
  %v3750 = vpop.f32.mrf.mxu0
  %3751 = vmatprep.mubr.f32.mxu0 0.0
  %3752 = vmatmul.mubr.f32.gmra.mxu0 %v3168
  %v3753 = vpop.f32.mrf.mxu0
  %v3754 = vadd.f32 0.0, %v3753
  %v3755 = vpop.f32.mrf.mxu0
  %3756 = vmatprep.mubr.f32.mxu0 0.0
  %3757 = vmatmul.mubr.f32.gmra.mxu0 %v3171
  %v3758 = vpop.f32.mrf.mxu0
  %v3759 = vadd.f32 0.0, %v3758
  %v3760 = vpop.f32.mrf.mxu0
  %3761 = vmatprep.mubr.f32.mxu0 0.0
  %3762 = vmatmul.mubr.f32.gmra.mxu0 %v3174
  %v3763 = vpop.f32.mrf.mxu0
  %v3764 = vadd.f32 0.0, %v3763
  %v3765 = vpop.f32.mrf.mxu0
  %3766 = vmatprep.mubr.f32.mxu0 0.0
  %3767 = vmatmul.mubr.f32.gmra.mxu0 %v3177
  %v3768 = vpop.f32.mrf.mxu0
  %v3769 = vadd.f32 0.0, %v3768
  %v3770 = vpop.f32.mrf.mxu0
  %3771 = vmatprep.mubr.f32.mxu0 0.0
  %3772 = vmatmul.mubr.f32.gmra.mxu0 %v3180
  %v3773 = vpop.f32.mrf.mxu0
  %v3774 = vadd.f32 0.0, %v3773
  %v3775 = vpop.f32.mrf.mxu0
  %3776 = vmatprep.mubr.f32.mxu0 0.0
  %3777 = vmatmul.mubr.f32.gmra.mxu0 %v3183
  %v3778 = vpop.f32.mrf.mxu0
  %v3779 = vadd.f32 0.0, %v3778
  %v3780 = vpop.f32.mrf.mxu0
  %3781 = vmatprep.mubr.f32.mxu0 0.0
  %3782 = vmatmul.mubr.f32.gmra.mxu0 %v3186
  %v3783 = vpop.f32.mrf.mxu0
  %v3784 = vadd.f32 0.0, %v3783
  %v3785 = vpop.f32.mrf.mxu0
  %3786 = vmatprep.mubr.f32.mxu0 0.0
  %3787 = vmatmul.mubr.f32.gmra.mxu0 %v3189
  %v3788 = vpop.f32.mrf.mxu0
  %v3789 = vadd.f32 0.0, %v3788
  %v3790 = vpop.f32.mrf.mxu0
  %3791 = vmatprep.mubr.f32.mxu0 0.0
  %3792 = vmatmul.mubr.f32.gmra.mxu0 %v3192
  %v3793 = vpop.f32.mrf.mxu0
  %v3794 = vadd.f32 0.0, %v3793
  %v3795 = vpop.f32.mrf.mxu0
  %3796 = vmatprep.mubr.f32.mxu0 0.0
  %3797 = vmatmul.mubr.f32.gmra.mxu0 %v3195
  %v3798 = vpop.f32.mrf.mxu0
  %v3799 = vadd.f32 0.0, %v3798
  %v3800 = vpop.f32.mrf.mxu0
  %3801 = vmatprep.mubr.f32.mxu0 0.0
  %3802 = vmatmul.mubr.f32.gmra.mxu0 %v3198
  %v3803 = vpop.f32.mrf.mxu0
  %v3804 = vadd.f32 0.0, %v3803
  %v3805 = vpop.f32.mrf.mxu0
  %3806 = vmatprep.mubr.f32.mxu0 0.0
  %3807 = vmatmul.mubr.f32.gmra.mxu0 %v3201
  %v3808 = vpop.f32.mrf.mxu0
  %v3809 = vadd.f32 0.0, %v3808
  %v3810 = vpop.f32.mrf.mxu0
  %3811 = vmatprep.mubr.f32.mxu0 0.0
  %3812 = vmatmul.mubr.f32.gmra.mxu0 %v3204
  %v3813 = vpop.f32.mrf.mxu0
  %v3814 = vadd.f32 0.0, %v3813
  %v3815 = vpop.f32.mrf.mxu0
  %3816 = vmatprep.mubr.f32.mxu0 0.0
  %3817 = vmatmul.mubr.f32.gmra.mxu0 %v3207
  %v3818 = vpop.f32.mrf.mxu0
  %v3819 = vadd.f32 0.0, %v3818
  %v3820 = vpop.f32.mrf.mxu0
  %3821 = vmatprep.mubr.f32.mxu0 0.0
  %3822 = vmatmul.mubr.f32.gmra.mxu0 %v3210
  %v3823 = vpop.f32.mrf.mxu0
  %v3824 = vadd.f32 0.0, %v3823
  %v3825 = vpop.f32.mrf.mxu0
  %3826 = vmatprep.mubr.f32.mxu0 0.0
  %3827 = vmatmul.mubr.f32.gmra.mxu0 %v3213
  %v3828 = vpop.f32.mrf.mxu0
  %v3829 = vadd.f32 0.0, %v3828
  %v3830 = vpop.f32.mrf.mxu0
  %3831 = vmatprep.mubr.f32.mxu0 0.0
  %3832 = vmatmul.mubr.f32.gmra.mxu0 %v3216
  %v3833 = vpop.f32.mrf.mxu0
  %v3834 = vadd.f32 0.0, %v3833
  %v3835 = vpop.f32.mrf.mxu0
  %3836 = vmatprep.mubr.f32.mxu0 0.0
  %3837 = vmatmul.mubr.f32.gmra.mxu0 %v3219
  %v3838 = vpop.f32.mrf.mxu0
  %v3839 = vadd.f32 0.0, %v3838
  %v3840 = vpop.f32.mrf.mxu0
  %3841 = vmatprep.mubr.f32.mxu0 0.0
  %3842 = vmatmul.mubr.f32.gmra.mxu0 %v3222
  %v3843 = vpop.f32.mrf.mxu0
  %v3844 = vadd.f32 0.0, %v3843
  %v3845 = vpop.f32.mrf.mxu0
  %3846 = vmatprep.mubr.f32.mxu0 0.0
  %3847 = vmatmul.mubr.f32.gmra.mxu0 %v3225
  %v3848 = vpop.f32.mrf.mxu0
  %v3849 = vadd.f32 0.0, %v3848
  %v3850 = vpop.f32.mrf.mxu0
  %3851 = vmatprep.mubr.f32.mxu0 0.0
  %3852 = vmatmul.mubr.f32.gmra.mxu0 %v3228
  %v3853 = vpop.f32.mrf.mxu0
  %v3854 = vadd.f32 0.0, %v3853
  %v3855 = vpop.f32.mrf.mxu0
  %3856 = vmatprep.mubr.f32.mxu0 0.0
  %3857 = vmatmul.mubr.f32.gmra.mxu0 %v3231
  %v3858 = vpop.f32.mrf.mxu0
  %v3859 = vadd.f32 0.0, %v3858
  %v3860 = vpop.f32.mrf.mxu0
  %3861 = vmatprep.mubr.f32.mxu0 0.0
  %3862 = vmatmul.mubr.f32.gmra.mxu0 %v3234
  %v3863 = vpop.f32.mrf.mxu0
  %v3864 = vadd.f32 0.0, %v3863
  %v3865 = vpop.f32.mrf.mxu0
  %3866 = vmatprep.mubr.f32.mxu0 0.0
  %3867 = vmatmul.mubr.f32.gmra.mxu0 %v3237
  %v3868 = vpop.f32.mrf.mxu0
  %v3869 = vadd.f32 0.0, %v3868
  %v3870 = vpop.f32.mrf.mxu0
  %3871 = vmatprep.mubr.f32.mxu0 0.0
  %3872 = vmatmul.mubr.f32.gmra.mxu0 %v3240
  %v3873 = vpop.f32.mrf.mxu0
  %v3874 = vadd.f32 0.0, %v3873
  %v3875 = vpop.f32.mrf.mxu0
  %3876 = vmatprep.mubr.f32.mxu0 0.0
  %3877 = vmatmul.mubr.f32.gmra.mxu0 %v3243
  %v3878 = vpop.f32.mrf.mxu0
  %v3879 = vadd.f32 0.0, %v3878
  %v3880 = vpop.f32.mrf.mxu0
  %3881 = vmatprep.mubr.f32.mxu0 0.0
  %3882 = vmatmul.mubr.f32.gmra.mxu0 %v3246
  %v3883 = vpop.f32.mrf.mxu0
  %v3884 = vadd.f32 0.0, %v3883
  %v3885 = vpop.f32.mrf.mxu0
  %3886 = vmatprep.mubr.f32.mxu0 0.0
  %3887 = vmatmul.mubr.f32.gmra.mxu0 %v3249
  %v3888 = vpop.f32.mrf.mxu0
  %v3889 = vadd.f32 0.0, %v3888
  %v3890 = vpop.f32.mrf.mxu0
  %3891 = vmatprep.mubr.f32.mxu0 0.0
  %3892 = vmatmul.mubr.f32.gmra.mxu0 %v3252
  %v3893 = vpop.f32.mrf.mxu0
  %v3894 = vadd.f32 0.0, %v3893
  %v3895 = vpop.f32.mrf.mxu0
  %3896 = vmatprep.mubr.f32.mxu0 0.0
  %3897 = vmatmul.mubr.f32.gmra.mxu0 %v3255
  %v3898 = vpop.f32.mrf.mxu0
  %v3899 = vadd.f32 0.0, %v3898
  %v3900 = vpop.f32.mrf.mxu0
  %3901 = vmatprep.mubr.f32.mxu0 0.0
  %3902 = vmatmul.mubr.f32.gmra.mxu0 %v3258
  %v3903 = vpop.f32.mrf.mxu0
  %v3904 = vadd.f32 0.0, %v3903
  %v3905 = vpop.f32.mrf.mxu0
  %3906 = vmatprep.mubr.f32.mxu0 0.0
  %3907 = vmatmul.mubr.f32.gmra.mxu0 %v3261
  %v3908 = vpop.f32.mrf.mxu0
  %v3909 = vadd.f32 0.0, %v3908
  %v3910 = vpop.f32.mrf.mxu0
  %3911 = vmatprep.mubr.f32.mxu0 0.0
  %3912 = vmatmul.mubr.f32.gmra.mxu0 %v3264
  %v3913 = vpop.f32.mrf.mxu0
  %v3914 = vadd.f32 0.0, %v3913
  %v3915 = vpop.f32.mrf.mxu0
  %3916 = vmatprep.mubr.f32.mxu0 0.0
  %3917 = vmatmul.mubr.f32.gmra.mxu0 %v3267
  %v3918 = vpop.f32.mrf.mxu0
  %v3919 = vadd.f32 0.0, %v3918
  %v3920 = vpop.f32.mrf.mxu0
  %3921 = vmatprep.mubr.f32.mxu0 0.0
  %3922 = vmatmul.mubr.f32.gmra.mxu0 %v3270
  %v3923 = vpop.f32.mrf.mxu0
  %v3924 = vadd.f32 0.0, %v3923
  %v3925 = vpop.f32.mrf.mxu0
  %3926 = vmatprep.mubr.f32.mxu0 0.0
  %3927 = vmatmul.mubr.f32.gmra.mxu0 %v3273
  %v3928 = vpop.f32.mrf.mxu0
  %v3929 = vadd.f32 0.0, %v3928
  %v3930 = vpop.f32.mrf.mxu0
  %3931 = vmatprep.mubr.f32.mxu0 0.0
  %3932 = vmatmul.mubr.f32.gmra.mxu0 %v3276
  %v3933 = vpop.f32.mrf.mxu0
  %v3934 = vadd.f32 0.0, %v3933
  %v3935 = vpop.f32.mrf.mxu0
  %3936 = vmatprep.mubr.f32.mxu0 0.0
  %3937 = vmatmul.mubr.f32.gmra.mxu0 %v3279
  %v3938 = vpop.f32.mrf.mxu0
  %v3939 = vadd.f32 0.0, %v3938
  %v3940 = vpop.f32.mrf.mxu0
  %3941 = vmatprep.mubr.f32.mxu0 0.0
  %3942 = vmatmul.mubr.f32.gmra.mxu0 %v3282
  %v3943 = vpop.f32.mrf.mxu0
  %v3944 = vadd.f32 0.0, %v3943
  %v3945 = vpop.f32.mrf.mxu0
  %3946 = vmatprep.mubr.f32.mxu0 0.0
  %3947 = vmatmul.mubr.f32.gmra.mxu0 %v3285
  %v3948 = vpop.f32.mrf.mxu0
  %v3949 = vadd.f32 0.0, %v3948
  %v3950 = vpop.f32.mrf.mxu0
  %3951 = vmatprep.mubr.f32.mxu0 0.0
  %3952 = vmatmul.mubr.f32.gmra.mxu0 %v3288
  %v3953 = vpop.f32.mrf.mxu0
  %v3954 = vadd.f32 0.0, %v3953
  %v3955 = vpop.f32.mrf.mxu0
  %3956 = vmatprep.mubr.f32.mxu0 0.0
  %3957 = vmatmul.mubr.f32.gmra.mxu0 %v3291
  %v3958 = vpop.f32.mrf.mxu0
  %v3959 = vadd.f32 0.0, %v3958
  %v3960 = vpop.f32.mrf.mxu0
  %3961 = vmatprep.mubr.f32.mxu0 0.0
  %3962 = vmatmul.mubr.f32.gmra.mxu0 %v3294
  %v3963 = vpop.f32.mrf.mxu0
  %v3964 = vadd.f32 0.0, %v3963
  %v3965 = vpop.f32.mrf.mxu0
  %3966 = vmatprep.mubr.f32.mxu0 0.0
  %3967 = vmatmul.mubr.f32.gmra.mxu0 %v3297
  %v3968 = vpop.f32.mrf.mxu0
  %v3969 = vadd.f32 0.0, %v3968
  %v3970 = vpop.f32.mrf.mxu0
  %3971 = vmatprep.mubr.f32.mxu0 0.0
  %3972 = vmatmul.mubr.f32.gmra.mxu0 %v3300
  %v3973 = vpop.f32.mrf.mxu0
  %v3974 = vadd.f32 0.0, %v3973
  %v3975 = vpop.f32.mrf.mxu0
  %3976 = vmatprep.mubr.f32.mxu0 0.0
  %3977 = vmatmul.mubr.f32.gmra.mxu0 %v3303
  %v3978 = vpop.f32.mrf.mxu0
  %v3979 = vadd.f32 0.0, %v3978
  %v3980 = vpop.f32.mrf.mxu0
  %3981 = vmatprep.mubr.f32.mxu0 0.0
  %3982 = vmatmul.mubr.f32.gmra.mxu0 %v3306
  %v3983 = vpop.f32.mrf.mxu0
  %v3984 = vadd.f32 0.0, %v3983
  %v3985 = vpop.f32.mrf.mxu0
  %3986 = vmatprep.mubr.f32.mxu0 0.0
  %3987 = vmatmul.mubr.f32.gmra.mxu0 %v3309
  %v3988 = vpop.f32.mrf.mxu0
  %v3989 = vadd.f32 0.0, %v3988
  %v3990 = vpop.f32.mrf.mxu0
  %3991 = vmatprep.mubr.f32.mxu0 0.0
  %3992 = vmatmul.mubr.f32.gmra.mxu0 %v3312
  %v3993 = vpop.f32.mrf.mxu0
  %v3994 = vadd.f32 0.0, %v3993
  %v3995 = vpop.f32.mrf.mxu0
  %3996 = vmatprep.mubr.f32.mxu0 0.0
  %3997 = vmatmul.mubr.f32.gmra.mxu0 %v3315
  %v3998 = vpop.f32.mrf.mxu0
  %v3999 = vadd.f32 0.0, %v3998
  %v4000 = vpop.f32.mrf.mxu0
  %4001 = vmatprep.mubr.f32.mxu0 0.0
  %4002 = vmatmul.mubr.f32.gmra.mxu0 %v3318
  %v4003 = vpop.f32.mrf.mxu0
  %v4004 = vadd.f32 0.0, %v4003
  %v4005 = vpop.f32.mrf.mxu0
  %4006 = vmatprep.mubr.f32.mxu0 0.0
  %4007 = vmatmul.mubr.f32.gmra.mxu0 %v3321
  %v4008 = vpop.f32.mrf.mxu0
  %v4009 = vadd.f32 0.0, %v4008
  %v4010 = vpop.f32.mrf.mxu0
  %4011 = vmatprep.mubr.f32.mxu0 0.0
  %4012 = vmatmul.mubr.f32.gmra.mxu0 %v3324
  %v4013 = vpop.f32.mrf.mxu0
  %v4014 = vadd.f32 0.0, %v4013
  %v4015 = vpop.f32.mrf.mxu0
  %4016 = vmatprep.mubr.f32.mxu0 0.0
  %4017 = vmatmul.mubr.f32.gmra.mxu0 %v3327
  %v4018 = vpop.f32.mrf.mxu0
  %v4019 = vadd.f32 0.0, %v4018
  %v4020 = vpop.f32.mrf.mxu0
  %4021 = vmatprep.mubr.f32.mxu0 0.0
  %4022 = vmatmul.mubr.f32.gmra.mxu0 %v3330
  %v4023 = vpop.f32.mrf.mxu0
  %v4024 = vadd.f32 0.0, %v4023
  %v4025 = vpop.f32.mrf.mxu0
  %4026 = vmatprep.mubr.f32.mxu0 0.0
  %4027 = vmatmul.mubr.f32.gmra.mxu0 %v3333
  %v4028 = vpop.f32.mrf.mxu0
  %v4029 = vadd.f32 0.0, %v4028
  %v4030 = vpop.f32.mrf.mxu0
  %4031 = vmatprep.mubr.f32.mxu0 0.0
  %4032 = vmatmul.mubr.f32.gmra.mxu0 %v3336
  %v4033 = vpop.f32.mrf.mxu0
  %v4034 = vadd.f32 0.0, %v4033
  %v4035 = vpop.f32.mrf.mxu0
  %4036 = vmatprep.mubr.f32.mxu0 0.0
  %4037 = vmatmul.mubr.f32.gmra.mxu0 %v3339
  %v4038 = vpop.f32.mrf.mxu0
  %v4039 = vadd.f32 0.0, %v4038
  %v4040 = vpop.f32.mrf.mxu0
  %4041 = vmatprep.mubr.f32.mxu0 0.0
  %4042 = vmatmul.mubr.f32.gmra.mxu0 %v3342
  %v4043 = vpop.f32.mrf.mxu0
  %v4044 = vadd.f32 0.0, %v4043
  %v4045 = vpop.f32.mrf.mxu0
  %4046 = vmatprep.mubr.f32.mxu0 0.0
  %4047 = vmatmul.mubr.f32.gmra.mxu0 %v3345
  %v4048 = vpop.f32.mrf.mxu0
  %v4049 = vadd.f32 0.0, %v4048
  %v4050 = vpop.f32.mrf.mxu0
  %4051 = vmatprep.mubr.f32.mxu0 0.0
  %4052 = vmatmul.mubr.f32.gmra.mxu0 %v3348
  %v4053 = vpop.f32.mrf.mxu0
  %v4054 = vadd.f32 0.0, %v4053
  %v4055 = vpop.f32.mrf.mxu0
  %4056 = vmatprep.mubr.f32.mxu0 0.0
  %4057 = vmatmul.mubr.f32.gmra.mxu0 %v3351
  %v4058 = vpop.f32.mrf.mxu0
  %v4059 = vadd.f32 0.0, %v4058
  %v4060 = vpop.f32.mrf.mxu0
  %4061 = vmatprep.mubr.f32.mxu0 0.0
  %4062 = vmatmul.mubr.f32.gmra.mxu0 %v3354
  %v4063 = vpop.f32.mrf.mxu0
  %v4064 = vadd.f32 0.0, %v4063
  %v4065 = vpop.f32.mrf.mxu0
  %4066 = vmatprep.mubr.f32.mxu0 0.0
  %4067 = vmatmul.mubr.f32.gmra.mxu0 %v3357
  %v4068 = vpop.f32.mrf.mxu0
  %v4069 = vadd.f32 0.0, %v4068
  %v4070 = vpop.f32.mrf.mxu0
  %4071 = vmatprep.mubr.f32.mxu0 0.0
  %4072 = vmatmul.mubr.f32.gmra.mxu0 %v3360
  %v4073 = vpop.f32.mrf.mxu0
  %v4074 = vadd.f32 0.0, %v4073
  %v4075 = vpop.f32.mrf.mxu0
  %4076 = vmatprep.mubr.f32.mxu0 0.0
  %4077 = vmatmul.mubr.f32.gmra.mxu0 %v3363
  %v4078 = vpop.f32.mrf.mxu0
  %v4079 = vadd.f32 0.0, %v4078
  %v4080 = vpop.f32.mrf.mxu0
  %4081 = vmatprep.mubr.f32.mxu0 0.0
  %4082 = vmatmul.mubr.f32.gmra.mxu0 %v3366
  %v4083 = vpop.f32.mrf.mxu0
  %v4084 = vadd.f32 0.0, %v4083
  %v4085 = vpop.f32.mrf.mxu0
  %4086 = vmatprep.mubr.f32.mxu0 0.0
  %4087 = vmatmul.mubr.f32.gmra.mxu0 %v3369
  %v4088 = vpop.f32.mrf.mxu0
  %v4089 = vadd.f32 0.0, %v4088
  %v4090 = vpop.f32.mrf.mxu0
  %4091 = vmatprep.mubr.f32.mxu0 0.0
  %4092 = vmatmul.mubr.f32.gmra.mxu0 %v3372
  %v4093 = vpop.f32.mrf.mxu0
  %v4094 = vadd.f32 0.0, %v4093
  %v4095 = vpop.f32.mrf.mxu0
  %4096 = vmatprep.mubr.f32.mxu0 0.0
  %4097 = vmatmul.mubr.f32.gmra.mxu0 %v3375
  %v4098 = vpop.f32.mrf.mxu0
  %v4099 = vadd.f32 0.0, %v4098
  %v4100 = vpop.f32.mrf.mxu0
  %4101 = vmatprep.mubr.f32.mxu0 0.0
  %4102 = vmatmul.mubr.f32.gmra.mxu0 %v3378
  %v4103 = vpop.f32.mrf.mxu0
  %v4104 = vadd.f32 0.0, %v4103
  %v4105 = vpop.f32.mrf.mxu0
  %4106 = vmatprep.mubr.f32.mxu0 0.0
  %4107 = vmatmul.mubr.f32.gmra.mxu0 %v3381
  %v4108 = vpop.f32.mrf.mxu0
  %v4109 = vadd.f32 0.0, %v4108
  %v4110 = vpop.f32.mrf.mxu0
  %4111 = vmatprep.mubr.f32.mxu0 0.0
  %4112 = vmatmul.mubr.f32.gmra.mxu0 %v3384
  %v4113 = vpop.f32.mrf.mxu0
  %v4114 = vadd.f32 0.0, %v4113
  %v4115 = vpop.f32.mrf.mxu0
  %4116 = vmatprep.mubr.f32.mxu0 0.0
  %4117 = vmatmul.mubr.f32.gmra.mxu0 %v3387
  %v4118 = vpop.f32.mrf.mxu0
  %v4119 = vadd.f32 0.0, %v4118
  %v4120 = vpop.f32.mrf.mxu0
  %4121 = vmatprep.mubr.f32.mxu0 0.0
  %4122 = vmatmul.mubr.f32.gmra.mxu0 %v3390
  %v4123 = vpop.f32.mrf.mxu0
  %v4124 = vadd.f32 0.0, %v4123
  %v4125 = vpop.f32.mrf.mxu0
  %4126 = vmatprep.mubr.f32.mxu0 0.0
  %4127 = vmatmul.mubr.f32.gmra.mxu0 %v3393
  %v4128 = vpop.f32.mrf.mxu0
  %v4129 = vadd.f32 0.0, %v4128
  %v4130 = vpop.f32.mrf.mxu0
  %4131 = vmatprep.mubr.f32.mxu0 0.0
  %4132 = vmatmul.mubr.f32.gmra.mxu0 %v3396
  %v4133 = vpop.f32.mrf.mxu0
  %v4134 = vadd.f32 0.0, %v4133
  %v4135 = vpop.f32.mrf.mxu0
  %4136 = vmatprep.mubr.f32.mxu0 0.0
  %4137 = vmatmul.mubr.f32.gmra.mxu0 %v3399
  %v4138 = vpop.f32.mrf.mxu0
  %v4139 = vadd.f32 0.0, %v4138
  %v4140 = vpop.f32.mrf.mxu0
  %4141 = vmatprep.mubr.f32.mxu0 0.0
  %4142 = vmatmul.mubr.f32.gmra.mxu0 %v3402
  %v4143 = vpop.f32.mrf.mxu0
  %v4144 = vadd.f32 0.0, %v4143
  %v4145 = vpop.f32.mrf.mxu0
  %4146 = vmatprep.mubr.f32.mxu0 0.0
  %4147 = vmatmul.mubr.f32.gmra.mxu0 %v3405
  %v4148 = vpop.f32.mrf.mxu0
  %v4149 = vadd.f32 0.0, %v4148
  %v4150 = vpop.f32.mrf.mxu0
  %4151 = vmatprep.mubr.f32.mxu0 0.0
  %4152 = vmatmul.mubr.f32.gmra.mxu0 %v3408
  %v4153 = vpop.f32.mrf.mxu0
  %v4154 = vadd.f32 0.0, %v4153
  %v4155 = vpop.f32.mrf.mxu0
  %4156 = vmatprep.mubr.f32.mxu0 0.0
  %4157 = vmatmul.mubr.f32.gmra.mxu0 %v3411
  %v4158 = vpop.f32.mrf.mxu0
  %v4159 = vadd.f32 0.0, %v4158
  %v4160 = vpop.f32.mrf.mxu0
  %4161 = vmatprep.mubr.f32.mxu0 0.0
  %4162 = vmatmul.mubr.f32.gmra.mxu0 %v3414
  %v4163 = vpop.f32.mrf.mxu0
  %v4164 = vadd.f32 0.0, %v4163
  %v4165 = vpop.f32.mrf.mxu0
  %4166 = vmatprep.mubr.f32.mxu0 0.0
  %4167 = vmatmul.mubr.f32.gmra.mxu0 %v3417
  %v4168 = vpop.f32.mrf.mxu0
  %v4169 = vadd.f32 0.0, %v4168
  %v4170 = vpop.f32.mrf.mxu0
  %4171 = vmatprep.mubr.f32.mxu0 0.0
  %4172 = vmatmul.mubr.f32.gmra.mxu0 %v3420
  %v4173 = vpop.f32.mrf.mxu0
  %v4174 = vadd.f32 0.0, %v4173
  %v4175 = vpop.f32.mrf.mxu0
  %4176 = vmatprep.mubr.f32.mxu0 0.0
  %4177 = vmatmul.mubr.f32.gmra.mxu0 %v3423
  %v4178 = vpop.f32.mrf.mxu0
  %v4179 = vadd.f32 0.0, %v4178
  %v4180 = vpop.f32.mrf.mxu0
  %4181 = vmatprep.mubr.f32.mxu0 0.0
  %4182 = vmatmul.mubr.f32.gmra.mxu0 %v3426
  %v4183 = vpop.f32.mrf.mxu0
  %v4184 = vadd.f32 0.0, %v4183
  %v4185 = vpop.f32.mrf.mxu0
  %4186 = vmatprep.mubr.f32.mxu0 0.0
  %4187 = vmatmul.mubr.f32.gmra.mxu0 %v3429
  %v4188 = vpop.f32.mrf.mxu0
  %v4189 = vadd.f32 0.0, %v4188
  %v4190 = vpop.f32.mrf.mxu0
  %4191 = vmatprep.mubr.f32.mxu0 0.0
  %4192 = vmatmul.mubr.f32.gmra.mxu0 %v3432
  %v4193 = vpop.f32.mrf.mxu0
  %v4194 = vadd.f32 0.0, %v4193
  %v4195 = vpop.f32.mrf.mxu0
  %4196 = vmatprep.mubr.f32.mxu0 0.0
  %4197 = vmatmul.mubr.f32.gmra.mxu0 %v3435
  %v4198 = vpop.f32.mrf.mxu0
  %v4199 = vadd.f32 0.0, %v4198
  %v4200 = vpop.f32.mrf.mxu0
  %4201 = vmatprep.mubr.f32.mxu0 0.0
  %4202 = vmatmul.mubr.f32.gmra.mxu0 %v3438
  %v4203 = vpop.f32.mrf.mxu0
  %v4204 = vadd.f32 0.0, %v4203
  %v4205 = vpop.f32.mrf.mxu0
  %4206 = vmatprep.mubr.f32.mxu0 0.0
  %4207 = vmatmul.mubr.f32.gmra.mxu0 %v3441
  %v4208 = vpop.f32.mrf.mxu0
  %v4209 = vadd.f32 0.0, %v4208
  %v4210 = vpop.f32.mrf.mxu0
  %4211 = vmatprep.mubr.f32.mxu0 0.0
  %4212 = vmatmul.mubr.f32.gmra.mxu0 %v3444
  %v4213 = vpop.f32.mrf.mxu0
  %v4214 = vadd.f32 0.0, %v4213
  %v4215 = vpop.f32.mrf.mxu0
  %4216 = vmatprep.mubr.f32.mxu0 0.0
  %4217 = vmatmul.mubr.f32.gmra.mxu0 %v3447
  %v4218 = vpop.f32.mrf.mxu0
  %v4219 = vadd.f32 0.0, %v4218
  %v4220 = vpop.f32.mrf.mxu0
  %4221 = vmatprep.mubr.f32.mxu0 0.0
  %4222 = vmatmul.mubr.f32.gmra.mxu0 %v3450
  %v4223 = vpop.f32.mrf.mxu0
  %v4224 = vadd.f32 0.0, %v4223
  %v4225 = vpop.f32.mrf.mxu0
  %4226 = vmatprep.mubr.f32.mxu0 0.0
  %4227 = vmatmul.mubr.f32.gmra.mxu0 %v3453
  %v4228 = vpop.f32.mrf.mxu0
  %v4229 = vadd.f32 0.0, %v4228
  %v4230 = vpop.f32.mrf.mxu0
  %4231 = vmatprep.mubr.f32.mxu0 0.0
  %4232 = vmatmul.mubr.f32.gmra.mxu0 %v3456
  %v4233 = vpop.f32.mrf.mxu0
  %v4234 = vadd.f32 0.0, %v4233
  %v4235 = vpop.f32.mrf.mxu0
  %4236 = vmatprep.mubr.f32.mxu0 0.0
  %4237 = vmatmul.mubr.f32.gmra.mxu0 %v3459
  %v4238 = vpop.f32.mrf.mxu0
  %v4239 = vadd.f32 0.0, %v4238
  %v4240 = vpop.f32.mrf.mxu0
  %4241 = vmatprep.mubr.f32.mxu0 0.0
  %4242 = vmatmul.mubr.f32.gmra.mxu0 %v3462
  %v4243 = vpop.f32.mrf.mxu0
  %v4244 = vadd.f32 0.0, %v4243
  %v4245 = vpop.f32.mrf.mxu0
  %4246 = vmatprep.mubr.f32.mxu0 0.0
  %4247 = vmatmul.mubr.f32.gmra.mxu0 %v3465
  %v4248 = vpop.f32.mrf.mxu0
  %v4249 = vadd.f32 0.0, %v4248
  %v4250 = vpop.f32.mrf.mxu0
  %4251 = vdwg.mxu0
  %v4252 = vmax.f32 %v2746, %v3534
  %v4253 = vmax.f32 %v2747, %v3539
  %v4254 = vmax.f32 %v2748, %v3544
  %v4255 = vmax.f32 %v2749, %v3549
  %v4256 = vmax.f32 %v2750, %v3554
  %v4257 = vmax.f32 %v2751, %v3559
  %v4258 = vmax.f32 %v2752, %v3564
  %v4259 = vmax.f32 %v2753, %v3569
  %v4260 = vmax.f32 %v2754, %v3574
  %v4261 = vmax.f32 %v2755, %v3579
  %v4262 = vmax.f32 %v2756, %v3584
  %v4263 = vmax.f32 %v2757, %v3589
  %v4264 = vmax.f32 %v2758, %v3594
  %v4265 = vmax.f32 %v2759, %v3599
  %v4266 = vmax.f32 %v2760, %v3604
  %v4267 = vmax.f32 %v2761, %v3609
  %v4268 = vmax.f32 %v2762, %v3614
  %v4269 = vmax.f32 %v2763, %v3619
  %v4270 = vmax.f32 %v2764, %v3624
  %v4271 = vmax.f32 %v2765, %v3629
  %v4272 = vmax.f32 %v2766, %v3634
  %v4273 = vmax.f32 %v2767, %v3639
  %v4274 = vmax.f32 %v2768, %v3644
  %v4275 = vmax.f32 %v2769, %v3649
  %v4276 = vmax.f32 %v2770, %v3654
  %v4277 = vmax.f32 %v2771, %v3659
  %v4278 = vmax.f32 %v2772, %v3664
  %v4279 = vmax.f32 %v2773, %v3669
  %v4280 = vmax.f32 %v2774, %v3674
  %v4281 = vmax.f32 %v2775, %v3679
  %v4282 = vmax.f32 %v2776, %v3684
  %v4283 = vmax.f32 %v2777, %v3689
  %v4284 = vmax.f32 %v2778, %v3694
  %v4285 = vmax.f32 %v2779, %v3699
  %v4286 = vmax.f32 %v2780, %v3704
  %v4287 = vmax.f32 %v2781, %v3709
  %v4288 = vmax.f32 %v2782, %v3714
  %v4289 = vmax.f32 %v2783, %v3719
  %v4290 = vmax.f32 %v2784, %v3724
  %v4291 = vmax.f32 %v2785, %v3729
  %v4292 = vmax.f32 %v2786, %v3734
  %v4293 = vmax.f32 %v2787, %v3739
  %v4294 = vmax.f32 %v2788, %v3744
  %v4295 = vmax.f32 %v2789, %v3749
  %v4296 = vmax.f32 %v2790, %v3754
  %v4297 = vmax.f32 %v2791, %v3759
  %v4298 = vmax.f32 %v2792, %v3764
  %v4299 = vmax.f32 %v2793, %v3769
  %v4300 = vmax.f32 %v2794, %v3774
  %v4301 = vmax.f32 %v2795, %v3779
  %v4302 = vmax.f32 %v2796, %v3784
  %v4303 = vmax.f32 %v2797, %v3789
  %v4304 = vmax.f32 %v2798, %v3794
  %v4305 = vmax.f32 %v2799, %v3799
  %v4306 = vmax.f32 %v2800, %v3804
  %v4307 = vmax.f32 %v2801, %v3809
  %v4308 = vmax.f32 %v2802, %v3814
  %v4309 = vmax.f32 %v2803, %v3819
  %v4310 = vmax.f32 %v2804, %v3824
  %v4311 = vmax.f32 %v2805, %v3829
  %v4312 = vmax.f32 %v2806, %v3834
  %v4313 = vmax.f32 %v2807, %v3839
  %v4314 = vmax.f32 %v2808, %v3844
  %v4315 = vmax.f32 %v2809, %v3849
  %v4316 = vmax.f32 %v2810, %v3854
  %v4317 = vmax.f32 %v2811, %v3859
  %v4318 = vmax.f32 %v2812, %v3864
  %v4319 = vmax.f32 %v2813, %v3869
  %v4320 = vmax.f32 %v2814, %v3874
  %v4321 = vmax.f32 %v2815, %v3879
  %v4322 = vmax.f32 %v2816, %v3884
  %v4323 = vmax.f32 %v2817, %v3889
  %v4324 = vmax.f32 %v2818, %v3894
  %v4325 = vmax.f32 %v2819, %v3899
  %v4326 = vmax.f32 %v2820, %v3904
  %v4327 = vmax.f32 %v2821, %v3909
  %v4328 = vmax.f32 %v2822, %v3914
  %v4329 = vmax.f32 %v2823, %v3919
  %v4330 = vmax.f32 %v2824, %v3924
  %v4331 = vmax.f32 %v2825, %v3929
  %v4332 = vmax.f32 %v2826, %v3934
  %v4333 = vmax.f32 %v2827, %v3939
  %v4334 = vmax.f32 %v2828, %v3944
  %v4335 = vmax.f32 %v2829, %v3949
  %v4336 = vmax.f32 %v2830, %v3954
  %v4337 = vmax.f32 %v2831, %v3959
  %v4338 = vmax.f32 %v2832, %v3964
  %v4339 = vmax.f32 %v2833, %v3969
  %v4340 = vmax.f32 %v2834, %v3974
  %v4341 = vmax.f32 %v2835, %v3979
  %v4342 = vmax.f32 %v2836, %v3984
  %v4343 = vmax.f32 %v2837, %v3989
  %v4344 = vmax.f32 %v2838, %v3994
  %v4345 = vmax.f32 %v2839, %v3999
  %v4346 = vmax.f32 %v2840, %v4004
  %v4347 = vmax.f32 %v2841, %v4009
  %v4348 = vmax.f32 %v2842, %v4014
  %v4349 = vmax.f32 %v2843, %v4019
  %v4350 = vmax.f32 %v2844, %v4024
  %v4351 = vmax.f32 %v2845, %v4029
  %v4352 = vmax.f32 %v2846, %v4034
  %v4353 = vmax.f32 %v2847, %v4039
  %v4354 = vmax.f32 %v2848, %v4044
  %v4355 = vmax.f32 %v2849, %v4049
  %v4356 = vmax.f32 %v2850, %v4054
  %v4357 = vmax.f32 %v2851, %v4059
  %v4358 = vmax.f32 %v2852, %v4064
  %v4359 = vmax.f32 %v2853, %v4069
  %v4360 = vmax.f32 %v2854, %v4074
  %v4361 = vmax.f32 %v2855, %v4079
  %v4362 = vmax.f32 %v2856, %v4084
  %v4363 = vmax.f32 %v2857, %v4089
  %v4364 = vmax.f32 %v2858, %v4094
  %v4365 = vmax.f32 %v2859, %v4099
  %v4366 = vmax.f32 %v2860, %v4104
  %v4367 = vmax.f32 %v2861, %v4109
  %v4368 = vmax.f32 %v2862, %v4114
  %v4369 = vmax.f32 %v2863, %v4119
  %v4370 = vmax.f32 %v2864, %v4124
  %v4371 = vmax.f32 %v2865, %v4129
  %v4372 = vmax.f32 %v2866, %v4134
  %v4373 = vmax.f32 %v2867, %v4139
  %v4374 = vmax.f32 %v2868, %v4144
  %v4375 = vmax.f32 %v2869, %v4149
  %v4376 = vmax.f32 %v2870, %v4154
  %v4377 = vmax.f32 %v2871, %v4159
  %v4378 = vmax.f32 %v2872, %v4164
  %v4379 = vmax.f32 %v2873, %v4169
  %v4380 = vmax.f32 %v2874, %v4174
  %v4381 = vmax.f32 %v2875, %v4179
  %v4382 = vmax.f32 %v2876, %v4184
  %v4383 = vmax.f32 %v2877, %v4189
  %v4384 = vmax.f32 %v2878, %v4194
  %v4385 = vmax.f32 %v2879, %v4199
  %v4386 = vmax.f32 %v2880, %v4204
  %v4387 = vmax.f32 %v2881, %v4209
  %v4388 = vmax.f32 %v2882, %v4214
  %v4389 = vmax.f32 %v2883, %v4219
  %v4390 = vmax.f32 %v2884, %v4224
  %v4391 = vmax.f32 %v2885, %v4229
  %v4392 = vmax.f32 %v2886, %v4234
  %v4393 = vmax.f32 %v2887, %v4239
  %v4394 = vmax.f32 %v2888, %v4244
  %v4395 = vmax.f32 %v2889, %v4249
  %s4396 = scalar_lea.vmem %s0, 3456
  %v4397 = vld [vmem:[%s4396] sm:$0xff]
  %v4398 = vld [vmem:[%s4396 + $0x8] sm:$0xff]
  %v4399 = vld [vmem:[%s4396 + $0x10] sm:$0xff]
  %v4400 = vld [vmem:[%s4396 + $0x18] sm:$0xff]
  %v4401 = vld [vmem:[%s4396 + $0x20] sm:$0xff]
  %v4402 = vld [vmem:[%s4396 + $0x28] sm:$0xff]
  %v4403 = vld [vmem:[%s4396 + $0x30] sm:$0xff]
  %v4404 = vld [vmem:[%s4396 + $0x38] sm:$0xff]
  %v4405 = vld [vmem:[%s4396 + $0x40] sm:$0xff]
  %v4406 = vld [vmem:[%s4396 + $0x48] sm:$0xff]
  %v4407 = vld [vmem:[%s4396 + $0x50] sm:$0xff]
  %v4408 = vld [vmem:[%s4396 + $0x58] sm:$0xff]
  %v4409 = vld [vmem:[%s4396 + $0x60] sm:$0xff]
  %v4410 = vld [vmem:[%s4396 + $0x68] sm:$0xff]
  %v4411 = vld [vmem:[%s4396 + $0x70] sm:$0xff]
  %v4412 = vld [vmem:[%s4396 + $0x78] sm:$0xff]
  %v4413 = vld [vmem:[%s4396 + $0x80] sm:$0xff]
  %v4414 = vld [vmem:[%s4396 + $0x88] sm:$0xff]
  %v4415 = vld [vmem:[%s4396 + $0x90] sm:$0xff]
  %v4416 = vld [vmem:[%s4396 + $0x98] sm:$0xff]
  %v4417 = vld [vmem:[%s4396 + $0xa0] sm:$0xff]
  %v4418 = vld [vmem:[%s4396 + $0xa8] sm:$0xff]
  %v4419 = vld [vmem:[%s4396 + $0xb0] sm:$0xff]
  %v4420 = vld [vmem:[%s4396 + $0xb8] sm:$0xff]
  %v4421 = vld [vmem:[%s4396 + $0xc0] sm:$0xff]
  %v4422 = vld [vmem:[%s4396 + $0xc8] sm:$0xff]
  %v4423 = vld [vmem:[%s4396 + $0xd0] sm:$0xff]
  %v4424 = vld [vmem:[%s4396 + $0xd8] sm:$0xff]
  %v4425 = vld [vmem:[%s4396 + $0xe0] sm:$0xff]
  %v4426 = vld [vmem:[%s4396 + $0xe8] sm:$0xff]
  %v4427 = vld [vmem:[%s4396 + $0xf0] sm:$0xff]
  %v4428 = vld [vmem:[%s4396 + $0xf8] sm:$0xff]
  %v4429 = vld [vmem:[%s4396 + $0x100] sm:$0xff]
  %v4430 = vld [vmem:[%s4396 + $0x108] sm:$0xff]
  %v4431 = vld [vmem:[%s4396 + $0x110] sm:$0xff]
  %v4432 = vld [vmem:[%s4396 + $0x118] sm:$0xff]
  %v4433 = vld [vmem:[%s4396 + $0x120] sm:$0xff]
  %v4434 = vld [vmem:[%s4396 + $0x128] sm:$0xff]
  %v4435 = vld [vmem:[%s4396 + $0x130] sm:$0xff]
  %v4436 = vld [vmem:[%s4396 + $0x138] sm:$0xff]
  %v4437 = vld [vmem:[%s4396 + $0x140] sm:$0xff]
  %v4438 = vld [vmem:[%s4396 + $0x148] sm:$0xff]
  %v4439 = vld [vmem:[%s4396 + $0x150] sm:$0xff]
  %v4440 = vld [vmem:[%s4396 + $0x158] sm:$0xff]
  %v4441 = vld [vmem:[%s4396 + $0x160] sm:$0xff]
  %v4442 = vld [vmem:[%s4396 + $0x168] sm:$0xff]
  %v4443 = vld [vmem:[%s4396 + $0x170] sm:$0xff]
  %v4444 = vld [vmem:[%s4396 + $0x178] sm:$0xff]
  %v4445 = vld [vmem:[%s4396 + $0x180] sm:$0xff]
  %v4446 = vld [vmem:[%s4396 + $0x188] sm:$0xff]
  %v4447 = vld [vmem:[%s4396 + $0x190] sm:$0xff]
  %v4448 = vld [vmem:[%s4396 + $0x198] sm:$0xff]
  %v4449 = vld [vmem:[%s4396 + $0x1a0] sm:$0xff]
  %v4450 = vld [vmem:[%s4396 + $0x1a8] sm:$0xff]
  %v4451 = vld [vmem:[%s4396 + $0x1b0] sm:$0xff]
  %v4452 = vld [vmem:[%s4396 + $0x1b8] sm:$0xff]
  %v4453 = vld [vmem:[%s4396 + $0x1c0] sm:$0xff]
  %v4454 = vld [vmem:[%s4396 + $0x1c8] sm:$0xff]
  %v4455 = vld [vmem:[%s4396 + $0x1d0] sm:$0xff]
  %v4456 = vld [vmem:[%s4396 + $0x1d8] sm:$0xff]
  %v4457 = vld [vmem:[%s4396 + $0x1e0] sm:$0xff]
  %v4458 = vld [vmem:[%s4396 + $0x1e8] sm:$0xff]
  %v4459 = vld [vmem:[%s4396 + $0x1f0] sm:$0xff]
  %v4460 = vld [vmem:[%s4396 + $0x1f8] sm:$0xff]
  %v4461 = vld [vmem:[%s4396 + $0x200] sm:$0xff]
  %v4462 = vld [vmem:[%s4396 + $0x208] sm:$0xff]
  %v4463 = vld [vmem:[%s4396 + $0x210] sm:$0xff]
  %v4464 = vld [vmem:[%s4396 + $0x218] sm:$0xff]
  %v4465 = vld [vmem:[%s4396 + $0x220] sm:$0xff]
  %v4466 = vld [vmem:[%s4396 + $0x228] sm:$0xff]
  %v4467 = vld [vmem:[%s4396 + $0x230] sm:$0xff]
  %v4468 = vld [vmem:[%s4396 + $0x238] sm:$0xff]
  %v4469 = vld [vmem:[%s4396 + $0x240] sm:$0xff]
  %v4470 = vld [vmem:[%s4396 + $0x248] sm:$0xff]
  %v4471 = vld [vmem:[%s4396 + $0x250] sm:$0xff]
  %v4472 = vld [vmem:[%s4396 + $0x258] sm:$0xff]
  %v4473 = vld [vmem:[%s4396 + $0x260] sm:$0xff]
  %v4474 = vld [vmem:[%s4396 + $0x268] sm:$0xff]
  %v4475 = vld [vmem:[%s4396 + $0x270] sm:$0xff]
  %v4476 = vld [vmem:[%s4396 + $0x278] sm:$0xff]
  %v4477 = vld [vmem:[%s4396 + $0x280] sm:$0xff]
  %v4478 = vld [vmem:[%s4396 + $0x288] sm:$0xff]
  %v4479 = vld [vmem:[%s4396 + $0x290] sm:$0xff]
  %v4480 = vld [vmem:[%s4396 + $0x298] sm:$0xff]
  %v4481 = vld [vmem:[%s4396 + $0x2a0] sm:$0xff]
  %v4482 = vld [vmem:[%s4396 + $0x2a8] sm:$0xff]
  %v4483 = vld [vmem:[%s4396 + $0x2b0] sm:$0xff]
  %v4484 = vld [vmem:[%s4396 + $0x2b8] sm:$0xff]
  %v4485 = vld [vmem:[%s4396 + $0x2c0] sm:$0xff]
  %v4486 = vld [vmem:[%s4396 + $0x2c8] sm:$0xff]
  %v4487 = vld [vmem:[%s4396 + $0x2d0] sm:$0xff]
  %v4488 = vld [vmem:[%s4396 + $0x2d8] sm:$0xff]
  %v4489 = vld [vmem:[%s4396 + $0x2e0] sm:$0xff]
  %v4490 = vld [vmem:[%s4396 + $0x2e8] sm:$0xff]
  %v4491 = vld [vmem:[%s4396 + $0x2f0] sm:$0xff]
  %v4492 = vld [vmem:[%s4396 + $0x2f8] sm:$0xff]
  %v4493 = vld [vmem:[%s4396 + $0x300] sm:$0xff]
  %v4494 = vld [vmem:[%s4396 + $0x308] sm:$0xff]
  %v4495 = vld [vmem:[%s4396 + $0x310] sm:$0xff]
  %v4496 = vld [vmem:[%s4396 + $0x318] sm:$0xff]
  %v4497 = vld [vmem:[%s4396 + $0x320] sm:$0xff]
  %v4498 = vld [vmem:[%s4396 + $0x328] sm:$0xff]
  %v4499 = vld [vmem:[%s4396 + $0x330] sm:$0xff]
  %v4500 = vld [vmem:[%s4396 + $0x338] sm:$0xff]
  %v4501 = vld [vmem:[%s4396 + $0x340] sm:$0xff]
  %v4502 = vld [vmem:[%s4396 + $0x348] sm:$0xff]
  %v4503 = vld [vmem:[%s4396 + $0x350] sm:$0xff]
  %v4504 = vld [vmem:[%s4396 + $0x358] sm:$0xff]
  %v4505 = vld [vmem:[%s4396 + $0x360] sm:$0xff]
  %v4506 = vld [vmem:[%s4396 + $0x368] sm:$0xff]
  %v4507 = vld [vmem:[%s4396 + $0x370] sm:$0xff]
  %v4508 = vld [vmem:[%s4396 + $0x378] sm:$0xff]
  %v4509 = vld [vmem:[%s4396 + $0x380] sm:$0xff]
  %v4510 = vld [vmem:[%s4396 + $0x388] sm:$0xff]
  %v4511 = vld [vmem:[%s4396 + $0x390] sm:$0xff]
  %v4512 = vld [vmem:[%s4396 + $0x398] sm:$0xff]
  %v4513 = vld [vmem:[%s4396 + $0x3a0] sm:$0xff]
  %v4514 = vld [vmem:[%s4396 + $0x3a8] sm:$0xff]
  %v4515 = vld [vmem:[%s4396 + $0x3b0] sm:$0xff]
  %v4516 = vld [vmem:[%s4396 + $0x3b8] sm:$0xff]
  %v4517 = vld [vmem:[%s4396 + $0x3c0] sm:$0xff]
  %v4518 = vld [vmem:[%s4396 + $0x3c8] sm:$0xff]
  %v4519 = vld [vmem:[%s4396 + $0x3d0] sm:$0xff]
  %v4520 = vld [vmem:[%s4396 + $0x3d8] sm:$0xff]
  %v4521 = vld [vmem:[%s4396 + $0x3e0] sm:$0xff]
  %v4522 = vld [vmem:[%s4396 + $0x3e8] sm:$0xff]
  %v4523 = vld [vmem:[%s4396 + $0x3f0] sm:$0xff]
  %v4524 = vld [vmem:[%s4396 + $0x3f8] sm:$0xff]
  %v4525 = vld [vmem:[%s4396 + $0x400] sm:$0xff]
  %v4526 = vld [vmem:[%s4396 + $0x408] sm:$0xff]
  %v4527 = vld [vmem:[%s4396 + $0x410] sm:$0xff]
  %v4528 = vld [vmem:[%s4396 + $0x418] sm:$0xff]
  %v4529 = vld [vmem:[%s4396 + $0x420] sm:$0xff]
  %v4530 = vld [vmem:[%s4396 + $0x428] sm:$0xff]
  %v4531 = vld [vmem:[%s4396 + $0x430] sm:$0xff]
  %v4532 = vld [vmem:[%s4396 + $0x438] sm:$0xff]
  %v4533 = vld [vmem:[%s4396 + $0x440] sm:$0xff]
  %v4534 = vld [vmem:[%s4396 + $0x448] sm:$0xff]
  %v4535 = vld [vmem:[%s4396 + $0x450] sm:$0xff]
  %v4536 = vld [vmem:[%s4396 + $0x458] sm:$0xff]
  %v4537 = vld [vmem:[%s4396 + $0x460] sm:$0xff]
  %v4538 = vld [vmem:[%s4396 + $0x468] sm:$0xff]
  %v4539 = vld [vmem:[%s4396 + $0x470] sm:$0xff]
  %v4540 = vld [vmem:[%s4396 + $0x478] sm:$0xff]
  %v4542 = vsel %vm162, %v4397, 0
  %v4545 = vsel %vm162, %v4398, 0
  %v4548 = vsel %vm162, %v4399, 0
  %v4551 = vsel %vm162, %v4400, 0
  %v4554 = vsel %vm162, %v4401, 0
  %v4557 = vsel %vm162, %v4402, 0
  %v4560 = vsel %vm162, %v4403, 0
  %v4563 = vsel %vm162, %v4404, 0
  %v4566 = vsel %vm162, %v4405, 0
  %v4569 = vsel %vm162, %v4406, 0
  %v4572 = vsel %vm162, %v4407, 0
  %v4575 = vsel %vm162, %v4408, 0
  %v4578 = vsel %vm162, %v4409, 0
  %v4581 = vsel %vm162, %v4410, 0
  %v4584 = vsel %vm162, %v4411, 0
  %v4587 = vsel %vm162, %v4412, 0
  %v4590 = vsel %vm162, %v4413, 0
  %v4593 = vsel %vm162, %v4414, 0
  %v4596 = vsel %vm162, %v4415, 0
  %v4599 = vsel %vm162, %v4416, 0
  %v4602 = vsel %vm162, %v4417, 0
  %v4605 = vsel %vm162, %v4418, 0
  %v4608 = vsel %vm162, %v4419, 0
  %v4611 = vsel %vm162, %v4420, 0
  %v4614 = vsel %vm162, %v4421, 0
  %v4617 = vsel %vm162, %v4422, 0
  %v4620 = vsel %vm162, %v4423, 0
  %v4623 = vsel %vm162, %v4424, 0
  %v4626 = vsel %vm162, %v4425, 0
  %v4629 = vsel %vm162, %v4426, 0
  %v4632 = vsel %vm162, %v4427, 0
  %v4635 = vsel %vm162, %v4428, 0
  %v4638 = vsel %vm162, %v4429, 0
  %v4641 = vsel %vm162, %v4430, 0
  %v4644 = vsel %vm162, %v4431, 0
  %v4647 = vsel %vm162, %v4432, 0
  %v4650 = vsel %vm162, %v4433, 0
  %v4653 = vsel %vm162, %v4434, 0
  %v4656 = vsel %vm162, %v4435, 0
  %v4659 = vsel %vm162, %v4436, 0
  %v4662 = vsel %vm162, %v4437, 0
  %v4665 = vsel %vm162, %v4438, 0
  %v4668 = vsel %vm162, %v4439, 0
  %v4671 = vsel %vm162, %v4440, 0
  %v4674 = vsel %vm162, %v4441, 0
  %v4677 = vsel %vm162, %v4442, 0
  %v4680 = vsel %vm162, %v4443, 0
  %v4683 = vsel %vm162, %v4444, 0
  %v4686 = vsel %vm162, %v4445, 0
  %v4689 = vsel %vm162, %v4446, 0
  %v4692 = vsel %vm162, %v4447, 0
  %v4695 = vsel %vm162, %v4448, 0
  %v4698 = vsel %vm162, %v4449, 0
  %v4701 = vsel %vm162, %v4450, 0
  %v4704 = vsel %vm162, %v4451, 0
  %v4707 = vsel %vm162, %v4452, 0
  %v4710 = vsel %vm162, %v4453, 0
  %v4713 = vsel %vm162, %v4454, 0
  %v4716 = vsel %vm162, %v4455, 0
  %v4719 = vsel %vm162, %v4456, 0
  %v4722 = vsel %vm162, %v4457, 0
  %v4725 = vsel %vm162, %v4458, 0
  %v4728 = vsel %vm162, %v4459, 0
  %v4731 = vsel %vm162, %v4460, 0
  %v4734 = vsel %vm162, %v4461, 0
  %v4737 = vsel %vm162, %v4462, 0
  %v4740 = vsel %vm162, %v4463, 0
  %v4743 = vsel %vm162, %v4464, 0
  %v4746 = vsel %vm162, %v4465, 0
  %v4749 = vsel %vm162, %v4466, 0
  %v4752 = vsel %vm162, %v4467, 0
  %v4755 = vsel %vm162, %v4468, 0
  %v4758 = vsel %vm162, %v4469, 0
  %v4761 = vsel %vm162, %v4470, 0
  %v4764 = vsel %vm162, %v4471, 0
  %v4767 = vsel %vm162, %v4472, 0
  %v4770 = vsel %vm162, %v4473, 0
  %v4773 = vsel %vm162, %v4474, 0
  %v4776 = vsel %vm162, %v4475, 0
  %v4779 = vsel %vm162, %v4476, 0
  %v4782 = vsel %vm162, %v4477, 0
  %v4785 = vsel %vm162, %v4478, 0
  %v4788 = vsel %vm162, %v4479, 0
  %v4791 = vsel %vm162, %v4480, 0
  %v4794 = vsel %vm162, %v4481, 0
  %v4797 = vsel %vm162, %v4482, 0
  %v4800 = vsel %vm162, %v4483, 0
  %v4803 = vsel %vm162, %v4484, 0
  %v4806 = vsel %vm162, %v4485, 0
  %v4809 = vsel %vm162, %v4486, 0
  %v4812 = vsel %vm162, %v4487, 0
  %v4815 = vsel %vm162, %v4488, 0
  %v4818 = vsel %vm162, %v4489, 0
  %v4821 = vsel %vm162, %v4490, 0
  %v4824 = vsel %vm162, %v4491, 0
  %v4827 = vsel %vm162, %v4492, 0
  %v4830 = vsel %vm162, %v4493, 0
  %v4833 = vsel %vm162, %v4494, 0
  %v4836 = vsel %vm162, %v4495, 0
  %v4839 = vsel %vm162, %v4496, 0
  %v4842 = vsel %vm162, %v4497, 0
  %v4845 = vsel %vm162, %v4498, 0
  %v4848 = vsel %vm162, %v4499, 0
  %v4851 = vsel %vm162, %v4500, 0
  %v4854 = vsel %vm162, %v4501, 0
  %v4857 = vsel %vm162, %v4502, 0
  %v4860 = vsel %vm162, %v4503, 0
  %v4863 = vsel %vm162, %v4504, 0
  %v4866 = vsel %vm162, %v4505, 0
  %v4869 = vsel %vm162, %v4506, 0
  %v4872 = vsel %vm162, %v4507, 0
  %v4875 = vsel %vm162, %v4508, 0
  %v4878 = vsel %vm162, %v4509, 0
  %v4881 = vsel %vm162, %v4510, 0
  %v4884 = vsel %vm162, %v4511, 0
  %v4887 = vsel %vm162, %v4512, 0
  %v4890 = vsel %vm162, %v4513, 0
  %v4893 = vsel %vm162, %v4514, 0
  %v4896 = vsel %vm162, %v4515, 0
  %v4899 = vsel %vm162, %v4516, 0
  %v4902 = vsel %vm162, %v4517, 0
  %v4905 = vsel %vm162, %v4518, 0
  %v4908 = vsel %vm162, %v4519, 0
  %v4911 = vsel %vm162, %v4520, 0
  %v4914 = vsel %vm162, %v4521, 0
  %v4917 = vsel %vm162, %v4522, 0
  %v4920 = vsel %vm162, %v4523, 0
  %v4923 = vsel %vm162, %v4524, 0
  %v4926 = vsel %vm162, %v4525, 0
  %v4929 = vsel %vm162, %v4526, 0
  %v4932 = vsel %vm162, %v4527, 0
  %v4935 = vsel %vm162, %v4528, 0
  %v4938 = vsel %vm162, %v4529, 0
  %v4941 = vsel %vm162, %v4530, 0
  %v4944 = vsel %vm162, %v4531, 0
  %v4947 = vsel %vm162, %v4532, 0
  %v4950 = vsel %vm162, %v4533, 0
  %v4953 = vsel %vm162, %v4534, 0
  %v4956 = vsel %vm162, %v4535, 0
  %v4959 = vsel %vm162, %v4536, 0
  %v4962 = vsel %vm162, %v4537, 0
  %v4965 = vsel %vm162, %v4538, 0
  %v4968 = vsel %vm162, %v4539, 0
  %v4971 = vsel %vm162, %v4540, 0
  %4973 = vmatprep.subr.mxu0 0.0
  %4974 = vmatpush1.msra.mxu0 0.0
  %4975 = vmatprep.subr.mxu0 0.0
  %4976 = vmatpush1.msra.mxu0 0.0
  %4977 = vmatprep.subr.mxu0 0.0
  %4978 = vmatpush1.msra.mxu0 0.0
  %4979 = vmatprep.subr.mxu0 0.0
  %4980 = vmatpush1.msra.mxu0 0.0
  %4981 = vmatprep.subr.mxu0 0.0
  %4982 = vmatpush1.msra.mxu0 0.0
  %4983 = vmatprep.subr.mxu0 0.0
  %4984 = vmatpush1.msra.mxu0 0.0
  %4985 = vmatprep.subr.mxu0 0.0
  %4986 = vmatpush1.msra.mxu0 0.0
  %4987 = vmatprep.subr.mxu0 0.0
  %4988 = vmatpush1.msra.mxu0 0.0
  %4989 = vmatprep.subr.mxu0 0.0
  %4990 = vmatpush1.msra.mxu0 0.0
  %4991 = vmatprep.subr.mxu0 0.0
  %4992 = vmatpush1.msra.mxu0 0.0
  %4993 = vmatprep.subr.mxu0 0.0
  %4994 = vmatpush1.msra.mxu0 0.0
  %4995 = vmatprep.subr.mxu0 0.0
  %4996 = vmatpush1.msra.mxu0 0.0
  %4997 = vmatprep.subr.mxu0 0.0
  %4998 = vmatpush1.msra.mxu0 %v597
  %4999 = vmatprep.subr.mxu0 0.0
  %5000 = vmatpush1.msra.mxu0 %v16
  %5001 = vmatprep.subr.mxu0 0.0
  %5002 = vmatpush1.msra.mxu0 %v15
  %5003 = vmatprep.subr.mxu0 0.0
  %5004 = vmatpush1.msra.mxu0 %v14
  %5005 = vmatprep.subr.mxu0 0.0
  %5006 = vmatpush2.msra.mxu0 0.0
  %5007 = vmatprep.subr.mxu0 0.0
  %5008 = vmatpush2.msra.mxu0 0.0
  %5009 = vmatprep.subr.mxu0 0.0
  %5010 = vmatpush2.msra.mxu0 0.0
  %5011 = vmatprep.subr.mxu0 0.0
  %5012 = vmatpush2.msra.mxu0 0.0
  %5013 = vmatprep.subr.mxu0 0.0
  %5014 = vmatpush2.msra.mxu0 0.0
  %5015 = vmatprep.subr.mxu0 0.0
  %5016 = vmatpush2.msra.mxu0 0.0
  %5017 = vmatprep.subr.mxu0 0.0
  %5018 = vmatpush2.msra.mxu0 0.0
  %5019 = vmatprep.subr.mxu0 0.0
  %5020 = vmatpush2.msra.mxu0 0.0
  %5021 = vmatprep.subr.mxu0 0.0
  %5022 = vmatpush2.msra.mxu0 0.0
  %5023 = vmatprep.subr.mxu0 0.0
  %5024 = vmatpush2.msra.mxu0 0.0
  %5025 = vmatprep.subr.mxu0 0.0
  %5026 = vmatpush2.msra.mxu0 0.0
  %5027 = vmatprep.subr.mxu0 0.0
  %5028 = vmatpush2.msra.mxu0 0.0
  %5029 = vmatprep.subr.mxu0 0.0
  %5030 = vmatpush2.msra.mxu0 0.0
  %5031 = vmatprep.subr.mxu0 0.0
  %5032 = vmatpush2.msra.mxu0 0.0
  %5033 = vmatprep.subr.mxu0 0.0
  %5034 = vmatpush2.msra.mxu0 0.0
  %5035 = vmatprep.subr.mxu0 0.0
  %5036 = vmatpush2.msra.mxu0 0.0
  %5037 = vmatprep.mubr.f32.mxu0 0.0
  %5038 = vmatmul.mubr.f32.gmra.mxu0 %v4542
  %v5039 = vpop.f32.mrf.mxu0
  %v5040 = vadd.f32 0.0, %v5039
  %v5041 = vpop.f32.mrf.mxu0
  %5042 = vmatprep.mubr.f32.mxu0 0.0
  %5043 = vmatmul.mubr.f32.gmra.mxu0 %v4545
  %v5044 = vpop.f32.mrf.mxu0
  %v5045 = vadd.f32 0.0, %v5044
  %v5046 = vpop.f32.mrf.mxu0
  %5047 = vmatprep.mubr.f32.mxu0 0.0
  %5048 = vmatmul.mubr.f32.gmra.mxu0 %v4548
  %v5049 = vpop.f32.mrf.mxu0
  %v5050 = vadd.f32 0.0, %v5049
  %v5051 = vpop.f32.mrf.mxu0
  %5052 = vmatprep.mubr.f32.mxu0 0.0
  %5053 = vmatmul.mubr.f32.gmra.mxu0 %v4551
  %v5054 = vpop.f32.mrf.mxu0
  %v5055 = vadd.f32 0.0, %v5054
  %v5056 = vpop.f32.mrf.mxu0
  %5057 = vmatprep.mubr.f32.mxu0 0.0
  %5058 = vmatmul.mubr.f32.gmra.mxu0 %v4554
  %v5059 = vpop.f32.mrf.mxu0
  %v5060 = vadd.f32 0.0, %v5059
  %v5061 = vpop.f32.mrf.mxu0
  %5062 = vmatprep.mubr.f32.mxu0 0.0
  %5063 = vmatmul.mubr.f32.gmra.mxu0 %v4557
  %v5064 = vpop.f32.mrf.mxu0
  %v5065 = vadd.f32 0.0, %v5064
  %v5066 = vpop.f32.mrf.mxu0
  %5067 = vmatprep.mubr.f32.mxu0 0.0
  %5068 = vmatmul.mubr.f32.gmra.mxu0 %v4560
  %v5069 = vpop.f32.mrf.mxu0
  %v5070 = vadd.f32 0.0, %v5069
  %v5071 = vpop.f32.mrf.mxu0
  %5072 = vmatprep.mubr.f32.mxu0 0.0
  %5073 = vmatmul.mubr.f32.gmra.mxu0 %v4563
  %v5074 = vpop.f32.mrf.mxu0
  %v5075 = vadd.f32 0.0, %v5074
  %v5076 = vpop.f32.mrf.mxu0
  %5077 = vmatprep.mubr.f32.mxu0 0.0
  %5078 = vmatmul.mubr.f32.gmra.mxu0 %v4566
  %v5079 = vpop.f32.mrf.mxu0
  %v5080 = vadd.f32 0.0, %v5079
  %v5081 = vpop.f32.mrf.mxu0
  %5082 = vmatprep.mubr.f32.mxu0 0.0
  %5083 = vmatmul.mubr.f32.gmra.mxu0 %v4569
  %v5084 = vpop.f32.mrf.mxu0
  %v5085 = vadd.f32 0.0, %v5084
  %v5086 = vpop.f32.mrf.mxu0
  %5087 = vmatprep.mubr.f32.mxu0 0.0
  %5088 = vmatmul.mubr.f32.gmra.mxu0 %v4572
  %v5089 = vpop.f32.mrf.mxu0
  %v5090 = vadd.f32 0.0, %v5089
  %v5091 = vpop.f32.mrf.mxu0
  %5092 = vmatprep.mubr.f32.mxu0 0.0
  %5093 = vmatmul.mubr.f32.gmra.mxu0 %v4575
  %v5094 = vpop.f32.mrf.mxu0
  %v5095 = vadd.f32 0.0, %v5094
  %v5096 = vpop.f32.mrf.mxu0
  %5097 = vmatprep.mubr.f32.mxu0 0.0
  %5098 = vmatmul.mubr.f32.gmra.mxu0 %v4578
  %v5099 = vpop.f32.mrf.mxu0
  %v5100 = vadd.f32 0.0, %v5099
  %v5101 = vpop.f32.mrf.mxu0
  %5102 = vmatprep.mubr.f32.mxu0 0.0
  %5103 = vmatmul.mubr.f32.gmra.mxu0 %v4581
  %v5104 = vpop.f32.mrf.mxu0
  %v5105 = vadd.f32 0.0, %v5104
  %v5106 = vpop.f32.mrf.mxu0
  %5107 = vmatprep.mubr.f32.mxu0 0.0
  %5108 = vmatmul.mubr.f32.gmra.mxu0 %v4584
  %v5109 = vpop.f32.mrf.mxu0
  %v5110 = vadd.f32 0.0, %v5109
  %v5111 = vpop.f32.mrf.mxu0
  %5112 = vmatprep.mubr.f32.mxu0 0.0
  %5113 = vmatmul.mubr.f32.gmra.mxu0 %v4587
  %v5114 = vpop.f32.mrf.mxu0
  %v5115 = vadd.f32 0.0, %v5114
  %v5116 = vpop.f32.mrf.mxu0
  %5117 = vmatprep.mubr.f32.mxu0 0.0
  %5118 = vmatmul.mubr.f32.gmra.mxu0 %v4590
  %v5119 = vpop.f32.mrf.mxu0
  %v5120 = vadd.f32 0.0, %v5119
  %v5121 = vpop.f32.mrf.mxu0
  %5122 = vmatprep.mubr.f32.mxu0 0.0
  %5123 = vmatmul.mubr.f32.gmra.mxu0 %v4593
  %v5124 = vpop.f32.mrf.mxu0
  %v5125 = vadd.f32 0.0, %v5124
  %v5126 = vpop.f32.mrf.mxu0
  %5127 = vmatprep.mubr.f32.mxu0 0.0
  %5128 = vmatmul.mubr.f32.gmra.mxu0 %v4596
  %v5129 = vpop.f32.mrf.mxu0
  %v5130 = vadd.f32 0.0, %v5129
  %v5131 = vpop.f32.mrf.mxu0
  %5132 = vmatprep.mubr.f32.mxu0 0.0
  %5133 = vmatmul.mubr.f32.gmra.mxu0 %v4599
  %v5134 = vpop.f32.mrf.mxu0
  %v5135 = vadd.f32 0.0, %v5134
  %v5136 = vpop.f32.mrf.mxu0
  %5137 = vmatprep.mubr.f32.mxu0 0.0
  %5138 = vmatmul.mubr.f32.gmra.mxu0 %v4602
  %v5139 = vpop.f32.mrf.mxu0
  %v5140 = vadd.f32 0.0, %v5139
  %v5141 = vpop.f32.mrf.mxu0
  %5142 = vmatprep.mubr.f32.mxu0 0.0
  %5143 = vmatmul.mubr.f32.gmra.mxu0 %v4605
  %v5144 = vpop.f32.mrf.mxu0
  %v5145 = vadd.f32 0.0, %v5144
  %v5146 = vpop.f32.mrf.mxu0
  %5147 = vmatprep.mubr.f32.mxu0 0.0
  %5148 = vmatmul.mubr.f32.gmra.mxu0 %v4608
  %v5149 = vpop.f32.mrf.mxu0
  %v5150 = vadd.f32 0.0, %v5149
  %v5151 = vpop.f32.mrf.mxu0
  %5152 = vmatprep.mubr.f32.mxu0 0.0
  %5153 = vmatmul.mubr.f32.gmra.mxu0 %v4611
  %v5154 = vpop.f32.mrf.mxu0
  %v5155 = vadd.f32 0.0, %v5154
  %v5156 = vpop.f32.mrf.mxu0
  %5157 = vmatprep.mubr.f32.mxu0 0.0
  %5158 = vmatmul.mubr.f32.gmra.mxu0 %v4614
  %v5159 = vpop.f32.mrf.mxu0
  %v5160 = vadd.f32 0.0, %v5159
  %v5161 = vpop.f32.mrf.mxu0
  %5162 = vmatprep.mubr.f32.mxu0 0.0
  %5163 = vmatmul.mubr.f32.gmra.mxu0 %v4617
  %v5164 = vpop.f32.mrf.mxu0
  %v5165 = vadd.f32 0.0, %v5164
  %v5166 = vpop.f32.mrf.mxu0
  %5167 = vmatprep.mubr.f32.mxu0 0.0
  %5168 = vmatmul.mubr.f32.gmra.mxu0 %v4620
  %v5169 = vpop.f32.mrf.mxu0
  %v5170 = vadd.f32 0.0, %v5169
  %v5171 = vpop.f32.mrf.mxu0
  %5172 = vmatprep.mubr.f32.mxu0 0.0
  %5173 = vmatmul.mubr.f32.gmra.mxu0 %v4623
  %v5174 = vpop.f32.mrf.mxu0
  %v5175 = vadd.f32 0.0, %v5174
  %v5176 = vpop.f32.mrf.mxu0
  %5177 = vmatprep.mubr.f32.mxu0 0.0
  %5178 = vmatmul.mubr.f32.gmra.mxu0 %v4626
  %v5179 = vpop.f32.mrf.mxu0
  %v5180 = vadd.f32 0.0, %v5179
  %v5181 = vpop.f32.mrf.mxu0
  %5182 = vmatprep.mubr.f32.mxu0 0.0
  %5183 = vmatmul.mubr.f32.gmra.mxu0 %v4629
  %v5184 = vpop.f32.mrf.mxu0
  %v5185 = vadd.f32 0.0, %v5184
  %v5186 = vpop.f32.mrf.mxu0
  %5187 = vmatprep.mubr.f32.mxu0 0.0
  %5188 = vmatmul.mubr.f32.gmra.mxu0 %v4632
  %v5189 = vpop.f32.mrf.mxu0
  %v5190 = vadd.f32 0.0, %v5189
  %v5191 = vpop.f32.mrf.mxu0
  %5192 = vmatprep.mubr.f32.mxu0 0.0
  %5193 = vmatmul.mubr.f32.gmra.mxu0 %v4635
  %v5194 = vpop.f32.mrf.mxu0
  %v5195 = vadd.f32 0.0, %v5194
  %v5196 = vpop.f32.mrf.mxu0
  %5197 = vmatprep.mubr.f32.mxu0 0.0
  %5198 = vmatmul.mubr.f32.gmra.mxu0 %v4638
  %v5199 = vpop.f32.mrf.mxu0
  %v5200 = vadd.f32 0.0, %v5199
  %v5201 = vpop.f32.mrf.mxu0
  %5202 = vmatprep.mubr.f32.mxu0 0.0
  %5203 = vmatmul.mubr.f32.gmra.mxu0 %v4641
  %v5204 = vpop.f32.mrf.mxu0
  %v5205 = vadd.f32 0.0, %v5204
  %v5206 = vpop.f32.mrf.mxu0
  %5207 = vmatprep.mubr.f32.mxu0 0.0
  %5208 = vmatmul.mubr.f32.gmra.mxu0 %v4644
  %v5209 = vpop.f32.mrf.mxu0
  %v5210 = vadd.f32 0.0, %v5209
  %v5211 = vpop.f32.mrf.mxu0
  %5212 = vmatprep.mubr.f32.mxu0 0.0
  %5213 = vmatmul.mubr.f32.gmra.mxu0 %v4647
  %v5214 = vpop.f32.mrf.mxu0
  %v5215 = vadd.f32 0.0, %v5214
  %v5216 = vpop.f32.mrf.mxu0
  %5217 = vmatprep.mubr.f32.mxu0 0.0
  %5218 = vmatmul.mubr.f32.gmra.mxu0 %v4650
  %v5219 = vpop.f32.mrf.mxu0
  %v5220 = vadd.f32 0.0, %v5219
  %v5221 = vpop.f32.mrf.mxu0
  %5222 = vmatprep.mubr.f32.mxu0 0.0
  %5223 = vmatmul.mubr.f32.gmra.mxu0 %v4653
  %v5224 = vpop.f32.mrf.mxu0
  %v5225 = vadd.f32 0.0, %v5224
  %v5226 = vpop.f32.mrf.mxu0
  %5227 = vmatprep.mubr.f32.mxu0 0.0
  %5228 = vmatmul.mubr.f32.gmra.mxu0 %v4656
  %v5229 = vpop.f32.mrf.mxu0
  %v5230 = vadd.f32 0.0, %v5229
  %v5231 = vpop.f32.mrf.mxu0
  %5232 = vmatprep.mubr.f32.mxu0 0.0
  %5233 = vmatmul.mubr.f32.gmra.mxu0 %v4659
  %v5234 = vpop.f32.mrf.mxu0
  %v5235 = vadd.f32 0.0, %v5234
  %v5236 = vpop.f32.mrf.mxu0
  %5237 = vmatprep.mubr.f32.mxu0 0.0
  %5238 = vmatmul.mubr.f32.gmra.mxu0 %v4662
  %v5239 = vpop.f32.mrf.mxu0
  %v5240 = vadd.f32 0.0, %v5239
  %v5241 = vpop.f32.mrf.mxu0
  %5242 = vmatprep.mubr.f32.mxu0 0.0
  %5243 = vmatmul.mubr.f32.gmra.mxu0 %v4665
  %v5244 = vpop.f32.mrf.mxu0
  %v5245 = vadd.f32 0.0, %v5244
  %v5246 = vpop.f32.mrf.mxu0
  %5247 = vmatprep.mubr.f32.mxu0 0.0
  %5248 = vmatmul.mubr.f32.gmra.mxu0 %v4668
  %v5249 = vpop.f32.mrf.mxu0
  %v5250 = vadd.f32 0.0, %v5249
  %v5251 = vpop.f32.mrf.mxu0
  %5252 = vmatprep.mubr.f32.mxu0 0.0
  %5253 = vmatmul.mubr.f32.gmra.mxu0 %v4671
  %v5254 = vpop.f32.mrf.mxu0
  %v5255 = vadd.f32 0.0, %v5254
  %v5256 = vpop.f32.mrf.mxu0
  %5257 = vmatprep.mubr.f32.mxu0 0.0
  %5258 = vmatmul.mubr.f32.gmra.mxu0 %v4674
  %v5259 = vpop.f32.mrf.mxu0
  %v5260 = vadd.f32 0.0, %v5259
  %v5261 = vpop.f32.mrf.mxu0
  %5262 = vmatprep.mubr.f32.mxu0 0.0
  %5263 = vmatmul.mubr.f32.gmra.mxu0 %v4677
  %v5264 = vpop.f32.mrf.mxu0
  %v5265 = vadd.f32 0.0, %v5264
  %v5266 = vpop.f32.mrf.mxu0
  %5267 = vmatprep.mubr.f32.mxu0 0.0
  %5268 = vmatmul.mubr.f32.gmra.mxu0 %v4680
  %v5269 = vpop.f32.mrf.mxu0
  %v5270 = vadd.f32 0.0, %v5269
  %v5271 = vpop.f32.mrf.mxu0
  %5272 = vmatprep.mubr.f32.mxu0 0.0
  %5273 = vmatmul.mubr.f32.gmra.mxu0 %v4683
  %v5274 = vpop.f32.mrf.mxu0
  %v5275 = vadd.f32 0.0, %v5274
  %v5276 = vpop.f32.mrf.mxu0
  %5277 = vmatprep.mubr.f32.mxu0 0.0
  %5278 = vmatmul.mubr.f32.gmra.mxu0 %v4686
  %v5279 = vpop.f32.mrf.mxu0
  %v5280 = vadd.f32 0.0, %v5279
  %v5281 = vpop.f32.mrf.mxu0
  %5282 = vmatprep.mubr.f32.mxu0 0.0
  %5283 = vmatmul.mubr.f32.gmra.mxu0 %v4689
  %v5284 = vpop.f32.mrf.mxu0
  %v5285 = vadd.f32 0.0, %v5284
  %v5286 = vpop.f32.mrf.mxu0
  %5287 = vmatprep.mubr.f32.mxu0 0.0
  %5288 = vmatmul.mubr.f32.gmra.mxu0 %v4692
  %v5289 = vpop.f32.mrf.mxu0
  %v5290 = vadd.f32 0.0, %v5289
  %v5291 = vpop.f32.mrf.mxu0
  %5292 = vmatprep.mubr.f32.mxu0 0.0
  %5293 = vmatmul.mubr.f32.gmra.mxu0 %v4695
  %v5294 = vpop.f32.mrf.mxu0
  %v5295 = vadd.f32 0.0, %v5294
  %v5296 = vpop.f32.mrf.mxu0
  %5297 = vmatprep.mubr.f32.mxu0 0.0
  %5298 = vmatmul.mubr.f32.gmra.mxu0 %v4698
  %v5299 = vpop.f32.mrf.mxu0
  %v5300 = vadd.f32 0.0, %v5299
  %v5301 = vpop.f32.mrf.mxu0
  %5302 = vmatprep.mubr.f32.mxu0 0.0
  %5303 = vmatmul.mubr.f32.gmra.mxu0 %v4701
  %v5304 = vpop.f32.mrf.mxu0
  %v5305 = vadd.f32 0.0, %v5304
  %v5306 = vpop.f32.mrf.mxu0
  %5307 = vmatprep.mubr.f32.mxu0 0.0
  %5308 = vmatmul.mubr.f32.gmra.mxu0 %v4704
  %v5309 = vpop.f32.mrf.mxu0
  %v5310 = vadd.f32 0.0, %v5309
  %v5311 = vpop.f32.mrf.mxu0
  %5312 = vmatprep.mubr.f32.mxu0 0.0
  %5313 = vmatmul.mubr.f32.gmra.mxu0 %v4707
  %v5314 = vpop.f32.mrf.mxu0
  %v5315 = vadd.f32 0.0, %v5314
  %v5316 = vpop.f32.mrf.mxu0
  %5317 = vmatprep.mubr.f32.mxu0 0.0
  %5318 = vmatmul.mubr.f32.gmra.mxu0 %v4710
  %v5319 = vpop.f32.mrf.mxu0
  %v5320 = vadd.f32 0.0, %v5319
  %v5321 = vpop.f32.mrf.mxu0
  %5322 = vmatprep.mubr.f32.mxu0 0.0
  %5323 = vmatmul.mubr.f32.gmra.mxu0 %v4713
  %v5324 = vpop.f32.mrf.mxu0
  %v5325 = vadd.f32 0.0, %v5324
  %v5326 = vpop.f32.mrf.mxu0
  %5327 = vmatprep.mubr.f32.mxu0 0.0
  %5328 = vmatmul.mubr.f32.gmra.mxu0 %v4716
  %v5329 = vpop.f32.mrf.mxu0
  %v5330 = vadd.f32 0.0, %v5329
  %v5331 = vpop.f32.mrf.mxu0
  %5332 = vmatprep.mubr.f32.mxu0 0.0
  %5333 = vmatmul.mubr.f32.gmra.mxu0 %v4719
  %v5334 = vpop.f32.mrf.mxu0
  %v5335 = vadd.f32 0.0, %v5334
  %v5336 = vpop.f32.mrf.mxu0
  %5337 = vmatprep.mubr.f32.mxu0 0.0
  %5338 = vmatmul.mubr.f32.gmra.mxu0 %v4722
  %v5339 = vpop.f32.mrf.mxu0
  %v5340 = vadd.f32 0.0, %v5339
  %v5341 = vpop.f32.mrf.mxu0
  %5342 = vmatprep.mubr.f32.mxu0 0.0
  %5343 = vmatmul.mubr.f32.gmra.mxu0 %v4725
  %v5344 = vpop.f32.mrf.mxu0
  %v5345 = vadd.f32 0.0, %v5344
  %v5346 = vpop.f32.mrf.mxu0
  %5347 = vmatprep.mubr.f32.mxu0 0.0
  %5348 = vmatmul.mubr.f32.gmra.mxu0 %v4728
  %v5349 = vpop.f32.mrf.mxu0
  %v5350 = vadd.f32 0.0, %v5349
  %v5351 = vpop.f32.mrf.mxu0
  %5352 = vmatprep.mubr.f32.mxu0 0.0
  %5353 = vmatmul.mubr.f32.gmra.mxu0 %v4731
  %v5354 = vpop.f32.mrf.mxu0
  %v5355 = vadd.f32 0.0, %v5354
  %v5356 = vpop.f32.mrf.mxu0
  %5357 = vmatprep.mubr.f32.mxu0 0.0
  %5358 = vmatmul.mubr.f32.gmra.mxu0 %v4734
  %v5359 = vpop.f32.mrf.mxu0
  %v5360 = vadd.f32 0.0, %v5359
  %v5361 = vpop.f32.mrf.mxu0
  %5362 = vmatprep.mubr.f32.mxu0 0.0
  %5363 = vmatmul.mubr.f32.gmra.mxu0 %v4737
  %v5364 = vpop.f32.mrf.mxu0
  %v5365 = vadd.f32 0.0, %v5364
  %v5366 = vpop.f32.mrf.mxu0
  %5367 = vmatprep.mubr.f32.mxu0 0.0
  %5368 = vmatmul.mubr.f32.gmra.mxu0 %v4740
  %v5369 = vpop.f32.mrf.mxu0
  %v5370 = vadd.f32 0.0, %v5369
  %v5371 = vpop.f32.mrf.mxu0
  %5372 = vmatprep.mubr.f32.mxu0 0.0
  %5373 = vmatmul.mubr.f32.gmra.mxu0 %v4743
  %v5374 = vpop.f32.mrf.mxu0
  %v5375 = vadd.f32 0.0, %v5374
  %v5376 = vpop.f32.mrf.mxu0
  %5377 = vmatprep.mubr.f32.mxu0 0.0
  %5378 = vmatmul.mubr.f32.gmra.mxu0 %v4746
  %v5379 = vpop.f32.mrf.mxu0
  %v5380 = vadd.f32 0.0, %v5379
  %v5381 = vpop.f32.mrf.mxu0
  %5382 = vmatprep.mubr.f32.mxu0 0.0
  %5383 = vmatmul.mubr.f32.gmra.mxu0 %v4749
  %v5384 = vpop.f32.mrf.mxu0
  %v5385 = vadd.f32 0.0, %v5384
  %v5386 = vpop.f32.mrf.mxu0
  %5387 = vmatprep.mubr.f32.mxu0 0.0
  %5388 = vmatmul.mubr.f32.gmra.mxu0 %v4752
  %v5389 = vpop.f32.mrf.mxu0
  %v5390 = vadd.f32 0.0, %v5389
  %v5391 = vpop.f32.mrf.mxu0
  %5392 = vmatprep.mubr.f32.mxu0 0.0
  %5393 = vmatmul.mubr.f32.gmra.mxu0 %v4755
  %v5394 = vpop.f32.mrf.mxu0
  %v5395 = vadd.f32 0.0, %v5394
  %v5396 = vpop.f32.mrf.mxu0
  %5397 = vmatprep.mubr.f32.mxu0 0.0
  %5398 = vmatmul.mubr.f32.gmra.mxu0 %v4758
  %v5399 = vpop.f32.mrf.mxu0
  %v5400 = vadd.f32 0.0, %v5399
  %v5401 = vpop.f32.mrf.mxu0
  %5402 = vmatprep.mubr.f32.mxu0 0.0
  %5403 = vmatmul.mubr.f32.gmra.mxu0 %v4761
  %v5404 = vpop.f32.mrf.mxu0
  %v5405 = vadd.f32 0.0, %v5404
  %v5406 = vpop.f32.mrf.mxu0
  %5407 = vmatprep.mubr.f32.mxu0 0.0
  %5408 = vmatmul.mubr.f32.gmra.mxu0 %v4764
  %v5409 = vpop.f32.mrf.mxu0
  %v5410 = vadd.f32 0.0, %v5409
  %v5411 = vpop.f32.mrf.mxu0
  %5412 = vmatprep.mubr.f32.mxu0 0.0
  %5413 = vmatmul.mubr.f32.gmra.mxu0 %v4767
  %v5414 = vpop.f32.mrf.mxu0
  %v5415 = vadd.f32 0.0, %v5414
  %v5416 = vpop.f32.mrf.mxu0
  %5417 = vmatprep.mubr.f32.mxu0 0.0
  %5418 = vmatmul.mubr.f32.gmra.mxu0 %v4770
  %v5419 = vpop.f32.mrf.mxu0
  %v5420 = vadd.f32 0.0, %v5419
  %v5421 = vpop.f32.mrf.mxu0
  %5422 = vmatprep.mubr.f32.mxu0 0.0
  %5423 = vmatmul.mubr.f32.gmra.mxu0 %v4773
  %v5424 = vpop.f32.mrf.mxu0
  %v5425 = vadd.f32 0.0, %v5424
  %v5426 = vpop.f32.mrf.mxu0
  %5427 = vmatprep.mubr.f32.mxu0 0.0
  %5428 = vmatmul.mubr.f32.gmra.mxu0 %v4776
  %v5429 = vpop.f32.mrf.mxu0
  %v5430 = vadd.f32 0.0, %v5429
  %v5431 = vpop.f32.mrf.mxu0
  %5432 = vmatprep.mubr.f32.mxu0 0.0
  %5433 = vmatmul.mubr.f32.gmra.mxu0 %v4779
  %v5434 = vpop.f32.mrf.mxu0
  %v5435 = vadd.f32 0.0, %v5434
  %v5436 = vpop.f32.mrf.mxu0
  %5437 = vmatprep.mubr.f32.mxu0 0.0
  %5438 = vmatmul.mubr.f32.gmra.mxu0 %v4782
  %v5439 = vpop.f32.mrf.mxu0
  %v5440 = vadd.f32 0.0, %v5439
  %v5441 = vpop.f32.mrf.mxu0
  %5442 = vmatprep.mubr.f32.mxu0 0.0
  %5443 = vmatmul.mubr.f32.gmra.mxu0 %v4785
  %v5444 = vpop.f32.mrf.mxu0
  %v5445 = vadd.f32 0.0, %v5444
  %v5446 = vpop.f32.mrf.mxu0
  %5447 = vmatprep.mubr.f32.mxu0 0.0
  %5448 = vmatmul.mubr.f32.gmra.mxu0 %v4788
  %v5449 = vpop.f32.mrf.mxu0
  %v5450 = vadd.f32 0.0, %v5449
  %v5451 = vpop.f32.mrf.mxu0
  %5452 = vmatprep.mubr.f32.mxu0 0.0
  %5453 = vmatmul.mubr.f32.gmra.mxu0 %v4791
  %v5454 = vpop.f32.mrf.mxu0
  %v5455 = vadd.f32 0.0, %v5454
  %v5456 = vpop.f32.mrf.mxu0
  %5457 = vmatprep.mubr.f32.mxu0 0.0
  %5458 = vmatmul.mubr.f32.gmra.mxu0 %v4794
  %v5459 = vpop.f32.mrf.mxu0
  %v5460 = vadd.f32 0.0, %v5459
  %v5461 = vpop.f32.mrf.mxu0
  %5462 = vmatprep.mubr.f32.mxu0 0.0
  %5463 = vmatmul.mubr.f32.gmra.mxu0 %v4797
  %v5464 = vpop.f32.mrf.mxu0
  %v5465 = vadd.f32 0.0, %v5464
  %v5466 = vpop.f32.mrf.mxu0
  %5467 = vmatprep.mubr.f32.mxu0 0.0
  %5468 = vmatmul.mubr.f32.gmra.mxu0 %v4800
  %v5469 = vpop.f32.mrf.mxu0
  %v5470 = vadd.f32 0.0, %v5469
  %v5471 = vpop.f32.mrf.mxu0
  %5472 = vmatprep.mubr.f32.mxu0 0.0
  %5473 = vmatmul.mubr.f32.gmra.mxu0 %v4803
  %v5474 = vpop.f32.mrf.mxu0
  %v5475 = vadd.f32 0.0, %v5474
  %v5476 = vpop.f32.mrf.mxu0
  %5477 = vmatprep.mubr.f32.mxu0 0.0
  %5478 = vmatmul.mubr.f32.gmra.mxu0 %v4806
  %v5479 = vpop.f32.mrf.mxu0
  %v5480 = vadd.f32 0.0, %v5479
  %v5481 = vpop.f32.mrf.mxu0
  %5482 = vmatprep.mubr.f32.mxu0 0.0
  %5483 = vmatmul.mubr.f32.gmra.mxu0 %v4809
  %v5484 = vpop.f32.mrf.mxu0
  %v5485 = vadd.f32 0.0, %v5484
  %v5486 = vpop.f32.mrf.mxu0
  %5487 = vmatprep.mubr.f32.mxu0 0.0
  %5488 = vmatmul.mubr.f32.gmra.mxu0 %v4812
  %v5489 = vpop.f32.mrf.mxu0
  %v5490 = vadd.f32 0.0, %v5489
  %v5491 = vpop.f32.mrf.mxu0
  %5492 = vmatprep.mubr.f32.mxu0 0.0
  %5493 = vmatmul.mubr.f32.gmra.mxu0 %v4815
  %v5494 = vpop.f32.mrf.mxu0
  %v5495 = vadd.f32 0.0, %v5494
  %v5496 = vpop.f32.mrf.mxu0
  %5497 = vmatprep.mubr.f32.mxu0 0.0
  %5498 = vmatmul.mubr.f32.gmra.mxu0 %v4818
  %v5499 = vpop.f32.mrf.mxu0
  %v5500 = vadd.f32 0.0, %v5499
  %v5501 = vpop.f32.mrf.mxu0
  %5502 = vmatprep.mubr.f32.mxu0 0.0
  %5503 = vmatmul.mubr.f32.gmra.mxu0 %v4821
  %v5504 = vpop.f32.mrf.mxu0
  %v5505 = vadd.f32 0.0, %v5504
  %v5506 = vpop.f32.mrf.mxu0
  %5507 = vmatprep.mubr.f32.mxu0 0.0
  %5508 = vmatmul.mubr.f32.gmra.mxu0 %v4824
  %v5509 = vpop.f32.mrf.mxu0
  %v5510 = vadd.f32 0.0, %v5509
  %v5511 = vpop.f32.mrf.mxu0
  %5512 = vmatprep.mubr.f32.mxu0 0.0
  %5513 = vmatmul.mubr.f32.gmra.mxu0 %v4827
  %v5514 = vpop.f32.mrf.mxu0
  %v5515 = vadd.f32 0.0, %v5514
  %v5516 = vpop.f32.mrf.mxu0
  %5517 = vmatprep.mubr.f32.mxu0 0.0
  %5518 = vmatmul.mubr.f32.gmra.mxu0 %v4830
  %v5519 = vpop.f32.mrf.mxu0
  %v5520 = vadd.f32 0.0, %v5519
  %v5521 = vpop.f32.mrf.mxu0
  %5522 = vmatprep.mubr.f32.mxu0 0.0
  %5523 = vmatmul.mubr.f32.gmra.mxu0 %v4833
  %v5524 = vpop.f32.mrf.mxu0
  %v5525 = vadd.f32 0.0, %v5524
  %v5526 = vpop.f32.mrf.mxu0
  %5527 = vmatprep.mubr.f32.mxu0 0.0
  %5528 = vmatmul.mubr.f32.gmra.mxu0 %v4836
  %v5529 = vpop.f32.mrf.mxu0
  %v5530 = vadd.f32 0.0, %v5529
  %v5531 = vpop.f32.mrf.mxu0
  %5532 = vmatprep.mubr.f32.mxu0 0.0
  %5533 = vmatmul.mubr.f32.gmra.mxu0 %v4839
  %v5534 = vpop.f32.mrf.mxu0
  %v5535 = vadd.f32 0.0, %v5534
  %v5536 = vpop.f32.mrf.mxu0
  %5537 = vmatprep.mubr.f32.mxu0 0.0
  %5538 = vmatmul.mubr.f32.gmra.mxu0 %v4842
  %v5539 = vpop.f32.mrf.mxu0
  %v5540 = vadd.f32 0.0, %v5539
  %v5541 = vpop.f32.mrf.mxu0
  %5542 = vmatprep.mubr.f32.mxu0 0.0
  %5543 = vmatmul.mubr.f32.gmra.mxu0 %v4845
  %v5544 = vpop.f32.mrf.mxu0
  %v5545 = vadd.f32 0.0, %v5544
  %v5546 = vpop.f32.mrf.mxu0
  %5547 = vmatprep.mubr.f32.mxu0 0.0
  %5548 = vmatmul.mubr.f32.gmra.mxu0 %v4848
  %v5549 = vpop.f32.mrf.mxu0
  %v5550 = vadd.f32 0.0, %v5549
  %v5551 = vpop.f32.mrf.mxu0
  %5552 = vmatprep.mubr.f32.mxu0 0.0
  %5553 = vmatmul.mubr.f32.gmra.mxu0 %v4851
  %v5554 = vpop.f32.mrf.mxu0
  %v5555 = vadd.f32 0.0, %v5554
  %v5556 = vpop.f32.mrf.mxu0
  %5557 = vmatprep.mubr.f32.mxu0 0.0
  %5558 = vmatmul.mubr.f32.gmra.mxu0 %v4854
  %v5559 = vpop.f32.mrf.mxu0
  %v5560 = vadd.f32 0.0, %v5559
  %v5561 = vpop.f32.mrf.mxu0
  %5562 = vmatprep.mubr.f32.mxu0 0.0
  %5563 = vmatmul.mubr.f32.gmra.mxu0 %v4857
  %v5564 = vpop.f32.mrf.mxu0
  %v5565 = vadd.f32 0.0, %v5564
  %v5566 = vpop.f32.mrf.mxu0
  %5567 = vmatprep.mubr.f32.mxu0 0.0
  %5568 = vmatmul.mubr.f32.gmra.mxu0 %v4860
  %v5569 = vpop.f32.mrf.mxu0
  %v5570 = vadd.f32 0.0, %v5569
  %v5571 = vpop.f32.mrf.mxu0
  %5572 = vmatprep.mubr.f32.mxu0 0.0
  %5573 = vmatmul.mubr.f32.gmra.mxu0 %v4863
  %v5574 = vpop.f32.mrf.mxu0
  %v5575 = vadd.f32 0.0, %v5574
  %v5576 = vpop.f32.mrf.mxu0
  %5577 = vmatprep.mubr.f32.mxu0 0.0
  %5578 = vmatmul.mubr.f32.gmra.mxu0 %v4866
  %v5579 = vpop.f32.mrf.mxu0
  %v5580 = vadd.f32 0.0, %v5579
  %v5581 = vpop.f32.mrf.mxu0
  %5582 = vmatprep.mubr.f32.mxu0 0.0
  %5583 = vmatmul.mubr.f32.gmra.mxu0 %v4869
  %v5584 = vpop.f32.mrf.mxu0
  %v5585 = vadd.f32 0.0, %v5584
  %v5586 = vpop.f32.mrf.mxu0
  %5587 = vmatprep.mubr.f32.mxu0 0.0
  %5588 = vmatmul.mubr.f32.gmra.mxu0 %v4872
  %v5589 = vpop.f32.mrf.mxu0
  %v5590 = vadd.f32 0.0, %v5589
  %v5591 = vpop.f32.mrf.mxu0
  %5592 = vmatprep.mubr.f32.mxu0 0.0
  %5593 = vmatmul.mubr.f32.gmra.mxu0 %v4875
  %v5594 = vpop.f32.mrf.mxu0
  %v5595 = vadd.f32 0.0, %v5594
  %v5596 = vpop.f32.mrf.mxu0
  %5597 = vmatprep.mubr.f32.mxu0 0.0
  %5598 = vmatmul.mubr.f32.gmra.mxu0 %v4878
  %v5599 = vpop.f32.mrf.mxu0
  %v5600 = vadd.f32 0.0, %v5599
  %v5601 = vpop.f32.mrf.mxu0
  %5602 = vmatprep.mubr.f32.mxu0 0.0
  %5603 = vmatmul.mubr.f32.gmra.mxu0 %v4881
  %v5604 = vpop.f32.mrf.mxu0
  %v5605 = vadd.f32 0.0, %v5604
  %v5606 = vpop.f32.mrf.mxu0
  %5607 = vmatprep.mubr.f32.mxu0 0.0
  %5608 = vmatmul.mubr.f32.gmra.mxu0 %v4884
  %v5609 = vpop.f32.mrf.mxu0
  %v5610 = vadd.f32 0.0, %v5609
  %v5611 = vpop.f32.mrf.mxu0
  %5612 = vmatprep.mubr.f32.mxu0 0.0
  %5613 = vmatmul.mubr.f32.gmra.mxu0 %v4887
  %v5614 = vpop.f32.mrf.mxu0
  %v5615 = vadd.f32 0.0, %v5614
  %v5616 = vpop.f32.mrf.mxu0
  %5617 = vmatprep.mubr.f32.mxu0 0.0
  %5618 = vmatmul.mubr.f32.gmra.mxu0 %v4890
  %v5619 = vpop.f32.mrf.mxu0
  %v5620 = vadd.f32 0.0, %v5619
  %v5621 = vpop.f32.mrf.mxu0
  %5622 = vmatprep.mubr.f32.mxu0 0.0
  %5623 = vmatmul.mubr.f32.gmra.mxu0 %v4893
  %v5624 = vpop.f32.mrf.mxu0
  %v5625 = vadd.f32 0.0, %v5624
  %v5626 = vpop.f32.mrf.mxu0
  %5627 = vmatprep.mubr.f32.mxu0 0.0
  %5628 = vmatmul.mubr.f32.gmra.mxu0 %v4896
  %v5629 = vpop.f32.mrf.mxu0
  %v5630 = vadd.f32 0.0, %v5629
  %v5631 = vpop.f32.mrf.mxu0
  %5632 = vmatprep.mubr.f32.mxu0 0.0
  %5633 = vmatmul.mubr.f32.gmra.mxu0 %v4899
  %v5634 = vpop.f32.mrf.mxu0
  %v5635 = vadd.f32 0.0, %v5634
  %v5636 = vpop.f32.mrf.mxu0
  %5637 = vmatprep.mubr.f32.mxu0 0.0
  %5638 = vmatmul.mubr.f32.gmra.mxu0 %v4902
  %v5639 = vpop.f32.mrf.mxu0
  %v5640 = vadd.f32 0.0, %v5639
  %v5641 = vpop.f32.mrf.mxu0
  %5642 = vmatprep.mubr.f32.mxu0 0.0
  %5643 = vmatmul.mubr.f32.gmra.mxu0 %v4905
  %v5644 = vpop.f32.mrf.mxu0
  %v5645 = vadd.f32 0.0, %v5644
  %v5646 = vpop.f32.mrf.mxu0
  %5647 = vmatprep.mubr.f32.mxu0 0.0
  %5648 = vmatmul.mubr.f32.gmra.mxu0 %v4908
  %v5649 = vpop.f32.mrf.mxu0
  %v5650 = vadd.f32 0.0, %v5649
  %v5651 = vpop.f32.mrf.mxu0
  %5652 = vmatprep.mubr.f32.mxu0 0.0
  %5653 = vmatmul.mubr.f32.gmra.mxu0 %v4911
  %v5654 = vpop.f32.mrf.mxu0
  %v5655 = vadd.f32 0.0, %v5654
  %v5656 = vpop.f32.mrf.mxu0
  %5657 = vmatprep.mubr.f32.mxu0 0.0
  %5658 = vmatmul.mubr.f32.gmra.mxu0 %v4914
  %v5659 = vpop.f32.mrf.mxu0
  %v5660 = vadd.f32 0.0, %v5659
  %v5661 = vpop.f32.mrf.mxu0
  %5662 = vmatprep.mubr.f32.mxu0 0.0
  %5663 = vmatmul.mubr.f32.gmra.mxu0 %v4917
  %v5664 = vpop.f32.mrf.mxu0
  %v5665 = vadd.f32 0.0, %v5664
  %v5666 = vpop.f32.mrf.mxu0
  %5667 = vmatprep.mubr.f32.mxu0 0.0
  %5668 = vmatmul.mubr.f32.gmra.mxu0 %v4920
  %v5669 = vpop.f32.mrf.mxu0
  %v5670 = vadd.f32 0.0, %v5669
  %v5671 = vpop.f32.mrf.mxu0
  %5672 = vmatprep.mubr.f32.mxu0 0.0
  %5673 = vmatmul.mubr.f32.gmra.mxu0 %v4923
  %v5674 = vpop.f32.mrf.mxu0
  %v5675 = vadd.f32 0.0, %v5674
  %v5676 = vpop.f32.mrf.mxu0
  %5677 = vmatprep.mubr.f32.mxu0 0.0
  %5678 = vmatmul.mubr.f32.gmra.mxu0 %v4926
  %v5679 = vpop.f32.mrf.mxu0
  %v5680 = vadd.f32 0.0, %v5679
  %v5681 = vpop.f32.mrf.mxu0
  %5682 = vmatprep.mubr.f32.mxu0 0.0
  %5683 = vmatmul.mubr.f32.gmra.mxu0 %v4929
  %v5684 = vpop.f32.mrf.mxu0
  %v5685 = vadd.f32 0.0, %v5684
  %v5686 = vpop.f32.mrf.mxu0
  %5687 = vmatprep.mubr.f32.mxu0 0.0
  %5688 = vmatmul.mubr.f32.gmra.mxu0 %v4932
  %v5689 = vpop.f32.mrf.mxu0
  %v5690 = vadd.f32 0.0, %v5689
  %v5691 = vpop.f32.mrf.mxu0
  %5692 = vmatprep.mubr.f32.mxu0 0.0
  %5693 = vmatmul.mubr.f32.gmra.mxu0 %v4935
  %v5694 = vpop.f32.mrf.mxu0
  %v5695 = vadd.f32 0.0, %v5694
  %v5696 = vpop.f32.mrf.mxu0
  %5697 = vmatprep.mubr.f32.mxu0 0.0
  %5698 = vmatmul.mubr.f32.gmra.mxu0 %v4938
  %v5699 = vpop.f32.mrf.mxu0
  %v5700 = vadd.f32 0.0, %v5699
  %v5701 = vpop.f32.mrf.mxu0
  %5702 = vmatprep.mubr.f32.mxu0 0.0
  %5703 = vmatmul.mubr.f32.gmra.mxu0 %v4941
  %v5704 = vpop.f32.mrf.mxu0
  %v5705 = vadd.f32 0.0, %v5704
  %v5706 = vpop.f32.mrf.mxu0
  %5707 = vmatprep.mubr.f32.mxu0 0.0
  %5708 = vmatmul.mubr.f32.gmra.mxu0 %v4944
  %v5709 = vpop.f32.mrf.mxu0
  %v5710 = vadd.f32 0.0, %v5709
  %v5711 = vpop.f32.mrf.mxu0
  %5712 = vmatprep.mubr.f32.mxu0 0.0
  %5713 = vmatmul.mubr.f32.gmra.mxu0 %v4947
  %v5714 = vpop.f32.mrf.mxu0
  %v5715 = vadd.f32 0.0, %v5714
  %v5716 = vpop.f32.mrf.mxu0
  %5717 = vmatprep.mubr.f32.mxu0 0.0
  %5718 = vmatmul.mubr.f32.gmra.mxu0 %v4950
  %v5719 = vpop.f32.mrf.mxu0
  %v5720 = vadd.f32 0.0, %v5719
  %v5721 = vpop.f32.mrf.mxu0
  %5722 = vmatprep.mubr.f32.mxu0 0.0
  %5723 = vmatmul.mubr.f32.gmra.mxu0 %v4953
  %v5724 = vpop.f32.mrf.mxu0
  %v5725 = vadd.f32 0.0, %v5724
  %v5726 = vpop.f32.mrf.mxu0
  %5727 = vmatprep.mubr.f32.mxu0 0.0
  %5728 = vmatmul.mubr.f32.gmra.mxu0 %v4956
  %v5729 = vpop.f32.mrf.mxu0
  %v5730 = vadd.f32 0.0, %v5729
  %v5731 = vpop.f32.mrf.mxu0
  %5732 = vmatprep.mubr.f32.mxu0 0.0
  %5733 = vmatmul.mubr.f32.gmra.mxu0 %v4959
  %v5734 = vpop.f32.mrf.mxu0
  %v5735 = vadd.f32 0.0, %v5734
  %v5736 = vpop.f32.mrf.mxu0
  %5737 = vmatprep.mubr.f32.mxu0 0.0
  %5738 = vmatmul.mubr.f32.gmra.mxu0 %v4962
  %v5739 = vpop.f32.mrf.mxu0
  %v5740 = vadd.f32 0.0, %v5739
  %v5741 = vpop.f32.mrf.mxu0
  %5742 = vmatprep.mubr.f32.mxu0 0.0
  %5743 = vmatmul.mubr.f32.gmra.mxu0 %v4965
  %v5744 = vpop.f32.mrf.mxu0
  %v5745 = vadd.f32 0.0, %v5744
  %v5746 = vpop.f32.mrf.mxu0
  %5747 = vmatprep.mubr.f32.mxu0 0.0
  %5748 = vmatmul.mubr.f32.gmra.mxu0 %v4968
  %v5749 = vpop.f32.mrf.mxu0
  %v5750 = vadd.f32 0.0, %v5749
  %v5751 = vpop.f32.mrf.mxu0
  %5752 = vmatprep.mubr.f32.mxu0 0.0
  %5753 = vmatmul.mubr.f32.gmra.mxu0 %v4971
  %v5754 = vpop.f32.mrf.mxu0
  %v5755 = vadd.f32 0.0, %v5754
  %v5756 = vpop.f32.mrf.mxu0
  %5757 = vdwg.mxu0
  %v5758 = vmax.f32 %v4252, %v5040
  %v5759 = vmax.f32 %v4253, %v5045
  %v5760 = vmax.f32 %v4254, %v5050
  %v5761 = vmax.f32 %v4255, %v5055
  %v5762 = vmax.f32 %v4256, %v5060
  %v5763 = vmax.f32 %v4257, %v5065
  %v5764 = vmax.f32 %v4258, %v5070
  %v5765 = vmax.f32 %v4259, %v5075
  %v5766 = vmax.f32 %v4260, %v5080
  %v5767 = vmax.f32 %v4261, %v5085
  %v5768 = vmax.f32 %v4262, %v5090
  %v5769 = vmax.f32 %v4263, %v5095
  %v5770 = vmax.f32 %v4264, %v5100
  %v5771 = vmax.f32 %v4265, %v5105
  %v5772 = vmax.f32 %v4266, %v5110
  %v5773 = vmax.f32 %v4267, %v5115
  %v5774 = vmax.f32 %v4268, %v5120
  %v5775 = vmax.f32 %v4269, %v5125
  %v5776 = vmax.f32 %v4270, %v5130
  %v5777 = vmax.f32 %v4271, %v5135
  %v5778 = vmax.f32 %v4272, %v5140
  %v5779 = vmax.f32 %v4273, %v5145
  %v5780 = vmax.f32 %v4274, %v5150
  %v5781 = vmax.f32 %v4275, %v5155
  %v5782 = vmax.f32 %v4276, %v5160
  %v5783 = vmax.f32 %v4277, %v5165
  %v5784 = vmax.f32 %v4278, %v5170
  %v5785 = vmax.f32 %v4279, %v5175
  %v5786 = vmax.f32 %v4280, %v5180
  %v5787 = vmax.f32 %v4281, %v5185
  %v5788 = vmax.f32 %v4282, %v5190
  %v5789 = vmax.f32 %v4283, %v5195
  %v5790 = vmax.f32 %v4284, %v5200
  %v5791 = vmax.f32 %v4285, %v5205
  %v5792 = vmax.f32 %v4286, %v5210
  %v5793 = vmax.f32 %v4287, %v5215
  %v5794 = vmax.f32 %v4288, %v5220
  %v5795 = vmax.f32 %v4289, %v5225
  %v5796 = vmax.f32 %v4290, %v5230
  %v5797 = vmax.f32 %v4291, %v5235
  %v5798 = vmax.f32 %v4292, %v5240
  %v5799 = vmax.f32 %v4293, %v5245
  %v5800 = vmax.f32 %v4294, %v5250
  %v5801 = vmax.f32 %v4295, %v5255
  %v5802 = vmax.f32 %v4296, %v5260
  %v5803 = vmax.f32 %v4297, %v5265
  %v5804 = vmax.f32 %v4298, %v5270
  %v5805 = vmax.f32 %v4299, %v5275
  %v5806 = vmax.f32 %v4300, %v5280
  %v5807 = vmax.f32 %v4301, %v5285
  %v5808 = vmax.f32 %v4302, %v5290
  %v5809 = vmax.f32 %v4303, %v5295
  %v5810 = vmax.f32 %v4304, %v5300
  %v5811 = vmax.f32 %v4305, %v5305
  %v5812 = vmax.f32 %v4306, %v5310
  %v5813 = vmax.f32 %v4307, %v5315
  %v5814 = vmax.f32 %v4308, %v5320
  %v5815 = vmax.f32 %v4309, %v5325
  %v5816 = vmax.f32 %v4310, %v5330
  %v5817 = vmax.f32 %v4311, %v5335
  %v5818 = vmax.f32 %v4312, %v5340
  %v5819 = vmax.f32 %v4313, %v5345
  %v5820 = vmax.f32 %v4314, %v5350
  %v5821 = vmax.f32 %v4315, %v5355
  %v5822 = vmax.f32 %v4316, %v5360
  %v5823 = vmax.f32 %v4317, %v5365
  %v5824 = vmax.f32 %v4318, %v5370
  %v5825 = vmax.f32 %v4319, %v5375
  %v5826 = vmax.f32 %v4320, %v5380
  %v5827 = vmax.f32 %v4321, %v5385
  %v5828 = vmax.f32 %v4322, %v5390
  %v5829 = vmax.f32 %v4323, %v5395
  %v5830 = vmax.f32 %v4324, %v5400
  %v5831 = vmax.f32 %v4325, %v5405
  %v5832 = vmax.f32 %v4326, %v5410
  %v5833 = vmax.f32 %v4327, %v5415
  %v5834 = vmax.f32 %v4328, %v5420
  %v5835 = vmax.f32 %v4329, %v5425
  %v5836 = vmax.f32 %v4330, %v5430
  %v5837 = vmax.f32 %v4331, %v5435
  %v5838 = vmax.f32 %v4332, %v5440
  %v5839 = vmax.f32 %v4333, %v5445
  %v5840 = vmax.f32 %v4334, %v5450
  %v5841 = vmax.f32 %v4335, %v5455
  %v5842 = vmax.f32 %v4336, %v5460
  %v5843 = vmax.f32 %v4337, %v5465
  %v5844 = vmax.f32 %v4338, %v5470
  %v5845 = vmax.f32 %v4339, %v5475
  %v5846 = vmax.f32 %v4340, %v5480
  %v5847 = vmax.f32 %v4341, %v5485
  %v5848 = vmax.f32 %v4342, %v5490
  %v5849 = vmax.f32 %v4343, %v5495
  %v5850 = vmax.f32 %v4344, %v5500
  %v5851 = vmax.f32 %v4345, %v5505
  %v5852 = vmax.f32 %v4346, %v5510
  %v5853 = vmax.f32 %v4347, %v5515
  %v5854 = vmax.f32 %v4348, %v5520
  %v5855 = vmax.f32 %v4349, %v5525
  %v5856 = vmax.f32 %v4350, %v5530
  %v5857 = vmax.f32 %v4351, %v5535
  %v5858 = vmax.f32 %v4352, %v5540
  %v5859 = vmax.f32 %v4353, %v5545
  %v5860 = vmax.f32 %v4354, %v5550
  %v5861 = vmax.f32 %v4355, %v5555
  %v5862 = vmax.f32 %v4356, %v5560
  %v5863 = vmax.f32 %v4357, %v5565
  %v5864 = vmax.f32 %v4358, %v5570
  %v5865 = vmax.f32 %v4359, %v5575
  %v5866 = vmax.f32 %v4360, %v5580
  %v5867 = vmax.f32 %v4361, %v5585
  %v5868 = vmax.f32 %v4362, %v5590
  %v5869 = vmax.f32 %v4363, %v5595
  %v5870 = vmax.f32 %v4364, %v5600
  %v5871 = vmax.f32 %v4365, %v5605
  %v5872 = vmax.f32 %v4366, %v5610
  %v5873 = vmax.f32 %v4367, %v5615
  %v5874 = vmax.f32 %v4368, %v5620
  %v5875 = vmax.f32 %v4369, %v5625
  %v5876 = vmax.f32 %v4370, %v5630
  %v5877 = vmax.f32 %v4371, %v5635
  %v5878 = vmax.f32 %v4372, %v5640
  %v5879 = vmax.f32 %v4373, %v5645
  %v5880 = vmax.f32 %v4374, %v5650
  %v5881 = vmax.f32 %v4375, %v5655
  %v5882 = vmax.f32 %v4376, %v5660
  %v5883 = vmax.f32 %v4377, %v5665
  %v5884 = vmax.f32 %v4378, %v5670
  %v5885 = vmax.f32 %v4379, %v5675
  %v5886 = vmax.f32 %v4380, %v5680
  %v5887 = vmax.f32 %v4381, %v5685
  %v5888 = vmax.f32 %v4382, %v5690
  %v5889 = vmax.f32 %v4383, %v5695
  %v5890 = vmax.f32 %v4384, %v5700
  %v5891 = vmax.f32 %v4385, %v5705
  %v5892 = vmax.f32 %v4386, %v5710
  %v5893 = vmax.f32 %v4387, %v5715
  %v5894 = vmax.f32 %v4388, %v5720
  %v5895 = vmax.f32 %v4389, %v5725
  %v5896 = vmax.f32 %v4390, %v5730
  %v5897 = vmax.f32 %v4391, %v5735
  %v5898 = vmax.f32 %v4392, %v5740
  %v5899 = vmax.f32 %v4393, %v5745
  %v5900 = vmax.f32 %v4394, %v5750
  %v5901 = vmax.f32 %v4395, %v5755
  %v5902 = vld [vmem:[%s2] sm:$0x1]
  %v5904 = vlaneseq
  %v5905 = vshrl.u32 %v5904, 7
  %v5906 = vsub.s32 0, %v5905
  %v5907 = vrot.slane %v5902, %v5906
  %v5909 = vadd.f32 %v5758, %v5907
  %v5910 = vadd.f32 %v5759, %v5907
  %v5911 = vadd.f32 %v5760, %v5907
  %v5912 = vadd.f32 %v5761, %v5907
  %v5913 = vadd.f32 %v5762, %v5907
  %v5914 = vadd.f32 %v5763, %v5907
  %v5915 = vadd.f32 %v5764, %v5907
  %v5916 = vadd.f32 %v5765, %v5907
  %v5917 = vadd.f32 %v5766, %v5907
  %v5918 = vadd.f32 %v5767, %v5907
  %v5919 = vadd.f32 %v5768, %v5907
  %v5920 = vadd.f32 %v5769, %v5907
  %v5921 = vadd.f32 %v5770, %v5907
  %v5922 = vadd.f32 %v5771, %v5907
  %v5923 = vadd.f32 %v5772, %v5907
  %v5924 = vadd.f32 %v5773, %v5907
  %v5925 = vadd.f32 %v5774, %v5907
  %v5926 = vadd.f32 %v5775, %v5907
  %v5927 = vadd.f32 %v5776, %v5907
  %v5928 = vadd.f32 %v5777, %v5907
  %v5929 = vadd.f32 %v5778, %v5907
  %v5930 = vadd.f32 %v5779, %v5907
  %v5931 = vadd.f32 %v5780, %v5907
  %v5932 = vadd.f32 %v5781, %v5907
  %v5933 = vadd.f32 %v5782, %v5907
  %v5934 = vadd.f32 %v5783, %v5907
  %v5935 = vadd.f32 %v5784, %v5907
  %v5936 = vadd.f32 %v5785, %v5907
  %v5937 = vadd.f32 %v5786, %v5907
  %v5938 = vadd.f32 %v5787, %v5907
  %v5939 = vadd.f32 %v5788, %v5907
  %v5940 = vadd.f32 %v5789, %v5907
  %v5941 = vadd.f32 %v5790, %v5907
  %v5942 = vadd.f32 %v5791, %v5907
  %v5943 = vadd.f32 %v5792, %v5907
  %v5944 = vadd.f32 %v5793, %v5907
  %v5945 = vadd.f32 %v5794, %v5907
  %v5946 = vadd.f32 %v5795, %v5907
  %v5947 = vadd.f32 %v5796, %v5907
  %v5948 = vadd.f32 %v5797, %v5907
  %v5949 = vadd.f32 %v5798, %v5907
  %v5950 = vadd.f32 %v5799, %v5907
  %v5951 = vadd.f32 %v5800, %v5907
  %v5952 = vadd.f32 %v5801, %v5907
  %v5953 = vadd.f32 %v5802, %v5907
  %v5954 = vadd.f32 %v5803, %v5907
  %v5955 = vadd.f32 %v5804, %v5907
  %v5956 = vadd.f32 %v5805, %v5907
  %v5957 = vadd.f32 %v5806, %v5907
  %v5958 = vadd.f32 %v5807, %v5907
  %v5959 = vadd.f32 %v5808, %v5907
  %v5960 = vadd.f32 %v5809, %v5907
  %v5961 = vadd.f32 %v5810, %v5907
  %v5962 = vadd.f32 %v5811, %v5907
  %v5963 = vadd.f32 %v5812, %v5907
  %v5964 = vadd.f32 %v5813, %v5907
  %v5965 = vadd.f32 %v5814, %v5907
  %v5966 = vadd.f32 %v5815, %v5907
  %v5967 = vadd.f32 %v5816, %v5907
  %v5968 = vadd.f32 %v5817, %v5907
  %v5969 = vadd.f32 %v5818, %v5907
  %v5970 = vadd.f32 %v5819, %v5907
  %v5971 = vadd.f32 %v5820, %v5907
  %v5972 = vadd.f32 %v5821, %v5907
  %v5973 = vadd.f32 %v5822, %v5907
  %v5974 = vadd.f32 %v5823, %v5907
  %v5975 = vadd.f32 %v5824, %v5907
  %v5976 = vadd.f32 %v5825, %v5907
  %v5977 = vadd.f32 %v5826, %v5907
  %v5978 = vadd.f32 %v5827, %v5907
  %v5979 = vadd.f32 %v5828, %v5907
  %v5980 = vadd.f32 %v5829, %v5907
  %v5981 = vadd.f32 %v5830, %v5907
  %v5982 = vadd.f32 %v5831, %v5907
  %v5983 = vadd.f32 %v5832, %v5907
  %v5984 = vadd.f32 %v5833, %v5907
  %v5985 = vadd.f32 %v5834, %v5907
  %v5986 = vadd.f32 %v5835, %v5907
  %v5987 = vadd.f32 %v5836, %v5907
  %v5988 = vadd.f32 %v5837, %v5907
  %v5989 = vadd.f32 %v5838, %v5907
  %v5990 = vadd.f32 %v5839, %v5907
  %v5991 = vadd.f32 %v5840, %v5907
  %v5992 = vadd.f32 %v5841, %v5907
  %v5993 = vadd.f32 %v5842, %v5907
  %v5994 = vadd.f32 %v5843, %v5907
  %v5995 = vadd.f32 %v5844, %v5907
  %v5996 = vadd.f32 %v5845, %v5907
  %v5997 = vadd.f32 %v5846, %v5907
  %v5998 = vadd.f32 %v5847, %v5907
  %v5999 = vadd.f32 %v5848, %v5907
  %v6000 = vadd.f32 %v5849, %v5907
  %v6001 = vadd.f32 %v5850, %v5907
  %v6002 = vadd.f32 %v5851, %v5907
  %v6003 = vadd.f32 %v5852, %v5907
  %v6004 = vadd.f32 %v5853, %v5907
  %v6005 = vadd.f32 %v5854, %v5907
  %v6006 = vadd.f32 %v5855, %v5907
  %v6007 = vadd.f32 %v5856, %v5907
  %v6008 = vadd.f32 %v5857, %v5907
  %v6009 = vadd.f32 %v5858, %v5907
  %v6010 = vadd.f32 %v5859, %v5907
  %v6011 = vadd.f32 %v5860, %v5907
  %v6012 = vadd.f32 %v5861, %v5907
  %v6013 = vadd.f32 %v5862, %v5907
  %v6014 = vadd.f32 %v5863, %v5907
  %v6015 = vadd.f32 %v5864, %v5907
  %v6016 = vadd.f32 %v5865, %v5907
  %v6017 = vadd.f32 %v5866, %v5907
  %v6018 = vadd.f32 %v5867, %v5907
  %v6019 = vadd.f32 %v5868, %v5907
  %v6020 = vadd.f32 %v5869, %v5907
  %v6021 = vadd.f32 %v5870, %v5907
  %v6022 = vadd.f32 %v5871, %v5907
  %v6023 = vadd.f32 %v5872, %v5907
  %v6024 = vadd.f32 %v5873, %v5907
  %v6025 = vadd.f32 %v5874, %v5907
  %v6026 = vadd.f32 %v5875, %v5907
  %v6027 = vadd.f32 %v5876, %v5907
  %v6028 = vadd.f32 %v5877, %v5907
  %v6029 = vadd.f32 %v5878, %v5907
  %v6030 = vadd.f32 %v5879, %v5907
  %v6031 = vadd.f32 %v5880, %v5907
  %v6032 = vadd.f32 %v5881, %v5907
  %v6033 = vadd.f32 %v5882, %v5907
  %v6034 = vadd.f32 %v5883, %v5907
  %v6035 = vadd.f32 %v5884, %v5907
  %v6036 = vadd.f32 %v5885, %v5907
  %v6037 = vadd.f32 %v5886, %v5907
  %v6038 = vadd.f32 %v5887, %v5907
  %v6039 = vadd.f32 %v5888, %v5907
  %v6040 = vadd.f32 %v5889, %v5907
  %v6041 = vadd.f32 %v5890, %v5907
  %v6042 = vadd.f32 %v5891, %v5907
  %v6043 = vadd.f32 %v5892, %v5907
  %v6044 = vadd.f32 %v5893, %v5907
  %v6045 = vadd.f32 %v5894, %v5907
  %v6046 = vadd.f32 %v5895, %v5907
  %v6047 = vadd.f32 %v5896, %v5907
  %v6048 = vadd.f32 %v5897, %v5907
  %v6049 = vadd.f32 %v5898, %v5907
  %v6050 = vadd.f32 %v5899, %v5907
  %v6051 = vadd.f32 %v5900, %v5907
  %v6052 = vadd.f32 %v5901, %v5907
  %v6053 = vmax.f32 %v5909, 0.0
  %v6054 = vmax.f32 %v5910, 0.0
  %v6055 = vmax.f32 %v5911, 0.0
  %v6056 = vmax.f32 %v5912, 0.0
  %v6057 = vmax.f32 %v5913, 0.0
  %v6058 = vmax.f32 %v5914, 0.0
  %v6059 = vmax.f32 %v5915, 0.0
  %v6060 = vmax.f32 %v5916, 0.0
  %v6061 = vmax.f32 %v5917, 0.0
  %v6062 = vmax.f32 %v5918, 0.0
  %v6063 = vmax.f32 %v5919, 0.0
  %v6064 = vmax.f32 %v5920, 0.0
  %v6065 = vmax.f32 %v5921, 0.0
  %v6066 = vmax.f32 %v5922, 0.0
  %v6067 = vmax.f32 %v5923, 0.0
  %v6068 = vmax.f32 %v5924, 0.0
  %v6069 = vmax.f32 %v5925, 0.0
  %v6070 = vmax.f32 %v5926, 0.0
  %v6071 = vmax.f32 %v5927, 0.0
  %v6072 = vmax.f32 %v5928, 0.0
  %v6073 = vmax.f32 %v5929, 0.0
  %v6074 = vmax.f32 %v5930, 0.0
  %v6075 = vmax.f32 %v5931, 0.0
  %v6076 = vmax.f32 %v5932, 0.0
  %v6077 = vmax.f32 %v5933, 0.0
  %v6078 = vmax.f32 %v5934, 0.0
  %v6079 = vmax.f32 %v5935, 0.0
  %v6080 = vmax.f32 %v5936, 0.0
  %v6081 = vmax.f32 %v5937, 0.0
  %v6082 = vmax.f32 %v5938, 0.0
  %v6083 = vmax.f32 %v5939, 0.0
  %v6084 = vmax.f32 %v5940, 0.0
  %v6085 = vmax.f32 %v5941, 0.0
  %v6086 = vmax.f32 %v5942, 0.0
  %v6087 = vmax.f32 %v5943, 0.0
  %v6088 = vmax.f32 %v5944, 0.0
  %v6089 = vmax.f32 %v5945, 0.0
  %v6090 = vmax.f32 %v5946, 0.0
  %v6091 = vmax.f32 %v5947, 0.0
  %v6092 = vmax.f32 %v5948, 0.0
  %v6093 = vmax.f32 %v5949, 0.0
  %v6094 = vmax.f32 %v5950, 0.0
  %v6095 = vmax.f32 %v5951, 0.0
  %v6096 = vmax.f32 %v5952, 0.0
  %v6097 = vmax.f32 %v5953, 0.0
  %v6098 = vmax.f32 %v5954, 0.0
  %v6099 = vmax.f32 %v5955, 0.0
  %v6100 = vmax.f32 %v5956, 0.0
  %v6101 = vmax.f32 %v5957, 0.0
  %v6102 = vmax.f32 %v5958, 0.0
  %v6103 = vmax.f32 %v5959, 0.0
  %v6104 = vmax.f32 %v5960, 0.0
  %v6105 = vmax.f32 %v5961, 0.0
  %v6106 = vmax.f32 %v5962, 0.0
  %v6107 = vmax.f32 %v5963, 0.0
  %v6108 = vmax.f32 %v5964, 0.0
  %v6109 = vmax.f32 %v5965, 0.0
  %v6110 = vmax.f32 %v5966, 0.0
  %v6111 = vmax.f32 %v5967, 0.0
  %v6112 = vmax.f32 %v5968, 0.0
  %v6113 = vmax.f32 %v5969, 0.0
  %v6114 = vmax.f32 %v5970, 0.0
  %v6115 = vmax.f32 %v5971, 0.0
  %v6116 = vmax.f32 %v5972, 0.0
  %v6117 = vmax.f32 %v5973, 0.0
  %v6118 = vmax.f32 %v5974, 0.0
  %v6119 = vmax.f32 %v5975, 0.0
  %v6120 = vmax.f32 %v5976, 0.0
  %v6121 = vmax.f32 %v5977, 0.0
  %v6122 = vmax.f32 %v5978, 0.0
  %v6123 = vmax.f32 %v5979, 0.0
  %v6124 = vmax.f32 %v5980, 0.0
  %v6125 = vmax.f32 %v5981, 0.0
  %v6126 = vmax.f32 %v5982, 0.0
  %v6127 = vmax.f32 %v5983, 0.0
  %v6128 = vmax.f32 %v5984, 0.0
  %v6129 = vmax.f32 %v5985, 0.0
  %v6130 = vmax.f32 %v5986, 0.0
  %v6131 = vmax.f32 %v5987, 0.0
  %v6132 = vmax.f32 %v5988, 0.0
  %v6133 = vmax.f32 %v5989, 0.0
  %v6134 = vmax.f32 %v5990, 0.0
  %v6135 = vmax.f32 %v5991, 0.0
  %v6136 = vmax.f32 %v5992, 0.0
  %v6137 = vmax.f32 %v5993, 0.0
  %v6138 = vmax.f32 %v5994, 0.0
  %v6139 = vmax.f32 %v5995, 0.0
  %v6140 = vmax.f32 %v5996, 0.0
  %v6141 = vmax.f32 %v5997, 0.0
  %v6142 = vmax.f32 %v5998, 0.0
  %v6143 = vmax.f32 %v5999, 0.0
  %v6144 = vmax.f32 %v6000, 0.0
  %v6145 = vmax.f32 %v6001, 0.0
  %v6146 = vmax.f32 %v6002, 0.0
  %v6147 = vmax.f32 %v6003, 0.0
  %v6148 = vmax.f32 %v6004, 0.0
  %v6149 = vmax.f32 %v6005, 0.0
  %v6150 = vmax.f32 %v6006, 0.0
  %v6151 = vmax.f32 %v6007, 0.0
  %v6152 = vmax.f32 %v6008, 0.0
  %v6153 = vmax.f32 %v6009, 0.0
  %v6154 = vmax.f32 %v6010, 0.0
  %v6155 = vmax.f32 %v6011, 0.0
  %v6156 = vmax.f32 %v6012, 0.0
  %v6157 = vmax.f32 %v6013, 0.0
  %v6158 = vmax.f32 %v6014, 0.0
  %v6159 = vmax.f32 %v6015, 0.0
  %v6160 = vmax.f32 %v6016, 0.0
  %v6161 = vmax.f32 %v6017, 0.0
  %v6162 = vmax.f32 %v6018, 0.0
  %v6163 = vmax.f32 %v6019, 0.0
  %v6164 = vmax.f32 %v6020, 0.0
  %v6165 = vmax.f32 %v6021, 0.0
  %v6166 = vmax.f32 %v6022, 0.0
  %v6167 = vmax.f32 %v6023, 0.0
  %v6168 = vmax.f32 %v6024, 0.0
  %v6169 = vmax.f32 %v6025, 0.0
  %v6170 = vmax.f32 %v6026, 0.0
  %v6171 = vmax.f32 %v6027, 0.0
  %v6172 = vmax.f32 %v6028, 0.0
  %v6173 = vmax.f32 %v6029, 0.0
  %v6174 = vmax.f32 %v6030, 0.0
  %v6175 = vmax.f32 %v6031, 0.0
  %v6176 = vmax.f32 %v6032, 0.0
  %v6177 = vmax.f32 %v6033, 0.0
  %v6178 = vmax.f32 %v6034, 0.0
  %v6179 = vmax.f32 %v6035, 0.0
  %v6180 = vmax.f32 %v6036, 0.0
  %v6181 = vmax.f32 %v6037, 0.0
  %v6182 = vmax.f32 %v6038, 0.0
  %v6183 = vmax.f32 %v6039, 0.0
  %v6184 = vmax.f32 %v6040, 0.0
  %v6185 = vmax.f32 %v6041, 0.0
  %v6186 = vmax.f32 %v6042, 0.0
  %v6187 = vmax.f32 %v6043, 0.0
  %v6188 = vmax.f32 %v6044, 0.0
  %v6189 = vmax.f32 %v6045, 0.0
  %v6190 = vmax.f32 %v6046, 0.0
  %v6191 = vmax.f32 %v6047, 0.0
  %v6192 = vmax.f32 %v6048, 0.0
  %v6193 = vmax.f32 %v6049, 0.0
  %v6194 = vmax.f32 %v6050, 0.0
  %v6195 = vmax.f32 %v6051, 0.0
  %v6196 = vmax.f32 %v6052, 0.0
  %vm6197 = vcmask 80896
  %6198 = vst.msk [vmem:[%s3] sm:$0xff] %vm6197, %v6053
  %6199 = vst.msk [vmem:[%s3 + $0x8] sm:$0xff] %vm6197, %v6054
  %6200 = vst.msk [vmem:[%s3 + $0x10] sm:$0xff] %vm6197, %v6055
  %6201 = vst.msk [vmem:[%s3 + $0x18] sm:$0xff] %vm6197, %v6056
  %6202 = vst.msk [vmem:[%s3 + $0x20] sm:$0xff] %vm6197, %v6057
  %6203 = vst.msk [vmem:[%s3 + $0x28] sm:$0xff] %vm6197, %v6058
  %6204 = vst.msk [vmem:[%s3 + $0x30] sm:$0xff] %vm6197, %v6059
  %6205 = vst.msk [vmem:[%s3 + $0x38] sm:$0xff] %vm6197, %v6060
  %6206 = vst.msk [vmem:[%s3 + $0x40] sm:$0xff] %vm6197, %v6061
  %6207 = vst.msk [vmem:[%s3 + $0x48] sm:$0xff] %vm6197, %v6062
  %6208 = vst.msk [vmem:[%s3 + $0x50] sm:$0xff] %vm6197, %v6063
  %6209 = vst.msk [vmem:[%s3 + $0x58] sm:$0xff] %vm6197, %v6064
  %6210 = vst.msk [vmem:[%s3 + $0x60] sm:$0xff] %vm6197, %v6065
  %6211 = vst.msk [vmem:[%s3 + $0x68] sm:$0xff] %vm6197, %v6066
  %6212 = vst.msk [vmem:[%s3 + $0x70] sm:$0xff] %vm6197, %v6067
  %6213 = vst.msk [vmem:[%s3 + $0x78] sm:$0xff] %vm6197, %v6068
  %6214 = vst.msk [vmem:[%s3 + $0x80] sm:$0xff] %vm6197, %v6069
  %6215 = vst.msk [vmem:[%s3 + $0x88] sm:$0xff] %vm6197, %v6070
  %6216 = vst.msk [vmem:[%s3 + $0x90] sm:$0xff] %vm6197, %v6071
  %6217 = vst.msk [vmem:[%s3 + $0x98] sm:$0xff] %vm6197, %v6072
  %6218 = vst.msk [vmem:[%s3 + $0xa0] sm:$0xff] %vm6197, %v6073
  %6219 = vst.msk [vmem:[%s3 + $0xa8] sm:$0xff] %vm6197, %v6074
  %6220 = vst.msk [vmem:[%s3 + $0xb0] sm:$0xff] %vm6197, %v6075
  %6221 = vst.msk [vmem:[%s3 + $0xb8] sm:$0xff] %vm6197, %v6076
  %6222 = vst.msk [vmem:[%s3 + $0xc0] sm:$0xff] %vm6197, %v6077
  %6223 = vst.msk [vmem:[%s3 + $0xc8] sm:$0xff] %vm6197, %v6078
  %6224 = vst.msk [vmem:[%s3 + $0xd0] sm:$0xff] %vm6197, %v6079
  %6225 = vst.msk [vmem:[%s3 + $0xd8] sm:$0xff] %vm6197, %v6080
  %6226 = vst.msk [vmem:[%s3 + $0xe0] sm:$0xff] %vm6197, %v6081
  %6227 = vst.msk [vmem:[%s3 + $0xe8] sm:$0xff] %vm6197, %v6082
  %6228 = vst.msk [vmem:[%s3 + $0xf0] sm:$0xff] %vm6197, %v6083
  %6229 = vst.msk [vmem:[%s3 + $0xf8] sm:$0xff] %vm6197, %v6084
  %6230 = vst.msk [vmem:[%s3 + $0x100] sm:$0xff] %vm6197, %v6085
  %6231 = vst.msk [vmem:[%s3 + $0x108] sm:$0xff] %vm6197, %v6086
  %6232 = vst.msk [vmem:[%s3 + $0x110] sm:$0xff] %vm6197, %v6087
  %6233 = vst.msk [vmem:[%s3 + $0x118] sm:$0xff] %vm6197, %v6088
  %6234 = vst.msk [vmem:[%s3 + $0x120] sm:$0xff] %vm6197, %v6089
  %6235 = vst.msk [vmem:[%s3 + $0x128] sm:$0xff] %vm6197, %v6090
  %6236 = vst.msk [vmem:[%s3 + $0x130] sm:$0xff] %vm6197, %v6091
  %6237 = vst.msk [vmem:[%s3 + $0x138] sm:$0xff] %vm6197, %v6092
  %6238 = vst.msk [vmem:[%s3 + $0x140] sm:$0xff] %vm6197, %v6093
  %6239 = vst.msk [vmem:[%s3 + $0x148] sm:$0xff] %vm6197, %v6094
  %6240 = vst.msk [vmem:[%s3 + $0x150] sm:$0xff] %vm6197, %v6095
  %6241 = vst.msk [vmem:[%s3 + $0x158] sm:$0xff] %vm6197, %v6096
  %6242 = vst.msk [vmem:[%s3 + $0x160] sm:$0xff] %vm6197, %v6097
  %6243 = vst.msk [vmem:[%s3 + $0x168] sm:$0xff] %vm6197, %v6098
  %6244 = vst.msk [vmem:[%s3 + $0x170] sm:$0xff] %vm6197, %v6099
  %6245 = vst.msk [vmem:[%s3 + $0x178] sm:$0xff] %vm6197, %v6100
  %6246 = vst.msk [vmem:[%s3 + $0x180] sm:$0xff] %vm6197, %v6101
  %6247 = vst.msk [vmem:[%s3 + $0x188] sm:$0xff] %vm6197, %v6102
  %6248 = vst.msk [vmem:[%s3 + $0x190] sm:$0xff] %vm6197, %v6103
  %6249 = vst.msk [vmem:[%s3 + $0x198] sm:$0xff] %vm6197, %v6104
  %6250 = vst.msk [vmem:[%s3 + $0x1a0] sm:$0xff] %vm6197, %v6105
  %6251 = vst.msk [vmem:[%s3 + $0x1a8] sm:$0xff] %vm6197, %v6106
  %6252 = vst.msk [vmem:[%s3 + $0x1b0] sm:$0xff] %vm6197, %v6107
  %6253 = vst.msk [vmem:[%s3 + $0x1b8] sm:$0xff] %vm6197, %v6108
  %6254 = vst.msk [vmem:[%s3 + $0x1c0] sm:$0xff] %vm6197, %v6109
  %6255 = vst.msk [vmem:[%s3 + $0x1c8] sm:$0xff] %vm6197, %v6110
  %6256 = vst.msk [vmem:[%s3 + $0x1d0] sm:$0xff] %vm6197, %v6111
  %6257 = vst.msk [vmem:[%s3 + $0x1d8] sm:$0xff] %vm6197, %v6112
  %6258 = vst.msk [vmem:[%s3 + $0x1e0] sm:$0xff] %vm6197, %v6113
  %6259 = vst.msk [vmem:[%s3 + $0x1e8] sm:$0xff] %vm6197, %v6114
  %6260 = vst.msk [vmem:[%s3 + $0x1f0] sm:$0xff] %vm6197, %v6115
  %6261 = vst.msk [vmem:[%s3 + $0x1f8] sm:$0xff] %vm6197, %v6116
  %6262 = vst.msk [vmem:[%s3 + $0x200] sm:$0xff] %vm6197, %v6117
  %6263 = vst.msk [vmem:[%s3 + $0x208] sm:$0xff] %vm6197, %v6118
  %6264 = vst.msk [vmem:[%s3 + $0x210] sm:$0xff] %vm6197, %v6119
  %6265 = vst.msk [vmem:[%s3 + $0x218] sm:$0xff] %vm6197, %v6120
  %6266 = vst.msk [vmem:[%s3 + $0x220] sm:$0xff] %vm6197, %v6121
  %6267 = vst.msk [vmem:[%s3 + $0x228] sm:$0xff] %vm6197, %v6122
  %6268 = vst.msk [vmem:[%s3 + $0x230] sm:$0xff] %vm6197, %v6123
  %6269 = vst.msk [vmem:[%s3 + $0x238] sm:$0xff] %vm6197, %v6124
  %6270 = vst.msk [vmem:[%s3 + $0x240] sm:$0xff] %vm6197, %v6125
  %6271 = vst.msk [vmem:[%s3 + $0x248] sm:$0xff] %vm6197, %v6126
  %6272 = vst.msk [vmem:[%s3 + $0x250] sm:$0xff] %vm6197, %v6127
  %6273 = vst.msk [vmem:[%s3 + $0x258] sm:$0xff] %vm6197, %v6128
  %6274 = vst.msk [vmem:[%s3 + $0x260] sm:$0xff] %vm6197, %v6129
  %6275 = vst.msk [vmem:[%s3 + $0x268] sm:$0xff] %vm6197, %v6130
  %6276 = vst.msk [vmem:[%s3 + $0x270] sm:$0xff] %vm6197, %v6131
  %6277 = vst.msk [vmem:[%s3 + $0x278] sm:$0xff] %vm6197, %v6132
  %6278 = vst.msk [vmem:[%s3 + $0x280] sm:$0xff] %vm6197, %v6133
  %6279 = vst.msk [vmem:[%s3 + $0x288] sm:$0xff] %vm6197, %v6134
  %6280 = vst.msk [vmem:[%s3 + $0x290] sm:$0xff] %vm6197, %v6135
  %6281 = vst.msk [vmem:[%s3 + $0x298] sm:$0xff] %vm6197, %v6136
  %6282 = vst.msk [vmem:[%s3 + $0x2a0] sm:$0xff] %vm6197, %v6137
  %6283 = vst.msk [vmem:[%s3 + $0x2a8] sm:$0xff] %vm6197, %v6138
  %6284 = vst.msk [vmem:[%s3 + $0x2b0] sm:$0xff] %vm6197, %v6139
  %6285 = vst.msk [vmem:[%s3 + $0x2b8] sm:$0xff] %vm6197, %v6140
  %6286 = vst.msk [vmem:[%s3 + $0x2c0] sm:$0xff] %vm6197, %v6141
  %6287 = vst.msk [vmem:[%s3 + $0x2c8] sm:$0xff] %vm6197, %v6142
  %6288 = vst.msk [vmem:[%s3 + $0x2d0] sm:$0xff] %vm6197, %v6143
  %6289 = vst.msk [vmem:[%s3 + $0x2d8] sm:$0xff] %vm6197, %v6144
  %6290 = vst.msk [vmem:[%s3 + $0x2e0] sm:$0xff] %vm6197, %v6145
  %6291 = vst.msk [vmem:[%s3 + $0x2e8] sm:$0xff] %vm6197, %v6146
  %6292 = vst.msk [vmem:[%s3 + $0x2f0] sm:$0xff] %vm6197, %v6147
  %6293 = vst.msk [vmem:[%s3 + $0x2f8] sm:$0xff] %vm6197, %v6148
  %6294 = vst.msk [vmem:[%s3 + $0x300] sm:$0xff] %vm6197, %v6149
  %6295 = vst.msk [vmem:[%s3 + $0x308] sm:$0xff] %vm6197, %v6150
  %6296 = vst.msk [vmem:[%s3 + $0x310] sm:$0xff] %vm6197, %v6151
  %6297 = vst.msk [vmem:[%s3 + $0x318] sm:$0xff] %vm6197, %v6152
  %6298 = vst.msk [vmem:[%s3 + $0x320] sm:$0xff] %vm6197, %v6153
  %6299 = vst.msk [vmem:[%s3 + $0x328] sm:$0xff] %vm6197, %v6154
  %6300 = vst.msk [vmem:[%s3 + $0x330] sm:$0xff] %vm6197, %v6155
  %6301 = vst.msk [vmem:[%s3 + $0x338] sm:$0xff] %vm6197, %v6156
  %6302 = vst.msk [vmem:[%s3 + $0x340] sm:$0xff] %vm6197, %v6157
  %6303 = vst.msk [vmem:[%s3 + $0x348] sm:$0xff] %vm6197, %v6158
  %6304 = vst.msk [vmem:[%s3 + $0x350] sm:$0xff] %vm6197, %v6159
  %6305 = vst.msk [vmem:[%s3 + $0x358] sm:$0xff] %vm6197, %v6160
  %6306 = vst.msk [vmem:[%s3 + $0x360] sm:$0xff] %vm6197, %v6161
  %6307 = vst.msk [vmem:[%s3 + $0x368] sm:$0xff] %vm6197, %v6162
  %6308 = vst.msk [vmem:[%s3 + $0x370] sm:$0xff] %vm6197, %v6163
  %6309 = vst.msk [vmem:[%s3 + $0x378] sm:$0xff] %vm6197, %v6164
  %6310 = vst.msk [vmem:[%s3 + $0x380] sm:$0xff] %vm6197, %v6165
  %6311 = vst.msk [vmem:[%s3 + $0x388] sm:$0xff] %vm6197, %v6166
  %6312 = vst.msk [vmem:[%s3 + $0x390] sm:$0xff] %vm6197, %v6167
  %6313 = vst.msk [vmem:[%s3 + $0x398] sm:$0xff] %vm6197, %v6168
  %6314 = vst.msk [vmem:[%s3 + $0x3a0] sm:$0xff] %vm6197, %v6169
  %6315 = vst.msk [vmem:[%s3 + $0x3a8] sm:$0xff] %vm6197, %v6170
  %6316 = vst.msk [vmem:[%s3 + $0x3b0] sm:$0xff] %vm6197, %v6171
  %6317 = vst.msk [vmem:[%s3 + $0x3b8] sm:$0xff] %vm6197, %v6172
  %6318 = vst.msk [vmem:[%s3 + $0x3c0] sm:$0xff] %vm6197, %v6173
  %6319 = vst.msk [vmem:[%s3 + $0x3c8] sm:$0xff] %vm6197, %v6174
  %6320 = vst.msk [vmem:[%s3 + $0x3d0] sm:$0xff] %vm6197, %v6175
  %6321 = vst.msk [vmem:[%s3 + $0x3d8] sm:$0xff] %vm6197, %v6176
  %6322 = vst.msk [vmem:[%s3 + $0x3e0] sm:$0xff] %vm6197, %v6177
  %6323 = vst.msk [vmem:[%s3 + $0x3e8] sm:$0xff] %vm6197, %v6178
  %6324 = vst.msk [vmem:[%s3 + $0x3f0] sm:$0xff] %vm6197, %v6179
  %6325 = vst.msk [vmem:[%s3 + $0x3f8] sm:$0xff] %vm6197, %v6180
  %6326 = vst.msk [vmem:[%s3 + $0x400] sm:$0xff] %vm6197, %v6181
  %6327 = vst.msk [vmem:[%s3 + $0x408] sm:$0xff] %vm6197, %v6182
  %6328 = vst.msk [vmem:[%s3 + $0x410] sm:$0xff] %vm6197, %v6183
  %6329 = vst.msk [vmem:[%s3 + $0x418] sm:$0xff] %vm6197, %v6184
  %6330 = vst.msk [vmem:[%s3 + $0x420] sm:$0xff] %vm6197, %v6185
  %6331 = vst.msk [vmem:[%s3 + $0x428] sm:$0xff] %vm6197, %v6186
  %6332 = vst.msk [vmem:[%s3 + $0x430] sm:$0xff] %vm6197, %v6187
  %6333 = vst.msk [vmem:[%s3 + $0x438] sm:$0xff] %vm6197, %v6188
  %6334 = vst.msk [vmem:[%s3 + $0x440] sm:$0xff] %vm6197, %v6189
  %6335 = vst.msk [vmem:[%s3 + $0x448] sm:$0xff] %vm6197, %v6190
  %6336 = vst.msk [vmem:[%s3 + $0x450] sm:$0xff] %vm6197, %v6191
  %6337 = vst.msk [vmem:[%s3 + $0x458] sm:$0xff] %vm6197, %v6192
  %6338 = vst.msk [vmem:[%s3 + $0x460] sm:$0xff] %vm6197, %v6193
  %6339 = vst.msk [vmem:[%s3 + $0x468] sm:$0xff] %vm6197, %v6194
  %6340 = vst.msk [vmem:[%s3 + $0x470] sm:$0xff] %vm6197, %v6195
  %6341 = vst.msk [vmem:[%s3 + $0x478] sm:$0xff] %vm6197, %v6196
  // Predicated region
  $region14: #{bounded_grid_loc_net_forward.2} parent=0 // pred_check
    _
  $region15: #{bounded_grid_loc_net_forward.2} parent=0 // pred_check_branch
    %6343 = sbr.rel (0) target = $region17
  $region16: #{bounded_grid_loc_net_forward.2} parent=0 // pred_region
    _
  $region17: #{bounded_grid_loc_net_forward.2} parent=0 // pred_fallthru
    _
  // Predicated region
  $region18: #{bounded_grid_loc_net_forward.2} parent=0 // pred_check
    _
  $region19: #{bounded_grid_loc_net_forward.2} parent=0 // pred_check_branch
    %6345 = sbr.rel (0) target = $region21
  $region20: #{bounded_grid_loc_net_forward.2} parent=0 // pred_region
    _
  $region21: #{bounded_grid_loc_net_forward.2} parent=0 // pred_fallthru
    _

// kernel: bounded_grid_loc_net_forward.3
$region0: #{bounded_grid_loc_net_forward.3}
  #allocation0 [shape = 'u32[]', space=smem, size = 0x4, offset = 0x4, fixed_abs, tag = 'smem constant byte address 0x4 - core index']
  #allocation1 [shape = 'u32[144,128]{1,0:T(1,128)}', space=vmem, size = 0x12000, scoped, tag = 'internal scratch']
  %s0 = inlined_call_operand.vmem [shape: f32[4,128,250], index: 0, kind: input, shape index: {}]
  %s1 = inlined_call_operand.vmem [shape: f32[250,20], index: 1, kind: input, shape index: {}]
  %s2 = inlined_call_operand.vmem [shape: f32[1,20], index: 2, kind: input, shape index: {}]
  %s3 = inlined_call_operand.vmem [shape: f32[16,20,50], index: 3, kind: input, shape index: {}]
  %s4 = inlined_call_operand.vmem [shape: f32[1,50], index: 4, kind: input, shape index: {}]
  %s5 = inlined_call_operand.vmem [shape: f32[50,32], index: 5, kind: input, shape index: {}]
  %s6 = inlined_call_operand.vmem [shape: f32[1,32], index: 6, kind: input, shape index: {}]
  %s7 = inlined_call_operand.vmem [shape: f32[8,32], index: 7, kind: output, shape index: {}]
  %s8 = sld [smem:[#allocation0]]
  $region38: #{bounded_grid_loc_net_forward.3} parent=0
    _
  %s10 = ssub.s32 1, %s8
  %s11 = scalar_select 0, %s10, %s8
  // Predicated region
  $region2: #{bounded_grid_loc_net_forward.3} parent=0 // pred_check
    _
  $region3: #{bounded_grid_loc_net_forward.3} parent=0 // pred_check_branch
    %13 = sbr.rel (0) target = $region5
  $region4: #{bounded_grid_loc_net_forward.3} parent=0 // pred_region
    _
  $region5: #{bounded_grid_loc_net_forward.3} parent=0 // pred_fallthru
    _
  // Predicated region
  $region6: #{bounded_grid_loc_net_forward.3} parent=0 // pred_check
    _
  $region7: #{bounded_grid_loc_net_forward.3} parent=0 // pred_check_branch
    %15 = sbr.rel (0) target = $region9
  $region8: #{bounded_grid_loc_net_forward.3} parent=0 // pred_region
    _
  $region9: #{bounded_grid_loc_net_forward.3} parent=0 // pred_fallthru
    _
  // Predicated region
  $region10: #{bounded_grid_loc_net_forward.3} parent=0 // pred_check
    _
  $region11: #{bounded_grid_loc_net_forward.3} parent=0 // pred_check_branch
    %17 = sbr.rel (0) target = $region13
  $region12: #{bounded_grid_loc_net_forward.3} parent=0 // pred_region
    _
  $region13: #{bounded_grid_loc_net_forward.3} parent=0 // pred_fallthru
    _
  // Predicated region
  $region14: #{bounded_grid_loc_net_forward.3} parent=0 // pred_check
    _
  $region15: #{bounded_grid_loc_net_forward.3} parent=0 // pred_check_branch
    %19 = sbr.rel (0) target = $region17
  $region16: #{bounded_grid_loc_net_forward.3} parent=0 // pred_region
    _
  $region17: #{bounded_grid_loc_net_forward.3} parent=0 // pred_fallthru
    _
  // Predicated region
  $region18: #{bounded_grid_loc_net_forward.3} parent=0 // pred_check
    _
  $region19: #{bounded_grid_loc_net_forward.3} parent=0 // pred_check_branch
    %21 = sbr.rel (0) target = $region21
  $region20: #{bounded_grid_loc_net_forward.3} parent=0 // pred_region
    _
  $region21: #{bounded_grid_loc_net_forward.3} parent=0 // pred_fallthru
    _
  // Predicated region
  $region22: #{bounded_grid_loc_net_forward.3} parent=0 // pred_check
    _
  $region23: #{bounded_grid_loc_net_forward.3} parent=0 // pred_check_branch
    %23 = sbr.rel (0) target = $region25
  $region24: #{bounded_grid_loc_net_forward.3} parent=0 // pred_region
    _
  $region25: #{bounded_grid_loc_net_forward.3} parent=0 // pred_fallthru
    _
  // Predicated region
  $region26: #{bounded_grid_loc_net_forward.3} parent=0 // pred_check
    _
  $region27: #{bounded_grid_loc_net_forward.3} parent=0 // pred_check_branch
    %25 = sbr.rel (0) target = $region29
  $region28: #{bounded_grid_loc_net_forward.3} parent=0 // pred_region
    _
  $region29: #{bounded_grid_loc_net_forward.3} parent=0 // pred_fallthru
    _
  %v26 = vld [vmem:[%s1] sm:$0xff]
  %v27 = vld [vmem:[%s1 + $0x8] sm:$0xff]
  %v28 = vld [vmem:[%s1 + $0x10] sm:$0xff]
  %v29 = vld [vmem:[%s1 + $0x18] sm:$0xff]
  %v30 = vld [vmem:[%s1 + $0x20] sm:$0xff]
  %v31 = vld [vmem:[%s1 + $0x28] sm:$0xff]
  %v32 = vld [vmem:[%s1 + $0x30] sm:$0xff]
  %v33 = vld [vmem:[%s1 + $0x38] sm:$0xff]
  %v34 = vld [vmem:[%s1 + $0x40] sm:$0xff]
  %v35 = vld [vmem:[%s1 + $0x48] sm:$0xff]
  %v36 = vld [vmem:[%s1 + $0x50] sm:$0xff]
  %v37 = vld [vmem:[%s1 + $0x58] sm:$0xff]
  %v38 = vld [vmem:[%s1 + $0x60] sm:$0xff]
  %v39 = vld [vmem:[%s1 + $0x68] sm:$0xff]
  %v40 = vld [vmem:[%s1 + $0x70] sm:$0xff]
  %v41 = vld [vmem:[%s1 + $0x78] sm:$0xff]
  %v42 = vld [vmem:[%s1 + $0x80] sm:$0xff]
  %v43 = vld [vmem:[%s1 + $0x88] sm:$0xff]
  %v44 = vld [vmem:[%s1 + $0x90] sm:$0xff]
  %v45 = vld [vmem:[%s1 + $0x98] sm:$0xff]
  %v46 = vld [vmem:[%s1 + $0xa0] sm:$0xff]
  %v47 = vld [vmem:[%s1 + $0xa8] sm:$0xff]
  %v48 = vld [vmem:[%s1 + $0xb0] sm:$0xff]
  %v49 = vld [vmem:[%s1 + $0xb8] sm:$0xff]
  %v50 = vld [vmem:[%s1 + $0xc0] sm:$0xff]
  %v51 = vld [vmem:[%s1 + $0xc8] sm:$0xff]
  %v52 = vld [vmem:[%s1 + $0xd0] sm:$0xff]
  %v53 = vld [vmem:[%s1 + $0xd8] sm:$0xff]
  %v54 = vld [vmem:[%s1 + $0xe0] sm:$0xff]
  %v55 = vld [vmem:[%s1 + $0xe8] sm:$0xff]
  %v56 = vld [vmem:[%s1 + $0xf0] sm:$0xff]
  %v57 = vld [vmem:[%s1 + $0xf8] sm:$0x3]
  %v58 = vld [vmem:[%s0] sm:$0xff]
  %v59 = vld [vmem:[%s0 + $0x8] sm:$0xff]
  %v60 = vld [vmem:[%s0 + $0x10] sm:$0xff]
  %v61 = vld [vmem:[%s0 + $0x18] sm:$0xff]
  %v62 = vld [vmem:[%s0 + $0x20] sm:$0xff]
  %v63 = vld [vmem:[%s0 + $0x28] sm:$0xff]
  %v64 = vld [vmem:[%s0 + $0x30] sm:$0xff]
  %v65 = vld [vmem:[%s0 + $0x38] sm:$0xff]
  %v66 = vld [vmem:[%s0 + $0x40] sm:$0xff]
  %v67 = vld [vmem:[%s0 + $0x48] sm:$0xff]
  %v68 = vld [vmem:[%s0 + $0x50] sm:$0xff]
  %v69 = vld [vmem:[%s0 + $0x58] sm:$0xff]
  %v70 = vld [vmem:[%s0 + $0x60] sm:$0xff]
  %v71 = vld [vmem:[%s0 + $0x68] sm:$0xff]
  %v72 = vld [vmem:[%s0 + $0x70] sm:$0xff]
  %v73 = vld [vmem:[%s0 + $0x78] sm:$0xff]
  %v74 = vld [vmem:[%s0 + $0x80] sm:$0xff]
  %v75 = vld [vmem:[%s0 + $0x88] sm:$0xff]
  %v76 = vld [vmem:[%s0 + $0x90] sm:$0xff]
  %v77 = vld [vmem:[%s0 + $0x98] sm:$0xff]
  %v78 = vld [vmem:[%s0 + $0xa0] sm:$0xff]
  %v79 = vld [vmem:[%s0 + $0xa8] sm:$0xff]
  %v80 = vld [vmem:[%s0 + $0xb0] sm:$0xff]
  %v81 = vld [vmem:[%s0 + $0xb8] sm:$0xff]
  %v82 = vld [vmem:[%s0 + $0xc0] sm:$0xff]
  %v83 = vld [vmem:[%s0 + $0xc8] sm:$0xff]
  %v84 = vld [vmem:[%s0 + $0xd0] sm:$0xff]
  %v85 = vld [vmem:[%s0 + $0xd8] sm:$0xff]
  %v86 = vld [vmem:[%s0 + $0xe0] sm:$0xff]
  %v87 = vld [vmem:[%s0 + $0xe8] sm:$0xff]
  %v88 = vld [vmem:[%s0 + $0xf0] sm:$0xff]
  %v89 = vld [vmem:[%s0 + $0xf8] sm:$0xff]
  %vm90 = vcmask 998400
  %v92 = vsel %vm90, %v59, 0
  %v95 = vsel %vm90, %v61, 0
  %v98 = vsel %vm90, %v63, 0
  %v101 = vsel %vm90, %v65, 0
  %v104 = vsel %vm90, %v67, 0
  %v107 = vsel %vm90, %v69, 0
  %v110 = vsel %vm90, %v71, 0
  %v113 = vsel %vm90, %v73, 0
  %v116 = vsel %vm90, %v75, 0
  %v119 = vsel %vm90, %v77, 0
  %v122 = vsel %vm90, %v79, 0
  %v125 = vsel %vm90, %v81, 0
  %v128 = vsel %vm90, %v83, 0
  %v131 = vsel %vm90, %v85, 0
  %v134 = vsel %vm90, %v87, 0
  %v137 = vsel %vm90, %v89, 0
  %vm139 = vcmask 1041408
  %v141 = vsel %vm139, %v57, 0
  %143 = vmatprep.subr.mxu0 0.0
  %144 = vmatpush1.msra.mxu0 %v41
  %145 = vmatprep.subr.mxu0 0.0
  %146 = vmatpush1.msra.mxu0 %v40
  %147 = vmatprep.subr.mxu0 0.0
  %148 = vmatpush1.msra.mxu0 %v39
  %149 = vmatprep.subr.mxu0 0.0
  %150 = vmatpush1.msra.mxu0 %v38
  %151 = vmatprep.subr.mxu0 0.0
  %152 = vmatpush1.msra.mxu0 %v37
  %153 = vmatprep.subr.mxu0 0.0
  %154 = vmatpush1.msra.mxu0 %v36
  %155 = vmatprep.subr.mxu0 0.0
  %156 = vmatpush1.msra.mxu0 %v35
  %157 = vmatprep.subr.mxu0 0.0
  %158 = vmatpush1.msra.mxu0 %v34
  %159 = vmatprep.subr.mxu0 0.0
  %160 = vmatpush1.msra.mxu0 %v33
  %161 = vmatprep.subr.mxu0 0.0
  %162 = vmatpush1.msra.mxu0 %v32
  %163 = vmatprep.subr.mxu0 0.0
  %164 = vmatpush1.msra.mxu0 %v31
  %165 = vmatprep.subr.mxu0 0.0
  %166 = vmatpush1.msra.mxu0 %v30
  %167 = vmatprep.subr.mxu0 0.0
  %168 = vmatpush1.msra.mxu0 %v29
  %169 = vmatprep.subr.mxu0 0.0
  %170 = vmatpush1.msra.mxu0 %v28
  %171 = vmatprep.subr.mxu0 0.0
  %172 = vmatpush1.msra.mxu0 %v27
  %173 = vmatprep.subr.mxu0 0.0
  %174 = vmatpush1.msra.mxu0 %v26
  %175 = vmatprep.subr.mxu0 0.0
  %176 = vmatpush2.msra.mxu0 %v141
  %177 = vmatprep.subr.mxu0 0.0
  %178 = vmatpush2.msra.mxu0 %v56
  %179 = vmatprep.subr.mxu0 0.0
  %180 = vmatpush2.msra.mxu0 %v55
  %181 = vmatprep.subr.mxu0 0.0
  %182 = vmatpush2.msra.mxu0 %v54
  %183 = vmatprep.subr.mxu0 0.0
  %184 = vmatpush2.msra.mxu0 %v53
  %185 = vmatprep.subr.mxu0 0.0
  %186 = vmatpush2.msra.mxu0 %v52
  %187 = vmatprep.subr.mxu0 0.0
  %188 = vmatpush2.msra.mxu0 %v51
  %189 = vmatprep.subr.mxu0 0.0
  %190 = vmatpush2.msra.mxu0 %v50
  %191 = vmatprep.subr.mxu0 0.0
  %192 = vmatpush2.msra.mxu0 %v49
  %193 = vmatprep.subr.mxu0 0.0
  %194 = vmatpush2.msra.mxu0 %v48
  %195 = vmatprep.subr.mxu0 0.0
  %196 = vmatpush2.msra.mxu0 %v47
  %197 = vmatprep.subr.mxu0 0.0
  %198 = vmatpush2.msra.mxu0 %v46
  %199 = vmatprep.subr.mxu0 0.0
  %200 = vmatpush2.msra.mxu0 %v45
  %201 = vmatprep.subr.mxu0 0.0
  %202 = vmatpush2.msra.mxu0 %v44
  %203 = vmatprep.subr.mxu0 0.0
  %204 = vmatpush2.msra.mxu0 %v43
  %205 = vmatprep.subr.mxu0 0.0
  %206 = vmatpush2.msra.mxu0 %v42
  %207 = vmatprep.mubr.f32.mxu0 %v92
  %208 = vmatmul.mubr.f32.gmra.mxu0 %v58
  %v209 = vpop.f32.mrf.mxu0
  %v210 = vadd.f32 0.0, %v209
  %v211 = vpop.f32.mrf.mxu0
  %212 = vmatprep.mubr.f32.mxu0 %v95
  %213 = vmatmul.mubr.f32.gmra.mxu0 %v60
  %v214 = vpop.f32.mrf.mxu0
  %v215 = vadd.f32 0.0, %v214
  %v216 = vpop.f32.mrf.mxu0
  %217 = vmatprep.mubr.f32.mxu0 %v98
  %218 = vmatmul.mubr.f32.gmra.mxu0 %v62
  %v219 = vpop.f32.mrf.mxu0
  %v220 = vadd.f32 0.0, %v219
  %v221 = vpop.f32.mrf.mxu0
  %222 = vmatprep.mubr.f32.mxu0 %v101
  %223 = vmatmul.mubr.f32.gmra.mxu0 %v64
  %v224 = vpop.f32.mrf.mxu0
  %v225 = vadd.f32 0.0, %v224
  %v226 = vpop.f32.mrf.mxu0
  %227 = vmatprep.mubr.f32.mxu0 %v104
  %228 = vmatmul.mubr.f32.gmra.mxu0 %v66
  %v229 = vpop.f32.mrf.mxu0
  %v230 = vadd.f32 0.0, %v229
  %v231 = vpop.f32.mrf.mxu0
  %232 = vmatprep.mubr.f32.mxu0 %v107
  %233 = vmatmul.mubr.f32.gmra.mxu0 %v68
  %v234 = vpop.f32.mrf.mxu0
  %v235 = vadd.f32 0.0, %v234
  %v236 = vpop.f32.mrf.mxu0
  %237 = vmatprep.mubr.f32.mxu0 %v110
  %238 = vmatmul.mubr.f32.gmra.mxu0 %v70
  %v239 = vpop.f32.mrf.mxu0
  %v240 = vadd.f32 0.0, %v239
  %v241 = vpop.f32.mrf.mxu0
  %242 = vmatprep.mubr.f32.mxu0 %v113
  %243 = vmatmul.mubr.f32.gmra.mxu0 %v72
  %v244 = vpop.f32.mrf.mxu0
  %v245 = vadd.f32 0.0, %v244
  %v246 = vpop.f32.mrf.mxu0
  %247 = vmatprep.mubr.f32.mxu0 %v116
  %248 = vmatmul.mubr.f32.gmra.mxu0 %v74
  %v249 = vpop.f32.mrf.mxu0
  %v250 = vadd.f32 0.0, %v249
  %v251 = vpop.f32.mrf.mxu0
  %252 = vmatprep.mubr.f32.mxu0 %v119
  %253 = vmatmul.mubr.f32.gmra.mxu0 %v76
  %v254 = vpop.f32.mrf.mxu0
  %v255 = vadd.f32 0.0, %v254
  %v256 = vpop.f32.mrf.mxu0
  %257 = vmatprep.mubr.f32.mxu0 %v122
  %258 = vmatmul.mubr.f32.gmra.mxu0 %v78
  %v259 = vpop.f32.mrf.mxu0
  %v260 = vadd.f32 0.0, %v259
  %v261 = vpop.f32.mrf.mxu0
  %262 = vmatprep.mubr.f32.mxu0 %v125
  %263 = vmatmul.mubr.f32.gmra.mxu0 %v80
  %v264 = vpop.f32.mrf.mxu0
  %v265 = vadd.f32 0.0, %v264
  %v266 = vpop.f32.mrf.mxu0
  %267 = vmatprep.mubr.f32.mxu0 %v128
  %268 = vmatmul.mubr.f32.gmra.mxu0 %v82
  %v269 = vpop.f32.mrf.mxu0
  %v270 = vadd.f32 0.0, %v269
  %v271 = vpop.f32.mrf.mxu0
  %272 = vmatprep.mubr.f32.mxu0 %v131
  %273 = vmatmul.mubr.f32.gmra.mxu0 %v84
  %v274 = vpop.f32.mrf.mxu0
  %v275 = vadd.f32 0.0, %v274
  %v276 = vpop.f32.mrf.mxu0
  %277 = vmatprep.mubr.f32.mxu0 %v134
  %278 = vmatmul.mubr.f32.gmra.mxu0 %v86
  %v279 = vpop.f32.mrf.mxu0
  %v280 = vadd.f32 0.0, %v279
  %v281 = vpop.f32.mrf.mxu0
  %282 = vmatprep.mubr.f32.mxu0 %v137
  %283 = vmatmul.mubr.f32.gmra.mxu0 %v88
  %v284 = vpop.f32.mrf.mxu0
  %v285 = vadd.f32 0.0, %v284
  %v286 = vpop.f32.mrf.mxu0
  %287 = vdwg.mxu0
  %s288 = scalar_lea.vmem %s0, 256
  %v289 = vld [vmem:[%s288] sm:$0xff]
  %v290 = vld [vmem:[%s288 + $0x8] sm:$0xff]
  %v291 = vld [vmem:[%s288 + $0x10] sm:$0xff]
  %v292 = vld [vmem:[%s288 + $0x18] sm:$0xff]
  %v293 = vld [vmem:[%s288 + $0x20] sm:$0xff]
  %v294 = vld [vmem:[%s288 + $0x28] sm:$0xff]
  %v295 = vld [vmem:[%s288 + $0x30] sm:$0xff]
  %v296 = vld [vmem:[%s288 + $0x38] sm:$0xff]
  %v297 = vld [vmem:[%s288 + $0x40] sm:$0xff]
  %v298 = vld [vmem:[%s288 + $0x48] sm:$0xff]
  %v299 = vld [vmem:[%s288 + $0x50] sm:$0xff]
  %v300 = vld [vmem:[%s288 + $0x58] sm:$0xff]
  %v301 = vld [vmem:[%s288 + $0x60] sm:$0xff]
  %v302 = vld [vmem:[%s288 + $0x68] sm:$0xff]
  %v303 = vld [vmem:[%s288 + $0x70] sm:$0xff]
  %v304 = vld [vmem:[%s288 + $0x78] sm:$0xff]
  %v305 = vld [vmem:[%s288 + $0x80] sm:$0xff]
  %v306 = vld [vmem:[%s288 + $0x88] sm:$0xff]
  %v307 = vld [vmem:[%s288 + $0x90] sm:$0xff]
  %v308 = vld [vmem:[%s288 + $0x98] sm:$0xff]
  %v309 = vld [vmem:[%s288 + $0xa0] sm:$0xff]
  %v310 = vld [vmem:[%s288 + $0xa8] sm:$0xff]
  %v311 = vld [vmem:[%s288 + $0xb0] sm:$0xff]
  %v312 = vld [vmem:[%s288 + $0xb8] sm:$0xff]
  %v313 = vld [vmem:[%s288 + $0xc0] sm:$0xff]
  %v314 = vld [vmem:[%s288 + $0xc8] sm:$0xff]
  %v315 = vld [vmem:[%s288 + $0xd0] sm:$0xff]
  %v316 = vld [vmem:[%s288 + $0xd8] sm:$0xff]
  %v317 = vld [vmem:[%s288 + $0xe0] sm:$0xff]
  %v318 = vld [vmem:[%s288 + $0xe8] sm:$0xff]
  %v319 = vld [vmem:[%s288 + $0xf0] sm:$0xff]
  %v320 = vld [vmem:[%s288 + $0xf8] sm:$0xff]
  %v322 = vsel %vm90, %v290, 0
  %v325 = vsel %vm90, %v292, 0
  %v328 = vsel %vm90, %v294, 0
  %v331 = vsel %vm90, %v296, 0
  %v334 = vsel %vm90, %v298, 0
  %v337 = vsel %vm90, %v300, 0
  %v340 = vsel %vm90, %v302, 0
  %v343 = vsel %vm90, %v304, 0
  %v346 = vsel %vm90, %v306, 0
  %v349 = vsel %vm90, %v308, 0
  %v352 = vsel %vm90, %v310, 0
  %v355 = vsel %vm90, %v312, 0
  %v358 = vsel %vm90, %v314, 0
  %v361 = vsel %vm90, %v316, 0
  %v364 = vsel %vm90, %v318, 0
  %v367 = vsel %vm90, %v320, 0
  %369 = vmatprep.subr.mxu0 0.0
  %370 = vmatpush1.msra.mxu0 %v41
  %371 = vmatprep.subr.mxu0 0.0
  %372 = vmatpush1.msra.mxu0 %v40
  %373 = vmatprep.subr.mxu0 0.0
  %374 = vmatpush1.msra.mxu0 %v39
  %375 = vmatprep.subr.mxu0 0.0
  %376 = vmatpush1.msra.mxu0 %v38
  %377 = vmatprep.subr.mxu0 0.0
  %378 = vmatpush1.msra.mxu0 %v37
  %379 = vmatprep.subr.mxu0 0.0
  %380 = vmatpush1.msra.mxu0 %v36
  %381 = vmatprep.subr.mxu0 0.0
  %382 = vmatpush1.msra.mxu0 %v35
  %383 = vmatprep.subr.mxu0 0.0
  %384 = vmatpush1.msra.mxu0 %v34
  %385 = vmatprep.subr.mxu0 0.0
  %386 = vmatpush1.msra.mxu0 %v33
  %387 = vmatprep.subr.mxu0 0.0
  %388 = vmatpush1.msra.mxu0 %v32
  %389 = vmatprep.subr.mxu0 0.0
  %390 = vmatpush1.msra.mxu0 %v31
  %391 = vmatprep.subr.mxu0 0.0
  %392 = vmatpush1.msra.mxu0 %v30
  %393 = vmatprep.subr.mxu0 0.0
  %394 = vmatpush1.msra.mxu0 %v29
  %395 = vmatprep.subr.mxu0 0.0
  %396 = vmatpush1.msra.mxu0 %v28
  %397 = vmatprep.subr.mxu0 0.0
  %398 = vmatpush1.msra.mxu0 %v27
  %399 = vmatprep.subr.mxu0 0.0
  %400 = vmatpush1.msra.mxu0 %v26
  %401 = vmatprep.subr.mxu0 0.0
  %402 = vmatpush2.msra.mxu0 %v141
  %403 = vmatprep.subr.mxu0 0.0
  %404 = vmatpush2.msra.mxu0 %v56
  %405 = vmatprep.subr.mxu0 0.0
  %406 = vmatpush2.msra.mxu0 %v55
  %407 = vmatprep.subr.mxu0 0.0
  %408 = vmatpush2.msra.mxu0 %v54
  %409 = vmatprep.subr.mxu0 0.0
  %410 = vmatpush2.msra.mxu0 %v53
  %411 = vmatprep.subr.mxu0 0.0
  %412 = vmatpush2.msra.mxu0 %v52
  %413 = vmatprep.subr.mxu0 0.0
  %414 = vmatpush2.msra.mxu0 %v51
  %415 = vmatprep.subr.mxu0 0.0
  %416 = vmatpush2.msra.mxu0 %v50
  %417 = vmatprep.subr.mxu0 0.0
  %418 = vmatpush2.msra.mxu0 %v49
  %419 = vmatprep.subr.mxu0 0.0
  %420 = vmatpush2.msra.mxu0 %v48
  %421 = vmatprep.subr.mxu0 0.0
  %422 = vmatpush2.msra.mxu0 %v47
  %423 = vmatprep.subr.mxu0 0.0
  %424 = vmatpush2.msra.mxu0 %v46
  %425 = vmatprep.subr.mxu0 0.0
  %426 = vmatpush2.msra.mxu0 %v45
  %427 = vmatprep.subr.mxu0 0.0
  %428 = vmatpush2.msra.mxu0 %v44
  %429 = vmatprep.subr.mxu0 0.0
  %430 = vmatpush2.msra.mxu0 %v43
  %431 = vmatprep.subr.mxu0 0.0
  %432 = vmatpush2.msra.mxu0 %v42
  %433 = vmatprep.mubr.f32.mxu0 %v322
  %434 = vmatmul.mubr.f32.gmra.mxu0 %v289
  %v435 = vpop.f32.mrf.mxu0
  %v436 = vadd.f32 0.0, %v435
  %v437 = vpop.f32.mrf.mxu0
  %438 = vmatprep.mubr.f32.mxu0 %v325
  %439 = vmatmul.mubr.f32.gmra.mxu0 %v291
  %v440 = vpop.f32.mrf.mxu0
  %v441 = vadd.f32 0.0, %v440
  %v442 = vpop.f32.mrf.mxu0
  %443 = vmatprep.mubr.f32.mxu0 %v328
  %444 = vmatmul.mubr.f32.gmra.mxu0 %v293
  %v445 = vpop.f32.mrf.mxu0
  %v446 = vadd.f32 0.0, %v445
  %v447 = vpop.f32.mrf.mxu0
  %448 = vmatprep.mubr.f32.mxu0 %v331
  %449 = vmatmul.mubr.f32.gmra.mxu0 %v295
  %v450 = vpop.f32.mrf.mxu0
  %v451 = vadd.f32 0.0, %v450
  %v452 = vpop.f32.mrf.mxu0
  %453 = vmatprep.mubr.f32.mxu0 %v334
  %454 = vmatmul.mubr.f32.gmra.mxu0 %v297
  %v455 = vpop.f32.mrf.mxu0
  %v456 = vadd.f32 0.0, %v455
  %v457 = vpop.f32.mrf.mxu0
  %458 = vmatprep.mubr.f32.mxu0 %v337
  %459 = vmatmul.mubr.f32.gmra.mxu0 %v299
  %v460 = vpop.f32.mrf.mxu0
  %v461 = vadd.f32 0.0, %v460
  %v462 = vpop.f32.mrf.mxu0
  %463 = vmatprep.mubr.f32.mxu0 %v340
  %464 = vmatmul.mubr.f32.gmra.mxu0 %v301
  %v465 = vpop.f32.mrf.mxu0
  %v466 = vadd.f32 0.0, %v465
  %v467 = vpop.f32.mrf.mxu0
  %468 = vmatprep.mubr.f32.mxu0 %v343
  %469 = vmatmul.mubr.f32.gmra.mxu0 %v303
  %v470 = vpop.f32.mrf.mxu0
  %v471 = vadd.f32 0.0, %v470
  %v472 = vpop.f32.mrf.mxu0
  %473 = vmatprep.mubr.f32.mxu0 %v346
  %474 = vmatmul.mubr.f32.gmra.mxu0 %v305
  %v475 = vpop.f32.mrf.mxu0
  %v476 = vadd.f32 0.0, %v475
  %v477 = vpop.f32.mrf.mxu0
  %478 = vmatprep.mubr.f32.mxu0 %v349
  %479 = vmatmul.mubr.f32.gmra.mxu0 %v307
  %v480 = vpop.f32.mrf.mxu0
  %v481 = vadd.f32 0.0, %v480
  %v482 = vpop.f32.mrf.mxu0
  %483 = vmatprep.mubr.f32.mxu0 %v352
  %484 = vmatmul.mubr.f32.gmra.mxu0 %v309
  %v485 = vpop.f32.mrf.mxu0
  %v486 = vadd.f32 0.0, %v485
  %v487 = vpop.f32.mrf.mxu0
  %488 = vmatprep.mubr.f32.mxu0 %v355
  %489 = vmatmul.mubr.f32.gmra.mxu0 %v311
  %v490 = vpop.f32.mrf.mxu0
  %v491 = vadd.f32 0.0, %v490
  %v492 = vpop.f32.mrf.mxu0
  %493 = vmatprep.mubr.f32.mxu0 %v358
  %494 = vmatmul.mubr.f32.gmra.mxu0 %v313
  %v495 = vpop.f32.mrf.mxu0
  %v496 = vadd.f32 0.0, %v495
  %v497 = vpop.f32.mrf.mxu0
  %498 = vmatprep.mubr.f32.mxu0 %v361
  %499 = vmatmul.mubr.f32.gmra.mxu0 %v315
  %v500 = vpop.f32.mrf.mxu0
  %v501 = vadd.f32 0.0, %v500
  %v502 = vpop.f32.mrf.mxu0
  %503 = vmatprep.mubr.f32.mxu0 %v364
  %504 = vmatmul.mubr.f32.gmra.mxu0 %v317
  %v505 = vpop.f32.mrf.mxu0
  %v506 = vadd.f32 0.0, %v505
  %v507 = vpop.f32.mrf.mxu0
  %508 = vmatprep.mubr.f32.mxu0 %v367
  %509 = vmatmul.mubr.f32.gmra.mxu0 %v319
  %v510 = vpop.f32.mrf.mxu0
  %v511 = vadd.f32 0.0, %v510
  %v512 = vpop.f32.mrf.mxu0
  %513 = vdwg.mxu0
  %v514 = vmax.f32 %v210, %v436
  %v515 = vmax.f32 %v215, %v441
  %v516 = vmax.f32 %v220, %v446
  %v517 = vmax.f32 %v225, %v451
  %v518 = vmax.f32 %v230, %v456
  %v519 = vmax.f32 %v235, %v461
  %v520 = vmax.f32 %v240, %v466
  %v521 = vmax.f32 %v245, %v471
  %v522 = vmax.f32 %v250, %v476
  %v523 = vmax.f32 %v255, %v481
  %v524 = vmax.f32 %v260, %v486
  %v525 = vmax.f32 %v265, %v491
  %v526 = vmax.f32 %v270, %v496
  %v527 = vmax.f32 %v275, %v501
  %v528 = vmax.f32 %v280, %v506
  %v529 = vmax.f32 %v285, %v511
  %s530 = scalar_lea.vmem %s0, 512
  %v531 = vld [vmem:[%s530] sm:$0xff]
  %v532 = vld [vmem:[%s530 + $0x8] sm:$0xff]
  %v533 = vld [vmem:[%s530 + $0x10] sm:$0xff]
  %v534 = vld [vmem:[%s530 + $0x18] sm:$0xff]
  %v535 = vld [vmem:[%s530 + $0x20] sm:$0xff]
  %v536 = vld [vmem:[%s530 + $0x28] sm:$0xff]
  %v537 = vld [vmem:[%s530 + $0x30] sm:$0xff]
  %v538 = vld [vmem:[%s530 + $0x38] sm:$0xff]
  %v539 = vld [vmem:[%s530 + $0x40] sm:$0xff]
  %v540 = vld [vmem:[%s530 + $0x48] sm:$0xff]
  %v541 = vld [vmem:[%s530 + $0x50] sm:$0xff]
  %v542 = vld [vmem:[%s530 + $0x58] sm:$0xff]
  %v543 = vld [vmem:[%s530 + $0x60] sm:$0xff]
  %v544 = vld [vmem:[%s530 + $0x68] sm:$0xff]
  %v545 = vld [vmem:[%s530 + $0x70] sm:$0xff]
  %v546 = vld [vmem:[%s530 + $0x78] sm:$0xff]
  %v547 = vld [vmem:[%s530 + $0x80] sm:$0xff]
  %v548 = vld [vmem:[%s530 + $0x88] sm:$0xff]
  %v549 = vld [vmem:[%s530 + $0x90] sm:$0xff]
  %v550 = vld [vmem:[%s530 + $0x98] sm:$0xff]
  %v551 = vld [vmem:[%s530 + $0xa0] sm:$0xff]
  %v552 = vld [vmem:[%s530 + $0xa8] sm:$0xff]
  %v553 = vld [vmem:[%s530 + $0xb0] sm:$0xff]
  %v554 = vld [vmem:[%s530 + $0xb8] sm:$0xff]
  %v555 = vld [vmem:[%s530 + $0xc0] sm:$0xff]
  %v556 = vld [vmem:[%s530 + $0xc8] sm:$0xff]
  %v557 = vld [vmem:[%s530 + $0xd0] sm:$0xff]
  %v558 = vld [vmem:[%s530 + $0xd8] sm:$0xff]
  %v559 = vld [vmem:[%s530 + $0xe0] sm:$0xff]
  %v560 = vld [vmem:[%s530 + $0xe8] sm:$0xff]
  %v561 = vld [vmem:[%s530 + $0xf0] sm:$0xff]
  %v562 = vld [vmem:[%s530 + $0xf8] sm:$0xff]
  %v564 = vsel %vm90, %v532, 0
  %v567 = vsel %vm90, %v534, 0
  %v570 = vsel %vm90, %v536, 0
  %v573 = vsel %vm90, %v538, 0
  %v576 = vsel %vm90, %v540, 0
  %v579 = vsel %vm90, %v542, 0
  %v582 = vsel %vm90, %v544, 0
  %v585 = vsel %vm90, %v546, 0
  %v588 = vsel %vm90, %v548, 0
  %v591 = vsel %vm90, %v550, 0
  %v594 = vsel %vm90, %v552, 0
  %v597 = vsel %vm90, %v554, 0
  %v600 = vsel %vm90, %v556, 0
  %v603 = vsel %vm90, %v558, 0
  %v606 = vsel %vm90, %v560, 0
  %v609 = vsel %vm90, %v562, 0
  %611 = vmatprep.subr.mxu0 0.0
  %612 = vmatpush1.msra.mxu0 %v41
  %613 = vmatprep.subr.mxu0 0.0
  %614 = vmatpush1.msra.mxu0 %v40
  %615 = vmatprep.subr.mxu0 0.0
  %616 = vmatpush1.msra.mxu0 %v39
  %617 = vmatprep.subr.mxu0 0.0
  %618 = vmatpush1.msra.mxu0 %v38
  %619 = vmatprep.subr.mxu0 0.0
  %620 = vmatpush1.msra.mxu0 %v37
  %621 = vmatprep.subr.mxu0 0.0
  %622 = vmatpush1.msra.mxu0 %v36
  %623 = vmatprep.subr.mxu0 0.0
  %624 = vmatpush1.msra.mxu0 %v35
  %625 = vmatprep.subr.mxu0 0.0
  %626 = vmatpush1.msra.mxu0 %v34
  %627 = vmatprep.subr.mxu0 0.0
  %628 = vmatpush1.msra.mxu0 %v33
  %629 = vmatprep.subr.mxu0 0.0
  %630 = vmatpush1.msra.mxu0 %v32
  %631 = vmatprep.subr.mxu0 0.0
  %632 = vmatpush1.msra.mxu0 %v31
  %633 = vmatprep.subr.mxu0 0.0
  %634 = vmatpush1.msra.mxu0 %v30
  %635 = vmatprep.subr.mxu0 0.0
  %636 = vmatpush1.msra.mxu0 %v29
  %637 = vmatprep.subr.mxu0 0.0
  %638 = vmatpush1.msra.mxu0 %v28
  %639 = vmatprep.subr.mxu0 0.0
  %640 = vmatpush1.msra.mxu0 %v27
  %641 = vmatprep.subr.mxu0 0.0
  %642 = vmatpush1.msra.mxu0 %v26
  %643 = vmatprep.subr.mxu0 0.0
  %644 = vmatpush2.msra.mxu0 %v141
  %645 = vmatprep.subr.mxu0 0.0
  %646 = vmatpush2.msra.mxu0 %v56
  %647 = vmatprep.subr.mxu0 0.0
  %648 = vmatpush2.msra.mxu0 %v55
  %649 = vmatprep.subr.mxu0 0.0
  %650 = vmatpush2.msra.mxu0 %v54
  %651 = vmatprep.subr.mxu0 0.0
  %652 = vmatpush2.msra.mxu0 %v53
  %653 = vmatprep.subr.mxu0 0.0
  %654 = vmatpush2.msra.mxu0 %v52
  %655 = vmatprep.subr.mxu0 0.0
  %656 = vmatpush2.msra.mxu0 %v51
  %657 = vmatprep.subr.mxu0 0.0
  %658 = vmatpush2.msra.mxu0 %v50
  %659 = vmatprep.subr.mxu0 0.0
  %660 = vmatpush2.msra.mxu0 %v49
  %661 = vmatprep.subr.mxu0 0.0
  %662 = vmatpush2.msra.mxu0 %v48
  %663 = vmatprep.subr.mxu0 0.0
  %664 = vmatpush2.msra.mxu0 %v47
  %665 = vmatprep.subr.mxu0 0.0
  %666 = vmatpush2.msra.mxu0 %v46
  %667 = vmatprep.subr.mxu0 0.0
  %668 = vmatpush2.msra.mxu0 %v45
  %669 = vmatprep.subr.mxu0 0.0
  %670 = vmatpush2.msra.mxu0 %v44
  %671 = vmatprep.subr.mxu0 0.0
  %672 = vmatpush2.msra.mxu0 %v43
  %673 = vmatprep.subr.mxu0 0.0
  %674 = vmatpush2.msra.mxu0 %v42
  %675 = vmatprep.mubr.f32.mxu0 %v564
  %676 = vmatmul.mubr.f32.gmra.mxu0 %v531
  %v677 = vpop.f32.mrf.mxu0
  %v678 = vadd.f32 0.0, %v677
  %v679 = vpop.f32.mrf.mxu0
  %680 = vmatprep.mubr.f32.mxu0 %v567
  %681 = vmatmul.mubr.f32.gmra.mxu0 %v533
  %v682 = vpop.f32.mrf.mxu0
  %v683 = vadd.f32 0.0, %v682
  %v684 = vpop.f32.mrf.mxu0
  %685 = vmatprep.mubr.f32.mxu0 %v570
  %686 = vmatmul.mubr.f32.gmra.mxu0 %v535
  %v687 = vpop.f32.mrf.mxu0
  %v688 = vadd.f32 0.0, %v687
  %v689 = vpop.f32.mrf.mxu0
  %690 = vmatprep.mubr.f32.mxu0 %v573
  %691 = vmatmul.mubr.f32.gmra.mxu0 %v537
  %v692 = vpop.f32.mrf.mxu0
  %v693 = vadd.f32 0.0, %v692
  %v694 = vpop.f32.mrf.mxu0
  %695 = vmatprep.mubr.f32.mxu0 %v576
  %696 = vmatmul.mubr.f32.gmra.mxu0 %v539
  %v697 = vpop.f32.mrf.mxu0
  %v698 = vadd.f32 0.0, %v697
  %v699 = vpop.f32.mrf.mxu0
  %700 = vmatprep.mubr.f32.mxu0 %v579
  %701 = vmatmul.mubr.f32.gmra.mxu0 %v541
  %v702 = vpop.f32.mrf.mxu0
  %v703 = vadd.f32 0.0, %v702
  %v704 = vpop.f32.mrf.mxu0
  %705 = vmatprep.mubr.f32.mxu0 %v582
  %706 = vmatmul.mubr.f32.gmra.mxu0 %v543
  %v707 = vpop.f32.mrf.mxu0
  %v708 = vadd.f32 0.0, %v707
  %v709 = vpop.f32.mrf.mxu0
  %710 = vmatprep.mubr.f32.mxu0 %v585
  %711 = vmatmul.mubr.f32.gmra.mxu0 %v545
  %v712 = vpop.f32.mrf.mxu0
  %v713 = vadd.f32 0.0, %v712
  %v714 = vpop.f32.mrf.mxu0
  %715 = vmatprep.mubr.f32.mxu0 %v588
  %716 = vmatmul.mubr.f32.gmra.mxu0 %v547
  %v717 = vpop.f32.mrf.mxu0
  %v718 = vadd.f32 0.0, %v717
  %v719 = vpop.f32.mrf.mxu0
  %720 = vmatprep.mubr.f32.mxu0 %v591
  %721 = vmatmul.mubr.f32.gmra.mxu0 %v549
  %v722 = vpop.f32.mrf.mxu0
  %v723 = vadd.f32 0.0, %v722
  %v724 = vpop.f32.mrf.mxu0
  %725 = vmatprep.mubr.f32.mxu0 %v594
  %726 = vmatmul.mubr.f32.gmra.mxu0 %v551
  %v727 = vpop.f32.mrf.mxu0
  %v728 = vadd.f32 0.0, %v727
  %v729 = vpop.f32.mrf.mxu0
  %730 = vmatprep.mubr.f32.mxu0 %v597
  %731 = vmatmul.mubr.f32.gmra.mxu0 %v553
  %v732 = vpop.f32.mrf.mxu0
  %v733 = vadd.f32 0.0, %v732
  %v734 = vpop.f32.mrf.mxu0
  %735 = vmatprep.mubr.f32.mxu0 %v600
  %736 = vmatmul.mubr.f32.gmra.mxu0 %v555
  %v737 = vpop.f32.mrf.mxu0
  %v738 = vadd.f32 0.0, %v737
  %v739 = vpop.f32.mrf.mxu0
  %740 = vmatprep.mubr.f32.mxu0 %v603
  %741 = vmatmul.mubr.f32.gmra.mxu0 %v557
  %v742 = vpop.f32.mrf.mxu0
  %v743 = vadd.f32 0.0, %v742
  %v744 = vpop.f32.mrf.mxu0
  %745 = vmatprep.mubr.f32.mxu0 %v606
  %746 = vmatmul.mubr.f32.gmra.mxu0 %v559
  %v747 = vpop.f32.mrf.mxu0
  %v748 = vadd.f32 0.0, %v747
  %v749 = vpop.f32.mrf.mxu0
  %750 = vmatprep.mubr.f32.mxu0 %v609
  %751 = vmatmul.mubr.f32.gmra.mxu0 %v561
  %v752 = vpop.f32.mrf.mxu0
  %v753 = vadd.f32 0.0, %v752
  %v754 = vpop.f32.mrf.mxu0
  %755 = vdwg.mxu0
  %v756 = vmax.f32 %v514, %v678
  %v757 = vmax.f32 %v515, %v683
  %v758 = vmax.f32 %v516, %v688
  %v759 = vmax.f32 %v517, %v693
  %v760 = vmax.f32 %v518, %v698
  %v761 = vmax.f32 %v519, %v703
  %v762 = vmax.f32 %v520, %v708
  %v763 = vmax.f32 %v521, %v713
  %v764 = vmax.f32 %v522, %v718
  %v765 = vmax.f32 %v523, %v723
  %v766 = vmax.f32 %v524, %v728
  %v767 = vmax.f32 %v525, %v733
  %v768 = vmax.f32 %v526, %v738
  %v769 = vmax.f32 %v527, %v743
  %v770 = vmax.f32 %v528, %v748
  %v771 = vmax.f32 %v529, %v753
  %s772 = scalar_lea.vmem %s0, 768
  %v773 = vld [vmem:[%s772] sm:$0xff]
  %v774 = vld [vmem:[%s772 + $0x8] sm:$0xff]
  %v775 = vld [vmem:[%s772 + $0x10] sm:$0xff]
  %v776 = vld [vmem:[%s772 + $0x18] sm:$0xff]
  %v777 = vld [vmem:[%s772 + $0x20] sm:$0xff]
  %v778 = vld [vmem:[%s772 + $0x28] sm:$0xff]
  %v779 = vld [vmem:[%s772 + $0x30] sm:$0xff]
  %v780 = vld [vmem:[%s772 + $0x38] sm:$0xff]
  %v781 = vld [vmem:[%s772 + $0x40] sm:$0xff]
  %v782 = vld [vmem:[%s772 + $0x48] sm:$0xff]
  %v783 = vld [vmem:[%s772 + $0x50] sm:$0xff]
  %v784 = vld [vmem:[%s772 + $0x58] sm:$0xff]
  %v785 = vld [vmem:[%s772 + $0x60] sm:$0xff]
  %v786 = vld [vmem:[%s772 + $0x68] sm:$0xff]
  %v787 = vld [vmem:[%s772 + $0x70] sm:$0xff]
  %v788 = vld [vmem:[%s772 + $0x78] sm:$0xff]
  %v789 = vld [vmem:[%s772 + $0x80] sm:$0xff]
  %v790 = vld [vmem:[%s772 + $0x88] sm:$0xff]
  %v791 = vld [vmem:[%s772 + $0x90] sm:$0xff]
  %v792 = vld [vmem:[%s772 + $0x98] sm:$0xff]
  %v793 = vld [vmem:[%s772 + $0xa0] sm:$0xff]
  %v794 = vld [vmem:[%s772 + $0xa8] sm:$0xff]
  %v795 = vld [vmem:[%s772 + $0xb0] sm:$0xff]
  %v796 = vld [vmem:[%s772 + $0xb8] sm:$0xff]
  %v797 = vld [vmem:[%s772 + $0xc0] sm:$0xff]
  %v798 = vld [vmem:[%s772 + $0xc8] sm:$0xff]
  %v799 = vld [vmem:[%s772 + $0xd0] sm:$0xff]
  %v800 = vld [vmem:[%s772 + $0xd8] sm:$0xff]
  %v801 = vld [vmem:[%s772 + $0xe0] sm:$0xff]
  %v802 = vld [vmem:[%s772 + $0xe8] sm:$0xff]
  %v803 = vld [vmem:[%s772 + $0xf0] sm:$0xff]
  %v804 = vld [vmem:[%s772 + $0xf8] sm:$0xff]
  %v806 = vsel %vm90, %v774, 0
  %v809 = vsel %vm90, %v776, 0
  %v812 = vsel %vm90, %v778, 0
  %v815 = vsel %vm90, %v780, 0
  %v818 = vsel %vm90, %v782, 0
  %v821 = vsel %vm90, %v784, 0
  %v824 = vsel %vm90, %v786, 0
  %v827 = vsel %vm90, %v788, 0
  %v830 = vsel %vm90, %v790, 0
  %v833 = vsel %vm90, %v792, 0
  %v836 = vsel %vm90, %v794, 0
  %v839 = vsel %vm90, %v796, 0
  %v842 = vsel %vm90, %v798, 0
  %v845 = vsel %vm90, %v800, 0
  %v848 = vsel %vm90, %v802, 0
  %v851 = vsel %vm90, %v804, 0
  %853 = vmatprep.subr.mxu0 0.0
  %854 = vmatpush1.msra.mxu0 %v41
  %855 = vmatprep.subr.mxu0 0.0
  %856 = vmatpush1.msra.mxu0 %v40
  %857 = vmatprep.subr.mxu0 0.0
  %858 = vmatpush1.msra.mxu0 %v39
  %859 = vmatprep.subr.mxu0 0.0
  %860 = vmatpush1.msra.mxu0 %v38
  %861 = vmatprep.subr.mxu0 0.0
  %862 = vmatpush1.msra.mxu0 %v37
  %863 = vmatprep.subr.mxu0 0.0
  %864 = vmatpush1.msra.mxu0 %v36
  %865 = vmatprep.subr.mxu0 0.0
  %866 = vmatpush1.msra.mxu0 %v35
  %867 = vmatprep.subr.mxu0 0.0
  %868 = vmatpush1.msra.mxu0 %v34
  %869 = vmatprep.subr.mxu0 0.0
  %870 = vmatpush1.msra.mxu0 %v33
  %871 = vmatprep.subr.mxu0 0.0
  %872 = vmatpush1.msra.mxu0 %v32
  %873 = vmatprep.subr.mxu0 0.0
  %874 = vmatpush1.msra.mxu0 %v31
  %875 = vmatprep.subr.mxu0 0.0
  %876 = vmatpush1.msra.mxu0 %v30
  %877 = vmatprep.subr.mxu0 0.0
  %878 = vmatpush1.msra.mxu0 %v29
  %879 = vmatprep.subr.mxu0 0.0
  %880 = vmatpush1.msra.mxu0 %v28
  %881 = vmatprep.subr.mxu0 0.0
  %882 = vmatpush1.msra.mxu0 %v27
  %883 = vmatprep.subr.mxu0 0.0
  %884 = vmatpush1.msra.mxu0 %v26
  %885 = vmatprep.subr.mxu0 0.0
  %886 = vmatpush2.msra.mxu0 %v141
  %887 = vmatprep.subr.mxu0 0.0
  %888 = vmatpush2.msra.mxu0 %v56
  %889 = vmatprep.subr.mxu0 0.0
  %890 = vmatpush2.msra.mxu0 %v55
  %891 = vmatprep.subr.mxu0 0.0
  %892 = vmatpush2.msra.mxu0 %v54
  %893 = vmatprep.subr.mxu0 0.0
  %894 = vmatpush2.msra.mxu0 %v53
  %895 = vmatprep.subr.mxu0 0.0
  %896 = vmatpush2.msra.mxu0 %v52
  %897 = vmatprep.subr.mxu0 0.0
  %898 = vmatpush2.msra.mxu0 %v51
  %899 = vmatprep.subr.mxu0 0.0
  %900 = vmatpush2.msra.mxu0 %v50
  %901 = vmatprep.subr.mxu0 0.0
  %902 = vmatpush2.msra.mxu0 %v49
  %903 = vmatprep.subr.mxu0 0.0
  %904 = vmatpush2.msra.mxu0 %v48
  %905 = vmatprep.subr.mxu0 0.0
  %906 = vmatpush2.msra.mxu0 %v47
  %907 = vmatprep.subr.mxu0 0.0
  %908 = vmatpush2.msra.mxu0 %v46
  %909 = vmatprep.subr.mxu0 0.0
  %910 = vmatpush2.msra.mxu0 %v45
  %911 = vmatprep.subr.mxu0 0.0
  %912 = vmatpush2.msra.mxu0 %v44
  %913 = vmatprep.subr.mxu0 0.0
  %914 = vmatpush2.msra.mxu0 %v43
  %915 = vmatprep.subr.mxu0 0.0
  %916 = vmatpush2.msra.mxu0 %v42
  %917 = vmatprep.mubr.f32.mxu0 %v806
  %918 = vmatmul.mubr.f32.gmra.mxu0 %v773
  %v919 = vpop.f32.mrf.mxu0
  %v920 = vadd.f32 0.0, %v919
  %v921 = vpop.f32.mrf.mxu0
  %922 = vmatprep.mubr.f32.mxu0 %v809
  %923 = vmatmul.mubr.f32.gmra.mxu0 %v775
  %v924 = vpop.f32.mrf.mxu0
  %v925 = vadd.f32 0.0, %v924
  %v926 = vpop.f32.mrf.mxu0
  %927 = vmatprep.mubr.f32.mxu0 %v812
  %928 = vmatmul.mubr.f32.gmra.mxu0 %v777
  %v929 = vpop.f32.mrf.mxu0
  %v930 = vadd.f32 0.0, %v929
  %v931 = vpop.f32.mrf.mxu0
  %932 = vmatprep.mubr.f32.mxu0 %v815
  %933 = vmatmul.mubr.f32.gmra.mxu0 %v779
  %v934 = vpop.f32.mrf.mxu0
  %v935 = vadd.f32 0.0, %v934
  %v936 = vpop.f32.mrf.mxu0
  %937 = vmatprep.mubr.f32.mxu0 %v818
  %938 = vmatmul.mubr.f32.gmra.mxu0 %v781
  %v939 = vpop.f32.mrf.mxu0
  %v940 = vadd.f32 0.0, %v939
  %v941 = vpop.f32.mrf.mxu0
  %942 = vmatprep.mubr.f32.mxu0 %v821
  %943 = vmatmul.mubr.f32.gmra.mxu0 %v783
  %v944 = vpop.f32.mrf.mxu0
  %v945 = vadd.f32 0.0, %v944
  %v946 = vpop.f32.mrf.mxu0
  %947 = vmatprep.mubr.f32.mxu0 %v824
  %948 = vmatmul.mubr.f32.gmra.mxu0 %v785
  %v949 = vpop.f32.mrf.mxu0
  %v950 = vadd.f32 0.0, %v949
  %v951 = vpop.f32.mrf.mxu0
  %952 = vmatprep.mubr.f32.mxu0 %v827
  %953 = vmatmul.mubr.f32.gmra.mxu0 %v787
  %v954 = vpop.f32.mrf.mxu0
  %v955 = vadd.f32 0.0, %v954
  %v956 = vpop.f32.mrf.mxu0
  %957 = vmatprep.mubr.f32.mxu0 %v830
  %958 = vmatmul.mubr.f32.gmra.mxu0 %v789
  %v959 = vpop.f32.mrf.mxu0
  %v960 = vadd.f32 0.0, %v959
  %v961 = vpop.f32.mrf.mxu0
  %962 = vmatprep.mubr.f32.mxu0 %v833
  %963 = vmatmul.mubr.f32.gmra.mxu0 %v791
  %v964 = vpop.f32.mrf.mxu0
  %v965 = vadd.f32 0.0, %v964
  %v966 = vpop.f32.mrf.mxu0
  %967 = vmatprep.mubr.f32.mxu0 %v836
  %968 = vmatmul.mubr.f32.gmra.mxu0 %v793
  %v969 = vpop.f32.mrf.mxu0
  %v970 = vadd.f32 0.0, %v969
  %v971 = vpop.f32.mrf.mxu0
  %972 = vmatprep.mubr.f32.mxu0 %v839
  %973 = vmatmul.mubr.f32.gmra.mxu0 %v795
  %v974 = vpop.f32.mrf.mxu0
  %v975 = vadd.f32 0.0, %v974
  %v976 = vpop.f32.mrf.mxu0
  %977 = vmatprep.mubr.f32.mxu0 %v842
  %978 = vmatmul.mubr.f32.gmra.mxu0 %v797
  %v979 = vpop.f32.mrf.mxu0
  %v980 = vadd.f32 0.0, %v979
  %v981 = vpop.f32.mrf.mxu0
  %982 = vmatprep.mubr.f32.mxu0 %v845
  %983 = vmatmul.mubr.f32.gmra.mxu0 %v799
  %v984 = vpop.f32.mrf.mxu0
  %v985 = vadd.f32 0.0, %v984
  %v986 = vpop.f32.mrf.mxu0
  %987 = vmatprep.mubr.f32.mxu0 %v848
  %988 = vmatmul.mubr.f32.gmra.mxu0 %v801
  %v989 = vpop.f32.mrf.mxu0
  %v990 = vadd.f32 0.0, %v989
  %v991 = vpop.f32.mrf.mxu0
  %992 = vmatprep.mubr.f32.mxu0 %v851
  %993 = vmatmul.mubr.f32.gmra.mxu0 %v803
  %v994 = vpop.f32.mrf.mxu0
  %v995 = vadd.f32 0.0, %v994
  %v996 = vpop.f32.mrf.mxu0
  %997 = vdwg.mxu0
  %v998 = vmax.f32 %v756, %v920
  %v999 = vmax.f32 %v757, %v925
  %v1000 = vmax.f32 %v758, %v930
  %v1001 = vmax.f32 %v759, %v935
  %v1002 = vmax.f32 %v760, %v940
  %v1003 = vmax.f32 %v761, %v945
  %v1004 = vmax.f32 %v762, %v950
  %v1005 = vmax.f32 %v763, %v955
  %v1006 = vmax.f32 %v764, %v960
  %v1007 = vmax.f32 %v765, %v965
  %v1008 = vmax.f32 %v766, %v970
  %v1009 = vmax.f32 %v767, %v975
  %v1010 = vmax.f32 %v768, %v980
  %v1011 = vmax.f32 %v769, %v985
  %v1012 = vmax.f32 %v770, %v990
  %v1013 = vmax.f32 %v771, %v995
  %v1014 = vld [vmem:[%s2] sm:$0x1]
  %v1016 = vlaneseq
  %v1017 = vshrl.u32 %v1016, 7
  %v1018 = vsub.s32 0, %v1017
  %v1019 = vrot.slane %v1014, %v1018
  %v1021 = vadd.f32 %v998, %v1019
  %v1022 = vadd.f32 %v999, %v1019
  %v1023 = vadd.f32 %v1000, %v1019
  %v1024 = vadd.f32 %v1001, %v1019
  %v1025 = vadd.f32 %v1002, %v1019
  %v1026 = vadd.f32 %v1003, %v1019
  %v1027 = vadd.f32 %v1004, %v1019
  %v1028 = vadd.f32 %v1005, %v1019
  %v1029 = vadd.f32 %v1006, %v1019
  %v1030 = vadd.f32 %v1007, %v1019
  %v1031 = vadd.f32 %v1008, %v1019
  %v1032 = vadd.f32 %v1009, %v1019
  %v1033 = vadd.f32 %v1010, %v1019
  %v1034 = vadd.f32 %v1011, %v1019
  %v1035 = vadd.f32 %v1012, %v1019
  %v1036 = vadd.f32 %v1013, %v1019
  %v1037 = vmax.f32 %v1021, 0.0
  %v1038 = vmax.f32 %v1022, 0.0
  %v1039 = vmax.f32 %v1023, 0.0
  %v1040 = vmax.f32 %v1024, 0.0
  %v1041 = vmax.f32 %v1025, 0.0
  %v1042 = vmax.f32 %v1026, 0.0
  %v1043 = vmax.f32 %v1027, 0.0
  %v1044 = vmax.f32 %v1028, 0.0
  %v1045 = vmax.f32 %v1029, 0.0
  %v1046 = vmax.f32 %v1030, 0.0
  %v1047 = vmax.f32 %v1031, 0.0
  %v1048 = vmax.f32 %v1032, 0.0
  %v1049 = vmax.f32 %v1033, 0.0
  %v1050 = vmax.f32 %v1034, 0.0
  %v1051 = vmax.f32 %v1035, 0.0
  %v1052 = vmax.f32 %v1036, 0.0
  %v1053 = vld [vmem:[%s4] sm:$0x1]
  %v1055 = vlaneseq
  %v1056 = vshrl.u32 %v1055, 7
  %v1057 = vsub.s32 0, %v1056
  %v1058 = vrot.slane %v1053, %v1057
  %v1060 = vadd.f32 %v1058, 0.0
  %v1061 = vld [vmem:[%s3] sm:$0xff]
  %v1062 = vld [vmem:[%s3 + $0x8] sm:$0xff]
  %v1063 = vld [vmem:[%s3 + $0x10] sm:$0xf]
  %vm1064 = vcmask 162816
  %v1066 = vsel %vm1064, %v1037, 0
  %vm1068 = vcmask 1043456
  %v1070 = vsel %vm1068, %v1063, 0
  %1072 = vmatprep.subr.mxu0 0.0
  %1073 = vmatpush1.msra.mxu0 0.0
  %1074 = vmatprep.subr.mxu0 0.0
  %1075 = vmatpush1.msra.mxu0 0.0
  %1076 = vmatprep.subr.mxu0 0.0
  %1077 = vmatpush1.msra.mxu0 0.0
  %1078 = vmatprep.subr.mxu0 0.0
  %1079 = vmatpush1.msra.mxu0 0.0
  %1080 = vmatprep.subr.mxu0 0.0
  %1081 = vmatpush1.msra.mxu0 0.0
  %1082 = vmatprep.subr.mxu0 0.0
  %1083 = vmatpush1.msra.mxu0 0.0
  %1084 = vmatprep.subr.mxu0 0.0
  %1085 = vmatpush1.msra.mxu0 0.0
  %1086 = vmatprep.subr.mxu0 0.0
  %1087 = vmatpush1.msra.mxu0 0.0
  %1088 = vmatprep.subr.mxu0 0.0
  %1089 = vmatpush1.msra.mxu0 0.0
  %1090 = vmatprep.subr.mxu0 0.0
  %1091 = vmatpush1.msra.mxu0 0.0
  %1092 = vmatprep.subr.mxu0 0.0
  %1093 = vmatpush1.msra.mxu0 0.0
  %1094 = vmatprep.subr.mxu0 0.0
  %1095 = vmatpush1.msra.mxu0 0.0
  %1096 = vmatprep.subr.mxu0 0.0
  %1097 = vmatpush1.msra.mxu0 0.0
  %1098 = vmatprep.subr.mxu0 0.0
  %1099 = vmatpush1.msra.mxu0 %v1070
  %1100 = vmatprep.subr.mxu0 0.0
  %1101 = vmatpush1.msra.mxu0 %v1062
  %1102 = vmatprep.subr.mxu0 0.0
  %1103 = vmatpush1.msra.mxu0 %v1061
  %1104 = vmatprep.subr.mxu0 0.0
  %1105 = vmatpush2.msra.mxu0 0.0
  %1106 = vmatprep.subr.mxu0 0.0
  %1107 = vmatpush2.msra.mxu0 0.0
  %1108 = vmatprep.subr.mxu0 0.0
  %1109 = vmatpush2.msra.mxu0 0.0
  %1110 = vmatprep.subr.mxu0 0.0
  %1111 = vmatpush2.msra.mxu0 0.0
  %1112 = vmatprep.subr.mxu0 0.0
  %1113 = vmatpush2.msra.mxu0 0.0
  %1114 = vmatprep.subr.mxu0 0.0
  %1115 = vmatpush2.msra.mxu0 0.0
  %1116 = vmatprep.subr.mxu0 0.0
  %1117 = vmatpush2.msra.mxu0 0.0
  %1118 = vmatprep.subr.mxu0 0.0
  %1119 = vmatpush2.msra.mxu0 0.0
  %1120 = vmatprep.subr.mxu0 0.0
  %1121 = vmatpush2.msra.mxu0 0.0
  %1122 = vmatprep.subr.mxu0 0.0
  %1123 = vmatpush2.msra.mxu0 0.0
  %1124 = vmatprep.subr.mxu0 0.0
  %1125 = vmatpush2.msra.mxu0 0.0
  %1126 = vmatprep.subr.mxu0 0.0
  %1127 = vmatpush2.msra.mxu0 0.0
  %1128 = vmatprep.subr.mxu0 0.0
  %1129 = vmatpush2.msra.mxu0 0.0
  %1130 = vmatprep.subr.mxu0 0.0
  %1131 = vmatpush2.msra.mxu0 0.0
  %1132 = vmatprep.subr.mxu0 0.0
  %1133 = vmatpush2.msra.mxu0 0.0
  %1134 = vmatprep.subr.mxu0 0.0
  %1135 = vmatpush2.msra.mxu0 0.0
  %1136 = vmatprep.mubr.f32.mxu0 0.0
  %1137 = vmatmul.mubr.f32.gmra.mxu0 %v1066
  %v1138 = vpop.f32.mrf.mxu0
  %v1139 = vadd.f32 0.0, %v1138
  %v1140 = vpop.f32.mrf.mxu0
  %1141 = vdwg.mxu0
  %v1142 = vadd.f32 %v1060, %v1139
  %s1143 = scalar_lea.vmem %s3, 24
  %v1144 = vld [vmem:[%s1143] sm:$0xff]
  %v1145 = vld [vmem:[%s1143 + $0x8] sm:$0xff]
  %v1146 = vld [vmem:[%s1143 + $0x10] sm:$0xf]
  %v1148 = vsel %vm1064, %v1038, 0
  %v1151 = vsel %vm1068, %v1146, 0
  %1153 = vmatprep.subr.mxu0 0.0
  %1154 = vmatpush1.msra.mxu0 0.0
  %1155 = vmatprep.subr.mxu0 0.0
  %1156 = vmatpush1.msra.mxu0 0.0
  %1157 = vmatprep.subr.mxu0 0.0
  %1158 = vmatpush1.msra.mxu0 0.0
  %1159 = vmatprep.subr.mxu0 0.0
  %1160 = vmatpush1.msra.mxu0 0.0
  %1161 = vmatprep.subr.mxu0 0.0
  %1162 = vmatpush1.msra.mxu0 0.0
  %1163 = vmatprep.subr.mxu0 0.0
  %1164 = vmatpush1.msra.mxu0 0.0
  %1165 = vmatprep.subr.mxu0 0.0
  %1166 = vmatpush1.msra.mxu0 0.0
  %1167 = vmatprep.subr.mxu0 0.0
  %1168 = vmatpush1.msra.mxu0 0.0
  %1169 = vmatprep.subr.mxu0 0.0
  %1170 = vmatpush1.msra.mxu0 0.0
  %1171 = vmatprep.subr.mxu0 0.0
  %1172 = vmatpush1.msra.mxu0 0.0
  %1173 = vmatprep.subr.mxu0 0.0
  %1174 = vmatpush1.msra.mxu0 0.0
  %1175 = vmatprep.subr.mxu0 0.0
  %1176 = vmatpush1.msra.mxu0 0.0
  %1177 = vmatprep.subr.mxu0 0.0
  %1178 = vmatpush1.msra.mxu0 0.0
  %1179 = vmatprep.subr.mxu0 0.0
  %1180 = vmatpush1.msra.mxu0 %v1151
  %1181 = vmatprep.subr.mxu0 0.0
  %1182 = vmatpush1.msra.mxu0 %v1145
  %1183 = vmatprep.subr.mxu0 0.0
  %1184 = vmatpush1.msra.mxu0 %v1144
  %1185 = vmatprep.subr.mxu0 0.0
  %1186 = vmatpush2.msra.mxu0 0.0
  %1187 = vmatprep.subr.mxu0 0.0
  %1188 = vmatpush2.msra.mxu0 0.0
  %1189 = vmatprep.subr.mxu0 0.0
  %1190 = vmatpush2.msra.mxu0 0.0
  %1191 = vmatprep.subr.mxu0 0.0
  %1192 = vmatpush2.msra.mxu0 0.0
  %1193 = vmatprep.subr.mxu0 0.0
  %1194 = vmatpush2.msra.mxu0 0.0
  %1195 = vmatprep.subr.mxu0 0.0
  %1196 = vmatpush2.msra.mxu0 0.0
  %1197 = vmatprep.subr.mxu0 0.0
  %1198 = vmatpush2.msra.mxu0 0.0
  %1199 = vmatprep.subr.mxu0 0.0
  %1200 = vmatpush2.msra.mxu0 0.0
  %1201 = vmatprep.subr.mxu0 0.0
  %1202 = vmatpush2.msra.mxu0 0.0
  %1203 = vmatprep.subr.mxu0 0.0
  %1204 = vmatpush2.msra.mxu0 0.0
  %1205 = vmatprep.subr.mxu0 0.0
  %1206 = vmatpush2.msra.mxu0 0.0
  %1207 = vmatprep.subr.mxu0 0.0
  %1208 = vmatpush2.msra.mxu0 0.0
  %1209 = vmatprep.subr.mxu0 0.0
  %1210 = vmatpush2.msra.mxu0 0.0
  %1211 = vmatprep.subr.mxu0 0.0
  %1212 = vmatpush2.msra.mxu0 0.0
  %1213 = vmatprep.subr.mxu0 0.0
  %1214 = vmatpush2.msra.mxu0 0.0
  %1215 = vmatprep.subr.mxu0 0.0
  %1216 = vmatpush2.msra.mxu0 0.0
  %1217 = vmatprep.mubr.f32.mxu0 0.0
  %1218 = vmatmul.mubr.f32.gmra.mxu0 %v1148
  %v1219 = vpop.f32.mrf.mxu0
  %v1220 = vadd.f32 0.0, %v1219
  %v1221 = vpop.f32.mrf.mxu0
  %1222 = vdwg.mxu0
  %v1223 = vadd.f32 %v1142, %v1220
  %s1224 = scalar_lea.vmem %s3, 48
  %v1225 = vld [vmem:[%s1224] sm:$0xff]
  %v1226 = vld [vmem:[%s1224 + $0x8] sm:$0xff]
  %v1227 = vld [vmem:[%s1224 + $0x10] sm:$0xf]
  %v1229 = vsel %vm1064, %v1039, 0
  %v1232 = vsel %vm1068, %v1227, 0
  %1234 = vmatprep.subr.mxu0 0.0
  %1235 = vmatpush1.msra.mxu0 0.0
  %1236 = vmatprep.subr.mxu0 0.0
  %1237 = vmatpush1.msra.mxu0 0.0
  %1238 = vmatprep.subr.mxu0 0.0
  %1239 = vmatpush1.msra.mxu0 0.0
  %1240 = vmatprep.subr.mxu0 0.0
  %1241 = vmatpush1.msra.mxu0 0.0
  %1242 = vmatprep.subr.mxu0 0.0
  %1243 = vmatpush1.msra.mxu0 0.0
  %1244 = vmatprep.subr.mxu0 0.0
  %1245 = vmatpush1.msra.mxu0 0.0
  %1246 = vmatprep.subr.mxu0 0.0
  %1247 = vmatpush1.msra.mxu0 0.0
  %1248 = vmatprep.subr.mxu0 0.0
  %1249 = vmatpush1.msra.mxu0 0.0
  %1250 = vmatprep.subr.mxu0 0.0
  %1251 = vmatpush1.msra.mxu0 0.0
  %1252 = vmatprep.subr.mxu0 0.0
  %1253 = vmatpush1.msra.mxu0 0.0
  %1254 = vmatprep.subr.mxu0 0.0
  %1255 = vmatpush1.msra.mxu0 0.0
  %1256 = vmatprep.subr.mxu0 0.0
  %1257 = vmatpush1.msra.mxu0 0.0
  %1258 = vmatprep.subr.mxu0 0.0
  %1259 = vmatpush1.msra.mxu0 0.0
  %1260 = vmatprep.subr.mxu0 0.0
  %1261 = vmatpush1.msra.mxu0 %v1232
  %1262 = vmatprep.subr.mxu0 0.0
  %1263 = vmatpush1.msra.mxu0 %v1226
  %1264 = vmatprep.subr.mxu0 0.0
  %1265 = vmatpush1.msra.mxu0 %v1225
  %1266 = vmatprep.subr.mxu0 0.0
  %1267 = vmatpush2.msra.mxu0 0.0
  %1268 = vmatprep.subr.mxu0 0.0
  %1269 = vmatpush2.msra.mxu0 0.0
  %1270 = vmatprep.subr.mxu0 0.0
  %1271 = vmatpush2.msra.mxu0 0.0
  %1272 = vmatprep.subr.mxu0 0.0
  %1273 = vmatpush2.msra.mxu0 0.0
  %1274 = vmatprep.subr.mxu0 0.0
  %1275 = vmatpush2.msra.mxu0 0.0
  %1276 = vmatprep.subr.mxu0 0.0
  %1277 = vmatpush2.msra.mxu0 0.0
  %1278 = vmatprep.subr.mxu0 0.0
  %1279 = vmatpush2.msra.mxu0 0.0
  %1280 = vmatprep.subr.mxu0 0.0
  %1281 = vmatpush2.msra.mxu0 0.0
  %1282 = vmatprep.subr.mxu0 0.0
  %1283 = vmatpush2.msra.mxu0 0.0
  %1284 = vmatprep.subr.mxu0 0.0
  %1285 = vmatpush2.msra.mxu0 0.0
  %1286 = vmatprep.subr.mxu0 0.0
  %1287 = vmatpush2.msra.mxu0 0.0
  %1288 = vmatprep.subr.mxu0 0.0
  %1289 = vmatpush2.msra.mxu0 0.0
  %1290 = vmatprep.subr.mxu0 0.0
  %1291 = vmatpush2.msra.mxu0 0.0
  %1292 = vmatprep.subr.mxu0 0.0
  %1293 = vmatpush2.msra.mxu0 0.0
  %1294 = vmatprep.subr.mxu0 0.0
  %1295 = vmatpush2.msra.mxu0 0.0
  %1296 = vmatprep.subr.mxu0 0.0
  %1297 = vmatpush2.msra.mxu0 0.0
  %1298 = vmatprep.mubr.f32.mxu0 0.0
  %1299 = vmatmul.mubr.f32.gmra.mxu0 %v1229
  %v1300 = vpop.f32.mrf.mxu0
  %v1301 = vadd.f32 0.0, %v1300
  %v1302 = vpop.f32.mrf.mxu0
  %1303 = vdwg.mxu0
  %v1304 = vadd.f32 %v1223, %v1301
  %s1305 = scalar_lea.vmem %s3, 72
  %v1306 = vld [vmem:[%s1305] sm:$0xff]
  %v1307 = vld [vmem:[%s1305 + $0x8] sm:$0xff]
  %v1308 = vld [vmem:[%s1305 + $0x10] sm:$0xf]
  %v1310 = vsel %vm1064, %v1040, 0
  %v1313 = vsel %vm1068, %v1308, 0
  %1315 = vmatprep.subr.mxu0 0.0
  %1316 = vmatpush1.msra.mxu0 0.0
  %1317 = vmatprep.subr.mxu0 0.0
  %1318 = vmatpush1.msra.mxu0 0.0
  %1319 = vmatprep.subr.mxu0 0.0
  %1320 = vmatpush1.msra.mxu0 0.0
  %1321 = vmatprep.subr.mxu0 0.0
  %1322 = vmatpush1.msra.mxu0 0.0
  %1323 = vmatprep.subr.mxu0 0.0
  %1324 = vmatpush1.msra.mxu0 0.0
  %1325 = vmatprep.subr.mxu0 0.0
  %1326 = vmatpush1.msra.mxu0 0.0
  %1327 = vmatprep.subr.mxu0 0.0
  %1328 = vmatpush1.msra.mxu0 0.0
  %1329 = vmatprep.subr.mxu0 0.0
  %1330 = vmatpush1.msra.mxu0 0.0
  %1331 = vmatprep.subr.mxu0 0.0
  %1332 = vmatpush1.msra.mxu0 0.0
  %1333 = vmatprep.subr.mxu0 0.0
  %1334 = vmatpush1.msra.mxu0 0.0
  %1335 = vmatprep.subr.mxu0 0.0
  %1336 = vmatpush1.msra.mxu0 0.0
  %1337 = vmatprep.subr.mxu0 0.0
  %1338 = vmatpush1.msra.mxu0 0.0
  %1339 = vmatprep.subr.mxu0 0.0
  %1340 = vmatpush1.msra.mxu0 0.0
  %1341 = vmatprep.subr.mxu0 0.0
  %1342 = vmatpush1.msra.mxu0 %v1313
  %1343 = vmatprep.subr.mxu0 0.0
  %1344 = vmatpush1.msra.mxu0 %v1307
  %1345 = vmatprep.subr.mxu0 0.0
  %1346 = vmatpush1.msra.mxu0 %v1306
  %1347 = vmatprep.subr.mxu0 0.0
  %1348 = vmatpush2.msra.mxu0 0.0
  %1349 = vmatprep.subr.mxu0 0.0
  %1350 = vmatpush2.msra.mxu0 0.0
  %1351 = vmatprep.subr.mxu0 0.0
  %1352 = vmatpush2.msra.mxu0 0.0
  %1353 = vmatprep.subr.mxu0 0.0
  %1354 = vmatpush2.msra.mxu0 0.0
  %1355 = vmatprep.subr.mxu0 0.0
  %1356 = vmatpush2.msra.mxu0 0.0
  %1357 = vmatprep.subr.mxu0 0.0
  %1358 = vmatpush2.msra.mxu0 0.0
  %1359 = vmatprep.subr.mxu0 0.0
  %1360 = vmatpush2.msra.mxu0 0.0
  %1361 = vmatprep.subr.mxu0 0.0
  %1362 = vmatpush2.msra.mxu0 0.0
  %1363 = vmatprep.subr.mxu0 0.0
  %1364 = vmatpush2.msra.mxu0 0.0
  %1365 = vmatprep.subr.mxu0 0.0
  %1366 = vmatpush2.msra.mxu0 0.0
  %1367 = vmatprep.subr.mxu0 0.0
  %1368 = vmatpush2.msra.mxu0 0.0
  %1369 = vmatprep.subr.mxu0 0.0
  %1370 = vmatpush2.msra.mxu0 0.0
  %1371 = vmatprep.subr.mxu0 0.0
  %1372 = vmatpush2.msra.mxu0 0.0
  %1373 = vmatprep.subr.mxu0 0.0
  %1374 = vmatpush2.msra.mxu0 0.0
  %1375 = vmatprep.subr.mxu0 0.0
  %1376 = vmatpush2.msra.mxu0 0.0
  %1377 = vmatprep.subr.mxu0 0.0
  %1378 = vmatpush2.msra.mxu0 0.0
  %1379 = vmatprep.mubr.f32.mxu0 0.0
  %1380 = vmatmul.mubr.f32.gmra.mxu0 %v1310
  %v1381 = vpop.f32.mrf.mxu0
  %v1382 = vadd.f32 0.0, %v1381
  %v1383 = vpop.f32.mrf.mxu0
  %1384 = vdwg.mxu0
  %v1385 = vadd.f32 %v1304, %v1382
  %s1386 = scalar_lea.vmem %s3, 96
  %v1387 = vld [vmem:[%s1386] sm:$0xff]
  %v1388 = vld [vmem:[%s1386 + $0x8] sm:$0xff]
  %v1389 = vld [vmem:[%s1386 + $0x10] sm:$0xf]
  %v1391 = vsel %vm1064, %v1041, 0
  %v1394 = vsel %vm1068, %v1389, 0
  %1396 = vmatprep.subr.mxu0 0.0
  %1397 = vmatpush1.msra.mxu0 0.0
  %1398 = vmatprep.subr.mxu0 0.0
  %1399 = vmatpush1.msra.mxu0 0.0
  %1400 = vmatprep.subr.mxu0 0.0
  %1401 = vmatpush1.msra.mxu0 0.0
  %1402 = vmatprep.subr.mxu0 0.0
  %1403 = vmatpush1.msra.mxu0 0.0
  %1404 = vmatprep.subr.mxu0 0.0
  %1405 = vmatpush1.msra.mxu0 0.0
  %1406 = vmatprep.subr.mxu0 0.0
  %1407 = vmatpush1.msra.mxu0 0.0
  %1408 = vmatprep.subr.mxu0 0.0
  %1409 = vmatpush1.msra.mxu0 0.0
  %1410 = vmatprep.subr.mxu0 0.0
  %1411 = vmatpush1.msra.mxu0 0.0
  %1412 = vmatprep.subr.mxu0 0.0
  %1413 = vmatpush1.msra.mxu0 0.0
  %1414 = vmatprep.subr.mxu0 0.0
  %1415 = vmatpush1.msra.mxu0 0.0
  %1416 = vmatprep.subr.mxu0 0.0
  %1417 = vmatpush1.msra.mxu0 0.0
  %1418 = vmatprep.subr.mxu0 0.0
  %1419 = vmatpush1.msra.mxu0 0.0
  %1420 = vmatprep.subr.mxu0 0.0
  %1421 = vmatpush1.msra.mxu0 0.0
  %1422 = vmatprep.subr.mxu0 0.0
  %1423 = vmatpush1.msra.mxu0 %v1394
  %1424 = vmatprep.subr.mxu0 0.0
  %1425 = vmatpush1.msra.mxu0 %v1388
  %1426 = vmatprep.subr.mxu0 0.0
  %1427 = vmatpush1.msra.mxu0 %v1387
  %1428 = vmatprep.subr.mxu0 0.0
  %1429 = vmatpush2.msra.mxu0 0.0
  %1430 = vmatprep.subr.mxu0 0.0
  %1431 = vmatpush2.msra.mxu0 0.0
  %1432 = vmatprep.subr.mxu0 0.0
  %1433 = vmatpush2.msra.mxu0 0.0
  %1434 = vmatprep.subr.mxu0 0.0
  %1435 = vmatpush2.msra.mxu0 0.0
  %1436 = vmatprep.subr.mxu0 0.0
  %1437 = vmatpush2.msra.mxu0 0.0
  %1438 = vmatprep.subr.mxu0 0.0
  %1439 = vmatpush2.msra.mxu0 0.0
  %1440 = vmatprep.subr.mxu0 0.0
  %1441 = vmatpush2.msra.mxu0 0.0
  %1442 = vmatprep.subr.mxu0 0.0
  %1443 = vmatpush2.msra.mxu0 0.0
  %1444 = vmatprep.subr.mxu0 0.0
  %1445 = vmatpush2.msra.mxu0 0.0
  %1446 = vmatprep.subr.mxu0 0.0
  %1447 = vmatpush2.msra.mxu0 0.0
  %1448 = vmatprep.subr.mxu0 0.0
  %1449 = vmatpush2.msra.mxu0 0.0
  %1450 = vmatprep.subr.mxu0 0.0
  %1451 = vmatpush2.msra.mxu0 0.0
  %1452 = vmatprep.subr.mxu0 0.0
  %1453 = vmatpush2.msra.mxu0 0.0
  %1454 = vmatprep.subr.mxu0 0.0
  %1455 = vmatpush2.msra.mxu0 0.0
  %1456 = vmatprep.subr.mxu0 0.0
  %1457 = vmatpush2.msra.mxu0 0.0
  %1458 = vmatprep.subr.mxu0 0.0
  %1459 = vmatpush2.msra.mxu0 0.0
  %1460 = vmatprep.mubr.f32.mxu0 0.0
  %1461 = vmatmul.mubr.f32.gmra.mxu0 %v1391
  %v1462 = vpop.f32.mrf.mxu0
  %v1463 = vadd.f32 0.0, %v1462
  %v1464 = vpop.f32.mrf.mxu0
  %1465 = vdwg.mxu0
  %v1466 = vadd.f32 %v1385, %v1463
  %s1467 = scalar_lea.vmem %s3, 120
  %v1468 = vld [vmem:[%s1467] sm:$0xff]
  %v1469 = vld [vmem:[%s1467 + $0x8] sm:$0xff]
  %v1470 = vld [vmem:[%s1467 + $0x10] sm:$0xf]
  %v1472 = vsel %vm1064, %v1042, 0
  %v1475 = vsel %vm1068, %v1470, 0
  %1477 = vmatprep.subr.mxu0 0.0
  %1478 = vmatpush1.msra.mxu0 0.0
  %1479 = vmatprep.subr.mxu0 0.0
  %1480 = vmatpush1.msra.mxu0 0.0
  %1481 = vmatprep.subr.mxu0 0.0
  %1482 = vmatpush1.msra.mxu0 0.0
  %1483 = vmatprep.subr.mxu0 0.0
  %1484 = vmatpush1.msra.mxu0 0.0
  %1485 = vmatprep.subr.mxu0 0.0
  %1486 = vmatpush1.msra.mxu0 0.0
  %1487 = vmatprep.subr.mxu0 0.0
  %1488 = vmatpush1.msra.mxu0 0.0
  %1489 = vmatprep.subr.mxu0 0.0
  %1490 = vmatpush1.msra.mxu0 0.0
  %1491 = vmatprep.subr.mxu0 0.0
  %1492 = vmatpush1.msra.mxu0 0.0
  %1493 = vmatprep.subr.mxu0 0.0
  %1494 = vmatpush1.msra.mxu0 0.0
  %1495 = vmatprep.subr.mxu0 0.0
  %1496 = vmatpush1.msra.mxu0 0.0
  %1497 = vmatprep.subr.mxu0 0.0
  %1498 = vmatpush1.msra.mxu0 0.0
  %1499 = vmatprep.subr.mxu0 0.0
  %1500 = vmatpush1.msra.mxu0 0.0
  %1501 = vmatprep.subr.mxu0 0.0
  %1502 = vmatpush1.msra.mxu0 0.0
  %1503 = vmatprep.subr.mxu0 0.0
  %1504 = vmatpush1.msra.mxu0 %v1475
  %1505 = vmatprep.subr.mxu0 0.0
  %1506 = vmatpush1.msra.mxu0 %v1469
  %1507 = vmatprep.subr.mxu0 0.0
  %1508 = vmatpush1.msra.mxu0 %v1468
  %1509 = vmatprep.subr.mxu0 0.0
  %1510 = vmatpush2.msra.mxu0 0.0
  %1511 = vmatprep.subr.mxu0 0.0
  %1512 = vmatpush2.msra.mxu0 0.0
  %1513 = vmatprep.subr.mxu0 0.0
  %1514 = vmatpush2.msra.mxu0 0.0
  %1515 = vmatprep.subr.mxu0 0.0
  %1516 = vmatpush2.msra.mxu0 0.0
  %1517 = vmatprep.subr.mxu0 0.0
  %1518 = vmatpush2.msra.mxu0 0.0
  %1519 = vmatprep.subr.mxu0 0.0
  %1520 = vmatpush2.msra.mxu0 0.0
  %1521 = vmatprep.subr.mxu0 0.0
  %1522 = vmatpush2.msra.mxu0 0.0
  %1523 = vmatprep.subr.mxu0 0.0
  %1524 = vmatpush2.msra.mxu0 0.0
  %1525 = vmatprep.subr.mxu0 0.0
  %1526 = vmatpush2.msra.mxu0 0.0
  %1527 = vmatprep.subr.mxu0 0.0
  %1528 = vmatpush2.msra.mxu0 0.0
  %1529 = vmatprep.subr.mxu0 0.0
  %1530 = vmatpush2.msra.mxu0 0.0
  %1531 = vmatprep.subr.mxu0 0.0
  %1532 = vmatpush2.msra.mxu0 0.0
  %1533 = vmatprep.subr.mxu0 0.0
  %1534 = vmatpush2.msra.mxu0 0.0
  %1535 = vmatprep.subr.mxu0 0.0
  %1536 = vmatpush2.msra.mxu0 0.0
  %1537 = vmatprep.subr.mxu0 0.0
  %1538 = vmatpush2.msra.mxu0 0.0
  %1539 = vmatprep.subr.mxu0 0.0
  %1540 = vmatpush2.msra.mxu0 0.0
  %1541 = vmatprep.mubr.f32.mxu0 0.0
  %1542 = vmatmul.mubr.f32.gmra.mxu0 %v1472
  %v1543 = vpop.f32.mrf.mxu0
  %v1544 = vadd.f32 0.0, %v1543
  %v1545 = vpop.f32.mrf.mxu0
  %1546 = vdwg.mxu0
  %v1547 = vadd.f32 %v1466, %v1544
  %s1548 = scalar_lea.vmem %s3, 144
  %v1549 = vld [vmem:[%s1548] sm:$0xff]
  %v1550 = vld [vmem:[%s1548 + $0x8] sm:$0xff]
  %v1551 = vld [vmem:[%s1548 + $0x10] sm:$0xf]
  %v1553 = vsel %vm1064, %v1043, 0
  %v1556 = vsel %vm1068, %v1551, 0
  %1558 = vmatprep.subr.mxu0 0.0
  %1559 = vmatpush1.msra.mxu0 0.0
  %1560 = vmatprep.subr.mxu0 0.0
  %1561 = vmatpush1.msra.mxu0 0.0
  %1562 = vmatprep.subr.mxu0 0.0
  %1563 = vmatpush1.msra.mxu0 0.0
  %1564 = vmatprep.subr.mxu0 0.0
  %1565 = vmatpush1.msra.mxu0 0.0
  %1566 = vmatprep.subr.mxu0 0.0
  %1567 = vmatpush1.msra.mxu0 0.0
  %1568 = vmatprep.subr.mxu0 0.0
  %1569 = vmatpush1.msra.mxu0 0.0
  %1570 = vmatprep.subr.mxu0 0.0
  %1571 = vmatpush1.msra.mxu0 0.0
  %1572 = vmatprep.subr.mxu0 0.0
  %1573 = vmatpush1.msra.mxu0 0.0
  %1574 = vmatprep.subr.mxu0 0.0
  %1575 = vmatpush1.msra.mxu0 0.0
  %1576 = vmatprep.subr.mxu0 0.0
  %1577 = vmatpush1.msra.mxu0 0.0
  %1578 = vmatprep.subr.mxu0 0.0
  %1579 = vmatpush1.msra.mxu0 0.0
  %1580 = vmatprep.subr.mxu0 0.0
  %1581 = vmatpush1.msra.mxu0 0.0
  %1582 = vmatprep.subr.mxu0 0.0
  %1583 = vmatpush1.msra.mxu0 0.0
  %1584 = vmatprep.subr.mxu0 0.0
  %1585 = vmatpush1.msra.mxu0 %v1556
  %1586 = vmatprep.subr.mxu0 0.0
  %1587 = vmatpush1.msra.mxu0 %v1550
  %1588 = vmatprep.subr.mxu0 0.0
  %1589 = vmatpush1.msra.mxu0 %v1549
  %1590 = vmatprep.subr.mxu0 0.0
  %1591 = vmatpush2.msra.mxu0 0.0
  %1592 = vmatprep.subr.mxu0 0.0
  %1593 = vmatpush2.msra.mxu0 0.0
  %1594 = vmatprep.subr.mxu0 0.0
  %1595 = vmatpush2.msra.mxu0 0.0
  %1596 = vmatprep.subr.mxu0 0.0
  %1597 = vmatpush2.msra.mxu0 0.0
  %1598 = vmatprep.subr.mxu0 0.0
  %1599 = vmatpush2.msra.mxu0 0.0
  %1600 = vmatprep.subr.mxu0 0.0
  %1601 = vmatpush2.msra.mxu0 0.0
  %1602 = vmatprep.subr.mxu0 0.0
  %1603 = vmatpush2.msra.mxu0 0.0
  %1604 = vmatprep.subr.mxu0 0.0
  %1605 = vmatpush2.msra.mxu0 0.0
  %1606 = vmatprep.subr.mxu0 0.0
  %1607 = vmatpush2.msra.mxu0 0.0
  %1608 = vmatprep.subr.mxu0 0.0
  %1609 = vmatpush2.msra.mxu0 0.0
  %1610 = vmatprep.subr.mxu0 0.0
  %1611 = vmatpush2.msra.mxu0 0.0
  %1612 = vmatprep.subr.mxu0 0.0
  %1613 = vmatpush2.msra.mxu0 0.0
  %1614 = vmatprep.subr.mxu0 0.0
  %1615 = vmatpush2.msra.mxu0 0.0
  %1616 = vmatprep.subr.mxu0 0.0
  %1617 = vmatpush2.msra.mxu0 0.0
  %1618 = vmatprep.subr.mxu0 0.0
  %1619 = vmatpush2.msra.mxu0 0.0
  %1620 = vmatprep.subr.mxu0 0.0
  %1621 = vmatpush2.msra.mxu0 0.0
  %1622 = vmatprep.mubr.f32.mxu0 0.0
  %1623 = vmatmul.mubr.f32.gmra.mxu0 %v1553
  %v1624 = vpop.f32.mrf.mxu0
  %v1625 = vadd.f32 0.0, %v1624
  %v1626 = vpop.f32.mrf.mxu0
  %1627 = vdwg.mxu0
  %v1628 = vadd.f32 %v1547, %v1625
  %s1629 = scalar_lea.vmem %s3, 168
  %v1630 = vld [vmem:[%s1629] sm:$0xff]
  %v1631 = vld [vmem:[%s1629 + $0x8] sm:$0xff]
  %v1632 = vld [vmem:[%s1629 + $0x10] sm:$0xf]
  %v1634 = vsel %vm1064, %v1044, 0
  %v1637 = vsel %vm1068, %v1632, 0
  %1639 = vmatprep.subr.mxu0 0.0
  %1640 = vmatpush1.msra.mxu0 0.0
  %1641 = vmatprep.subr.mxu0 0.0
  %1642 = vmatpush1.msra.mxu0 0.0
  %1643 = vmatprep.subr.mxu0 0.0
  %1644 = vmatpush1.msra.mxu0 0.0
  %1645 = vmatprep.subr.mxu0 0.0
  %1646 = vmatpush1.msra.mxu0 0.0
  %1647 = vmatprep.subr.mxu0 0.0
  %1648 = vmatpush1.msra.mxu0 0.0
  %1649 = vmatprep.subr.mxu0 0.0
  %1650 = vmatpush1.msra.mxu0 0.0
  %1651 = vmatprep.subr.mxu0 0.0
  %1652 = vmatpush1.msra.mxu0 0.0
  %1653 = vmatprep.subr.mxu0 0.0
  %1654 = vmatpush1.msra.mxu0 0.0
  %1655 = vmatprep.subr.mxu0 0.0
  %1656 = vmatpush1.msra.mxu0 0.0
  %1657 = vmatprep.subr.mxu0 0.0
  %1658 = vmatpush1.msra.mxu0 0.0
  %1659 = vmatprep.subr.mxu0 0.0
  %1660 = vmatpush1.msra.mxu0 0.0
  %1661 = vmatprep.subr.mxu0 0.0
  %1662 = vmatpush1.msra.mxu0 0.0
  %1663 = vmatprep.subr.mxu0 0.0
  %1664 = vmatpush1.msra.mxu0 0.0
  %1665 = vmatprep.subr.mxu0 0.0
  %1666 = vmatpush1.msra.mxu0 %v1637
  %1667 = vmatprep.subr.mxu0 0.0
  %1668 = vmatpush1.msra.mxu0 %v1631
  %1669 = vmatprep.subr.mxu0 0.0
  %1670 = vmatpush1.msra.mxu0 %v1630
  %1671 = vmatprep.subr.mxu0 0.0
  %1672 = vmatpush2.msra.mxu0 0.0
  %1673 = vmatprep.subr.mxu0 0.0
  %1674 = vmatpush2.msra.mxu0 0.0
  %1675 = vmatprep.subr.mxu0 0.0
  %1676 = vmatpush2.msra.mxu0 0.0
  %1677 = vmatprep.subr.mxu0 0.0
  %1678 = vmatpush2.msra.mxu0 0.0
  %1679 = vmatprep.subr.mxu0 0.0
  %1680 = vmatpush2.msra.mxu0 0.0
  %1681 = vmatprep.subr.mxu0 0.0
  %1682 = vmatpush2.msra.mxu0 0.0
  %1683 = vmatprep.subr.mxu0 0.0
  %1684 = vmatpush2.msra.mxu0 0.0
  %1685 = vmatprep.subr.mxu0 0.0
  %1686 = vmatpush2.msra.mxu0 0.0
  %1687 = vmatprep.subr.mxu0 0.0
  %1688 = vmatpush2.msra.mxu0 0.0
  %1689 = vmatprep.subr.mxu0 0.0
  %1690 = vmatpush2.msra.mxu0 0.0
  %1691 = vmatprep.subr.mxu0 0.0
  %1692 = vmatpush2.msra.mxu0 0.0
  %1693 = vmatprep.subr.mxu0 0.0
  %1694 = vmatpush2.msra.mxu0 0.0
  %1695 = vmatprep.subr.mxu0 0.0
  %1696 = vmatpush2.msra.mxu0 0.0
  %1697 = vmatprep.subr.mxu0 0.0
  %1698 = vmatpush2.msra.mxu0 0.0
  %1699 = vmatprep.subr.mxu0 0.0
  %1700 = vmatpush2.msra.mxu0 0.0
  %1701 = vmatprep.subr.mxu0 0.0
  %1702 = vmatpush2.msra.mxu0 0.0
  %1703 = vmatprep.mubr.f32.mxu0 0.0
  %1704 = vmatmul.mubr.f32.gmra.mxu0 %v1634
  %v1705 = vpop.f32.mrf.mxu0
  %v1706 = vadd.f32 0.0, %v1705
  %v1707 = vpop.f32.mrf.mxu0
  %1708 = vdwg.mxu0
  %v1709 = vadd.f32 %v1628, %v1706
  %s1710 = scalar_lea.vmem %s3, 192
  %v1711 = vld [vmem:[%s1710] sm:$0xff]
  %v1712 = vld [vmem:[%s1710 + $0x8] sm:$0xff]
  %v1713 = vld [vmem:[%s1710 + $0x10] sm:$0xf]
  %v1715 = vsel %vm1064, %v1045, 0
  %v1718 = vsel %vm1068, %v1713, 0
  %1720 = vmatprep.subr.mxu0 0.0
  %1721 = vmatpush1.msra.mxu0 0.0
  %1722 = vmatprep.subr.mxu0 0.0
  %1723 = vmatpush1.msra.mxu0 0.0
  %1724 = vmatprep.subr.mxu0 0.0
  %1725 = vmatpush1.msra.mxu0 0.0
  %1726 = vmatprep.subr.mxu0 0.0
  %1727 = vmatpush1.msra.mxu0 0.0
  %1728 = vmatprep.subr.mxu0 0.0
  %1729 = vmatpush1.msra.mxu0 0.0
  %1730 = vmatprep.subr.mxu0 0.0
  %1731 = vmatpush1.msra.mxu0 0.0
  %1732 = vmatprep.subr.mxu0 0.0
  %1733 = vmatpush1.msra.mxu0 0.0
  %1734 = vmatprep.subr.mxu0 0.0
  %1735 = vmatpush1.msra.mxu0 0.0
  %1736 = vmatprep.subr.mxu0 0.0
  %1737 = vmatpush1.msra.mxu0 0.0
  %1738 = vmatprep.subr.mxu0 0.0
  %1739 = vmatpush1.msra.mxu0 0.0
  %1740 = vmatprep.subr.mxu0 0.0
  %1741 = vmatpush1.msra.mxu0 0.0
  %1742 = vmatprep.subr.mxu0 0.0
  %1743 = vmatpush1.msra.mxu0 0.0
  %1744 = vmatprep.subr.mxu0 0.0
  %1745 = vmatpush1.msra.mxu0 0.0
  %1746 = vmatprep.subr.mxu0 0.0
  %1747 = vmatpush1.msra.mxu0 %v1718
  %1748 = vmatprep.subr.mxu0 0.0
  %1749 = vmatpush1.msra.mxu0 %v1712
  %1750 = vmatprep.subr.mxu0 0.0
  %1751 = vmatpush1.msra.mxu0 %v1711
  %1752 = vmatprep.subr.mxu0 0.0
  %1753 = vmatpush2.msra.mxu0 0.0
  %1754 = vmatprep.subr.mxu0 0.0
  %1755 = vmatpush2.msra.mxu0 0.0
  %1756 = vmatprep.subr.mxu0 0.0
  %1757 = vmatpush2.msra.mxu0 0.0
  %1758 = vmatprep.subr.mxu0 0.0
  %1759 = vmatpush2.msra.mxu0 0.0
  %1760 = vmatprep.subr.mxu0 0.0
  %1761 = vmatpush2.msra.mxu0 0.0
  %1762 = vmatprep.subr.mxu0 0.0
  %1763 = vmatpush2.msra.mxu0 0.0
  %1764 = vmatprep.subr.mxu0 0.0
  %1765 = vmatpush2.msra.mxu0 0.0
  %1766 = vmatprep.subr.mxu0 0.0
  %1767 = vmatpush2.msra.mxu0 0.0
  %1768 = vmatprep.subr.mxu0 0.0
  %1769 = vmatpush2.msra.mxu0 0.0
  %1770 = vmatprep.subr.mxu0 0.0
  %1771 = vmatpush2.msra.mxu0 0.0
  %1772 = vmatprep.subr.mxu0 0.0
  %1773 = vmatpush2.msra.mxu0 0.0
  %1774 = vmatprep.subr.mxu0 0.0
  %1775 = vmatpush2.msra.mxu0 0.0
  %1776 = vmatprep.subr.mxu0 0.0
  %1777 = vmatpush2.msra.mxu0 0.0
  %1778 = vmatprep.subr.mxu0 0.0
  %1779 = vmatpush2.msra.mxu0 0.0
  %1780 = vmatprep.subr.mxu0 0.0
  %1781 = vmatpush2.msra.mxu0 0.0
  %1782 = vmatprep.subr.mxu0 0.0
  %1783 = vmatpush2.msra.mxu0 0.0
  %1784 = vmatprep.mubr.f32.mxu0 0.0
  %1785 = vmatmul.mubr.f32.gmra.mxu0 %v1715
  %v1786 = vpop.f32.mrf.mxu0
  %v1787 = vadd.f32 0.0, %v1786
  %v1788 = vpop.f32.mrf.mxu0
  %1789 = vdwg.mxu0
  %v1790 = vadd.f32 %v1709, %v1787
  %s1791 = scalar_lea.vmem %s3, 216
  %v1792 = vld [vmem:[%s1791] sm:$0xff]
  %v1793 = vld [vmem:[%s1791 + $0x8] sm:$0xff]
  %v1794 = vld [vmem:[%s1791 + $0x10] sm:$0xf]
  %v1796 = vsel %vm1064, %v1046, 0
  %v1799 = vsel %vm1068, %v1794, 0
  %1801 = vmatprep.subr.mxu0 0.0
  %1802 = vmatpush1.msra.mxu0 0.0
  %1803 = vmatprep.subr.mxu0 0.0
  %1804 = vmatpush1.msra.mxu0 0.0
  %1805 = vmatprep.subr.mxu0 0.0
  %1806 = vmatpush1.msra.mxu0 0.0
  %1807 = vmatprep.subr.mxu0 0.0
  %1808 = vmatpush1.msra.mxu0 0.0
  %1809 = vmatprep.subr.mxu0 0.0
  %1810 = vmatpush1.msra.mxu0 0.0
  %1811 = vmatprep.subr.mxu0 0.0
  %1812 = vmatpush1.msra.mxu0 0.0
  %1813 = vmatprep.subr.mxu0 0.0
  %1814 = vmatpush1.msra.mxu0 0.0
  %1815 = vmatprep.subr.mxu0 0.0
  %1816 = vmatpush1.msra.mxu0 0.0
  %1817 = vmatprep.subr.mxu0 0.0
  %1818 = vmatpush1.msra.mxu0 0.0
  %1819 = vmatprep.subr.mxu0 0.0
  %1820 = vmatpush1.msra.mxu0 0.0
  %1821 = vmatprep.subr.mxu0 0.0
  %1822 = vmatpush1.msra.mxu0 0.0
  %1823 = vmatprep.subr.mxu0 0.0
  %1824 = vmatpush1.msra.mxu0 0.0
  %1825 = vmatprep.subr.mxu0 0.0
  %1826 = vmatpush1.msra.mxu0 0.0
  %1827 = vmatprep.subr.mxu0 0.0
  %1828 = vmatpush1.msra.mxu0 %v1799
  %1829 = vmatprep.subr.mxu0 0.0
  %1830 = vmatpush1.msra.mxu0 %v1793
  %1831 = vmatprep.subr.mxu0 0.0
  %1832 = vmatpush1.msra.mxu0 %v1792
  %1833 = vmatprep.subr.mxu0 0.0
  %1834 = vmatpush2.msra.mxu0 0.0
  %1835 = vmatprep.subr.mxu0 0.0
  %1836 = vmatpush2.msra.mxu0 0.0
  %1837 = vmatprep.subr.mxu0 0.0
  %1838 = vmatpush2.msra.mxu0 0.0
  %1839 = vmatprep.subr.mxu0 0.0
  %1840 = vmatpush2.msra.mxu0 0.0
  %1841 = vmatprep.subr.mxu0 0.0
  %1842 = vmatpush2.msra.mxu0 0.0
  %1843 = vmatprep.subr.mxu0 0.0
  %1844 = vmatpush2.msra.mxu0 0.0
  %1845 = vmatprep.subr.mxu0 0.0
  %1846 = vmatpush2.msra.mxu0 0.0
  %1847 = vmatprep.subr.mxu0 0.0
  %1848 = vmatpush2.msra.mxu0 0.0
  %1849 = vmatprep.subr.mxu0 0.0
  %1850 = vmatpush2.msra.mxu0 0.0
  %1851 = vmatprep.subr.mxu0 0.0
  %1852 = vmatpush2.msra.mxu0 0.0
  %1853 = vmatprep.subr.mxu0 0.0
  %1854 = vmatpush2.msra.mxu0 0.0
  %1855 = vmatprep.subr.mxu0 0.0
  %1856 = vmatpush2.msra.mxu0 0.0
  %1857 = vmatprep.subr.mxu0 0.0
  %1858 = vmatpush2.msra.mxu0 0.0
  %1859 = vmatprep.subr.mxu0 0.0
  %1860 = vmatpush2.msra.mxu0 0.0
  %1861 = vmatprep.subr.mxu0 0.0
  %1862 = vmatpush2.msra.mxu0 0.0
  %1863 = vmatprep.subr.mxu0 0.0
  %1864 = vmatpush2.msra.mxu0 0.0
  %1865 = vmatprep.mubr.f32.mxu0 0.0
  %1866 = vmatmul.mubr.f32.gmra.mxu0 %v1796
  %v1867 = vpop.f32.mrf.mxu0
  %v1868 = vadd.f32 0.0, %v1867
  %v1869 = vpop.f32.mrf.mxu0
  %1870 = vdwg.mxu0
  %v1871 = vadd.f32 %v1790, %v1868
  %s1872 = scalar_lea.vmem %s3, 240
  %v1873 = vld [vmem:[%s1872] sm:$0xff]
  %v1874 = vld [vmem:[%s1872 + $0x8] sm:$0xff]
  %v1875 = vld [vmem:[%s1872 + $0x10] sm:$0xf]
  %v1877 = vsel %vm1064, %v1047, 0
  %v1880 = vsel %vm1068, %v1875, 0
  %1882 = vmatprep.subr.mxu0 0.0
  %1883 = vmatpush1.msra.mxu0 0.0
  %1884 = vmatprep.subr.mxu0 0.0
  %1885 = vmatpush1.msra.mxu0 0.0
  %1886 = vmatprep.subr.mxu0 0.0
  %1887 = vmatpush1.msra.mxu0 0.0
  %1888 = vmatprep.subr.mxu0 0.0
  %1889 = vmatpush1.msra.mxu0 0.0
  %1890 = vmatprep.subr.mxu0 0.0
  %1891 = vmatpush1.msra.mxu0 0.0
  %1892 = vmatprep.subr.mxu0 0.0
  %1893 = vmatpush1.msra.mxu0 0.0
  %1894 = vmatprep.subr.mxu0 0.0
  %1895 = vmatpush1.msra.mxu0 0.0
  %1896 = vmatprep.subr.mxu0 0.0
  %1897 = vmatpush1.msra.mxu0 0.0
  %1898 = vmatprep.subr.mxu0 0.0
  %1899 = vmatpush1.msra.mxu0 0.0
  %1900 = vmatprep.subr.mxu0 0.0
  %1901 = vmatpush1.msra.mxu0 0.0
  %1902 = vmatprep.subr.mxu0 0.0
  %1903 = vmatpush1.msra.mxu0 0.0
  %1904 = vmatprep.subr.mxu0 0.0
  %1905 = vmatpush1.msra.mxu0 0.0
  %1906 = vmatprep.subr.mxu0 0.0
  %1907 = vmatpush1.msra.mxu0 0.0
  %1908 = vmatprep.subr.mxu0 0.0
  %1909 = vmatpush1.msra.mxu0 %v1880
  %1910 = vmatprep.subr.mxu0 0.0
  %1911 = vmatpush1.msra.mxu0 %v1874
  %1912 = vmatprep.subr.mxu0 0.0
  %1913 = vmatpush1.msra.mxu0 %v1873
  %1914 = vmatprep.subr.mxu0 0.0
  %1915 = vmatpush2.msra.mxu0 0.0
  %1916 = vmatprep.subr.mxu0 0.0
  %1917 = vmatpush2.msra.mxu0 0.0
  %1918 = vmatprep.subr.mxu0 0.0
  %1919 = vmatpush2.msra.mxu0 0.0
  %1920 = vmatprep.subr.mxu0 0.0
  %1921 = vmatpush2.msra.mxu0 0.0
  %1922 = vmatprep.subr.mxu0 0.0
  %1923 = vmatpush2.msra.mxu0 0.0
  %1924 = vmatprep.subr.mxu0 0.0
  %1925 = vmatpush2.msra.mxu0 0.0
  %1926 = vmatprep.subr.mxu0 0.0
  %1927 = vmatpush2.msra.mxu0 0.0
  %1928 = vmatprep.subr.mxu0 0.0
  %1929 = vmatpush2.msra.mxu0 0.0
  %1930 = vmatprep.subr.mxu0 0.0
  %1931 = vmatpush2.msra.mxu0 0.0
  %1932 = vmatprep.subr.mxu0 0.0
  %1933 = vmatpush2.msra.mxu0 0.0
  %1934 = vmatprep.subr.mxu0 0.0
  %1935 = vmatpush2.msra.mxu0 0.0
  %1936 = vmatprep.subr.mxu0 0.0
  %1937 = vmatpush2.msra.mxu0 0.0
  %1938 = vmatprep.subr.mxu0 0.0
  %1939 = vmatpush2.msra.mxu0 0.0
  %1940 = vmatprep.subr.mxu0 0.0
  %1941 = vmatpush2.msra.mxu0 0.0
  %1942 = vmatprep.subr.mxu0 0.0
  %1943 = vmatpush2.msra.mxu0 0.0
  %1944 = vmatprep.subr.mxu0 0.0
  %1945 = vmatpush2.msra.mxu0 0.0
  %1946 = vmatprep.mubr.f32.mxu0 0.0
  %1947 = vmatmul.mubr.f32.gmra.mxu0 %v1877
  %v1948 = vpop.f32.mrf.mxu0
  %v1949 = vadd.f32 0.0, %v1948
  %v1950 = vpop.f32.mrf.mxu0
  %1951 = vdwg.mxu0
  %v1952 = vadd.f32 %v1871, %v1949
  %s1953 = scalar_lea.vmem %s3, 264
  %v1954 = vld [vmem:[%s1953] sm:$0xff]
  %v1955 = vld [vmem:[%s1953 + $0x8] sm:$0xff]
  %v1956 = vld [vmem:[%s1953 + $0x10] sm:$0xf]
  %v1958 = vsel %vm1064, %v1048, 0
  %v1961 = vsel %vm1068, %v1956, 0
  %1963 = vmatprep.subr.mxu0 0.0
  %1964 = vmatpush1.msra.mxu0 0.0
  %1965 = vmatprep.subr.mxu0 0.0
  %1966 = vmatpush1.msra.mxu0 0.0
  %1967 = vmatprep.subr.mxu0 0.0
  %1968 = vmatpush1.msra.mxu0 0.0
  %1969 = vmatprep.subr.mxu0 0.0
  %1970 = vmatpush1.msra.mxu0 0.0
  %1971 = vmatprep.subr.mxu0 0.0
  %1972 = vmatpush1.msra.mxu0 0.0
  %1973 = vmatprep.subr.mxu0 0.0
  %1974 = vmatpush1.msra.mxu0 0.0
  %1975 = vmatprep.subr.mxu0 0.0
  %1976 = vmatpush1.msra.mxu0 0.0
  %1977 = vmatprep.subr.mxu0 0.0
  %1978 = vmatpush1.msra.mxu0 0.0
  %1979 = vmatprep.subr.mxu0 0.0
  %1980 = vmatpush1.msra.mxu0 0.0
  %1981 = vmatprep.subr.mxu0 0.0
  %1982 = vmatpush1.msra.mxu0 0.0
  %1983 = vmatprep.subr.mxu0 0.0
  %1984 = vmatpush1.msra.mxu0 0.0
  %1985 = vmatprep.subr.mxu0 0.0
  %1986 = vmatpush1.msra.mxu0 0.0
  %1987 = vmatprep.subr.mxu0 0.0
  %1988 = vmatpush1.msra.mxu0 0.0
  %1989 = vmatprep.subr.mxu0 0.0
  %1990 = vmatpush1.msra.mxu0 %v1961
  %1991 = vmatprep.subr.mxu0 0.0
  %1992 = vmatpush1.msra.mxu0 %v1955
  %1993 = vmatprep.subr.mxu0 0.0
  %1994 = vmatpush1.msra.mxu0 %v1954
  %1995 = vmatprep.subr.mxu0 0.0
  %1996 = vmatpush2.msra.mxu0 0.0
  %1997 = vmatprep.subr.mxu0 0.0
  %1998 = vmatpush2.msra.mxu0 0.0
  %1999 = vmatprep.subr.mxu0 0.0
  %2000 = vmatpush2.msra.mxu0 0.0
  %2001 = vmatprep.subr.mxu0 0.0
  %2002 = vmatpush2.msra.mxu0 0.0
  %2003 = vmatprep.subr.mxu0 0.0
  %2004 = vmatpush2.msra.mxu0 0.0
  %2005 = vmatprep.subr.mxu0 0.0
  %2006 = vmatpush2.msra.mxu0 0.0
  %2007 = vmatprep.subr.mxu0 0.0
  %2008 = vmatpush2.msra.mxu0 0.0
  %2009 = vmatprep.subr.mxu0 0.0
  %2010 = vmatpush2.msra.mxu0 0.0
  %2011 = vmatprep.subr.mxu0 0.0
  %2012 = vmatpush2.msra.mxu0 0.0
  %2013 = vmatprep.subr.mxu0 0.0
  %2014 = vmatpush2.msra.mxu0 0.0
  %2015 = vmatprep.subr.mxu0 0.0
  %2016 = vmatpush2.msra.mxu0 0.0
  %2017 = vmatprep.subr.mxu0 0.0
  %2018 = vmatpush2.msra.mxu0 0.0
  %2019 = vmatprep.subr.mxu0 0.0
  %2020 = vmatpush2.msra.mxu0 0.0
  %2021 = vmatprep.subr.mxu0 0.0
  %2022 = vmatpush2.msra.mxu0 0.0
  %2023 = vmatprep.subr.mxu0 0.0
  %2024 = vmatpush2.msra.mxu0 0.0
  %2025 = vmatprep.subr.mxu0 0.0
  %2026 = vmatpush2.msra.mxu0 0.0
  %2027 = vmatprep.mubr.f32.mxu0 0.0
  %2028 = vmatmul.mubr.f32.gmra.mxu0 %v1958
  %v2029 = vpop.f32.mrf.mxu0
  %v2030 = vadd.f32 0.0, %v2029
  %v2031 = vpop.f32.mrf.mxu0
  %2032 = vdwg.mxu0
  %v2033 = vadd.f32 %v1952, %v2030
  %s2034 = scalar_lea.vmem %s3, 288
  %v2035 = vld [vmem:[%s2034] sm:$0xff]
  %v2036 = vld [vmem:[%s2034 + $0x8] sm:$0xff]
  %v2037 = vld [vmem:[%s2034 + $0x10] sm:$0xf]
  %v2039 = vsel %vm1064, %v1049, 0
  %v2042 = vsel %vm1068, %v2037, 0
  %2044 = vmatprep.subr.mxu0 0.0
  %2045 = vmatpush1.msra.mxu0 0.0
  %2046 = vmatprep.subr.mxu0 0.0
  %2047 = vmatpush1.msra.mxu0 0.0
  %2048 = vmatprep.subr.mxu0 0.0
  %2049 = vmatpush1.msra.mxu0 0.0
  %2050 = vmatprep.subr.mxu0 0.0
  %2051 = vmatpush1.msra.mxu0 0.0
  %2052 = vmatprep.subr.mxu0 0.0
  %2053 = vmatpush1.msra.mxu0 0.0
  %2054 = vmatprep.subr.mxu0 0.0
  %2055 = vmatpush1.msra.mxu0 0.0
  %2056 = vmatprep.subr.mxu0 0.0
  %2057 = vmatpush1.msra.mxu0 0.0
  %2058 = vmatprep.subr.mxu0 0.0
  %2059 = vmatpush1.msra.mxu0 0.0
  %2060 = vmatprep.subr.mxu0 0.0
  %2061 = vmatpush1.msra.mxu0 0.0
  %2062 = vmatprep.subr.mxu0 0.0
  %2063 = vmatpush1.msra.mxu0 0.0
  %2064 = vmatprep.subr.mxu0 0.0
  %2065 = vmatpush1.msra.mxu0 0.0
  %2066 = vmatprep.subr.mxu0 0.0
  %2067 = vmatpush1.msra.mxu0 0.0
  %2068 = vmatprep.subr.mxu0 0.0
  %2069 = vmatpush1.msra.mxu0 0.0
  %2070 = vmatprep.subr.mxu0 0.0
  %2071 = vmatpush1.msra.mxu0 %v2042
  %2072 = vmatprep.subr.mxu0 0.0
  %2073 = vmatpush1.msra.mxu0 %v2036
  %2074 = vmatprep.subr.mxu0 0.0
  %2075 = vmatpush1.msra.mxu0 %v2035
  %2076 = vmatprep.subr.mxu0 0.0
  %2077 = vmatpush2.msra.mxu0 0.0
  %2078 = vmatprep.subr.mxu0 0.0
  %2079 = vmatpush2.msra.mxu0 0.0
  %2080 = vmatprep.subr.mxu0 0.0
  %2081 = vmatpush2.msra.mxu0 0.0
  %2082 = vmatprep.subr.mxu0 0.0
  %2083 = vmatpush2.msra.mxu0 0.0
  %2084 = vmatprep.subr.mxu0 0.0
  %2085 = vmatpush2.msra.mxu0 0.0
  %2086 = vmatprep.subr.mxu0 0.0
  %2087 = vmatpush2.msra.mxu0 0.0
  %2088 = vmatprep.subr.mxu0 0.0
  %2089 = vmatpush2.msra.mxu0 0.0
  %2090 = vmatprep.subr.mxu0 0.0
  %2091 = vmatpush2.msra.mxu0 0.0
  %2092 = vmatprep.subr.mxu0 0.0
  %2093 = vmatpush2.msra.mxu0 0.0
  %2094 = vmatprep.subr.mxu0 0.0
  %2095 = vmatpush2.msra.mxu0 0.0
  %2096 = vmatprep.subr.mxu0 0.0
  %2097 = vmatpush2.msra.mxu0 0.0
  %2098 = vmatprep.subr.mxu0 0.0
  %2099 = vmatpush2.msra.mxu0 0.0
  %2100 = vmatprep.subr.mxu0 0.0
  %2101 = vmatpush2.msra.mxu0 0.0
  %2102 = vmatprep.subr.mxu0 0.0
  %2103 = vmatpush2.msra.mxu0 0.0
  %2104 = vmatprep.subr.mxu0 0.0
  %2105 = vmatpush2.msra.mxu0 0.0
  %2106 = vmatprep.subr.mxu0 0.0
  %2107 = vmatpush2.msra.mxu0 0.0
  %2108 = vmatprep.mubr.f32.mxu0 0.0
  %2109 = vmatmul.mubr.f32.gmra.mxu0 %v2039
  %v2110 = vpop.f32.mrf.mxu0
  %v2111 = vadd.f32 0.0, %v2110
  %v2112 = vpop.f32.mrf.mxu0
  %2113 = vdwg.mxu0
  %v2114 = vadd.f32 %v2033, %v2111
  %s2115 = scalar_lea.vmem %s3, 312
  %v2116 = vld [vmem:[%s2115] sm:$0xff]
  %v2117 = vld [vmem:[%s2115 + $0x8] sm:$0xff]
  %v2118 = vld [vmem:[%s2115 + $0x10] sm:$0xf]
  %v2120 = vsel %vm1064, %v1050, 0
  %v2123 = vsel %vm1068, %v2118, 0
  %2125 = vmatprep.subr.mxu0 0.0
  %2126 = vmatpush1.msra.mxu0 0.0
  %2127 = vmatprep.subr.mxu0 0.0
  %2128 = vmatpush1.msra.mxu0 0.0
  %2129 = vmatprep.subr.mxu0 0.0
  %2130 = vmatpush1.msra.mxu0 0.0
  %2131 = vmatprep.subr.mxu0 0.0
  %2132 = vmatpush1.msra.mxu0 0.0
  %2133 = vmatprep.subr.mxu0 0.0
  %2134 = vmatpush1.msra.mxu0 0.0
  %2135 = vmatprep.subr.mxu0 0.0
  %2136 = vmatpush1.msra.mxu0 0.0
  %2137 = vmatprep.subr.mxu0 0.0
  %2138 = vmatpush1.msra.mxu0 0.0
  %2139 = vmatprep.subr.mxu0 0.0
  %2140 = vmatpush1.msra.mxu0 0.0
  %2141 = vmatprep.subr.mxu0 0.0
  %2142 = vmatpush1.msra.mxu0 0.0
  %2143 = vmatprep.subr.mxu0 0.0
  %2144 = vmatpush1.msra.mxu0 0.0
  %2145 = vmatprep.subr.mxu0 0.0
  %2146 = vmatpush1.msra.mxu0 0.0
  %2147 = vmatprep.subr.mxu0 0.0
  %2148 = vmatpush1.msra.mxu0 0.0
  %2149 = vmatprep.subr.mxu0 0.0
  %2150 = vmatpush1.msra.mxu0 0.0
  %2151 = vmatprep.subr.mxu0 0.0
  %2152 = vmatpush1.msra.mxu0 %v2123
  %2153 = vmatprep.subr.mxu0 0.0
  %2154 = vmatpush1.msra.mxu0 %v2117
  %2155 = vmatprep.subr.mxu0 0.0
  %2156 = vmatpush1.msra.mxu0 %v2116
  %2157 = vmatprep.subr.mxu0 0.0
  %2158 = vmatpush2.msra.mxu0 0.0
  %2159 = vmatprep.subr.mxu0 0.0
  %2160 = vmatpush2.msra.mxu0 0.0
  %2161 = vmatprep.subr.mxu0 0.0
  %2162 = vmatpush2.msra.mxu0 0.0
  %2163 = vmatprep.subr.mxu0 0.0
  %2164 = vmatpush2.msra.mxu0 0.0
  %2165 = vmatprep.subr.mxu0 0.0
  %2166 = vmatpush2.msra.mxu0 0.0
  %2167 = vmatprep.subr.mxu0 0.0
  %2168 = vmatpush2.msra.mxu0 0.0
  %2169 = vmatprep.subr.mxu0 0.0
  %2170 = vmatpush2.msra.mxu0 0.0
  %2171 = vmatprep.subr.mxu0 0.0
  %2172 = vmatpush2.msra.mxu0 0.0
  %2173 = vmatprep.subr.mxu0 0.0
  %2174 = vmatpush2.msra.mxu0 0.0
  %2175 = vmatprep.subr.mxu0 0.0
  %2176 = vmatpush2.msra.mxu0 0.0
  %2177 = vmatprep.subr.mxu0 0.0
  %2178 = vmatpush2.msra.mxu0 0.0
  %2179 = vmatprep.subr.mxu0 0.0
  %2180 = vmatpush2.msra.mxu0 0.0
  %2181 = vmatprep.subr.mxu0 0.0
  %2182 = vmatpush2.msra.mxu0 0.0
  %2183 = vmatprep.subr.mxu0 0.0
  %2184 = vmatpush2.msra.mxu0 0.0
  %2185 = vmatprep.subr.mxu0 0.0
  %2186 = vmatpush2.msra.mxu0 0.0
  %2187 = vmatprep.subr.mxu0 0.0
  %2188 = vmatpush2.msra.mxu0 0.0
  %2189 = vmatprep.mubr.f32.mxu0 0.0
  %2190 = vmatmul.mubr.f32.gmra.mxu0 %v2120
  %v2191 = vpop.f32.mrf.mxu0
  %v2192 = vadd.f32 0.0, %v2191
  %v2193 = vpop.f32.mrf.mxu0
  %2194 = vdwg.mxu0
  %v2195 = vadd.f32 %v2114, %v2192
  %s2196 = scalar_lea.vmem %s3, 336
  %v2197 = vld [vmem:[%s2196] sm:$0xff]
  %v2198 = vld [vmem:[%s2196 + $0x8] sm:$0xff]
  %v2199 = vld [vmem:[%s2196 + $0x10] sm:$0xf]
  %v2201 = vsel %vm1064, %v1051, 0
  %v2204 = vsel %vm1068, %v2199, 0
  %2206 = vmatprep.subr.mxu0 0.0
  %2207 = vmatpush1.msra.mxu0 0.0
  %2208 = vmatprep.subr.mxu0 0.0
  %2209 = vmatpush1.msra.mxu0 0.0
  %2210 = vmatprep.subr.mxu0 0.0
  %2211 = vmatpush1.msra.mxu0 0.0
  %2212 = vmatprep.subr.mxu0 0.0
  %2213 = vmatpush1.msra.mxu0 0.0
  %2214 = vmatprep.subr.mxu0 0.0
  %2215 = vmatpush1.msra.mxu0 0.0
  %2216 = vmatprep.subr.mxu0 0.0
  %2217 = vmatpush1.msra.mxu0 0.0
  %2218 = vmatprep.subr.mxu0 0.0
  %2219 = vmatpush1.msra.mxu0 0.0
  %2220 = vmatprep.subr.mxu0 0.0
  %2221 = vmatpush1.msra.mxu0 0.0
  %2222 = vmatprep.subr.mxu0 0.0
  %2223 = vmatpush1.msra.mxu0 0.0
  %2224 = vmatprep.subr.mxu0 0.0
  %2225 = vmatpush1.msra.mxu0 0.0
  %2226 = vmatprep.subr.mxu0 0.0
  %2227 = vmatpush1.msra.mxu0 0.0
  %2228 = vmatprep.subr.mxu0 0.0
  %2229 = vmatpush1.msra.mxu0 0.0
  %2230 = vmatprep.subr.mxu0 0.0
  %2231 = vmatpush1.msra.mxu0 0.0
  %2232 = vmatprep.subr.mxu0 0.0
  %2233 = vmatpush1.msra.mxu0 %v2204
  %2234 = vmatprep.subr.mxu0 0.0
  %2235 = vmatpush1.msra.mxu0 %v2198
  %2236 = vmatprep.subr.mxu0 0.0
  %2237 = vmatpush1.msra.mxu0 %v2197
  %2238 = vmatprep.subr.mxu0 0.0
  %2239 = vmatpush2.msra.mxu0 0.0
  %2240 = vmatprep.subr.mxu0 0.0
  %2241 = vmatpush2.msra.mxu0 0.0
  %2242 = vmatprep.subr.mxu0 0.0
  %2243 = vmatpush2.msra.mxu0 0.0
  %2244 = vmatprep.subr.mxu0 0.0
  %2245 = vmatpush2.msra.mxu0 0.0
  %2246 = vmatprep.subr.mxu0 0.0
  %2247 = vmatpush2.msra.mxu0 0.0
  %2248 = vmatprep.subr.mxu0 0.0
  %2249 = vmatpush2.msra.mxu0 0.0
  %2250 = vmatprep.subr.mxu0 0.0
  %2251 = vmatpush2.msra.mxu0 0.0
  %2252 = vmatprep.subr.mxu0 0.0
  %2253 = vmatpush2.msra.mxu0 0.0
  %2254 = vmatprep.subr.mxu0 0.0
  %2255 = vmatpush2.msra.mxu0 0.0
  %2256 = vmatprep.subr.mxu0 0.0
  %2257 = vmatpush2.msra.mxu0 0.0
  %2258 = vmatprep.subr.mxu0 0.0
  %2259 = vmatpush2.msra.mxu0 0.0
  %2260 = vmatprep.subr.mxu0 0.0
  %2261 = vmatpush2.msra.mxu0 0.0
  %2262 = vmatprep.subr.mxu0 0.0
  %2263 = vmatpush2.msra.mxu0 0.0
  %2264 = vmatprep.subr.mxu0 0.0
  %2265 = vmatpush2.msra.mxu0 0.0
  %2266 = vmatprep.subr.mxu0 0.0
  %2267 = vmatpush2.msra.mxu0 0.0
  %2268 = vmatprep.subr.mxu0 0.0
  %2269 = vmatpush2.msra.mxu0 0.0
  %2270 = vmatprep.mubr.f32.mxu0 0.0
  %2271 = vmatmul.mubr.f32.gmra.mxu0 %v2201
  %v2272 = vpop.f32.mrf.mxu0
  %v2273 = vadd.f32 0.0, %v2272
  %v2274 = vpop.f32.mrf.mxu0
  %2275 = vdwg.mxu0
  %v2276 = vadd.f32 %v2195, %v2273
  %s2277 = scalar_lea.vmem %s3, 360
  %v2278 = vld [vmem:[%s2277] sm:$0xff]
  %v2279 = vld [vmem:[%s2277 + $0x8] sm:$0xff]
  %v2280 = vld [vmem:[%s2277 + $0x10] sm:$0xf]
  %v2282 = vsel %vm1064, %v1052, 0
  %v2285 = vsel %vm1068, %v2280, 0
  %2287 = vmatprep.subr.mxu0 0.0
  %2288 = vmatpush1.msra.mxu0 0.0
  %2289 = vmatprep.subr.mxu0 0.0
  %2290 = vmatpush1.msra.mxu0 0.0
  %2291 = vmatprep.subr.mxu0 0.0
  %2292 = vmatpush1.msra.mxu0 0.0
  %2293 = vmatprep.subr.mxu0 0.0
  %2294 = vmatpush1.msra.mxu0 0.0
  %2295 = vmatprep.subr.mxu0 0.0
  %2296 = vmatpush1.msra.mxu0 0.0
  %2297 = vmatprep.subr.mxu0 0.0
  %2298 = vmatpush1.msra.mxu0 0.0
  %2299 = vmatprep.subr.mxu0 0.0
  %2300 = vmatpush1.msra.mxu0 0.0
  %2301 = vmatprep.subr.mxu0 0.0
  %2302 = vmatpush1.msra.mxu0 0.0
  %2303 = vmatprep.subr.mxu0 0.0
  %2304 = vmatpush1.msra.mxu0 0.0
  %2305 = vmatprep.subr.mxu0 0.0
  %2306 = vmatpush1.msra.mxu0 0.0
  %2307 = vmatprep.subr.mxu0 0.0
  %2308 = vmatpush1.msra.mxu0 0.0
  %2309 = vmatprep.subr.mxu0 0.0
  %2310 = vmatpush1.msra.mxu0 0.0
  %2311 = vmatprep.subr.mxu0 0.0
  %2312 = vmatpush1.msra.mxu0 0.0
  %2313 = vmatprep.subr.mxu0 0.0
  %2314 = vmatpush1.msra.mxu0 %v2285
  %2315 = vmatprep.subr.mxu0 0.0
  %2316 = vmatpush1.msra.mxu0 %v2279
  %2317 = vmatprep.subr.mxu0 0.0
  %2318 = vmatpush1.msra.mxu0 %v2278
  %2319 = vmatprep.subr.mxu0 0.0
  %2320 = vmatpush2.msra.mxu0 0.0
  %2321 = vmatprep.subr.mxu0 0.0
  %2322 = vmatpush2.msra.mxu0 0.0
  %2323 = vmatprep.subr.mxu0 0.0
  %2324 = vmatpush2.msra.mxu0 0.0
  %2325 = vmatprep.subr.mxu0 0.0
  %2326 = vmatpush2.msra.mxu0 0.0
  %2327 = vmatprep.subr.mxu0 0.0
  %2328 = vmatpush2.msra.mxu0 0.0
  %2329 = vmatprep.subr.mxu0 0.0
  %2330 = vmatpush2.msra.mxu0 0.0
  %2331 = vmatprep.subr.mxu0 0.0
  %2332 = vmatpush2.msra.mxu0 0.0
  %2333 = vmatprep.subr.mxu0 0.0
  %2334 = vmatpush2.msra.mxu0 0.0
  %2335 = vmatprep.subr.mxu0 0.0
  %2336 = vmatpush2.msra.mxu0 0.0
  %2337 = vmatprep.subr.mxu0 0.0
  %2338 = vmatpush2.msra.mxu0 0.0
  %2339 = vmatprep.subr.mxu0 0.0
  %2340 = vmatpush2.msra.mxu0 0.0
  %2341 = vmatprep.subr.mxu0 0.0
  %2342 = vmatpush2.msra.mxu0 0.0
  %2343 = vmatprep.subr.mxu0 0.0
  %2344 = vmatpush2.msra.mxu0 0.0
  %2345 = vmatprep.subr.mxu0 0.0
  %2346 = vmatpush2.msra.mxu0 0.0
  %2347 = vmatprep.subr.mxu0 0.0
  %2348 = vmatpush2.msra.mxu0 0.0
  %2349 = vmatprep.subr.mxu0 0.0
  %2350 = vmatpush2.msra.mxu0 0.0
  %2351 = vmatprep.mubr.f32.mxu0 0.0
  %2352 = vmatmul.mubr.f32.gmra.mxu0 %v2282
  %v2353 = vpop.f32.mrf.mxu0
  %v2354 = vadd.f32 0.0, %v2353
  %v2355 = vpop.f32.mrf.mxu0
  %2356 = vdwg.mxu0
  %v2357 = vadd.f32 %v2276, %v2354
  %v2358 = vmax.f32 %v2357, 0.0
  %v2359 = vld [vmem:[%s5] sm:$0xff]
  %v2360 = vld [vmem:[%s5 + $0x8] sm:$0xff]
  %v2361 = vld [vmem:[%s5 + $0x10] sm:$0xff]
  %v2362 = vld [vmem:[%s5 + $0x18] sm:$0xff]
  %v2363 = vld [vmem:[%s5 + $0x20] sm:$0xff]
  %v2364 = vld [vmem:[%s5 + $0x28] sm:$0xff]
  %v2365 = vld [vmem:[%s5 + $0x30] sm:$0x3]
  %v2366 = vld [vmem:[%s6] sm:$0x1]
  %v2368 = vlaneseq
  %v2369 = vshrl.u32 %v2368, 7
  %v2370 = vsub.s32 0, %v2369
  %v2371 = vrot.slane %v2366, %v2370
  %vm2373 = vcmask 408576
  %v2375 = vsel %vm2373, %v2358, 0
  %v2378 = vsel %vm139, %v2365, 0
  %2380 = vmatprep.subr.mxu0 0.0
  %2381 = vmatpush1.msra.mxu0 0.0
  %2382 = vmatprep.subr.mxu0 0.0
  %2383 = vmatpush1.msra.mxu0 0.0
  %2384 = vmatprep.subr.mxu0 0.0
  %2385 = vmatpush1.msra.mxu0 0.0
  %2386 = vmatprep.subr.mxu0 0.0
  %2387 = vmatpush1.msra.mxu0 0.0
  %2388 = vmatprep.subr.mxu0 0.0
  %2389 = vmatpush1.msra.mxu0 0.0
  %2390 = vmatprep.subr.mxu0 0.0
  %2391 = vmatpush1.msra.mxu0 0.0
  %2392 = vmatprep.subr.mxu0 0.0
  %2393 = vmatpush1.msra.mxu0 0.0
  %2394 = vmatprep.subr.mxu0 0.0
  %2395 = vmatpush1.msra.mxu0 0.0
  %2396 = vmatprep.subr.mxu0 0.0
  %2397 = vmatpush1.msra.mxu0 0.0
  %2398 = vmatprep.subr.mxu0 0.0
  %2399 = vmatpush1.msra.mxu0 %v2378
  %2400 = vmatprep.subr.mxu0 0.0
  %2401 = vmatpush1.msra.mxu0 %v2364
  %2402 = vmatprep.subr.mxu0 0.0
  %2403 = vmatpush1.msra.mxu0 %v2363
  %2404 = vmatprep.subr.mxu0 0.0
  %2405 = vmatpush1.msra.mxu0 %v2362
  %2406 = vmatprep.subr.mxu0 0.0
  %2407 = vmatpush1.msra.mxu0 %v2361
  %2408 = vmatprep.subr.mxu0 0.0
  %2409 = vmatpush1.msra.mxu0 %v2360
  %2410 = vmatprep.subr.mxu0 0.0
  %2411 = vmatpush1.msra.mxu0 %v2359
  %2412 = vmatprep.subr.mxu0 0.0
  %2413 = vmatpush2.msra.mxu0 0.0
  %2414 = vmatprep.subr.mxu0 0.0
  %2415 = vmatpush2.msra.mxu0 0.0
  %2416 = vmatprep.subr.mxu0 0.0
  %2417 = vmatpush2.msra.mxu0 0.0
  %2418 = vmatprep.subr.mxu0 0.0
  %2419 = vmatpush2.msra.mxu0 0.0
  %2420 = vmatprep.subr.mxu0 0.0
  %2421 = vmatpush2.msra.mxu0 0.0
  %2422 = vmatprep.subr.mxu0 0.0
  %2423 = vmatpush2.msra.mxu0 0.0
  %2424 = vmatprep.subr.mxu0 0.0
  %2425 = vmatpush2.msra.mxu0 0.0
  %2426 = vmatprep.subr.mxu0 0.0
  %2427 = vmatpush2.msra.mxu0 0.0
  %2428 = vmatprep.subr.mxu0 0.0
  %2429 = vmatpush2.msra.mxu0 0.0
  %2430 = vmatprep.subr.mxu0 0.0
  %2431 = vmatpush2.msra.mxu0 0.0
  %2432 = vmatprep.subr.mxu0 0.0
  %2433 = vmatpush2.msra.mxu0 0.0
  %2434 = vmatprep.subr.mxu0 0.0
  %2435 = vmatpush2.msra.mxu0 0.0
  %2436 = vmatprep.subr.mxu0 0.0
  %2437 = vmatpush2.msra.mxu0 0.0
  %2438 = vmatprep.subr.mxu0 0.0
  %2439 = vmatpush2.msra.mxu0 0.0
  %2440 = vmatprep.subr.mxu0 0.0
  %2441 = vmatpush2.msra.mxu0 0.0
  %2442 = vmatprep.subr.mxu0 0.0
  %2443 = vmatpush2.msra.mxu0 0.0
  %2444 = vmatprep.mubr.f32.mxu0 0.0
  %2445 = vmatmul.mubr.f32.gmra.mxu0 %v2375
  %v2446 = vpop.f32.mrf.mxu0
  %v2447 = vadd.f32 %v2371, %v2446
  %v2448 = vpop.f32.mrf.mxu0
  %2449 = vdwg.mxu0
  %v2450 = vtanh.pop %v2447
  %vm2451 = vcmask 261120
  %2452 = vst.msk [vmem:[%s7] sm:$0xff] %vm2451, %v2450
  // Predicated region
  $region30: #{bounded_grid_loc_net_forward.3} parent=0 // pred_check
    _
  $region31: #{bounded_grid_loc_net_forward.3} parent=0 // pred_check_branch
    %2454 = sbr.rel (0) target = $region33
  $region32: #{bounded_grid_loc_net_forward.3} parent=0 // pred_region
    _
  $region33: #{bounded_grid_loc_net_forward.3} parent=0 // pred_fallthru
    _
  // Predicated region
  $region34: #{bounded_grid_loc_net_forward.3} parent=0 // pred_check
    _
  $region35: #{bounded_grid_loc_net_forward.3} parent=0 // pred_check_branch
    %2456 = sbr.rel (0) target = $region37
  $region36: #{bounded_grid_loc_net_forward.3} parent=0 // pred_region
    _
  $region37: #{bounded_grid_loc_net_forward.3} parent=0 // pred_fallthru
    _

</llo_original>
